<compile_context>
chip_gen: v7x
topology: tpu7x:2x2x1
jax: 0.10.0
libtpu: 0.0.40
codegen_flags: <defaults>
</compile_context>

<pallas_src>
import math

import jax
import jax.numpy as jnp
from jax import lax
from jax.experimental import pallas as pl
from jax.experimental.pallas import tpu as pltpu

KERNEL_SIZE = 5
PAD = 2


def _shift_time(h, d, length):
    """Return s with s[:, t] = h[:, t + d], zero-filled outside [0, length)."""
    if d == 0:
        return h
    rolled = pltpu.roll(h, (-d) % length, 1)                 # XLU lane rotation
    col = lax.broadcasted_iota(jnp.int32, h.shape, 1)
    if d > 0:
        mask = col < (length - d)
    else:
        mask = col >= (-d)
    return jnp.where(mask, rolled, jnp.zeros_like(rolled))


def _conv1d_ae_kernel(alphas_ref, x_ref, *wb_and_out):
    """One sample per grid step: x_ref block is [1, Cin, L]; weights stay resident."""
    out_ref = wb_and_out[-1]
    wb = wb_and_out[:-1]                       # w1, b1, ..., w8, b8
    n_layers = len(wb) // 2

    h = x_ref[0].astype(jnp.float32)           # [Cin, L]
    length = h.shape[-1]

    for i in range(n_layers):                  # static unroll -> straight-line code
        w_ref = wb[2 * i]                      # [K, Cout, Cin]  (bf16, VMEM-resident)
        b_ref = wb[2 * i + 1]                  # [Cout, 1]       (f32)
        cout = w_ref.shape[1]
        acc = jnp.zeros((cout, length), jnp.float32)
        for j in range(KERNEL_SIZE):           # 5 taps -> 5 MXU matmuls, f32 accumulation
            hs = _shift_time(h, j - PAD, length).astype(w_ref.dtype)
            acc = acc + jnp.dot(w_ref[j], hs, preferred_element_type=jnp.float32)
        h = acc + b_ref[...]                   # bias broadcast over lanes (f32)
        if i < n_layers - 1:                   # PReLU after every layer except the last
            a = alphas_ref[i]
            h = jnp.where(h > 0, h, a * h)

    out_ref[0] = h.astype(out_ref.dtype)


def conv1d_autoencoder_forward(x, params):
    """x: [N, Cin, L] float32. Returns (output [N, Cin, L], 0) like the PyTorch module."""
    n, c_in, length = x.shape
    eff_w = params["eff_weights"]              # list of [K, Cout, Cin] bf16
    biases = params["biases"]                  # list of [Cout, 1] f32
    alphas = params["alphas"]                  # (n_layers - 1,) f32

    wb_args = []
    in_specs = [
        pl.BlockSpec(memory_space=pltpu.MemorySpace.SMEM),        # PReLU slopes (scalars)
        pl.BlockSpec((1, c_in, length), lambda i: (i, 0, 0)),     # per-sample activation tile
    ]
    for w, b in zip(eff_w, biases):
        wb_args += [w, b]
        in_specs.append(pl.BlockSpec(w.shape, lambda i: (0, 0, 0)))   # constant index -> resident
        in_specs.append(pl.BlockSpec(b.shape, lambda i: (0, 0)))      # constant index -> resident

    out = pl.pallas_call(
        _conv1d_ae_kernel,
        out_shape=jax.ShapeDtypeStruct((n, c_in, length), jnp.float32),
        grid=(n,),
        in_specs=in_specs,
        out_specs=pl.BlockSpec((1, c_in, length), lambda i: (i, 0, 0)),
        compiler_params=pltpu.CompilerParams(
            dimension_semantics=("parallel",),        # megacore split on v7x
            vmem_limit_bytes=48 * 1024 * 1024,        # explicit budget (v5e default is 16 MiB)
        ),
    )(alphas, x, *wb_args)
    return out, 0


def init_torch_params(key, in_channels, hidden_channels):
    """Deterministic init in native PyTorch layouts:
       Conv1d weight:          [Cout, Cin, K]
       ConvTranspose1d weight: [Cin, Cout, K]
    """
    h = hidden_channels
    conv_dims = [(in_channels, 8 * h), (8 * h, 4 * h), (4 * h, 2 * h), (2 * h, h)]
    deconv_dims = [(h, 2 * h), (2 * h, 4 * h), (4 * h, 8 * h), (8 * h, in_channels)]
    weights, biases = [], []
    for li, (cin, cout) in enumerate(conv_dims + deconv_dims):
        key, wk, bk = jax.random.split(key, 3)
        fan_in, fan_out = cin * KERNEL_SIZE, cout * KERNEL_SIZE
        limit = math.sqrt(6.0 / (fan_in + fan_out))           # xavier-uniform
        if li < len(conv_dims):
            shape = (cout, cin, KERNEL_SIZE)                  # Conv1d
        else:
            shape = (cin, cout, KERNEL_SIZE)                  # ConvTranspose1d
        weights.append(jax.random.uniform(wk, shape, jnp.float32, -limit, limit))
        biases.append(jax.random.uniform(bk, (cout,), jnp.float32, -0.1, 0.1))
    alphas = jnp.full((len(weights) - 1,), 0.25, jnp.float32)  # nn.PReLU() default slope
    return weights, biases, alphas


def prepare_kernel_params(weights, biases, alphas, compute_dtype=jnp.bfloat16):
    """Fold conv / transpose-conv into one effective [K, Cout, Cin] tensor per layer (bf16)."""
    n_conv = len(weights) // 2
    eff_w, eff_b = [], []
    for li, w in enumerate(weights):
        if li < n_conv:
            we = jnp.transpose(w, (2, 0, 1))                         # [K, Cout, Cin]
        else:
            # ConvTranspose1d(stride=1, pad=2, k=5) == conv with flipped taps, swapped channels.
            we = jnp.transpose(jnp.flip(w, axis=2), (2, 1, 0))        # [K, Cout, Cin]
        eff_w.append(we.astype(compute_dtype))
        eff_b.append(biases[li].reshape(-1, 1).astype(jnp.float32))
    return {"eff_weights": eff_w, "biases": eff_b, "alphas": alphas.astype(jnp.float32)}


def reference_forward(x, weights, biases, alphas, compute_dtype=jnp.bfloat16):
    """Plain-JAX reference via lax.conv (same bf16-operand / f32-accumulate precision)."""
    n_conv = len(weights) // 2
    h = x.astype(jnp.float32)
    for li, w in enumerate(weights):
        if li < n_conv:
            wc = w                                                    # [Cout, Cin, K]
        else:
            wc = jnp.transpose(jnp.flip(w, axis=2), (1, 0, 2))        # -> [Cout, Cin, K]
        y = lax.conv_general_dilated(
            h.astype(compute_dtype), wc.astype(compute_dtype),
            window_strides=(1,), padding=[(PAD, PAD)],
            dimension_numbers=("NCH", "OIH", "NCH"),
            preferred_element_type=jnp.float32)
        y = y + biases[li].reshape(1, -1, 1)
        if li < len(weights) - 1:
            y = jnp.where(y > 0, y, alphas[li] * y)
        h = y
    return h


if __name__ == "__main__":
    key = jax.random.PRNGKey(0)

    batch = 2
    in_channels = 8
    hidden_channels = 16       # layer widths: 128, 64, 32, 16, 32, 64, 128, 8
    seq_len = 256              # multiple of 128 -> lane-dense activations & stores

    key, pk, xk = jax.random.split(key, 3)
    weights, biases, alphas = init_torch_params(pk, in_channels, hidden_channels)
    params = prepare_kernel_params(weights, biases, alphas)

    x = jax.random.normal(xk, (batch, in_channels, seq_len), dtype=jnp.float32)

    out, zero = conv1d_autoencoder_forward(x, params)
    out = jax.block_until_ready(out)

    ref = reference_forward(x, weights, biases, alphas)
    assert out.shape == (batch, in_channels, seq_len)
    assert zero == 0
    max_diff = float(jnp.max(jnp.abs(out - ref)))
    assert jnp.allclose(out, ref, atol=1e-2, rtol=1e-2), f"mismatch vs reference (max abs diff={max_diff})"

    # TODO(synk): fit()/Adam/StepLR training loop and weights_init are host-side training
    # utilities, not part of the forward pass, and are intentionally not implemented in Pallas.
    print("KERNEL_OK")
</pallas_src>

<mosaic_0001>
module attributes {stable_mosaic.version = 11 : i64} {
  func.func @_conv1d_ae_kernel(%arg0: i32, %arg1: memref<7xf32, #tpu.memory_space<smem>>, %arg2: memref<1x8x256xf32, #tpu.memory_space<vmem>>, %arg3: memref<5x128x8xbf16, #tpu.memory_space<vmem>>, %arg4: memref<128x1xf32, #tpu.memory_space<vmem>>, %arg5: memref<5x64x128xbf16, #tpu.memory_space<vmem>>, %arg6: memref<64x1xf32, #tpu.memory_space<vmem>>, %arg7: memref<5x32x64xbf16, #tpu.memory_space<vmem>>, %arg8: memref<32x1xf32, #tpu.memory_space<vmem>>, %arg9: memref<5x16x32xbf16, #tpu.memory_space<vmem>>, %arg10: memref<16x1xf32, #tpu.memory_space<vmem>>, %arg11: memref<5x32x16xbf16, #tpu.memory_space<vmem>>, %arg12: memref<32x1xf32, #tpu.memory_space<vmem>>, %arg13: memref<5x64x32xbf16, #tpu.memory_space<vmem>>, %arg14: memref<64x1xf32, #tpu.memory_space<vmem>>, %arg15: memref<5x128x64xbf16, #tpu.memory_space<vmem>>, %arg16: memref<128x1xf32, #tpu.memory_space<vmem>>, %arg17: memref<5x8x128xbf16, #tpu.memory_space<vmem>>, %arg18: memref<8x1xf32, #tpu.memory_space<vmem>>, %arg19: memref<1x8x256xf32, #tpu.memory_space<vmem>>) attributes {dimension_semantics = [#tpu.dimension_semantics<parallel>], iteration_bounds = array<i64: 2>, scalar_prefetch = 0 : i64, scratch_operands = 0 : i64, tpu.core_type = #tpu.core_type<tc>, window_params = [{transform_indices = @transform_0, window_bounds = array<i64: 7>}, {transform_indices = @transform_1, window_bounds = array<i64: 1, 8, 256>}, {pipeline_mode = #tpu.pipeline_mode<synchronous>, transform_indices = @transform_2, window_bounds = array<i64: 5, 128, 8>}, {pipeline_mode = #tpu.pipeline_mode<synchronous>, transform_indices = @transform_3, window_bounds = array<i64: 128, 1>}, {pipeline_mode = #tpu.pipeline_mode<synchronous>, transform_indices = @transform_4, window_bounds = array<i64: 5, 64, 128>}, {pipeline_mode = #tpu.pipeline_mode<synchronous>, transform_indices = @transform_5, window_bounds = array<i64: 64, 1>}, {pipeline_mode = #tpu.pipeline_mode<synchronous>, transform_indices = @transform_6, window_bounds = array<i64: 5, 32, 64>}, {pipeline_mode = #tpu.pipeline_mode<synchronous>, transform_indices = @transform_7, window_bounds = array<i64: 32, 1>}, {pipeline_mode = #tpu.pipeline_mode<synchronous>, transform_indices = @transform_8, window_bounds = array<i64: 5, 16, 32>}, {pipeline_mode = #tpu.pipeline_mode<synchronous>, transform_indices = @transform_9, window_bounds = array<i64: 16, 1>}, {pipeline_mode = #tpu.pipeline_mode<synchronous>, transform_indices = @transform_10, window_bounds = array<i64: 5, 32, 16>}, {pipeline_mode = #tpu.pipeline_mode<synchronous>, transform_indices = @transform_11, window_bounds = array<i64: 32, 1>}, {pipeline_mode = #tpu.pipeline_mode<synchronous>, transform_indices = @transform_12, window_bounds = array<i64: 5, 64, 32>}, {pipeline_mode = #tpu.pipeline_mode<synchronous>, transform_indices = @transform_13, window_bounds = array<i64: 64, 1>}, {pipeline_mode = #tpu.pipeline_mode<synchronous>, transform_indices = @transform_14, window_bounds = array<i64: 5, 128, 64>}, {pipeline_mode = #tpu.pipeline_mode<synchronous>, transform_indices = @transform_15, window_bounds = array<i64: 128, 1>}, {pipeline_mode = #tpu.pipeline_mode<synchronous>, transform_indices = @transform_16, window_bounds = array<i64: 5, 8, 128>}, {pipeline_mode = #tpu.pipeline_mode<synchronous>, transform_indices = @transform_17, window_bounds = array<i64: 8, 1>}, {transform_indices = @transform_18, window_bounds = array<i64: 1, 8, 256>}]} {
    %c0 = arith.constant 0 : index
    %c0_0 = arith.constant 0 : index
    %c0_1 = arith.constant 0 : index
    %0 = vector.load %arg2[%c0, %c0_0, %c0_1] : memref<1x8x256xf32, #tpu.memory_space<vmem>>, vector<1x8x256xf32>
    %1 = vector.shape_cast %0 : vector<1x8x256xf32> to vector<8x256xf32>
    %cst = arith.constant 0.000000e+00 : f32
    %2 = vector.broadcast %cst : f32 to vector<128x256xf32>
    %c2_i32 = arith.constant 2 : i32
    %3 = tpu.dynamic_rotate %1 by %c2_i32 dim 1 : vector<8x256xf32>, i32 -> vector<8x256xf32>
    %4 = tpu.iota {dimensions = array<i32: 1>} : vector<8x256xi32>
    %c2_i32_2 = arith.constant 2 : i32
    %5 = vector.broadcast %c2_i32_2 : i32 to vector<8x256xi32>
    %6 = arith.cmpi sge, %4, %5 : vector<8x256xi32>
    %cst_3 = arith.constant 0.000000e+00 : f32
    %7 = vector.broadcast %cst_3 : f32 to vector<8x256xf32>
    %8 = arith.select %6, %3, %7 : vector<8x256xi1>, vector<8x256xf32>
    %9 = arith.truncf %8 : vector<8x256xf32> to vector<8x256xbf16>
    %c0_4 = arith.constant 0 : index
    %c0_5 = arith.constant 0 : index
    %c0_6 = arith.constant 0 : index
    %10 = vector.load %arg3[%c0_4, %c0_5, %c0_6] : memref<5x128x8xbf16, #tpu.memory_space<vmem>>, vector<1x128x8xbf16>
    %11 = vector.shape_cast %10 : vector<1x128x8xbf16> to vector<128x8xbf16>
    %cst_7 = arith.constant dense<0.000000e+00> : vector<128x256xf32>
    %12 = tpu.matmul %11, %9, %cst_7 {dimension_numbers = #tpu.dot_dimension_numbers<[1], [0], [0], [1], [0, 0, 1, 1], [], []>} : vector<128x8xbf16>, vector<8x256xbf16>, vector<128x256xf32> -> vector<128x256xf32>
    %13 = arith.addf %2, %12 : vector<128x256xf32>
    %c1_i32 = arith.constant 1 : i32
    %14 = tpu.dynamic_rotate %1 by %c1_i32 dim 1 : vector<8x256xf32>, i32 -> vector<8x256xf32>
    %15 = tpu.iota {dimensions = array<i32: 1>} : vector<8x256xi32>
    %c1_i32_8 = arith.constant 1 : i32
    %16 = vector.broadcast %c1_i32_8 : i32 to vector<8x256xi32>
    %17 = arith.cmpi sge, %15, %16 : vector<8x256xi32>
    %cst_9 = arith.constant 0.000000e+00 : f32
    %18 = vector.broadcast %cst_9 : f32 to vector<8x256xf32>
    %19 = arith.select %17, %14, %18 : vector<8x256xi1>, vector<8x256xf32>
    %20 = arith.truncf %19 : vector<8x256xf32> to vector<8x256xbf16>
    %c1 = arith.constant 1 : index
    %c0_10 = arith.constant 0 : index
    %c0_11 = arith.constant 0 : index
    %21 = vector.load %arg3[%c1, %c0_10, %c0_11] : memref<5x128x8xbf16, #tpu.memory_space<vmem>>, vector<1x128x8xbf16>
    %22 = vector.shape_cast %21 : vector<1x128x8xbf16> to vector<128x8xbf16>
    %cst_12 = arith.constant dense<0.000000e+00> : vector<128x256xf32>
    %23 = tpu.matmul %22, %20, %cst_12 {dimension_numbers = #tpu.dot_dimension_numbers<[1], [0], [0], [1], [0, 0, 1, 1], [], []>} : vector<128x8xbf16>, vector<8x256xbf16>, vector<128x256xf32> -> vector<128x256xf32>
    %24 = arith.addf %13, %23 : vector<128x256xf32>
    %25 = arith.truncf %1 : vector<8x256xf32> to vector<8x256xbf16>
    %c2 = arith.constant 2 : index
    %c0_13 = arith.constant 0 : index
    %c0_14 = arith.constant 0 : index
    %26 = vector.load %arg3[%c2, %c0_13, %c0_14] : memref<5x128x8xbf16, #tpu.memory_space<vmem>>, vector<1x128x8xbf16>
    %27 = vector.shape_cast %26 : vector<1x128x8xbf16> to vector<128x8xbf16>
    %cst_15 = arith.constant dense<0.000000e+00> : vector<128x256xf32>
    %28 = tpu.matmul %27, %25, %cst_15 {dimension_numbers = #tpu.dot_dimension_numbers<[1], [0], [0], [1], [0, 0, 1, 1], [], []>} : vector<128x8xbf16>, vector<8x256xbf16>, vector<128x256xf32> -> vector<128x256xf32>
    %29 = arith.addf %24, %28 : vector<128x256xf32>
    %c255_i32 = arith.constant 255 : i32
    %30 = tpu.dynamic_rotate %1 by %c255_i32 dim 1 : vector<8x256xf32>, i32 -> vector<8x256xf32>
    %31 = tpu.iota {dimensions = array<i32: 1>} : vector<8x256xi32>
    %c255_i32_16 = arith.constant 255 : i32
    %32 = vector.broadcast %c255_i32_16 : i32 to vector<8x256xi32>
    %33 = arith.cmpi slt, %31, %32 : vector<8x256xi32>
    %cst_17 = arith.constant 0.000000e+00 : f32
    %34 = vector.broadcast %cst_17 : f32 to vector<8x256xf32>
    %35 = arith.select %33, %30, %34 : vector<8x256xi1>, vector<8x256xf32>
    %36 = arith.truncf %35 : vector<8x256xf32> to vector<8x256xbf16>
    %c3 = arith.constant 3 : index
    %c0_18 = arith.constant 0 : index
    %c0_19 = arith.constant 0 : index
    %37 = vector.load %arg3[%c3, %c0_18, %c0_19] : memref<5x128x8xbf16, #tpu.memory_space<vmem>>, vector<1x128x8xbf16>
    %38 = vector.shape_cast %37 : vector<1x128x8xbf16> to vector<128x8xbf16>
    %cst_20 = arith.constant dense<0.000000e+00> : vector<128x256xf32>
    %39 = tpu.matmul %38, %36, %cst_20 {dimension_numbers = #tpu.dot_dimension_numbers<[1], [0], [0], [1], [0, 0, 1, 1], [], []>} : vector<128x8xbf16>, vector<8x256xbf16>, vector<128x256xf32> -> vector<128x256xf32>
    %40 = arith.addf %29, %39 : vector<128x256xf32>
    %c254_i32 = arith.constant 254 : i32
    %41 = tpu.dynamic_rotate %1 by %c254_i32 dim 1 : vector<8x256xf32>, i32 -> vector<8x256xf32>
    %42 = tpu.iota {dimensions = array<i32: 1>} : vector<8x256xi32>
    %c254_i32_21 = arith.constant 254 : i32
    %43 = vector.broadcast %c254_i32_21 : i32 to vector<8x256xi32>
    %44 = arith.cmpi slt, %42, %43 : vector<8x256xi32>
    %cst_22 = arith.constant 0.000000e+00 : f32
    %45 = vector.broadcast %cst_22 : f32 to vector<8x256xf32>
    %46 = arith.select %44, %41, %45 : vector<8x256xi1>, vector<8x256xf32>
    %47 = arith.truncf %46 : vector<8x256xf32> to vector<8x256xbf16>
    %c4 = arith.constant 4 : index
    %c0_23 = arith.constant 0 : index
    %c0_24 = arith.constant 0 : index
    %48 = vector.load %arg3[%c4, %c0_23, %c0_24] : memref<5x128x8xbf16, #tpu.memory_space<vmem>>, vector<1x128x8xbf16>
    %49 = vector.shape_cast %48 : vector<1x128x8xbf16> to vector<128x8xbf16>
    %cst_25 = arith.constant dense<0.000000e+00> : vector<128x256xf32>
    %50 = tpu.matmul %49, %47, %cst_25 {dimension_numbers = #tpu.dot_dimension_numbers<[1], [0], [0], [1], [0, 0, 1, 1], [], []>} : vector<128x8xbf16>, vector<8x256xbf16>, vector<128x256xf32> -> vector<128x256xf32>
    %51 = arith.addf %40, %50 : vector<128x256xf32>
    %c0_26 = arith.constant 0 : index
    %c0_27 = arith.constant 0 : index
    %52 = vector.load %arg4[%c0_26, %c0_27] : memref<128x1xf32, #tpu.memory_space<vmem>>, vector<128x1xf32>
    %53 = vector.broadcast %52 : vector<128x1xf32> to vector<128x256xf32>
    %54 = arith.addf %51, %53 : vector<128x256xf32>
    %c0_28 = arith.constant 0 : index
    %55 = memref.load %arg1[%c0_28] : memref<7xf32, #tpu.memory_space<smem>>
    %cst_29 = arith.constant 0.000000e+00 : f32
    %56 = vector.broadcast %cst_29 : f32 to vector<128x256xf32>
    %57 = arith.cmpf ogt, %54, %56 : vector<128x256xf32>
    %58 = vector.broadcast %55 : f32 to vector<128x256xf32>
    %59 = arith.mulf %58, %54 : vector<128x256xf32>
    %60 = arith.select %57, %54, %59 : vector<128x256xi1>, vector<128x256xf32>
    %cst_30 = arith.constant 0.000000e+00 : f32
    %61 = vector.broadcast %cst_30 : f32 to vector<64x256xf32>
    %c2_i32_31 = arith.constant 2 : i32
    %62 = tpu.dynamic_rotate %60 by %c2_i32_31 dim 1 : vector<128x256xf32>, i32 -> vector<128x256xf32>
    %63 = tpu.iota {dimensions = array<i32: 1>} : vector<128x256xi32>
    %c2_i32_32 = arith.constant 2 : i32
    %64 = vector.broadcast %c2_i32_32 : i32 to vector<128x256xi32>
    %65 = arith.cmpi sge, %63, %64 : vector<128x256xi32>
    %cst_33 = arith.constant 0.000000e+00 : f32
    %66 = vector.broadcast %cst_33 : f32 to vector<128x256xf32>
    %67 = arith.select %65, %62, %66 : vector<128x256xi1>, vector<128x256xf32>
    %68 = arith.truncf %67 : vector<128x256xf32> to vector<128x256xbf16>
    %c0_34 = arith.constant 0 : index
    %c0_35 = arith.constant 0 : index
    %c0_36 = arith.constant 0 : index
    %69 = vector.load %arg5[%c0_34, %c0_35, %c0_36] : memref<5x64x128xbf16, #tpu.memory_space<vmem>>, vector<1x64x128xbf16>
    %70 = vector.shape_cast %69 : vector<1x64x128xbf16> to vector<64x128xbf16>
    %cst_37 = arith.constant dense<0.000000e+00> : vector<64x256xf32>
    %71 = tpu.matmul %70, %68, %cst_37 {dimension_numbers = #tpu.dot_dimension_numbers<[1], [0], [0], [1], [0, 0, 1, 1], [], []>} : vector<64x128xbf16>, vector<128x256xbf16>, vector<64x256xf32> -> vector<64x256xf32>
    %72 = arith.addf %61, %71 : vector<64x256xf32>
    %c1_i32_38 = arith.constant 1 : i32
    %73 = tpu.dynamic_rotate %60 by %c1_i32_38 dim 1 : vector<128x256xf32>, i32 -> vector<128x256xf32>
    %74 = tpu.iota {dimensions = array<i32: 1>} : vector<128x256xi32>
    %c1_i32_39 = arith.constant 1 : i32
    %75 = vector.broadcast %c1_i32_39 : i32 to vector<128x256xi32>
    %76 = arith.cmpi sge, %74, %75 : vector<128x256xi32>
    %cst_40 = arith.constant 0.000000e+00 : f32
    %77 = vector.broadcast %cst_40 : f32 to vector<128x256xf32>
    %78 = arith.select %76, %73, %77 : vector<128x256xi1>, vector<128x256xf32>
    %79 = arith.truncf %78 : vector<128x256xf32> to vector<128x256xbf16>
    %c1_41 = arith.constant 1 : index
    %c0_42 = arith.constant 0 : index
    %c0_43 = arith.constant 0 : index
    %80 = vector.load %arg5[%c1_41, %c0_42, %c0_43] : memref<5x64x128xbf16, #tpu.memory_space<vmem>>, vector<1x64x128xbf16>
    %81 = vector.shape_cast %80 : vector<1x64x128xbf16> to vector<64x128xbf16>
    %cst_44 = arith.constant dense<0.000000e+00> : vector<64x256xf32>
    %82 = tpu.matmul %81, %79, %cst_44 {dimension_numbers = #tpu.dot_dimension_numbers<[1], [0], [0], [1], [0, 0, 1, 1], [], []>} : vector<64x128xbf16>, vector<128x256xbf16>, vector<64x256xf32> -> vector<64x256xf32>
    %83 = arith.addf %72, %82 : vector<64x256xf32>
    %84 = arith.truncf %60 : vector<128x256xf32> to vector<128x256xbf16>
    %c2_45 = arith.constant 2 : index
    %c0_46 = arith.constant 0 : index
    %c0_47 = arith.constant 0 : index
    %85 = vector.load %arg5[%c2_45, %c0_46, %c0_47] : memref<5x64x128xbf16, #tpu.memory_space<vmem>>, vector<1x64x128xbf16>
    %86 = vector.shape_cast %85 : vector<1x64x128xbf16> to vector<64x128xbf16>
    %cst_48 = arith.constant dense<0.000000e+00> : vector<64x256xf32>
    %87 = tpu.matmul %86, %84, %cst_48 {dimension_numbers = #tpu.dot_dimension_numbers<[1], [0], [0], [1], [0, 0, 1, 1], [], []>} : vector<64x128xbf16>, vector<128x256xbf16>, vector<64x256xf32> -> vector<64x256xf32>
    %88 = arith.addf %83, %87 : vector<64x256xf32>
    %c255_i32_49 = arith.constant 255 : i32
    %89 = tpu.dynamic_rotate %60 by %c255_i32_49 dim 1 : vector<128x256xf32>, i32 -> vector<128x256xf32>
    %90 = tpu.iota {dimensions = array<i32: 1>} : vector<128x256xi32>
    %c255_i32_50 = arith.constant 255 : i32
    %91 = vector.broadcast %c255_i32_50 : i32 to vector<128x256xi32>
    %92 = arith.cmpi slt, %90, %91 : vector<128x256xi32>
    %cst_51 = arith.constant 0.000000e+00 : f32
    %93 = vector.broadcast %cst_51 : f32 to vector<128x256xf32>
    %94 = arith.select %92, %89, %93 : vector<128x256xi1>, vector<128x256xf32>
    %95 = arith.truncf %94 : vector<128x256xf32> to vector<128x256xbf16>
    %c3_52 = arith.constant 3 : index
    %c0_53 = arith.constant 0 : index
    %c0_54 = arith.constant 0 : index
    %96 = vector.load %arg5[%c3_52, %c0_53, %c0_54] : memref<5x64x128xbf16, #tpu.memory_space<vmem>>, vector<1x64x128xbf16>
    %97 = vector.shape_cast %96 : vector<1x64x128xbf16> to vector<64x128xbf16>
    %cst_55 = arith.constant dense<0.000000e+00> : vector<64x256xf32>
    %98 = tpu.matmul %97, %95, %cst_55 {dimension_numbers = #tpu.dot_dimension_numbers<[1], [0], [0], [1], [0, 0, 1, 1], [], []>} : vector<64x128xbf16>, vector<128x256xbf16>, vector<64x256xf32> -> vector<64x256xf32>
    %99 = arith.addf %88, %98 : vector<64x256xf32>
    %c254_i32_56 = arith.constant 254 : i32
    %100 = tpu.dynamic_rotate %60 by %c254_i32_56 dim 1 : vector<128x256xf32>, i32 -> vector<128x256xf32>
    %101 = tpu.iota {dimensions = array<i32: 1>} : vector<128x256xi32>
    %c254_i32_57 = arith.constant 254 : i32
    %102 = vector.broadcast %c254_i32_57 : i32 to vector<128x256xi32>
    %103 = arith.cmpi slt, %101, %102 : vector<128x256xi32>
    %cst_58 = arith.constant 0.000000e+00 : f32
    %104 = vector.broadcast %cst_58 : f32 to vector<128x256xf32>
    %105 = arith.select %103, %100, %104 : vector<128x256xi1>, vector<128x256xf32>
    %106 = arith.truncf %105 : vector<128x256xf32> to vector<128x256xbf16>
    %c4_59 = arith.constant 4 : index
    %c0_60 = arith.constant 0 : index
    %c0_61 = arith.constant 0 : index
    %107 = vector.load %arg5[%c4_59, %c0_60, %c0_61] : memref<5x64x128xbf16, #tpu.memory_space<vmem>>, vector<1x64x128xbf16>
    %108 = vector.shape_cast %107 : vector<1x64x128xbf16> to vector<64x128xbf16>
    %cst_62 = arith.constant dense<0.000000e+00> : vector<64x256xf32>
    %109 = tpu.matmul %108, %106, %cst_62 {dimension_numbers = #tpu.dot_dimension_numbers<[1], [0], [0], [1], [0, 0, 1, 1], [], []>} : vector<64x128xbf16>, vector<128x256xbf16>, vector<64x256xf32> -> vector<64x256xf32>
    %110 = arith.addf %99, %109 : vector<64x256xf32>
    %c0_63 = arith.constant 0 : index
    %c0_64 = arith.constant 0 : index
    %111 = vector.load %arg6[%c0_63, %c0_64] : memref<64x1xf32, #tpu.memory_space<vmem>>, vector<64x1xf32>
    %112 = vector.broadcast %111 : vector<64x1xf32> to vector<64x256xf32>
    %113 = arith.addf %110, %112 : vector<64x256xf32>
    %c1_65 = arith.constant 1 : index
    %114 = memref.load %arg1[%c1_65] : memref<7xf32, #tpu.memory_space<smem>>
    %cst_66 = arith.constant 0.000000e+00 : f32
    %115 = vector.broadcast %cst_66 : f32 to vector<64x256xf32>
    %116 = arith.cmpf ogt, %113, %115 : vector<64x256xf32>
    %117 = vector.broadcast %114 : f32 to vector<64x256xf32>
    %118 = arith.mulf %117, %113 : vector<64x256xf32>
    %119 = arith.select %116, %113, %118 : vector<64x256xi1>, vector<64x256xf32>
    %cst_67 = arith.constant 0.000000e+00 : f32
    %120 = vector.broadcast %cst_67 : f32 to vector<32x256xf32>
    %c2_i32_68 = arith.constant 2 : i32
    %121 = tpu.dynamic_rotate %119 by %c2_i32_68 dim 1 : vector<64x256xf32>, i32 -> vector<64x256xf32>
    %122 = tpu.iota {dimensions = array<i32: 1>} : vector<64x256xi32>
    %c2_i32_69 = arith.constant 2 : i32
    %123 = vector.broadcast %c2_i32_69 : i32 to vector<64x256xi32>
    %124 = arith.cmpi sge, %122, %123 : vector<64x256xi32>
    %cst_70 = arith.constant 0.000000e+00 : f32
    %125 = vector.broadcast %cst_70 : f32 to vector<64x256xf32>
    %126 = arith.select %124, %121, %125 : vector<64x256xi1>, vector<64x256xf32>
    %127 = arith.truncf %126 : vector<64x256xf32> to vector<64x256xbf16>
    %c0_71 = arith.constant 0 : index
    %c0_72 = arith.constant 0 : index
    %c0_73 = arith.constant 0 : index
    %128 = vector.load %arg7[%c0_71, %c0_72, %c0_73] : memref<5x32x64xbf16, #tpu.memory_space<vmem>>, vector<1x32x64xbf16>
    %129 = vector.shape_cast %128 : vector<1x32x64xbf16> to vector<32x64xbf16>
    %cst_74 = arith.constant dense<0.000000e+00> : vector<32x256xf32>
    %130 = tpu.matmul %129, %127, %cst_74 {dimension_numbers = #tpu.dot_dimension_numbers<[1], [0], [0], [1], [0, 0, 1, 1], [], []>} : vector<32x64xbf16>, vector<64x256xbf16>, vector<32x256xf32> -> vector<32x256xf32>
    %131 = arith.addf %120, %130 : vector<32x256xf32>
    %c1_i32_75 = arith.constant 1 : i32
    %132 = tpu.dynamic_rotate %119 by %c1_i32_75 dim 1 : vector<64x256xf32>, i32 -> vector<64x256xf32>
    %133 = tpu.iota {dimensions = array<i32: 1>} : vector<64x256xi32>
    %c1_i32_76 = arith.constant 1 : i32
    %134 = vector.broadcast %c1_i32_76 : i32 to vector<64x256xi32>
    %135 = arith.cmpi sge, %133, %134 : vector<64x256xi32>
    %cst_77 = arith.constant 0.000000e+00 : f32
    %136 = vector.broadcast %cst_77 : f32 to vector<64x256xf32>
    %137 = arith.select %135, %132, %136 : vector<64x256xi1>, vector<64x256xf32>
    %138 = arith.truncf %137 : vector<64x256xf32> to vector<64x256xbf16>
    %c1_78 = arith.constant 1 : index
    %c0_79 = arith.constant 0 : index
    %c0_80 = arith.constant 0 : index
    %139 = vector.load %arg7[%c1_78, %c0_79, %c0_80] : memref<5x32x64xbf16, #tpu.memory_space<vmem>>, vector<1x32x64xbf16>
    %140 = vector.shape_cast %139 : vector<1x32x64xbf16> to vector<32x64xbf16>
    %cst_81 = arith.constant dense<0.000000e+00> : vector<32x256xf32>
    %141 = tpu.matmul %140, %138, %cst_81 {dimension_numbers = #tpu.dot_dimension_numbers<[1], [0], [0], [1], [0, 0, 1, 1], [], []>} : vector<32x64xbf16>, vector<64x256xbf16>, vector<32x256xf32> -> vector<32x256xf32>
    %142 = arith.addf %131, %141 : vector<32x256xf32>
    %143 = arith.truncf %119 : vector<64x256xf32> to vector<64x256xbf16>
    %c2_82 = arith.constant 2 : index
    %c0_83 = arith.constant 0 : index
    %c0_84 = arith.constant 0 : index
    %144 = vector.load %arg7[%c2_82, %c0_83, %c0_84] : memref<5x32x64xbf16, #tpu.memory_space<vmem>>, vector<1x32x64xbf16>
    %145 = vector.shape_cast %144 : vector<1x32x64xbf16> to vector<32x64xbf16>
    %cst_85 = arith.constant dense<0.000000e+00> : vector<32x256xf32>
    %146 = tpu.matmul %145, %143, %cst_85 {dimension_numbers = #tpu.dot_dimension_numbers<[1], [0], [0], [1], [0, 0, 1, 1], [], []>} : vector<32x64xbf16>, vector<64x256xbf16>, vector<32x256xf32> -> vector<32x256xf32>
    %147 = arith.addf %142, %146 : vector<32x256xf32>
    %c255_i32_86 = arith.constant 255 : i32
    %148 = tpu.dynamic_rotate %119 by %c255_i32_86 dim 1 : vector<64x256xf32>, i32 -> vector<64x256xf32>
    %149 = tpu.iota {dimensions = array<i32: 1>} : vector<64x256xi32>
    %c255_i32_87 = arith.constant 255 : i32
    %150 = vector.broadcast %c255_i32_87 : i32 to vector<64x256xi32>
    %151 = arith.cmpi slt, %149, %150 : vector<64x256xi32>
    %cst_88 = arith.constant 0.000000e+00 : f32
    %152 = vector.broadcast %cst_88 : f32 to vector<64x256xf32>
    %153 = arith.select %151, %148, %152 : vector<64x256xi1>, vector<64x256xf32>
    %154 = arith.truncf %153 : vector<64x256xf32> to vector<64x256xbf16>
    %c3_89 = arith.constant 3 : index
    %c0_90 = arith.constant 0 : index
    %c0_91 = arith.constant 0 : index
    %155 = vector.load %arg7[%c3_89, %c0_90, %c0_91] : memref<5x32x64xbf16, #tpu.memory_space<vmem>>, vector<1x32x64xbf16>
    %156 = vector.shape_cast %155 : vector<1x32x64xbf16> to vector<32x64xbf16>
    %cst_92 = arith.constant dense<0.000000e+00> : vector<32x256xf32>
    %157 = tpu.matmul %156, %154, %cst_92 {dimension_numbers = #tpu.dot_dimension_numbers<[1], [0], [0], [1], [0, 0, 1, 1], [], []>} : vector<32x64xbf16>, vector<64x256xbf16>, vector<32x256xf32> -> vector<32x256xf32>
    %158 = arith.addf %147, %157 : vector<32x256xf32>
    %c254_i32_93 = arith.constant 254 : i32
    %159 = tpu.dynamic_rotate %119 by %c254_i32_93 dim 1 : vector<64x256xf32>, i32 -> vector<64x256xf32>
    %160 = tpu.iota {dimensions = array<i32: 1>} : vector<64x256xi32>
    %c254_i32_94 = arith.constant 254 : i32
    %161 = vector.broadcast %c254_i32_94 : i32 to vector<64x256xi32>
    %162 = arith.cmpi slt, %160, %161 : vector<64x256xi32>
    %cst_95 = arith.constant 0.000000e+00 : f32
    %163 = vector.broadcast %cst_95 : f32 to vector<64x256xf32>
    %164 = arith.select %162, %159, %163 : vector<64x256xi1>, vector<64x256xf32>
    %165 = arith.truncf %164 : vector<64x256xf32> to vector<64x256xbf16>
    %c4_96 = arith.constant 4 : index
    %c0_97 = arith.constant 0 : index
    %c0_98 = arith.constant 0 : index
    %166 = vector.load %arg7[%c4_96, %c0_97, %c0_98] : memref<5x32x64xbf16, #tpu.memory_space<vmem>>, vector<1x32x64xbf16>
    %167 = vector.shape_cast %166 : vector<1x32x64xbf16> to vector<32x64xbf16>
    %cst_99 = arith.constant dense<0.000000e+00> : vector<32x256xf32>
    %168 = tpu.matmul %167, %165, %cst_99 {dimension_numbers = #tpu.dot_dimension_numbers<[1], [0], [0], [1], [0, 0, 1, 1], [], []>} : vector<32x64xbf16>, vector<64x256xbf16>, vector<32x256xf32> -> vector<32x256xf32>
    %169 = arith.addf %158, %168 : vector<32x256xf32>
    %c0_100 = arith.constant 0 : index
    %c0_101 = arith.constant 0 : index
    %170 = vector.load %arg8[%c0_100, %c0_101] : memref<32x1xf32, #tpu.memory_space<vmem>>, vector<32x1xf32>
    %171 = vector.broadcast %170 : vector<32x1xf32> to vector<32x256xf32>
    %172 = arith.addf %169, %171 : vector<32x256xf32>
    %c2_102 = arith.constant 2 : index
    %173 = memref.load %arg1[%c2_102] : memref<7xf32, #tpu.memory_space<smem>>
    %cst_103 = arith.constant 0.000000e+00 : f32
    %174 = vector.broadcast %cst_103 : f32 to vector<32x256xf32>
    %175 = arith.cmpf ogt, %172, %174 : vector<32x256xf32>
    %176 = vector.broadcast %173 : f32 to vector<32x256xf32>
    %177 = arith.mulf %176, %172 : vector<32x256xf32>
    %178 = arith.select %175, %172, %177 : vector<32x256xi1>, vector<32x256xf32>
    %cst_104 = arith.constant 0.000000e+00 : f32
    %179 = vector.broadcast %cst_104 : f32 to vector<16x256xf32>
    %c2_i32_105 = arith.constant 2 : i32
    %180 = tpu.dynamic_rotate %178 by %c2_i32_105 dim 1 : vector<32x256xf32>, i32 -> vector<32x256xf32>
    %181 = tpu.iota {dimensions = array<i32: 1>} : vector<32x256xi32>
    %c2_i32_106 = arith.constant 2 : i32
    %182 = vector.broadcast %c2_i32_106 : i32 to vector<32x256xi32>
    %183 = arith.cmpi sge, %181, %182 : vector<32x256xi32>
    %cst_107 = arith.constant 0.000000e+00 : f32
    %184 = vector.broadcast %cst_107 : f32 to vector<32x256xf32>
    %185 = arith.select %183, %180, %184 : vector<32x256xi1>, vector<32x256xf32>
    %186 = arith.truncf %185 : vector<32x256xf32> to vector<32x256xbf16>
    %c0_108 = arith.constant 0 : index
    %c0_109 = arith.constant 0 : index
    %c0_110 = arith.constant 0 : index
    %187 = vector.load %arg9[%c0_108, %c0_109, %c0_110] : memref<5x16x32xbf16, #tpu.memory_space<vmem>>, vector<1x16x32xbf16>
    %188 = vector.shape_cast %187 : vector<1x16x32xbf16> to vector<16x32xbf16>
    %cst_111 = arith.constant dense<0.000000e+00> : vector<16x256xf32>
    %189 = tpu.matmul %188, %186, %cst_111 {dimension_numbers = #tpu.dot_dimension_numbers<[1], [0], [0], [1], [0, 0, 1, 1], [], []>} : vector<16x32xbf16>, vector<32x256xbf16>, vector<16x256xf32> -> vector<16x256xf32>
    %190 = arith.addf %179, %189 : vector<16x256xf32>
    %c1_i32_112 = arith.constant 1 : i32
    %191 = tpu.dynamic_rotate %178 by %c1_i32_112 dim 1 : vector<32x256xf32>, i32 -> vector<32x256xf32>
    %192 = tpu.iota {dimensions = array<i32: 1>} : vector<32x256xi32>
    %c1_i32_113 = arith.constant 1 : i32
    %193 = vector.broadcast %c1_i32_113 : i32 to vector<32x256xi32>
    %194 = arith.cmpi sge, %192, %193 : vector<32x256xi32>
    %cst_114 = arith.constant 0.000000e+00 : f32
    %195 = vector.broadcast %cst_114 : f32 to vector<32x256xf32>
    %196 = arith.select %194, %191, %195 : vector<32x256xi1>, vector<32x256xf32>
    %197 = arith.truncf %196 : vector<32x256xf32> to vector<32x256xbf16>
    %c1_115 = arith.constant 1 : index
    %c0_116 = arith.constant 0 : index
    %c0_117 = arith.constant 0 : index
    %198 = vector.load %arg9[%c1_115, %c0_116, %c0_117] : memref<5x16x32xbf16, #tpu.memory_space<vmem>>, vector<1x16x32xbf16>
    %199 = vector.shape_cast %198 : vector<1x16x32xbf16> to vector<16x32xbf16>
    %cst_118 = arith.constant dense<0.000000e+00> : vector<16x256xf32>
    %200 = tpu.matmul %199, %197, %cst_118 {dimension_numbers = #tpu.dot_dimension_numbers<[1], [0], [0], [1], [0, 0, 1, 1], [], []>} : vector<16x32xbf16>, vector<32x256xbf16>, vector<16x256xf32> -> vector<16x256xf32>
    %201 = arith.addf %190, %200 : vector<16x256xf32>
    %202 = arith.truncf %178 : vector<32x256xf32> to vector<32x256xbf16>
    %c2_119 = arith.constant 2 : index
    %c0_120 = arith.constant 0 : index
    %c0_121 = arith.constant 0 : index
    %203 = vector.load %arg9[%c2_119, %c0_120, %c0_121] : memref<5x16x32xbf16, #tpu.memory_space<vmem>>, vector<1x16x32xbf16>
    %204 = vector.shape_cast %203 : vector<1x16x32xbf16> to vector<16x32xbf16>
    %cst_122 = arith.constant dense<0.000000e+00> : vector<16x256xf32>
    %205 = tpu.matmul %204, %202, %cst_122 {dimension_numbers = #tpu.dot_dimension_numbers<[1], [0], [0], [1], [0, 0, 1, 1], [], []>} : vector<16x32xbf16>, vector<32x256xbf16>, vector<16x256xf32> -> vector<16x256xf32>
    %206 = arith.addf %201, %205 : vector<16x256xf32>
    %c255_i32_123 = arith.constant 255 : i32
    %207 = tpu.dynamic_rotate %178 by %c255_i32_123 dim 1 : vector<32x256xf32>, i32 -> vector<32x256xf32>
    %208 = tpu.iota {dimensions = array<i32: 1>} : vector<32x256xi32>
    %c255_i32_124 = arith.constant 255 : i32
    %209 = vector.broadcast %c255_i32_124 : i32 to vector<32x256xi32>
    %210 = arith.cmpi slt, %208, %209 : vector<32x256xi32>
    %cst_125 = arith.constant 0.000000e+00 : f32
    %211 = vector.broadcast %cst_125 : f32 to vector<32x256xf32>
    %212 = arith.select %210, %207, %211 : vector<32x256xi1>, vector<32x256xf32>
    %213 = arith.truncf %212 : vector<32x256xf32> to vector<32x256xbf16>
    %c3_126 = arith.constant 3 : index
    %c0_127 = arith.constant 0 : index
    %c0_128 = arith.constant 0 : index
    %214 = vector.load %arg9[%c3_126, %c0_127, %c0_128] : memref<5x16x32xbf16, #tpu.memory_space<vmem>>, vector<1x16x32xbf16>
    %215 = vector.shape_cast %214 : vector<1x16x32xbf16> to vector<16x32xbf16>
    %cst_129 = arith.constant dense<0.000000e+00> : vector<16x256xf32>
    %216 = tpu.matmul %215, %213, %cst_129 {dimension_numbers = #tpu.dot_dimension_numbers<[1], [0], [0], [1], [0, 0, 1, 1], [], []>} : vector<16x32xbf16>, vector<32x256xbf16>, vector<16x256xf32> -> vector<16x256xf32>
    %217 = arith.addf %206, %216 : vector<16x256xf32>
    %c254_i32_130 = arith.constant 254 : i32
    %218 = tpu.dynamic_rotate %178 by %c254_i32_130 dim 1 : vector<32x256xf32>, i32 -> vector<32x256xf32>
    %219 = tpu.iota {dimensions = array<i32: 1>} : vector<32x256xi32>
    %c254_i32_131 = arith.constant 254 : i32
    %220 = vector.broadcast %c254_i32_131 : i32 to vector<32x256xi32>
    %221 = arith.cmpi slt, %219, %220 : vector<32x256xi32>
    %cst_132 = arith.constant 0.000000e+00 : f32
    %222 = vector.broadcast %cst_132 : f32 to vector<32x256xf32>
    %223 = arith.select %221, %218, %222 : vector<32x256xi1>, vector<32x256xf32>
    %224 = arith.truncf %223 : vector<32x256xf32> to vector<32x256xbf16>
    %c4_133 = arith.constant 4 : index
    %c0_134 = arith.constant 0 : index
    %c0_135 = arith.constant 0 : index
    %225 = vector.load %arg9[%c4_133, %c0_134, %c0_135] : memref<5x16x32xbf16, #tpu.memory_space<vmem>>, vector<1x16x32xbf16>
    %226 = vector.shape_cast %225 : vector<1x16x32xbf16> to vector<16x32xbf16>
    %cst_136 = arith.constant dense<0.000000e+00> : vector<16x256xf32>
    %227 = tpu.matmul %226, %224, %cst_136 {dimension_numbers = #tpu.dot_dimension_numbers<[1], [0], [0], [1], [0, 0, 1, 1], [], []>} : vector<16x32xbf16>, vector<32x256xbf16>, vector<16x256xf32> -> vector<16x256xf32>
    %228 = arith.addf %217, %227 : vector<16x256xf32>
    %c0_137 = arith.constant 0 : index
    %c0_138 = arith.constant 0 : index
    %229 = vector.load %arg10[%c0_137, %c0_138] : memref<16x1xf32, #tpu.memory_space<vmem>>, vector<16x1xf32>
    %230 = vector.broadcast %229 : vector<16x1xf32> to vector<16x256xf32>
    %231 = arith.addf %228, %230 : vector<16x256xf32>
    %c3_139 = arith.constant 3 : index
    %232 = memref.load %arg1[%c3_139] : memref<7xf32, #tpu.memory_space<smem>>
    %cst_140 = arith.constant 0.000000e+00 : f32
    %233 = vector.broadcast %cst_140 : f32 to vector<16x256xf32>
    %234 = arith.cmpf ogt, %231, %233 : vector<16x256xf32>
    %235 = vector.broadcast %232 : f32 to vector<16x256xf32>
    %236 = arith.mulf %235, %231 : vector<16x256xf32>
    %237 = arith.select %234, %231, %236 : vector<16x256xi1>, vector<16x256xf32>
    %cst_141 = arith.constant 0.000000e+00 : f32
    %238 = vector.broadcast %cst_141 : f32 to vector<32x256xf32>
    %c2_i32_142 = arith.constant 2 : i32
    %239 = tpu.dynamic_rotate %237 by %c2_i32_142 dim 1 : vector<16x256xf32>, i32 -> vector<16x256xf32>
    %240 = tpu.iota {dimensions = array<i32: 1>} : vector<16x256xi32>
    %c2_i32_143 = arith.constant 2 : i32
    %241 = vector.broadcast %c2_i32_143 : i32 to vector<16x256xi32>
    %242 = arith.cmpi sge, %240, %241 : vector<16x256xi32>
    %cst_144 = arith.constant 0.000000e+00 : f32
    %243 = vector.broadcast %cst_144 : f32 to vector<16x256xf32>
    %244 = arith.select %242, %239, %243 : vector<16x256xi1>, vector<16x256xf32>
    %245 = arith.truncf %244 : vector<16x256xf32> to vector<16x256xbf16>
    %c0_145 = arith.constant 0 : index
    %c0_146 = arith.constant 0 : index
    %c0_147 = arith.constant 0 : index
    %246 = vector.load %arg11[%c0_145, %c0_146, %c0_147] : memref<5x32x16xbf16, #tpu.memory_space<vmem>>, vector<1x32x16xbf16>
    %247 = vector.shape_cast %246 : vector<1x32x16xbf16> to vector<32x16xbf16>
    %cst_148 = arith.constant dense<0.000000e+00> : vector<32x256xf32>
    %248 = tpu.matmul %247, %245, %cst_148 {dimension_numbers = #tpu.dot_dimension_numbers<[1], [0], [0], [1], [0, 0, 1, 1], [], []>} : vector<32x16xbf16>, vector<16x256xbf16>, vector<32x256xf32> -> vector<32x256xf32>
    %249 = arith.addf %238, %248 : vector<32x256xf32>
    %c1_i32_149 = arith.constant 1 : i32
    %250 = tpu.dynamic_rotate %237 by %c1_i32_149 dim 1 : vector<16x256xf32>, i32 -> vector<16x256xf32>
    %251 = tpu.iota {dimensions = array<i32: 1>} : vector<16x256xi32>
    %c1_i32_150 = arith.constant 1 : i32
    %252 = vector.broadcast %c1_i32_150 : i32 to vector<16x256xi32>
    %253 = arith.cmpi sge, %251, %252 : vector<16x256xi32>
    %cst_151 = arith.constant 0.000000e+00 : f32
    %254 = vector.broadcast %cst_151 : f32 to vector<16x256xf32>
    %255 = arith.select %253, %250, %254 : vector<16x256xi1>, vector<16x256xf32>
    %256 = arith.truncf %255 : vector<16x256xf32> to vector<16x256xbf16>
    %c1_152 = arith.constant 1 : index
    %c0_153 = arith.constant 0 : index
    %c0_154 = arith.constant 0 : index
    %257 = vector.load %arg11[%c1_152, %c0_153, %c0_154] : memref<5x32x16xbf16, #tpu.memory_space<vmem>>, vector<1x32x16xbf16>
    %258 = vector.shape_cast %257 : vector<1x32x16xbf16> to vector<32x16xbf16>
    %cst_155 = arith.constant dense<0.000000e+00> : vector<32x256xf32>
    %259 = tpu.matmul %258, %256, %cst_155 {dimension_numbers = #tpu.dot_dimension_numbers<[1], [0], [0], [1], [0, 0, 1, 1], [], []>} : vector<32x16xbf16>, vector<16x256xbf16>, vector<32x256xf32> -> vector<32x256xf32>
    %260 = arith.addf %249, %259 : vector<32x256xf32>
    %261 = arith.truncf %237 : vector<16x256xf32> to vector<16x256xbf16>
    %c2_156 = arith.constant 2 : index
    %c0_157 = arith.constant 0 : index
    %c0_158 = arith.constant 0 : index
    %262 = vector.load %arg11[%c2_156, %c0_157, %c0_158] : memref<5x32x16xbf16, #tpu.memory_space<vmem>>, vector<1x32x16xbf16>
    %263 = vector.shape_cast %262 : vector<1x32x16xbf16> to vector<32x16xbf16>
    %cst_159 = arith.constant dense<0.000000e+00> : vector<32x256xf32>
    %264 = tpu.matmul %263, %261, %cst_159 {dimension_numbers = #tpu.dot_dimension_numbers<[1], [0], [0], [1], [0, 0, 1, 1], [], []>} : vector<32x16xbf16>, vector<16x256xbf16>, vector<32x256xf32> -> vector<32x256xf32>
    %265 = arith.addf %260, %264 : vector<32x256xf32>
    %c255_i32_160 = arith.constant 255 : i32
    %266 = tpu.dynamic_rotate %237 by %c255_i32_160 dim 1 : vector<16x256xf32>, i32 -> vector<16x256xf32>
    %267 = tpu.iota {dimensions = array<i32: 1>} : vector<16x256xi32>
    %c255_i32_161 = arith.constant 255 : i32
    %268 = vector.broadcast %c255_i32_161 : i32 to vector<16x256xi32>
    %269 = arith.cmpi slt, %267, %268 : vector<16x256xi32>
    %cst_162 = arith.constant 0.000000e+00 : f32
    %270 = vector.broadcast %cst_162 : f32 to vector<16x256xf32>
    %271 = arith.select %269, %266, %270 : vector<16x256xi1>, vector<16x256xf32>
    %272 = arith.truncf %271 : vector<16x256xf32> to vector<16x256xbf16>
    %c3_163 = arith.constant 3 : index
    %c0_164 = arith.constant 0 : index
    %c0_165 = arith.constant 0 : index
    %273 = vector.load %arg11[%c3_163, %c0_164, %c0_165] : memref<5x32x16xbf16, #tpu.memory_space<vmem>>, vector<1x32x16xbf16>
    %274 = vector.shape_cast %273 : vector<1x32x16xbf16> to vector<32x16xbf16>
    %cst_166 = arith.constant dense<0.000000e+00> : vector<32x256xf32>
    %275 = tpu.matmul %274, %272, %cst_166 {dimension_numbers = #tpu.dot_dimension_numbers<[1], [0], [0], [1], [0, 0, 1, 1], [], []>} : vector<32x16xbf16>, vector<16x256xbf16>, vector<32x256xf32> -> vector<32x256xf32>
    %276 = arith.addf %265, %275 : vector<32x256xf32>
    %c254_i32_167 = arith.constant 254 : i32
    %277 = tpu.dynamic_rotate %237 by %c254_i32_167 dim 1 : vector<16x256xf32>, i32 -> vector<16x256xf32>
    %278 = tpu.iota {dimensions = array<i32: 1>} : vector<16x256xi32>
    %c254_i32_168 = arith.constant 254 : i32
    %279 = vector.broadcast %c254_i32_168 : i32 to vector<16x256xi32>
    %280 = arith.cmpi slt, %278, %279 : vector<16x256xi32>
    %cst_169 = arith.constant 0.000000e+00 : f32
    %281 = vector.broadcast %cst_169 : f32 to vector<16x256xf32>
    %282 = arith.select %280, %277, %281 : vector<16x256xi1>, vector<16x256xf32>
    %283 = arith.truncf %282 : vector<16x256xf32> to vector<16x256xbf16>
    %c4_170 = arith.constant 4 : index
    %c0_171 = arith.constant 0 : index
    %c0_172 = arith.constant 0 : index
    %284 = vector.load %arg11[%c4_170, %c0_171, %c0_172] : memref<5x32x16xbf16, #tpu.memory_space<vmem>>, vector<1x32x16xbf16>
    %285 = vector.shape_cast %284 : vector<1x32x16xbf16> to vector<32x16xbf16>
    %cst_173 = arith.constant dense<0.000000e+00> : vector<32x256xf32>
    %286 = tpu.matmul %285, %283, %cst_173 {dimension_numbers = #tpu.dot_dimension_numbers<[1], [0], [0], [1], [0, 0, 1, 1], [], []>} : vector<32x16xbf16>, vector<16x256xbf16>, vector<32x256xf32> -> vector<32x256xf32>
    %287 = arith.addf %276, %286 : vector<32x256xf32>
    %c0_174 = arith.constant 0 : index
    %c0_175 = arith.constant 0 : index
    %288 = vector.load %arg12[%c0_174, %c0_175] : memref<32x1xf32, #tpu.memory_space<vmem>>, vector<32x1xf32>
    %289 = vector.broadcast %288 : vector<32x1xf32> to vector<32x256xf32>
    %290 = arith.addf %287, %289 : vector<32x256xf32>
    %c4_176 = arith.constant 4 : index
    %291 = memref.load %arg1[%c4_176] : memref<7xf32, #tpu.memory_space<smem>>
    %cst_177 = arith.constant 0.000000e+00 : f32
    %292 = vector.broadcast %cst_177 : f32 to vector<32x256xf32>
    %293 = arith.cmpf ogt, %290, %292 : vector<32x256xf32>
    %294 = vector.broadcast %291 : f32 to vector<32x256xf32>
    %295 = arith.mulf %294, %290 : vector<32x256xf32>
    %296 = arith.select %293, %290, %295 : vector<32x256xi1>, vector<32x256xf32>
    %cst_178 = arith.constant 0.000000e+00 : f32
    %297 = vector.broadcast %cst_178 : f32 to vector<64x256xf32>
    %c2_i32_179 = arith.constant 2 : i32
    %298 = tpu.dynamic_rotate %296 by %c2_i32_179 dim 1 : vector<32x256xf32>, i32 -> vector<32x256xf32>
    %299 = tpu.iota {dimensions = array<i32: 1>} : vector<32x256xi32>
    %c2_i32_180 = arith.constant 2 : i32
    %300 = vector.broadcast %c2_i32_180 : i32 to vector<32x256xi32>
    %301 = arith.cmpi sge, %299, %300 : vector<32x256xi32>
    %cst_181 = arith.constant 0.000000e+00 : f32
    %302 = vector.broadcast %cst_181 : f32 to vector<32x256xf32>
    %303 = arith.select %301, %298, %302 : vector<32x256xi1>, vector<32x256xf32>
    %304 = arith.truncf %303 : vector<32x256xf32> to vector<32x256xbf16>
    %c0_182 = arith.constant 0 : index
    %c0_183 = arith.constant 0 : index
    %c0_184 = arith.constant 0 : index
    %305 = vector.load %arg13[%c0_182, %c0_183, %c0_184] : memref<5x64x32xbf16, #tpu.memory_space<vmem>>, vector<1x64x32xbf16>
    %306 = vector.shape_cast %305 : vector<1x64x32xbf16> to vector<64x32xbf16>
    %cst_185 = arith.constant dense<0.000000e+00> : vector<64x256xf32>
    %307 = tpu.matmul %306, %304, %cst_185 {dimension_numbers = #tpu.dot_dimension_numbers<[1], [0], [0], [1], [0, 0, 1, 1], [], []>} : vector<64x32xbf16>, vector<32x256xbf16>, vector<64x256xf32> -> vector<64x256xf32>
    %308 = arith.addf %297, %307 : vector<64x256xf32>
    %c1_i32_186 = arith.constant 1 : i32
    %309 = tpu.dynamic_rotate %296 by %c1_i32_186 dim 1 : vector<32x256xf32>, i32 -> vector<32x256xf32>
    %310 = tpu.iota {dimensions = array<i32: 1>} : vector<32x256xi32>
    %c1_i32_187 = arith.constant 1 : i32
    %311 = vector.broadcast %c1_i32_187 : i32 to vector<32x256xi32>
    %312 = arith.cmpi sge, %310, %311 : vector<32x256xi32>
    %cst_188 = arith.constant 0.000000e+00 : f32
    %313 = vector.broadcast %cst_188 : f32 to vector<32x256xf32>
    %314 = arith.select %312, %309, %313 : vector<32x256xi1>, vector<32x256xf32>
    %315 = arith.truncf %314 : vector<32x256xf32> to vector<32x256xbf16>
    %c1_189 = arith.constant 1 : index
    %c0_190 = arith.constant 0 : index
    %c0_191 = arith.constant 0 : index
    %316 = vector.load %arg13[%c1_189, %c0_190, %c0_191] : memref<5x64x32xbf16, #tpu.memory_space<vmem>>, vector<1x64x32xbf16>
    %317 = vector.shape_cast %316 : vector<1x64x32xbf16> to vector<64x32xbf16>
    %cst_192 = arith.constant dense<0.000000e+00> : vector<64x256xf32>
    %318 = tpu.matmul %317, %315, %cst_192 {dimension_numbers = #tpu.dot_dimension_numbers<[1], [0], [0], [1], [0, 0, 1, 1], [], []>} : vector<64x32xbf16>, vector<32x256xbf16>, vector<64x256xf32> -> vector<64x256xf32>
    %319 = arith.addf %308, %318 : vector<64x256xf32>
    %320 = arith.truncf %296 : vector<32x256xf32> to vector<32x256xbf16>
    %c2_193 = arith.constant 2 : index
    %c0_194 = arith.constant 0 : index
    %c0_195 = arith.constant 0 : index
    %321 = vector.load %arg13[%c2_193, %c0_194, %c0_195] : memref<5x64x32xbf16, #tpu.memory_space<vmem>>, vector<1x64x32xbf16>
    %322 = vector.shape_cast %321 : vector<1x64x32xbf16> to vector<64x32xbf16>
    %cst_196 = arith.constant dense<0.000000e+00> : vector<64x256xf32>
    %323 = tpu.matmul %322, %320, %cst_196 {dimension_numbers = #tpu.dot_dimension_numbers<[1], [0], [0], [1], [0, 0, 1, 1], [], []>} : vector<64x32xbf16>, vector<32x256xbf16>, vector<64x256xf32> -> vector<64x256xf32>
    %324 = arith.addf %319, %323 : vector<64x256xf32>
    %c255_i32_197 = arith.constant 255 : i32
    %325 = tpu.dynamic_rotate %296 by %c255_i32_197 dim 1 : vector<32x256xf32>, i32 -> vector<32x256xf32>
    %326 = tpu.iota {dimensions = array<i32: 1>} : vector<32x256xi32>
    %c255_i32_198 = arith.constant 255 : i32
    %327 = vector.broadcast %c255_i32_198 : i32 to vector<32x256xi32>
    %328 = arith.cmpi slt, %326, %327 : vector<32x256xi32>
    %cst_199 = arith.constant 0.000000e+00 : f32
    %329 = vector.broadcast %cst_199 : f32 to vector<32x256xf32>
    %330 = arith.select %328, %325, %329 : vector<32x256xi1>, vector<32x256xf32>
    %331 = arith.truncf %330 : vector<32x256xf32> to vector<32x256xbf16>
    %c3_200 = arith.constant 3 : index
    %c0_201 = arith.constant 0 : index
    %c0_202 = arith.constant 0 : index
    %332 = vector.load %arg13[%c3_200, %c0_201, %c0_202] : memref<5x64x32xbf16, #tpu.memory_space<vmem>>, vector<1x64x32xbf16>
    %333 = vector.shape_cast %332 : vector<1x64x32xbf16> to vector<64x32xbf16>
    %cst_203 = arith.constant dense<0.000000e+00> : vector<64x256xf32>
    %334 = tpu.matmul %333, %331, %cst_203 {dimension_numbers = #tpu.dot_dimension_numbers<[1], [0], [0], [1], [0, 0, 1, 1], [], []>} : vector<64x32xbf16>, vector<32x256xbf16>, vector<64x256xf32> -> vector<64x256xf32>
    %335 = arith.addf %324, %334 : vector<64x256xf32>
    %c254_i32_204 = arith.constant 254 : i32
    %336 = tpu.dynamic_rotate %296 by %c254_i32_204 dim 1 : vector<32x256xf32>, i32 -> vector<32x256xf32>
    %337 = tpu.iota {dimensions = array<i32: 1>} : vector<32x256xi32>
    %c254_i32_205 = arith.constant 254 : i32
    %338 = vector.broadcast %c254_i32_205 : i32 to vector<32x256xi32>
    %339 = arith.cmpi slt, %337, %338 : vector<32x256xi32>
    %cst_206 = arith.constant 0.000000e+00 : f32
    %340 = vector.broadcast %cst_206 : f32 to vector<32x256xf32>
    %341 = arith.select %339, %336, %340 : vector<32x256xi1>, vector<32x256xf32>
    %342 = arith.truncf %341 : vector<32x256xf32> to vector<32x256xbf16>
    %c4_207 = arith.constant 4 : index
    %c0_208 = arith.constant 0 : index
    %c0_209 = arith.constant 0 : index
    %343 = vector.load %arg13[%c4_207, %c0_208, %c0_209] : memref<5x64x32xbf16, #tpu.memory_space<vmem>>, vector<1x64x32xbf16>
    %344 = vector.shape_cast %343 : vector<1x64x32xbf16> to vector<64x32xbf16>
    %cst_210 = arith.constant dense<0.000000e+00> : vector<64x256xf32>
    %345 = tpu.matmul %344, %342, %cst_210 {dimension_numbers = #tpu.dot_dimension_numbers<[1], [0], [0], [1], [0, 0, 1, 1], [], []>} : vector<64x32xbf16>, vector<32x256xbf16>, vector<64x256xf32> -> vector<64x256xf32>
    %346 = arith.addf %335, %345 : vector<64x256xf32>
    %c0_211 = arith.constant 0 : index
    %c0_212 = arith.constant 0 : index
    %347 = vector.load %arg14[%c0_211, %c0_212] : memref<64x1xf32, #tpu.memory_space<vmem>>, vector<64x1xf32>
    %348 = vector.broadcast %347 : vector<64x1xf32> to vector<64x256xf32>
    %349 = arith.addf %346, %348 : vector<64x256xf32>
    %c5 = arith.constant 5 : index
    %350 = memref.load %arg1[%c5] : memref<7xf32, #tpu.memory_space<smem>>
    %cst_213 = arith.constant 0.000000e+00 : f32
    %351 = vector.broadcast %cst_213 : f32 to vector<64x256xf32>
    %352 = arith.cmpf ogt, %349, %351 : vector<64x256xf32>
    %353 = vector.broadcast %350 : f32 to vector<64x256xf32>
    %354 = arith.mulf %353, %349 : vector<64x256xf32>
    %355 = arith.select %352, %349, %354 : vector<64x256xi1>, vector<64x256xf32>
    %cst_214 = arith.constant 0.000000e+00 : f32
    %356 = vector.broadcast %cst_214 : f32 to vector<128x256xf32>
    %c2_i32_215 = arith.constant 2 : i32
    %357 = tpu.dynamic_rotate %355 by %c2_i32_215 dim 1 : vector<64x256xf32>, i32 -> vector<64x256xf32>
    %358 = tpu.iota {dimensions = array<i32: 1>} : vector<64x256xi32>
    %c2_i32_216 = arith.constant 2 : i32
    %359 = vector.broadcast %c2_i32_216 : i32 to vector<64x256xi32>
    %360 = arith.cmpi sge, %358, %359 : vector<64x256xi32>
    %cst_217 = arith.constant 0.000000e+00 : f32
    %361 = vector.broadcast %cst_217 : f32 to vector<64x256xf32>
    %362 = arith.select %360, %357, %361 : vector<64x256xi1>, vector<64x256xf32>
    %363 = arith.truncf %362 : vector<64x256xf32> to vector<64x256xbf16>
    %c0_218 = arith.constant 0 : index
    %c0_219 = arith.constant 0 : index
    %c0_220 = arith.constant 0 : index
    %364 = vector.load %arg15[%c0_218, %c0_219, %c0_220] : memref<5x128x64xbf16, #tpu.memory_space<vmem>>, vector<1x128x64xbf16>
    %365 = vector.shape_cast %364 : vector<1x128x64xbf16> to vector<128x64xbf16>
    %cst_221 = arith.constant dense<0.000000e+00> : vector<128x256xf32>
    %366 = tpu.matmul %365, %363, %cst_221 {dimension_numbers = #tpu.dot_dimension_numbers<[1], [0], [0], [1], [0, 0, 1, 1], [], []>} : vector<128x64xbf16>, vector<64x256xbf16>, vector<128x256xf32> -> vector<128x256xf32>
    %367 = arith.addf %356, %366 : vector<128x256xf32>
    %c1_i32_222 = arith.constant 1 : i32
    %368 = tpu.dynamic_rotate %355 by %c1_i32_222 dim 1 : vector<64x256xf32>, i32 -> vector<64x256xf32>
    %369 = tpu.iota {dimensions = array<i32: 1>} : vector<64x256xi32>
    %c1_i32_223 = arith.constant 1 : i32
    %370 = vector.broadcast %c1_i32_223 : i32 to vector<64x256xi32>
    %371 = arith.cmpi sge, %369, %370 : vector<64x256xi32>
    %cst_224 = arith.constant 0.000000e+00 : f32
    %372 = vector.broadcast %cst_224 : f32 to vector<64x256xf32>
    %373 = arith.select %371, %368, %372 : vector<64x256xi1>, vector<64x256xf32>
    %374 = arith.truncf %373 : vector<64x256xf32> to vector<64x256xbf16>
    %c1_225 = arith.constant 1 : index
    %c0_226 = arith.constant 0 : index
    %c0_227 = arith.constant 0 : index
    %375 = vector.load %arg15[%c1_225, %c0_226, %c0_227] : memref<5x128x64xbf16, #tpu.memory_space<vmem>>, vector<1x128x64xbf16>
    %376 = vector.shape_cast %375 : vector<1x128x64xbf16> to vector<128x64xbf16>
    %cst_228 = arith.constant dense<0.000000e+00> : vector<128x256xf32>
    %377 = tpu.matmul %376, %374, %cst_228 {dimension_numbers = #tpu.dot_dimension_numbers<[1], [0], [0], [1], [0, 0, 1, 1], [], []>} : vector<128x64xbf16>, vector<64x256xbf16>, vector<128x256xf32> -> vector<128x256xf32>
    %378 = arith.addf %367, %377 : vector<128x256xf32>
    %379 = arith.truncf %355 : vector<64x256xf32> to vector<64x256xbf16>
    %c2_229 = arith.constant 2 : index
    %c0_230 = arith.constant 0 : index
    %c0_231 = arith.constant 0 : index
    %380 = vector.load %arg15[%c2_229, %c0_230, %c0_231] : memref<5x128x64xbf16, #tpu.memory_space<vmem>>, vector<1x128x64xbf16>
    %381 = vector.shape_cast %380 : vector<1x128x64xbf16> to vector<128x64xbf16>
    %cst_232 = arith.constant dense<0.000000e+00> : vector<128x256xf32>
    %382 = tpu.matmul %381, %379, %cst_232 {dimension_numbers = #tpu.dot_dimension_numbers<[1], [0], [0], [1], [0, 0, 1, 1], [], []>} : vector<128x64xbf16>, vector<64x256xbf16>, vector<128x256xf32> -> vector<128x256xf32>
    %383 = arith.addf %378, %382 : vector<128x256xf32>
    %c255_i32_233 = arith.constant 255 : i32
    %384 = tpu.dynamic_rotate %355 by %c255_i32_233 dim 1 : vector<64x256xf32>, i32 -> vector<64x256xf32>
    %385 = tpu.iota {dimensions = array<i32: 1>} : vector<64x256xi32>
    %c255_i32_234 = arith.constant 255 : i32
    %386 = vector.broadcast %c255_i32_234 : i32 to vector<64x256xi32>
    %387 = arith.cmpi slt, %385, %386 : vector<64x256xi32>
    %cst_235 = arith.constant 0.000000e+00 : f32
    %388 = vector.broadcast %cst_235 : f32 to vector<64x256xf32>
    %389 = arith.select %387, %384, %388 : vector<64x256xi1>, vector<64x256xf32>
    %390 = arith.truncf %389 : vector<64x256xf32> to vector<64x256xbf16>
    %c3_236 = arith.constant 3 : index
    %c0_237 = arith.constant 0 : index
    %c0_238 = arith.constant 0 : index
    %391 = vector.load %arg15[%c3_236, %c0_237, %c0_238] : memref<5x128x64xbf16, #tpu.memory_space<vmem>>, vector<1x128x64xbf16>
    %392 = vector.shape_cast %391 : vector<1x128x64xbf16> to vector<128x64xbf16>
    %cst_239 = arith.constant dense<0.000000e+00> : vector<128x256xf32>
    %393 = tpu.matmul %392, %390, %cst_239 {dimension_numbers = #tpu.dot_dimension_numbers<[1], [0], [0], [1], [0, 0, 1, 1], [], []>} : vector<128x64xbf16>, vector<64x256xbf16>, vector<128x256xf32> -> vector<128x256xf32>
    %394 = arith.addf %383, %393 : vector<128x256xf32>
    %c254_i32_240 = arith.constant 254 : i32
    %395 = tpu.dynamic_rotate %355 by %c254_i32_240 dim 1 : vector<64x256xf32>, i32 -> vector<64x256xf32>
    %396 = tpu.iota {dimensions = array<i32: 1>} : vector<64x256xi32>
    %c254_i32_241 = arith.constant 254 : i32
    %397 = vector.broadcast %c254_i32_241 : i32 to vector<64x256xi32>
    %398 = arith.cmpi slt, %396, %397 : vector<64x256xi32>
    %cst_242 = arith.constant 0.000000e+00 : f32
    %399 = vector.broadcast %cst_242 : f32 to vector<64x256xf32>
    %400 = arith.select %398, %395, %399 : vector<64x256xi1>, vector<64x256xf32>
    %401 = arith.truncf %400 : vector<64x256xf32> to vector<64x256xbf16>
    %c4_243 = arith.constant 4 : index
    %c0_244 = arith.constant 0 : index
    %c0_245 = arith.constant 0 : index
    %402 = vector.load %arg15[%c4_243, %c0_244, %c0_245] : memref<5x128x64xbf16, #tpu.memory_space<vmem>>, vector<1x128x64xbf16>
    %403 = vector.shape_cast %402 : vector<1x128x64xbf16> to vector<128x64xbf16>
    %cst_246 = arith.constant dense<0.000000e+00> : vector<128x256xf32>
    %404 = tpu.matmul %403, %401, %cst_246 {dimension_numbers = #tpu.dot_dimension_numbers<[1], [0], [0], [1], [0, 0, 1, 1], [], []>} : vector<128x64xbf16>, vector<64x256xbf16>, vector<128x256xf32> -> vector<128x256xf32>
    %405 = arith.addf %394, %404 : vector<128x256xf32>
    %c0_247 = arith.constant 0 : index
    %c0_248 = arith.constant 0 : index
    %406 = vector.load %arg16[%c0_247, %c0_248] : memref<128x1xf32, #tpu.memory_space<vmem>>, vector<128x1xf32>
    %407 = vector.broadcast %406 : vector<128x1xf32> to vector<128x256xf32>
    %408 = arith.addf %405, %407 : vector<128x256xf32>
    %c6 = arith.constant 6 : index
    %409 = memref.load %arg1[%c6] : memref<7xf32, #tpu.memory_space<smem>>
    %cst_249 = arith.constant 0.000000e+00 : f32
    %410 = vector.broadcast %cst_249 : f32 to vector<128x256xf32>
    %411 = arith.cmpf ogt, %408, %410 : vector<128x256xf32>
    %412 = vector.broadcast %409 : f32 to vector<128x256xf32>
    %413 = arith.mulf %412, %408 : vector<128x256xf32>
    %414 = arith.select %411, %408, %413 : vector<128x256xi1>, vector<128x256xf32>
    %cst_250 = arith.constant 0.000000e+00 : f32
    %415 = vector.broadcast %cst_250 : f32 to vector<8x256xf32>
    %c2_i32_251 = arith.constant 2 : i32
    %416 = tpu.dynamic_rotate %414 by %c2_i32_251 dim 1 : vector<128x256xf32>, i32 -> vector<128x256xf32>
    %417 = tpu.iota {dimensions = array<i32: 1>} : vector<128x256xi32>
    %c2_i32_252 = arith.constant 2 : i32
    %418 = vector.broadcast %c2_i32_252 : i32 to vector<128x256xi32>
    %419 = arith.cmpi sge, %417, %418 : vector<128x256xi32>
    %cst_253 = arith.constant 0.000000e+00 : f32
    %420 = vector.broadcast %cst_253 : f32 to vector<128x256xf32>
    %421 = arith.select %419, %416, %420 : vector<128x256xi1>, vector<128x256xf32>
    %422 = arith.truncf %421 : vector<128x256xf32> to vector<128x256xbf16>
    %c0_254 = arith.constant 0 : index
    %c0_255 = arith.constant 0 : index
    %c0_256 = arith.constant 0 : index
    %423 = vector.load %arg17[%c0_254, %c0_255, %c0_256] : memref<5x8x128xbf16, #tpu.memory_space<vmem>>, vector<1x8x128xbf16>
    %424 = vector.shape_cast %423 : vector<1x8x128xbf16> to vector<8x128xbf16>
    %cst_257 = arith.constant dense<0.000000e+00> : vector<8x256xf32>
    %425 = tpu.matmul %424, %422, %cst_257 {dimension_numbers = #tpu.dot_dimension_numbers<[1], [0], [0], [1], [0, 0, 1, 1], [], []>} : vector<8x128xbf16>, vector<128x256xbf16>, vector<8x256xf32> -> vector<8x256xf32>
    %426 = arith.addf %415, %425 : vector<8x256xf32>
    %c1_i32_258 = arith.constant 1 : i32
    %427 = tpu.dynamic_rotate %414 by %c1_i32_258 dim 1 : vector<128x256xf32>, i32 -> vector<128x256xf32>
    %428 = tpu.iota {dimensions = array<i32: 1>} : vector<128x256xi32>
    %c1_i32_259 = arith.constant 1 : i32
    %429 = vector.broadcast %c1_i32_259 : i32 to vector<128x256xi32>
    %430 = arith.cmpi sge, %428, %429 : vector<128x256xi32>
    %cst_260 = arith.constant 0.000000e+00 : f32
    %431 = vector.broadcast %cst_260 : f32 to vector<128x256xf32>
    %432 = arith.select %430, %427, %431 : vector<128x256xi1>, vector<128x256xf32>
    %433 = arith.truncf %432 : vector<128x256xf32> to vector<128x256xbf16>
    %c1_261 = arith.constant 1 : index
    %c0_262 = arith.constant 0 : index
    %c0_263 = arith.constant 0 : index
    %434 = vector.load %arg17[%c1_261, %c0_262, %c0_263] : memref<5x8x128xbf16, #tpu.memory_space<vmem>>, vector<1x8x128xbf16>
    %435 = vector.shape_cast %434 : vector<1x8x128xbf16> to vector<8x128xbf16>
    %cst_264 = arith.constant dense<0.000000e+00> : vector<8x256xf32>
    %436 = tpu.matmul %435, %433, %cst_264 {dimension_numbers = #tpu.dot_dimension_numbers<[1], [0], [0], [1], [0, 0, 1, 1], [], []>} : vector<8x128xbf16>, vector<128x256xbf16>, vector<8x256xf32> -> vector<8x256xf32>
    %437 = arith.addf %426, %436 : vector<8x256xf32>
    %438 = arith.truncf %414 : vector<128x256xf32> to vector<128x256xbf16>
    %c2_265 = arith.constant 2 : index
    %c0_266 = arith.constant 0 : index
    %c0_267 = arith.constant 0 : index
    %439 = vector.load %arg17[%c2_265, %c0_266, %c0_267] : memref<5x8x128xbf16, #tpu.memory_space<vmem>>, vector<1x8x128xbf16>
    %440 = vector.shape_cast %439 : vector<1x8x128xbf16> to vector<8x128xbf16>
    %cst_268 = arith.constant dense<0.000000e+00> : vector<8x256xf32>
    %441 = tpu.matmul %440, %438, %cst_268 {dimension_numbers = #tpu.dot_dimension_numbers<[1], [0], [0], [1], [0, 0, 1, 1], [], []>} : vector<8x128xbf16>, vector<128x256xbf16>, vector<8x256xf32> -> vector<8x256xf32>
    %442 = arith.addf %437, %441 : vector<8x256xf32>
    %c255_i32_269 = arith.constant 255 : i32
    %443 = tpu.dynamic_rotate %414 by %c255_i32_269 dim 1 : vector<128x256xf32>, i32 -> vector<128x256xf32>
    %444 = tpu.iota {dimensions = array<i32: 1>} : vector<128x256xi32>
    %c255_i32_270 = arith.constant 255 : i32
    %445 = vector.broadcast %c255_i32_270 : i32 to vector<128x256xi32>
    %446 = arith.cmpi slt, %444, %445 : vector<128x256xi32>
    %cst_271 = arith.constant 0.000000e+00 : f32
    %447 = vector.broadcast %cst_271 : f32 to vector<128x256xf32>
    %448 = arith.select %446, %443, %447 : vector<128x256xi1>, vector<128x256xf32>
    %449 = arith.truncf %448 : vector<128x256xf32> to vector<128x256xbf16>
    %c3_272 = arith.constant 3 : index
    %c0_273 = arith.constant 0 : index
    %c0_274 = arith.constant 0 : index
    %450 = vector.load %arg17[%c3_272, %c0_273, %c0_274] : memref<5x8x128xbf16, #tpu.memory_space<vmem>>, vector<1x8x128xbf16>
    %451 = vector.shape_cast %450 : vector<1x8x128xbf16> to vector<8x128xbf16>
    %cst_275 = arith.constant dense<0.000000e+00> : vector<8x256xf32>
    %452 = tpu.matmul %451, %449, %cst_275 {dimension_numbers = #tpu.dot_dimension_numbers<[1], [0], [0], [1], [0, 0, 1, 1], [], []>} : vector<8x128xbf16>, vector<128x256xbf16>, vector<8x256xf32> -> vector<8x256xf32>
    %453 = arith.addf %442, %452 : vector<8x256xf32>
    %c254_i32_276 = arith.constant 254 : i32
    %454 = tpu.dynamic_rotate %414 by %c254_i32_276 dim 1 : vector<128x256xf32>, i32 -> vector<128x256xf32>
    %455 = tpu.iota {dimensions = array<i32: 1>} : vector<128x256xi32>
    %c254_i32_277 = arith.constant 254 : i32
    %456 = vector.broadcast %c254_i32_277 : i32 to vector<128x256xi32>
    %457 = arith.cmpi slt, %455, %456 : vector<128x256xi32>
    %cst_278 = arith.constant 0.000000e+00 : f32
    %458 = vector.broadcast %cst_278 : f32 to vector<128x256xf32>
    %459 = arith.select %457, %454, %458 : vector<128x256xi1>, vector<128x256xf32>
    %460 = arith.truncf %459 : vector<128x256xf32> to vector<128x256xbf16>
    %c4_279 = arith.constant 4 : index
    %c0_280 = arith.constant 0 : index
    %c0_281 = arith.constant 0 : index
    %461 = vector.load %arg17[%c4_279, %c0_280, %c0_281] : memref<5x8x128xbf16, #tpu.memory_space<vmem>>, vector<1x8x128xbf16>
    %462 = vector.shape_cast %461 : vector<1x8x128xbf16> to vector<8x128xbf16>
    %cst_282 = arith.constant dense<0.000000e+00> : vector<8x256xf32>
    %463 = tpu.matmul %462, %460, %cst_282 {dimension_numbers = #tpu.dot_dimension_numbers<[1], [0], [0], [1], [0, 0, 1, 1], [], []>} : vector<8x128xbf16>, vector<128x256xbf16>, vector<8x256xf32> -> vector<8x256xf32>
    %464 = arith.addf %453, %463 : vector<8x256xf32>
    %c0_283 = arith.constant 0 : index
    %c0_284 = arith.constant 0 : index
    %465 = vector.load %arg18[%c0_283, %c0_284] : memref<8x1xf32, #tpu.memory_space<vmem>>, vector<8x1xf32>
    %466 = vector.broadcast %465 : vector<8x1xf32> to vector<8x256xf32>
    %467 = arith.addf %464, %466 : vector<8x256xf32>
    %c0_285 = arith.constant 0 : index
    %c0_286 = arith.constant 0 : index
    %c0_287 = arith.constant 0 : index
    %468 = vector.load %arg19[%c0_285, %c0_286, %c0_287] : memref<1x8x256xf32, #tpu.memory_space<vmem>>, vector<1x8x256xf32>
    %469 = vector.shape_cast %468 : vector<1x8x256xf32> to vector<8x256xf32>
    %470 = vector.shape_cast %467 : vector<8x256xf32> to vector<1x8x256xf32>
    tpu.vector_store %arg19[%c0_285, %c0_286, %c0_287], %470 {strides = array<i32>} : memref<1x8x256xf32, #tpu.memory_space<vmem>>, vector<1x8x256xf32>,
    return
  }
  func.func @transform_0(%arg0: i32) -> i32 {
    %c0_i32 = arith.constant 0 : i32
    %c0_i32_0 = arith.constant 0 : i32
    return %c0_i32 : i32
  }
  func.func @transform_1(%arg0: i32) -> (i32, i32, i32) {
    %c0_i32 = arith.constant 0 : i32
    %c0_i32_0 = arith.constant 0 : i32
    %c0_i32_1 = arith.constant 0 : i32
    return %arg0, %c0_i32, %c0_i32_0 : i32, i32, i32
  }
  func.func @transform_2(%arg0: i32) -> (i32, i32, i32) {
    %c0_i32 = arith.constant 0 : i32
    %c0_i32_0 = arith.constant 0 : i32
    %c0_i32_1 = arith.constant 0 : i32
    %c0_i32_2 = arith.constant 0 : i32
    return %c0_i32, %c0_i32_0, %c0_i32_1 : i32, i32, i32
  }
  func.func @transform_3(%arg0: i32) -> (i32, i32) {
    %c0_i32 = arith.constant 0 : i32
    %c0_i32_0 = arith.constant 0 : i32
    %c0_i32_1 = arith.constant 0 : i32
    return %c0_i32, %c0_i32_0 : i32, i32
  }
  func.func @transform_4(%arg0: i32) -> (i32, i32, i32) {
    %c0_i32 = arith.constant 0 : i32
    %c0_i32_0 = arith.constant 0 : i32
    %c0_i32_1 = arith.constant 0 : i32
    %c0_i32_2 = arith.constant 0 : i32
    return %c0_i32, %c0_i32_0, %c0_i32_1 : i32, i32, i32
  }
  func.func @transform_5(%arg0: i32) -> (i32, i32) {
    %c0_i32 = arith.constant 0 : i32
    %c0_i32_0 = arith.constant 0 : i32
    %c0_i32_1 = arith.constant 0 : i32
    return %c0_i32, %c0_i32_0 : i32, i32
  }
  func.func @transform_6(%arg0: i32) -> (i32, i32, i32) {
    %c0_i32 = arith.constant 0 : i32
    %c0_i32_0 = arith.constant 0 : i32
    %c0_i32_1 = arith.constant 0 : i32
    %c0_i32_2 = arith.constant 0 : i32
    return %c0_i32, %c0_i32_0, %c0_i32_1 : i32, i32, i32
  }
  func.func @transform_7(%arg0: i32) -> (i32, i32) {
    %c0_i32 = arith.constant 0 : i32
    %c0_i32_0 = arith.constant 0 : i32
    %c0_i32_1 = arith.constant 0 : i32
    return %c0_i32, %c0_i32_0 : i32, i32
  }
  func.func @transform_8(%arg0: i32) -> (i32, i32, i32) {
    %c0_i32 = arith.constant 0 : i32
    %c0_i32_0 = arith.constant 0 : i32
    %c0_i32_1 = arith.constant 0 : i32
    %c0_i32_2 = arith.constant 0 : i32
    return %c0_i32, %c0_i32_0, %c0_i32_1 : i32, i32, i32
  }
  func.func @transform_9(%arg0: i32) -> (i32, i32) {
    %c0_i32 = arith.constant 0 : i32
    %c0_i32_0 = arith.constant 0 : i32
    %c0_i32_1 = arith.constant 0 : i32
    return %c0_i32, %c0_i32_0 : i32, i32
  }
  func.func @transform_10(%arg0: i32) -> (i32, i32, i32) {
    %c0_i32 = arith.constant 0 : i32
    %c0_i32_0 = arith.constant 0 : i32
    %c0_i32_1 = arith.constant 0 : i32
    %c0_i32_2 = arith.constant 0 : i32
    return %c0_i32, %c0_i32_0, %c0_i32_1 : i32, i32, i32
  }
  func.func @transform_11(%arg0: i32) -> (i32, i32) {
    %c0_i32 = arith.constant 0 : i32
    %c0_i32_0 = arith.constant 0 : i32
    %c0_i32_1 = arith.constant 0 : i32
    return %c0_i32, %c0_i32_0 : i32, i32
  }
  func.func @transform_12(%arg0: i32) -> (i32, i32, i32) {
    %c0_i32 = arith.constant 0 : i32
    %c0_i32_0 = arith.constant 0 : i32
    %c0_i32_1 = arith.constant 0 : i32
    %c0_i32_2 = arith.constant 0 : i32
    return %c0_i32, %c0_i32_0, %c0_i32_1 : i32, i32, i32
  }
  func.func @transform_13(%arg0: i32) -> (i32, i32) {
    %c0_i32 = arith.constant 0 : i32
    %c0_i32_0 = arith.constant 0 : i32
    %c0_i32_1 = arith.constant 0 : i32
    return %c0_i32, %c0_i32_0 : i32, i32
  }
  func.func @transform_14(%arg0: i32) -> (i32, i32, i32) {
    %c0_i32 = arith.constant 0 : i32
    %c0_i32_0 = arith.constant 0 : i32
    %c0_i32_1 = arith.constant 0 : i32
    %c0_i32_2 = arith.constant 0 : i32
    return %c0_i32, %c0_i32_0, %c0_i32_1 : i32, i32, i32
  }
  func.func @transform_15(%arg0: i32) -> (i32, i32) {
    %c0_i32 = arith.constant 0 : i32
    %c0_i32_0 = arith.constant 0 : i32
    %c0_i32_1 = arith.constant 0 : i32
    return %c0_i32, %c0_i32_0 : i32, i32
  }
  func.func @transform_16(%arg0: i32) -> (i32, i32, i32) {
    %c0_i32 = arith.constant 0 : i32
    %c0_i32_0 = arith.constant 0 : i32
    %c0_i32_1 = arith.constant 0 : i32
    %c0_i32_2 = arith.constant 0 : i32
    return %c0_i32, %c0_i32_0, %c0_i32_1 : i32, i32, i32
  }
  func.func @transform_17(%arg0: i32) -> (i32, i32) {
    %c0_i32 = arith.constant 0 : i32
    %c0_i32_0 = arith.constant 0 : i32
    %c0_i32_1 = arith.constant 0 : i32
    return %c0_i32, %c0_i32_0 : i32, i32
  }
  func.func @transform_18(%arg0: i32) -> (i32, i32, i32) {
    %c0_i32 = arith.constant 0 : i32
    %c0_i32_0 = arith.constant 0 : i32
    %c0_i32_1 = arith.constant 0 : i32
    return %arg0, %c0_i32, %c0_i32_0 : i32, i32, i32
  }
}

</mosaic_0001>

<llo_original>
// kernel: tpu_custom_call.1
$region0: #{tpu_custom_call.1}
  #allocation0 [shape = 'u32[]', space=smem, size = 0x4, offset = 0x4, fixed_abs, tag = 'smem constant byte address 0x4 - core index']
  #allocation1 [shape = 'u32[144,128]{1,0:T(1,128)}', space=vmem, size = 0x12000, scoped, tag = 'internal scratch']
  %s0 = inlined_call_operand.vmem [shape: f32[7], index: 0, kind: input, shape index: {}]
  %s1 = inlined_call_operand.vmem [shape: f32[2,8,256], index: 1, kind: input, shape index: {}]
  %s2 = inlined_call_operand.vmem [shape: bf16[5,128,8], index: 2, kind: input, shape index: {}]
  %s3 = inlined_call_operand.vmem [shape: f32[128,1], index: 3, kind: input, shape index: {}]
  %s4 = inlined_call_operand.vmem [shape: bf16[5,64,128], index: 4, kind: input, shape index: {}]
  %s5 = inlined_call_operand.vmem [shape: f32[64,1], index: 5, kind: input, shape index: {}]
  %s6 = inlined_call_operand.vmem [shape: bf16[5,32,64], index: 6, kind: input, shape index: {}]
  %s7 = inlined_call_operand.vmem [shape: f32[32,1], index: 7, kind: input, shape index: {}]
  %s8 = inlined_call_operand.vmem [shape: bf16[5,16,32], index: 8, kind: input, shape index: {}]
  %s9 = inlined_call_operand.vmem [shape: f32[16,1], index: 9, kind: input, shape index: {}]
  %s10 = inlined_call_operand.vmem [shape: bf16[5,32,16], index: 10, kind: input, shape index: {}]
  %s11 = inlined_call_operand.vmem [shape: f32[32,1], index: 11, kind: input, shape index: {}]
  %s12 = inlined_call_operand.vmem [shape: bf16[5,64,32], index: 12, kind: input, shape index: {}]
  %s13 = inlined_call_operand.vmem [shape: f32[64,1], index: 13, kind: input, shape index: {}]
  %s14 = inlined_call_operand.vmem [shape: bf16[5,128,64], index: 14, kind: input, shape index: {}]
  %s15 = inlined_call_operand.vmem [shape: f32[128,1], index: 15, kind: input, shape index: {}]
  %s16 = inlined_call_operand.vmem [shape: bf16[5,8,128], index: 16, kind: input, shape index: {}]
  %s17 = inlined_call_operand.vmem [shape: f32[8,1], index: 17, kind: input, shape index: {}]
  %s18 = inlined_call_operand.hbm [shape: f32[2,8,256], index: 18, kind: output, shape index: {}]
  %s19 = sld [smem:[#allocation0]]
  $region109: #{tpu_custom_call.1} parent=0
    _
  %s21 = ssub.s32 1, %s19
  %s22 = scalar_select 0, %s21, %s19
  $region1: #{tpu_custom_call.1} parent=0
    #allocation2 [shape = 'u8[512]{0}', space=smem, size = 0x200, scoped, tag = 'input window, operand 0, single buffered']
    #allocation3 [shape = 's32[2]{0}', space=sflag, size = 0x8, scoped, tag = 'scoped memory for tpu_custom_call.1']
    #allocation4 [shape = 's32[2]{0}', space=sflag, size = 0x8, scoped, tag = 'scoped memory for tpu_custom_call.1']
    #allocation5 [shape = 'u8[16384]{0}', space=vmem, size = 0x4000, scoped, tag = 'output window, operand 0']
    %23 = vsyncpa [#allocation4], 0
    %24 = vsyncpa [#allocation3], 0
    %s25 = scalar_lea.sflag [#allocation3], 1
    %26 = vsyncpa %s25, 0
    loop: start=0, step=1, limit=4
    $region2: #{tpu_custom_call.1} parent=1 // loop_pre_header
      _
    $region3: #{tpu_custom_call.1} parent=1 // loop_header
      %s28 = sphi 0, %s32
      %p29 = scmp.ge.s32.totalorder %s28, 4
      %s36 = sphi 0, %s36
      %s38 = sphi 0, %s36
      %s39 = sphi 0, %s38
      %s53 = sphi 0, %s39
      %s59 = sphi 0, %s61
      %s62 = sphi 0, %s59
      %s63 = sphi 0, %s62
      %s79 = sphi 0, %s63
      %s83 = sphi 0, %s83
      %s85 = sphi 0, %s83
      %s86 = sphi 0, %s85
      %s100 = sphi 0, %s86
      %s104 = sphi 0, %s104
      %s106 = sphi 0, %s104
      %s107 = sphi 0, %s106
      %s121 = sphi 0, %s107
      %s125 = sphi 0, %s125
      %s127 = sphi 0, %s125
      %s128 = sphi 0, %s127
      %s142 = sphi 0, %s128
      %s146 = sphi 0, %s146
      %s148 = sphi 0, %s146
      %s149 = sphi 0, %s148
      %s163 = sphi 0, %s149
      %s167 = sphi 0, %s167
      %s169 = sphi 0, %s167
      %s170 = sphi 0, %s169
      %s184 = sphi 0, %s170
      %s188 = sphi 0, %s188
      %s190 = sphi 0, %s188
      %s191 = sphi 0, %s190
      %s205 = sphi 0, %s191
      %s209 = sphi 0, %s209
      %s211 = sphi 0, %s209
      %s212 = sphi 0, %s211
      %s226 = sphi 0, %s212
      %s230 = sphi 0, %s230
      %s232 = sphi 0, %s230
      %s233 = sphi 0, %s232
      %s247 = sphi 0, %s233
      %s251 = sphi 0, %s251
      %s253 = sphi 0, %s251
      %s254 = sphi 0, %s253
      %s268 = sphi 0, %s254
      %s272 = sphi 0, %s272
      %s274 = sphi 0, %s272
      %s275 = sphi 0, %s274
      %s289 = sphi 0, %s275
      %s293 = sphi 0, %s293
      %s295 = sphi 0, %s293
      %s296 = sphi 0, %s295
      %s310 = sphi 0, %s296
      %s314 = sphi 0, %s314
      %s316 = sphi 0, %s314
      %s317 = sphi 0, %s316
      %s331 = sphi 0, %s317
      %s335 = sphi 0, %s335
      %s337 = sphi 0, %s335
      %s338 = sphi 0, %s337
      %s352 = sphi 0, %s338
      %s356 = sphi 0, %s356
      %s358 = sphi 0, %s356
      %s359 = sphi 0, %s358
      %s373 = sphi 0, %s359
      %s377 = sphi 0, %s377
      %s379 = sphi 0, %s377
      %s380 = sphi 0, %s379
      %s394 = sphi 0, %s380
      %s398 = sphi 0, %s398
      %s400 = sphi 0, %s398
      %s401 = sphi 0, %s400
      %s415 = sphi 0, %s401
      %s421 = sphi 0, %s423
      %s424 = sphi 0, %s421
      %s425 = sphi 0, %s424
      %s441 = sphi 0, %s425
    $region4: #{tpu_custom_call.1} parent=1 // loop_header_branch
      %31 = sbr.rel (%p29) target = $region8
    $region5: #{tpu_custom_call.1} parent=1 // loop_body
      %s33 = ssub.s32 %s28, 1
      %s34 = ssub.s32 %s28, 2
      %s35 = sadd.s32 %s28, 1
      %s37 = sadd.s32 %s36, 1
      %p40 = scmp.eq.s32.totalorder %s28, 1
      %p41 = scmp.ne.s32.totalorder %s36, %s38
      %p42 = scmp.eq.s32.totalorder %s28, 0
      %p43 = por %p41, %p42
      %p44 = scmp.ne.s32.totalorder %s36, %s38
      %p45 = scmp.eq.s32.totalorder %s33, 1
      %p46 = por %p44, %p45
      %p47 = scmp.ne.s32.totalorder %s38, %s39
      %p48 = scmp.eq.s32.totalorder %s33, 0
      %p49 = por %p47, %p48
      %p50 = scmp.ne.s32.totalorder %s38, %s39
      %p51 = scmp.eq.s32.totalorder %s34, 1
      %p52 = por %p50, %p51
      %p54 = scmp.ne.s32.totalorder %s39, %s53
      %p55 = scmp.eq.s32.totalorder %s34, 0
      %p56 = por %p54, %p55
      %s57 = ssub.s32 %s28, %s35
      %p58 = scmp.eq.s32.totalorder %s57, 0
      %s60 = sadd.s32 %s59, 1
      %s61 = scalar_select %p58, %s59, %s60
      %p64 = pneg %p58
      %p65 = scmp.eq.s32.totalorder %s28, 1
      %p66 = por %p64, %p65
      %p67 = scmp.ne.s32.totalorder %s59, %s62
      %p68 = scmp.eq.s32.totalorder %s28, 0
      %p69 = por %p67, %p68
      %p70 = scmp.ne.s32.totalorder %s59, %s62
      %p71 = scmp.eq.s32.totalorder %s33, 1
      %p72 = por %p70, %p71
      %p73 = scmp.ne.s32.totalorder %s62, %s63
      %p74 = scmp.eq.s32.totalorder %s33, 0
      %p75 = por %p73, %p74
      %p76 = scmp.ne.s32.totalorder %s62, %s63
      %p77 = scmp.eq.s32.totalorder %s34, 1
      %p78 = por %p76, %p77
      %p80 = scmp.ne.s32.totalorder %s63, %s79
      %p81 = scmp.eq.s32.totalorder %s34, 0
      %p82 = por %p80, %p81
      %s84 = sadd.s32 %s83, 1
      %p87 = scmp.eq.s32.totalorder %s28, 1
      %p88 = scmp.ne.s32.totalorder %s83, %s85
      %p89 = scmp.eq.s32.totalorder %s28, 0
      %p90 = por %p88, %p89
      %p91 = scmp.ne.s32.totalorder %s83, %s85
      %p92 = scmp.eq.s32.totalorder %s33, 1
      %p93 = por %p91, %p92
      %p94 = scmp.ne.s32.totalorder %s85, %s86
      %p95 = scmp.eq.s32.totalorder %s33, 0
      %p96 = por %p94, %p95
      %p97 = scmp.ne.s32.totalorder %s85, %s86
      %p98 = scmp.eq.s32.totalorder %s34, 1
      %p99 = por %p97, %p98
      %p101 = scmp.ne.s32.totalorder %s86, %s100
      %p102 = scmp.eq.s32.totalorder %s34, 0
      %p103 = por %p101, %p102
      %s105 = sadd.s32 %s104, 1
      %p108 = scmp.eq.s32.totalorder %s28, 1
      %p109 = scmp.ne.s32.totalorder %s104, %s106
      %p110 = scmp.eq.s32.totalorder %s28, 0
      %p111 = por %p109, %p110
      %p112 = scmp.ne.s32.totalorder %s104, %s106
      %p113 = scmp.eq.s32.totalorder %s33, 1
      %p114 = por %p112, %p113
      %p115 = scmp.ne.s32.totalorder %s106, %s107
      %p116 = scmp.eq.s32.totalorder %s33, 0
      %p117 = por %p115, %p116
      %p118 = scmp.ne.s32.totalorder %s106, %s107
      %p119 = scmp.eq.s32.totalorder %s34, 1
      %p120 = por %p118, %p119
      %p122 = scmp.ne.s32.totalorder %s107, %s121
      %p123 = scmp.eq.s32.totalorder %s34, 0
      %p124 = por %p122, %p123
      %s126 = sadd.s32 %s125, 1
      %p129 = scmp.eq.s32.totalorder %s28, 1
      %p130 = scmp.ne.s32.totalorder %s125, %s127
      %p131 = scmp.eq.s32.totalorder %s28, 0
      %p132 = por %p130, %p131
      %p133 = scmp.ne.s32.totalorder %s125, %s127
      %p134 = scmp.eq.s32.totalorder %s33, 1
      %p135 = por %p133, %p134
      %p136 = scmp.ne.s32.totalorder %s127, %s128
      %p137 = scmp.eq.s32.totalorder %s33, 0
      %p138 = por %p136, %p137
      %p139 = scmp.ne.s32.totalorder %s127, %s128
      %p140 = scmp.eq.s32.totalorder %s34, 1
      %p141 = por %p139, %p140
      %p143 = scmp.ne.s32.totalorder %s128, %s142
      %p144 = scmp.eq.s32.totalorder %s34, 0
      %p145 = por %p143, %p144
      %s147 = sadd.s32 %s146, 1
      %p150 = scmp.eq.s32.totalorder %s28, 1
      %p151 = scmp.ne.s32.totalorder %s146, %s148
      %p152 = scmp.eq.s32.totalorder %s28, 0
      %p153 = por %p151, %p152
      %p154 = scmp.ne.s32.totalorder %s146, %s148
      %p155 = scmp.eq.s32.totalorder %s33, 1
      %p156 = por %p154, %p155
      %p157 = scmp.ne.s32.totalorder %s148, %s149
      %p158 = scmp.eq.s32.totalorder %s33, 0
      %p159 = por %p157, %p158
      %p160 = scmp.ne.s32.totalorder %s148, %s149
      %p161 = scmp.eq.s32.totalorder %s34, 1
      %p162 = por %p160, %p161
      %p164 = scmp.ne.s32.totalorder %s149, %s163
      %p165 = scmp.eq.s32.totalorder %s34, 0
      %p166 = por %p164, %p165
      %s168 = sadd.s32 %s167, 1
      %p171 = scmp.eq.s32.totalorder %s28, 1
      %p172 = scmp.ne.s32.totalorder %s167, %s169
      %p173 = scmp.eq.s32.totalorder %s28, 0
      %p174 = por %p172, %p173
      %p175 = scmp.ne.s32.totalorder %s167, %s169
      %p176 = scmp.eq.s32.totalorder %s33, 1
      %p177 = por %p175, %p176
      %p178 = scmp.ne.s32.totalorder %s169, %s170
      %p179 = scmp.eq.s32.totalorder %s33, 0
      %p180 = por %p178, %p179
      %p181 = scmp.ne.s32.totalorder %s169, %s170
      %p182 = scmp.eq.s32.totalorder %s34, 1
      %p183 = por %p181, %p182
      %p185 = scmp.ne.s32.totalorder %s170, %s184
      %p186 = scmp.eq.s32.totalorder %s34, 0
      %p187 = por %p185, %p186
      %s189 = sadd.s32 %s188, 1
      %p192 = scmp.eq.s32.totalorder %s28, 1
      %p193 = scmp.ne.s32.totalorder %s188, %s190
      %p194 = scmp.eq.s32.totalorder %s28, 0
      %p195 = por %p193, %p194
      %p196 = scmp.ne.s32.totalorder %s188, %s190
      %p197 = scmp.eq.s32.totalorder %s33, 1
      %p198 = por %p196, %p197
      %p199 = scmp.ne.s32.totalorder %s190, %s191
      %p200 = scmp.eq.s32.totalorder %s33, 0
      %p201 = por %p199, %p200
      %p202 = scmp.ne.s32.totalorder %s190, %s191
      %p203 = scmp.eq.s32.totalorder %s34, 1
      %p204 = por %p202, %p203
      %p206 = scmp.ne.s32.totalorder %s191, %s205
      %p207 = scmp.eq.s32.totalorder %s34, 0
      %p208 = por %p206, %p207
      %s210 = sadd.s32 %s209, 1
      %p213 = scmp.eq.s32.totalorder %s28, 1
      %p214 = scmp.ne.s32.totalorder %s209, %s211
      %p215 = scmp.eq.s32.totalorder %s28, 0
      %p216 = por %p214, %p215
      %p217 = scmp.ne.s32.totalorder %s209, %s211
      %p218 = scmp.eq.s32.totalorder %s33, 1
      %p219 = por %p217, %p218
      %p220 = scmp.ne.s32.totalorder %s211, %s212
      %p221 = scmp.eq.s32.totalorder %s33, 0
      %p222 = por %p220, %p221
      %p223 = scmp.ne.s32.totalorder %s211, %s212
      %p224 = scmp.eq.s32.totalorder %s34, 1
      %p225 = por %p223, %p224
      %p227 = scmp.ne.s32.totalorder %s212, %s226
      %p228 = scmp.eq.s32.totalorder %s34, 0
      %p229 = por %p227, %p228
      %s231 = sadd.s32 %s230, 1
      %p234 = scmp.eq.s32.totalorder %s28, 1
      %p235 = scmp.ne.s32.totalorder %s230, %s232
      %p236 = scmp.eq.s32.totalorder %s28, 0
      %p237 = por %p235, %p236
      %p238 = scmp.ne.s32.totalorder %s230, %s232
      %p239 = scmp.eq.s32.totalorder %s33, 1
      %p240 = por %p238, %p239
      %p241 = scmp.ne.s32.totalorder %s232, %s233
      %p242 = scmp.eq.s32.totalorder %s33, 0
      %p243 = por %p241, %p242
      %p244 = scmp.ne.s32.totalorder %s232, %s233
      %p245 = scmp.eq.s32.totalorder %s34, 1
      %p246 = por %p244, %p245
      %p248 = scmp.ne.s32.totalorder %s233, %s247
      %p249 = scmp.eq.s32.totalorder %s34, 0
      %p250 = por %p248, %p249
      %s252 = sadd.s32 %s251, 1
      %p255 = scmp.eq.s32.totalorder %s28, 1
      %p256 = scmp.ne.s32.totalorder %s251, %s253
      %p257 = scmp.eq.s32.totalorder %s28, 0
      %p258 = por %p256, %p257
      %p259 = scmp.ne.s32.totalorder %s251, %s253
      %p260 = scmp.eq.s32.totalorder %s33, 1
      %p261 = por %p259, %p260
      %p262 = scmp.ne.s32.totalorder %s253, %s254
      %p263 = scmp.eq.s32.totalorder %s33, 0
      %p264 = por %p262, %p263
      %p265 = scmp.ne.s32.totalorder %s253, %s254
      %p266 = scmp.eq.s32.totalorder %s34, 1
      %p267 = por %p265, %p266
      %p269 = scmp.ne.s32.totalorder %s254, %s268
      %p270 = scmp.eq.s32.totalorder %s34, 0
      %p271 = por %p269, %p270
      %s273 = sadd.s32 %s272, 1
      %p276 = scmp.eq.s32.totalorder %s28, 1
      %p277 = scmp.ne.s32.totalorder %s272, %s274
      %p278 = scmp.eq.s32.totalorder %s28, 0
      %p279 = por %p277, %p278
      %p280 = scmp.ne.s32.totalorder %s272, %s274
      %p281 = scmp.eq.s32.totalorder %s33, 1
      %p282 = por %p280, %p281
      %p283 = scmp.ne.s32.totalorder %s274, %s275
      %p284 = scmp.eq.s32.totalorder %s33, 0
      %p285 = por %p283, %p284
      %p286 = scmp.ne.s32.totalorder %s274, %s275
      %p287 = scmp.eq.s32.totalorder %s34, 1
      %p288 = por %p286, %p287
      %p290 = scmp.ne.s32.totalorder %s275, %s289
      %p291 = scmp.eq.s32.totalorder %s34, 0
      %p292 = por %p290, %p291
      %s294 = sadd.s32 %s293, 1
      %p297 = scmp.eq.s32.totalorder %s28, 1
      %p298 = scmp.ne.s32.totalorder %s293, %s295
      %p299 = scmp.eq.s32.totalorder %s28, 0
      %p300 = por %p298, %p299
      %p301 = scmp.ne.s32.totalorder %s293, %s295
      %p302 = scmp.eq.s32.totalorder %s33, 1
      %p303 = por %p301, %p302
      %p304 = scmp.ne.s32.totalorder %s295, %s296
      %p305 = scmp.eq.s32.totalorder %s33, 0
      %p306 = por %p304, %p305
      %p307 = scmp.ne.s32.totalorder %s295, %s296
      %p308 = scmp.eq.s32.totalorder %s34, 1
      %p309 = por %p307, %p308
      %p311 = scmp.ne.s32.totalorder %s296, %s310
      %p312 = scmp.eq.s32.totalorder %s34, 0
      %p313 = por %p311, %p312
      %s315 = sadd.s32 %s314, 1
      %p318 = scmp.eq.s32.totalorder %s28, 1
      %p319 = scmp.ne.s32.totalorder %s314, %s316
      %p320 = scmp.eq.s32.totalorder %s28, 0
      %p321 = por %p319, %p320
      %p322 = scmp.ne.s32.totalorder %s314, %s316
      %p323 = scmp.eq.s32.totalorder %s33, 1
      %p324 = por %p322, %p323
      %p325 = scmp.ne.s32.totalorder %s316, %s317
      %p326 = scmp.eq.s32.totalorder %s33, 0
      %p327 = por %p325, %p326
      %p328 = scmp.ne.s32.totalorder %s316, %s317
      %p329 = scmp.eq.s32.totalorder %s34, 1
      %p330 = por %p328, %p329
      %p332 = scmp.ne.s32.totalorder %s317, %s331
      %p333 = scmp.eq.s32.totalorder %s34, 0
      %p334 = por %p332, %p333
      %s336 = sadd.s32 %s335, 1
      %p339 = scmp.eq.s32.totalorder %s28, 1
      %p340 = scmp.ne.s32.totalorder %s335, %s337
      %p341 = scmp.eq.s32.totalorder %s28, 0
      %p342 = por %p340, %p341
      %p343 = scmp.ne.s32.totalorder %s335, %s337
      %p344 = scmp.eq.s32.totalorder %s33, 1
      %p345 = por %p343, %p344
      %p346 = scmp.ne.s32.totalorder %s337, %s338
      %p347 = scmp.eq.s32.totalorder %s33, 0
      %p348 = por %p346, %p347
      %p349 = scmp.ne.s32.totalorder %s337, %s338
      %p350 = scmp.eq.s32.totalorder %s34, 1
      %p351 = por %p349, %p350
      %p353 = scmp.ne.s32.totalorder %s338, %s352
      %p354 = scmp.eq.s32.totalorder %s34, 0
      %p355 = por %p353, %p354
      %s357 = sadd.s32 %s356, 1
      %p360 = scmp.eq.s32.totalorder %s28, 1
      %p361 = scmp.ne.s32.totalorder %s356, %s358
      %p362 = scmp.eq.s32.totalorder %s28, 0
      %p363 = por %p361, %p362
      %p364 = scmp.ne.s32.totalorder %s356, %s358
      %p365 = scmp.eq.s32.totalorder %s33, 1
      %p366 = por %p364, %p365
      %p367 = scmp.ne.s32.totalorder %s358, %s359
      %p368 = scmp.eq.s32.totalorder %s33, 0
      %p369 = por %p367, %p368
      %p370 = scmp.ne.s32.totalorder %s358, %s359
      %p371 = scmp.eq.s32.totalorder %s34, 1
      %p372 = por %p370, %p371
      %p374 = scmp.ne.s32.totalorder %s359, %s373
      %p375 = scmp.eq.s32.totalorder %s34, 0
      %p376 = por %p374, %p375
      %s378 = sadd.s32 %s377, 1
      %p381 = scmp.eq.s32.totalorder %s28, 1
      %p382 = scmp.ne.s32.totalorder %s377, %s379
      %p383 = scmp.eq.s32.totalorder %s28, 0
      %p384 = por %p382, %p383
      %p385 = scmp.ne.s32.totalorder %s377, %s379
      %p386 = scmp.eq.s32.totalorder %s33, 1
      %p387 = por %p385, %p386
      %p388 = scmp.ne.s32.totalorder %s379, %s380
      %p389 = scmp.eq.s32.totalorder %s33, 0
      %p390 = por %p388, %p389
      %p391 = scmp.ne.s32.totalorder %s379, %s380
      %p392 = scmp.eq.s32.totalorder %s34, 1
      %p393 = por %p391, %p392
      %p395 = scmp.ne.s32.totalorder %s380, %s394
      %p396 = scmp.eq.s32.totalorder %s34, 0
      %p397 = por %p395, %p396
      %s399 = sadd.s32 %s398, 1
      %p402 = scmp.eq.s32.totalorder %s28, 1
      %p403 = scmp.ne.s32.totalorder %s398, %s400
      %p404 = scmp.eq.s32.totalorder %s28, 0
      %p405 = por %p403, %p404
      %p406 = scmp.ne.s32.totalorder %s398, %s400
      %p407 = scmp.eq.s32.totalorder %s33, 1
      %p408 = por %p406, %p407
      %p409 = scmp.ne.s32.totalorder %s400, %s401
      %p410 = scmp.eq.s32.totalorder %s33, 0
      %p411 = por %p409, %p410
      %p412 = scmp.ne.s32.totalorder %s400, %s401
      %p413 = scmp.eq.s32.totalorder %s34, 1
      %p414 = por %p412, %p413
      %p416 = scmp.ne.s32.totalorder %s401, %s415
      %p417 = scmp.eq.s32.totalorder %s34, 0
      %p418 = por %p416, %p417
      %s419 = ssub.s32 %s28, %s35
      %p420 = scmp.eq.s32.totalorder %s419, 0
      %s422 = sadd.s32 %s421, 1
      %s423 = scalar_select %p420, %s421, %s422
      %p426 = pneg %p420
      %p427 = scmp.eq.s32.totalorder %s28, 1
      %p428 = por %p426, %p427
      %p429 = scmp.ne.s32.totalorder %s421, %s424
      %p430 = scmp.eq.s32.totalorder %s28, 0
      %p431 = por %p429, %p430
      %p432 = scmp.ne.s32.totalorder %s421, %s424
      %p433 = scmp.eq.s32.totalorder %s33, 1
      %p434 = por %p432, %p433
      %p435 = scmp.ne.s32.totalorder %s424, %s425
      %p436 = scmp.eq.s32.totalorder %s33, 0
      %p437 = por %p435, %p436
      %p438 = scmp.ne.s32.totalorder %s424, %s425
      %p439 = scmp.eq.s32.totalorder %s34, 1
      %p440 = por %p438, %p439
      %p442 = scmp.ne.s32.totalorder %s425, %s441
      %p443 = scmp.eq.s32.totalorder %s34, 0
      %p444 = por %p442, %p443
      %p445 = scmp.le.s32.totalorder 1, %s28
      %p446 = scmp.lt.s32.totalorder %s28, 3
      %p447 = pnand %p445, %p446
      %p448 = pneg %p447
      // Predicated region
      $region9: #{tpu_custom_call.1} parent=5 // pred_check
        _
      $region10: #{tpu_custom_call.1} parent=5 // pred_check_branch
        %450 = sbr.rel (%p447) target = $region12
      $region11: #{tpu_custom_call.1} parent=5 // pred_region
        %s451 = ssub.s32 %s28, 1
        // Predicated region
        $region13: #{tpu_custom_call.1} parent=11 // pred_check
          %p452 = pneg %p49
        $region14: #{tpu_custom_call.1} parent=11 // pred_check_branch
          %454 = sbr.rel (%p452) target = $region16
        $region15: #{tpu_custom_call.1} parent=11 // pred_region
          %s456 = ssub.s32 16, 16
          %457 = vsyncadd [#allocation4], %s456
          %s459 = sshll.u32 %s0, 4
          %s460 = int_to_ptr.vmem [resolvable:$true] %s459
          %462 = dma.vmem_to_smem %s460, 16, [#allocation2], [#allocation4]
        $region16: #{tpu_custom_call.1} parent=11 // pred_fallthru
          _
        // Predicated region
        $region17: #{tpu_custom_call.1} parent=11 // pred_check
          %p463 = pneg %p96
        $region18: #{tpu_custom_call.1} parent=11 // pred_check_branch
          %465 = sbr.rel (%p463) target = $region20
        $region19: #{tpu_custom_call.1} parent=11 // pred_region
          _
        $region20: #{tpu_custom_call.1} parent=11 // pred_fallthru
          _
        // Predicated region
        $region21: #{tpu_custom_call.1} parent=11 // pred_check
          %p466 = pneg %p117
        $region22: #{tpu_custom_call.1} parent=11 // pred_check_branch
          %468 = sbr.rel (%p466) target = $region24
        $region23: #{tpu_custom_call.1} parent=11 // pred_region
          _
        $region24: #{tpu_custom_call.1} parent=11 // pred_fallthru
          _
        // Predicated region
        $region25: #{tpu_custom_call.1} parent=11 // pred_check
          %p469 = pneg %p138
        $region26: #{tpu_custom_call.1} parent=11 // pred_check_branch
          %471 = sbr.rel (%p469) target = $region28
        $region27: #{tpu_custom_call.1} parent=11 // pred_region
          _
        $region28: #{tpu_custom_call.1} parent=11 // pred_fallthru
          _
        // Predicated region
        $region29: #{tpu_custom_call.1} parent=11 // pred_check
          %p472 = pneg %p159
        $region30: #{tpu_custom_call.1} parent=11 // pred_check_branch
          %474 = sbr.rel (%p472) target = $region32
        $region31: #{tpu_custom_call.1} parent=11 // pred_region
          _
        $region32: #{tpu_custom_call.1} parent=11 // pred_fallthru
          _
        // Predicated region
        $region33: #{tpu_custom_call.1} parent=11 // pred_check
          %p475 = pneg %p180
        $region34: #{tpu_custom_call.1} parent=11 // pred_check_branch
          %477 = sbr.rel (%p475) target = $region36
        $region35: #{tpu_custom_call.1} parent=11 // pred_region
          _
        $region36: #{tpu_custom_call.1} parent=11 // pred_fallthru
          _
        // Predicated region
        $region37: #{tpu_custom_call.1} parent=11 // pred_check
          %p478 = pneg %p201
        $region38: #{tpu_custom_call.1} parent=11 // pred_check_branch
          %480 = sbr.rel (%p478) target = $region40
        $region39: #{tpu_custom_call.1} parent=11 // pred_region
          _
        $region40: #{tpu_custom_call.1} parent=11 // pred_fallthru
          _
        // Predicated region
        $region41: #{tpu_custom_call.1} parent=11 // pred_check
          %p481 = pneg %p222
        $region42: #{tpu_custom_call.1} parent=11 // pred_check_branch
          %483 = sbr.rel (%p481) target = $region44
        $region43: #{tpu_custom_call.1} parent=11 // pred_region
          _
        $region44: #{tpu_custom_call.1} parent=11 // pred_fallthru
          _
        // Predicated region
        $region45: #{tpu_custom_call.1} parent=11 // pred_check
          %p484 = pneg %p243
        $region46: #{tpu_custom_call.1} parent=11 // pred_check_branch
          %486 = sbr.rel (%p484) target = $region48
        $region47: #{tpu_custom_call.1} parent=11 // pred_region
          _
        $region48: #{tpu_custom_call.1} parent=11 // pred_fallthru
          _
        // Predicated region
        $region49: #{tpu_custom_call.1} parent=11 // pred_check
          %p487 = pneg %p264
        $region50: #{tpu_custom_call.1} parent=11 // pred_check_branch
          %489 = sbr.rel (%p487) target = $region52
        $region51: #{tpu_custom_call.1} parent=11 // pred_region
          _
        $region52: #{tpu_custom_call.1} parent=11 // pred_fallthru
          _
        // Predicated region
        $region53: #{tpu_custom_call.1} parent=11 // pred_check
          %p490 = pneg %p285
        $region54: #{tpu_custom_call.1} parent=11 // pred_check_branch
          %492 = sbr.rel (%p490) target = $region56
        $region55: #{tpu_custom_call.1} parent=11 // pred_region
          _
        $region56: #{tpu_custom_call.1} parent=11 // pred_fallthru
          _
        // Predicated region
        $region57: #{tpu_custom_call.1} parent=11 // pred_check
          %p493 = pneg %p306
        $region58: #{tpu_custom_call.1} parent=11 // pred_check_branch
          %495 = sbr.rel (%p493) target = $region60
        $region59: #{tpu_custom_call.1} parent=11 // pred_region
          _
        $region60: #{tpu_custom_call.1} parent=11 // pred_fallthru
          _
        // Predicated region
        $region61: #{tpu_custom_call.1} parent=11 // pred_check
          %p496 = pneg %p327
        $region62: #{tpu_custom_call.1} parent=11 // pred_check_branch
          %498 = sbr.rel (%p496) target = $region64
        $region63: #{tpu_custom_call.1} parent=11 // pred_region
          _
        $region64: #{tpu_custom_call.1} parent=11 // pred_fallthru
          _
        // Predicated region
        $region65: #{tpu_custom_call.1} parent=11 // pred_check
          %p499 = pneg %p348
        $region66: #{tpu_custom_call.1} parent=11 // pred_check_branch
          %501 = sbr.rel (%p499) target = $region68
        $region67: #{tpu_custom_call.1} parent=11 // pred_region
          _
        $region68: #{tpu_custom_call.1} parent=11 // pred_fallthru
          _
        // Predicated region
        $region69: #{tpu_custom_call.1} parent=11 // pred_check
          %p502 = pneg %p369
        $region70: #{tpu_custom_call.1} parent=11 // pred_check_branch
          %504 = sbr.rel (%p502) target = $region72
        $region71: #{tpu_custom_call.1} parent=11 // pred_region
          _
        $region72: #{tpu_custom_call.1} parent=11 // pred_fallthru
          _
        // Predicated region
        $region73: #{tpu_custom_call.1} parent=11 // pred_check
          %p505 = pneg %p390
        $region74: #{tpu_custom_call.1} parent=11 // pred_check_branch
          %507 = sbr.rel (%p505) target = $region76
        $region75: #{tpu_custom_call.1} parent=11 // pred_region
          _
        $region76: #{tpu_custom_call.1} parent=11 // pred_fallthru
          _
        // Predicated region
        $region77: #{tpu_custom_call.1} parent=11 // pred_check
          %p508 = pneg %p411
        $region78: #{tpu_custom_call.1} parent=11 // pred_check_branch
          %510 = sbr.rel (%p508) target = $region80
        $region79: #{tpu_custom_call.1} parent=11 // pred_region
          _
        $region80: #{tpu_custom_call.1} parent=11 // pred_fallthru
          _
      $region12: #{tpu_custom_call.1} parent=5 // pred_fallthru
        _
      %p511 = scmp.lt.s32.totalorder %s28, 2
      // Predicated region
      $region81: #{tpu_custom_call.1} parent=5 // pred_check
        %p512 = pneg %p511
      $region82: #{tpu_custom_call.1} parent=5 // pred_check_branch
        %514 = sbr.rel (%p512) target = $region84
      $region83: #{tpu_custom_call.1} parent=5 // pred_region
        // Predicated region
        $region85: #{tpu_custom_call.1} parent=83 // pred_check
          %p515 = pneg %p69
        $region86: #{tpu_custom_call.1} parent=83 // pred_check_branch
          %517 = sbr.rel (%p515) target = $region88
        $region87: #{tpu_custom_call.1} parent=83 // pred_region
          %p518 = scmp.lt.s32.totalorder %s28, 1
          %s519 = scalar_select %p518, %s28, 1
          %s520 = smul.addr %s519, 2
          %s521 = smul.addr %s520, 8
          %s522 = scalar_lea.vmem %s1, %s521
        $region88: #{tpu_custom_call.1} parent=83 // pred_fallthru
          _
      $region84: #{tpu_custom_call.1} parent=5 // pred_fallthru
        _
      %p523 = scmp.le.s32.totalorder 1, %s28
      %p524 = scmp.lt.s32.totalorder %s28, 3
      %p525 = pnand %p523, %p524
      %p526 = pneg %p525
      // Predicated region
      $region89: #{tpu_custom_call.1} parent=5 // pred_check
        _
      $region90: #{tpu_custom_call.1} parent=5 // pred_check_branch
        %528 = sbr.rel (%p525) target = $region92
      $region91: #{tpu_custom_call.1} parent=5 // pred_region
        %s529 = ssub.s32 %s28, 1
        // Predicated region
        $region93: #{tpu_custom_call.1} parent=91 // pred_check
          %p530 = pneg %p49
        $region94: #{tpu_custom_call.1} parent=91 // pred_check_branch
          %532 = sbr.rel (%p530) target = $region96
        $region95: #{tpu_custom_call.1} parent=91 // pred_region
          %533 = dma.done [#allocation4], 16
        $region96: #{tpu_custom_call.1} parent=91 // pred_fallthru
          _
        %534 = sfence
        %p535 = pneg %p49
        %p536 = pneg %p46
        %p537 = scmp.lt.s32.totalorder %s33, 1
        %s538 = scalar_select %p537, %s33, 1
        %s539 = smul.addr %s538, 2
        %s540 = smul.addr %s539, 8
        %s541 = scalar_lea.vmem %s1, %s540
        %p542 = pneg %p75
        %p543 = pneg %p72
        %p544 = pneg %p96
        %p545 = pneg %p93
        %p546 = pneg %p117
        %p547 = pneg %p114
        %p548 = pneg %p138
        %p549 = pneg %p135
        %p550 = pneg %p159
        %p551 = pneg %p156
        %p552 = pneg %p180
        %p553 = pneg %p177
        %p554 = pneg %p201
        %p555 = pneg %p198
        %p556 = pneg %p222
        %p557 = pneg %p219
        %p558 = pneg %p243
        %p559 = pneg %p240
        %p560 = pneg %p264
        %p561 = pneg %p261
        %p562 = pneg %p285
        %p563 = pneg %p282
        %p564 = pneg %p306
        %p565 = pneg %p303
        %p566 = pneg %p327
        %p567 = pneg %p324
        %p568 = pneg %p348
        %p569 = pneg %p345
        %p570 = pneg %p369
        %p571 = pneg %p366
        %p572 = pneg %p390
        %p573 = pneg %p387
        %p574 = pneg %p411
        %p575 = pneg %p408
        %p576 = pneg %p437
        %p577 = pneg %p434
        %s578 = sand.u32 %s424, 1
        %s579 = scalar_lea.sflag [#allocation3], %s578
        %s580 = sand.u32 %s424, 1
        %s581 = smul.addr %s580, 16
        %s582 = scalar_lea.vmem [#allocation5], %s581
        %p583 = scmp.lt.s32.totalorder %s33, 1
        %s584 = scalar_select %p583, %s33, 1
        %s585 = smul.addr %s584, 2
        %s586 = smul.addr %s585, 8
        %s587 = scalar_lea.vmem %s1, %s586
        %v589 = vld [vmem:[%s587] sm:$0xff]
        %v590 = vld [vmem:[%s587 + $0x8] sm:$0xff]
        %591 = vrot.lane.b32.xlu0 %v589, 2
        %v592 = vpop.permute.xlu0 %591
        %593 = vrot.lane.b32.xlu0 %v590, 2
        %v594 = vpop.permute.xlu0 %593
        %v595 = vlaneseq
        %v596 = vand.u32 %v595, 127
        %vm597 = vcmp.lt.s32.totalorder %v596, 2
        %v598 = vsel %vm597, %v592, %v594
        %v599 = vsel %vm597, %v594, %v592
        %v600 = vadd.s32 %v596, 128
        %vm601 = vcmp.ge.s32.totalorder %v596, 2
        %vm602 = vcmp.ge.s32.totalorder %v600, 2
        %v603 = vsel %vm601, %v599, 0.0
        %v604 = vsel %vm602, %v598, 0.0
        %v605 = vpack.c.bf16 %v603, %v603
        %v606 = vpack.c.bf16 %v604, %v604
        %v607 = vld [vmem:[%s2] sm:$0xf]
        %v608 = vld [vmem:[%s2 + $0x4] sm:$0xf]
        %v609 = vld [vmem:[%s2 + $0x8] sm:$0xf]
        %v610 = vld [vmem:[%s2 + $0xc] sm:$0xf]
        %v611 = vld [vmem:[%s2 + $0x10] sm:$0xf]
        %v612 = vld [vmem:[%s2 + $0x14] sm:$0xf]
        %v613 = vld [vmem:[%s2 + $0x18] sm:$0xf]
        %v614 = vld [vmem:[%s2 + $0x1c] sm:$0xf]
        %v615 = vld [vmem:[%s2 + $0x20] sm:$0xf]
        %v616 = vld [vmem:[%s2 + $0x24] sm:$0xf]
        %v617 = vld [vmem:[%s2 + $0x28] sm:$0xf]
        %v618 = vld [vmem:[%s2 + $0x2c] sm:$0xf]
        %v619 = vld [vmem:[%s2 + $0x30] sm:$0xf]
        %v620 = vld [vmem:[%s2 + $0x34] sm:$0xf]
        %v621 = vld [vmem:[%s2 + $0x38] sm:$0xf]
        %v622 = vld [vmem:[%s2 + $0x3c] sm:$0xf]
        %623 = vrot.lane.b32.xlu0 %v589, 1
        %v624 = vpop.permute.xlu0 %623
        %625 = vrot.lane.b32.xlu0 %v590, 1
        %v626 = vpop.permute.xlu0 %625
        %vm627 = vcmp.lt.s32.totalorder %v596, 1
        %v628 = vsel %vm627, %v624, %v626
        %v629 = vsel %vm627, %v626, %v624
        %vm630 = vcmp.ge.s32.totalorder %v596, 1
        %vm631 = vcmp.ge.s32.totalorder %v600, 1
        %v632 = vsel %vm630, %v629, 0.0
        %v633 = vsel %vm631, %v628, 0.0
        %v634 = vpack.c.bf16 %v632, %v632
        %v635 = vpack.c.bf16 %v633, %v633
        %s636 = scalar_lea.vmem %s2, 64
        %v637 = vld [vmem:[%s636] sm:$0xf]
        %v638 = vld [vmem:[%s636 + $0x4] sm:$0xf]
        %v639 = vld [vmem:[%s636 + $0x8] sm:$0xf]
        %v640 = vld [vmem:[%s636 + $0xc] sm:$0xf]
        %v641 = vld [vmem:[%s636 + $0x10] sm:$0xf]
        %v642 = vld [vmem:[%s636 + $0x14] sm:$0xf]
        %v643 = vld [vmem:[%s636 + $0x18] sm:$0xf]
        %v644 = vld [vmem:[%s636 + $0x1c] sm:$0xf]
        %v645 = vld [vmem:[%s636 + $0x20] sm:$0xf]
        %v646 = vld [vmem:[%s636 + $0x24] sm:$0xf]
        %v647 = vld [vmem:[%s636 + $0x28] sm:$0xf]
        %v648 = vld [vmem:[%s636 + $0x2c] sm:$0xf]
        %v649 = vld [vmem:[%s636 + $0x30] sm:$0xf]
        %v650 = vld [vmem:[%s636 + $0x34] sm:$0xf]
        %v651 = vld [vmem:[%s636 + $0x38] sm:$0xf]
        %v652 = vld [vmem:[%s636 + $0x3c] sm:$0xf]
        %v669 = vunpack.c.l.b16 %v637
        %v670 = vunpack.c.l.b16 %v638
        %v671 = vunpack.c.l.b16 %v639
        %v672 = vunpack.c.l.b16 %v640
        %v673 = vunpack.c.l.b16 %v641
        %v674 = vunpack.c.l.b16 %v642
        %v675 = vunpack.c.l.b16 %v643
        %v676 = vunpack.c.l.b16 %v644
        %v677 = vunpack.c.l.b16 %v645
        %v678 = vunpack.c.l.b16 %v646
        %v679 = vunpack.c.l.b16 %v647
        %v680 = vunpack.c.l.b16 %v648
        %v681 = vunpack.c.l.b16 %v649
        %v682 = vunpack.c.l.b16 %v650
        %v683 = vunpack.c.l.b16 %v651
        %v684 = vunpack.c.l.b16 %v652
        %v685 = vpack.c.b16 %v670, %v669
        %v686 = vpack.c.b16 %v672, %v671
        %v687 = vpack.c.b16 %v674, %v673
        %v688 = vpack.c.b16 %v676, %v675
        %v689 = vpack.c.b16 %v678, %v677
        %v690 = vpack.c.b16 %v680, %v679
        %v691 = vpack.c.b16 %v682, %v681
        %v692 = vpack.c.b16 %v684, %v683
        %vm693 = vcmask 64512
        %v695 = vsel %vm693, %v685, 0
        %v698 = vsel %vm693, %v686, 0
        %v701 = vsel %vm693, %v687, 0
        %v704 = vsel %vm693, %v688, 0
        %v707 = vsel %vm693, %v689, 0
        %v710 = vsel %vm693, %v690, 0
        %v713 = vsel %vm693, %v691, 0
        %v716 = vsel %vm693, %v692, 0
        %vm718 = vcmask 1043456
        %v720 = vsel %vm718, %v634, 0
        %v723 = vsel %vm718, %v635, 0
        %725 = vmatprep.subr.bf16.mxu0 %v723
        %726 = vmatpush1.bf16.msra.mxu0 %v720
        %727 = vmatprep.subr.bf16.mxu0 0
        %728 = vmatpush1.bf16.msra.mxu0 0
        %729 = vmatprep.subr.bf16.mxu0 0
        %730 = vmatpush1.bf16.msra.mxu0 0
        %731 = vmatprep.subr.bf16.mxu0 0
        %732 = vmatpush1.bf16.msra.mxu0 0
        %733 = vmatprep.subr.bf16.mxu0 0
        %734 = vmatpush1.bf16.msra.mxu0 0
        %735 = vmatprep.subr.bf16.mxu0 0
        %736 = vmatpush1.bf16.msra.mxu0 0
        %737 = vmatprep.subr.bf16.mxu0 0
        %738 = vmatpush1.bf16.msra.mxu0 0
        %739 = vmatprep.subr.bf16.mxu0 0
        %740 = vmatpush1.bf16.msra.mxu0 0
        %741 = vmatprep.subr.bf16.mxu0 0
        %742 = vmatpush1.bf16.msra.mxu0 0
        %743 = vmatprep.subr.bf16.mxu0 0
        %744 = vmatpush1.bf16.msra.mxu0 0
        %745 = vmatprep.subr.bf16.mxu0 0
        %746 = vmatpush1.bf16.msra.mxu0 0
        %747 = vmatprep.subr.bf16.mxu0 0
        %748 = vmatpush1.bf16.msra.mxu0 0
        %749 = vmatprep.subr.bf16.mxu0 0
        %750 = vmatpush1.bf16.msra.mxu0 0
        %751 = vmatprep.subr.bf16.mxu0 0
        %752 = vmatpush1.bf16.msra.mxu0 0
        %753 = vmatprep.subr.bf16.mxu0 0
        %754 = vmatpush1.bf16.msra.mxu0 0
        %755 = vmatprep.subr.bf16.mxu0 0
        %756 = vmatpush1.bf16.msra.mxu0 0
        %757 = vmatprep.mubr.bf16.mxu0 0
        %758 = vmatmul.mubr.bf16.gmra.mrb[0].mxu0 %v695
        %v759 = vpop.f32.mrb[0].mxu0
        %v760 = vadd.f32 0.0, %v759
        %v761 = vpop.f32.mrb[0].mxu0
        %v762 = vadd.f32 0.0, %v761
        %v763 = vpop.f32.mrb[0].mxu0
        %v764 = vadd.f32 0.0, %v763
        %v765 = vpop.f32.mrb[0].mxu0
        %v766 = vadd.f32 0.0, %v765
        %767 = vmatprep.mubr.bf16.mxu0 0
        %768 = vmatmul.mubr.bf16.gmra.mrb[0].mxu0 %v698
        %v769 = vpop.f32.mrb[0].mxu0
        %v770 = vadd.f32 0.0, %v769
        %v771 = vpop.f32.mrb[0].mxu0
        %v772 = vadd.f32 0.0, %v771
        %v773 = vpop.f32.mrb[0].mxu0
        %v774 = vadd.f32 0.0, %v773
        %v775 = vpop.f32.mrb[0].mxu0
        %v776 = vadd.f32 0.0, %v775
        %777 = vmatprep.mubr.bf16.mxu0 0
        %778 = vmatmul.mubr.bf16.gmra.mrb[0].mxu0 %v701
        %v779 = vpop.f32.mrb[0].mxu0
        %v780 = vadd.f32 0.0, %v779
        %v781 = vpop.f32.mrb[0].mxu0
        %v782 = vadd.f32 0.0, %v781
        %v783 = vpop.f32.mrb[0].mxu0
        %v784 = vadd.f32 0.0, %v783
        %v785 = vpop.f32.mrb[0].mxu0
        %v786 = vadd.f32 0.0, %v785
        %787 = vmatprep.mubr.bf16.mxu0 0
        %788 = vmatmul.mubr.bf16.gmra.mrb[0].mxu0 %v704
        %v789 = vpop.f32.mrb[0].mxu0
        %v790 = vadd.f32 0.0, %v789
        %v791 = vpop.f32.mrb[0].mxu0
        %v792 = vadd.f32 0.0, %v791
        %v793 = vpop.f32.mrb[0].mxu0
        %v794 = vadd.f32 0.0, %v793
        %v795 = vpop.f32.mrb[0].mxu0
        %v796 = vadd.f32 0.0, %v795
        %797 = vmatprep.mubr.bf16.mxu0 0
        %798 = vmatmul.mubr.bf16.gmra.mrb[0].mxu0 %v707
        %v799 = vpop.f32.mrb[0].mxu0
        %v800 = vadd.f32 0.0, %v799
        %v801 = vpop.f32.mrb[0].mxu0
        %v802 = vadd.f32 0.0, %v801
        %v803 = vpop.f32.mrb[0].mxu0
        %v804 = vadd.f32 0.0, %v803
        %v805 = vpop.f32.mrb[0].mxu0
        %v806 = vadd.f32 0.0, %v805
        %807 = vmatprep.mubr.bf16.mxu0 0
        %808 = vmatmul.mubr.bf16.gmra.mrb[0].mxu0 %v710
        %v809 = vpop.f32.mrb[0].mxu0
        %v810 = vadd.f32 0.0, %v809
        %v811 = vpop.f32.mrb[0].mxu0
        %v812 = vadd.f32 0.0, %v811
        %v813 = vpop.f32.mrb[0].mxu0
        %v814 = vadd.f32 0.0, %v813
        %v815 = vpop.f32.mrb[0].mxu0
        %v816 = vadd.f32 0.0, %v815
        %817 = vmatprep.mubr.bf16.mxu0 0
        %818 = vmatmul.mubr.bf16.gmra.mrb[0].mxu0 %v713
        %v819 = vpop.f32.mrb[0].mxu0
        %v820 = vadd.f32 0.0, %v819
        %v821 = vpop.f32.mrb[0].mxu0
        %v822 = vadd.f32 0.0, %v821
        %v823 = vpop.f32.mrb[0].mxu0
        %v824 = vadd.f32 0.0, %v823
        %v825 = vpop.f32.mrb[0].mxu0
        %v826 = vadd.f32 0.0, %v825
        %827 = vmatprep.mubr.bf16.mxu0 0
        %828 = vmatmul.mubr.bf16.gmra.mrb[0].mxu0 %v716
        %v829 = vpop.f32.mrb[0].mxu0
        %v830 = vadd.f32 0.0, %v829
        %v831 = vpop.f32.mrb[0].mxu0
        %v832 = vadd.f32 0.0, %v831
        %v833 = vpop.f32.mrb[0].mxu0
        %v834 = vadd.f32 0.0, %v833
        %v835 = vpop.f32.mrb[0].mxu0
        %v836 = vadd.f32 0.0, %v835
        %837 = vdwg.mxu0
        %v854 = vunpack.c.l.b16 %v607
        %v855 = vunpack.c.l.b16 %v608
        %v856 = vunpack.c.l.b16 %v609
        %v857 = vunpack.c.l.b16 %v610
        %v858 = vunpack.c.l.b16 %v611
        %v859 = vunpack.c.l.b16 %v612
        %v860 = vunpack.c.l.b16 %v613
        %v861 = vunpack.c.l.b16 %v614
        %v862 = vunpack.c.l.b16 %v615
        %v863 = vunpack.c.l.b16 %v616
        %v864 = vunpack.c.l.b16 %v617
        %v865 = vunpack.c.l.b16 %v618
        %v866 = vunpack.c.l.b16 %v619
        %v867 = vunpack.c.l.b16 %v620
        %v868 = vunpack.c.l.b16 %v621
        %v869 = vunpack.c.l.b16 %v622
        %v870 = vpack.c.b16 %v855, %v854
        %v871 = vpack.c.b16 %v857, %v856
        %v872 = vpack.c.b16 %v859, %v858
        %v873 = vpack.c.b16 %v861, %v860
        %v874 = vpack.c.b16 %v863, %v862
        %v875 = vpack.c.b16 %v865, %v864
        %v876 = vpack.c.b16 %v867, %v866
        %v877 = vpack.c.b16 %v869, %v868
        %v879 = vsel %vm693, %v870, 0
        %v882 = vsel %vm693, %v871, 0
        %v885 = vsel %vm693, %v872, 0
        %v888 = vsel %vm693, %v873, 0
        %v891 = vsel %vm693, %v874, 0
        %v894 = vsel %vm693, %v875, 0
        %v897 = vsel %vm693, %v876, 0
        %v900 = vsel %vm693, %v877, 0
        %v903 = vsel %vm718, %v605, 0
        %v906 = vsel %vm718, %v606, 0
        %908 = vmatprep.subr.bf16.mxu0 %v906
        %909 = vmatpush1.bf16.msra.mxu0 %v903
        %910 = vmatprep.subr.bf16.mxu0 0
        %911 = vmatpush1.bf16.msra.mxu0 0
        %912 = vmatprep.subr.bf16.mxu0 0
        %913 = vmatpush1.bf16.msra.mxu0 0
        %914 = vmatprep.subr.bf16.mxu0 0
        %915 = vmatpush1.bf16.msra.mxu0 0
        %916 = vmatprep.subr.bf16.mxu0 0
        %917 = vmatpush1.bf16.msra.mxu0 0
        %918 = vmatprep.subr.bf16.mxu0 0
        %919 = vmatpush1.bf16.msra.mxu0 0
        %920 = vmatprep.subr.bf16.mxu0 0
        %921 = vmatpush1.bf16.msra.mxu0 0
        %922 = vmatprep.subr.bf16.mxu0 0
        %923 = vmatpush1.bf16.msra.mxu0 0
        %924 = vmatprep.subr.bf16.mxu0 0
        %925 = vmatpush1.bf16.msra.mxu0 0
        %926 = vmatprep.subr.bf16.mxu0 0
        %927 = vmatpush1.bf16.msra.mxu0 0
        %928 = vmatprep.subr.bf16.mxu0 0
        %929 = vmatpush1.bf16.msra.mxu0 0
        %930 = vmatprep.subr.bf16.mxu0 0
        %931 = vmatpush1.bf16.msra.mxu0 0
        %932 = vmatprep.subr.bf16.mxu0 0
        %933 = vmatpush1.bf16.msra.mxu0 0
        %934 = vmatprep.subr.bf16.mxu0 0
        %935 = vmatpush1.bf16.msra.mxu0 0
        %936 = vmatprep.subr.bf16.mxu0 0
        %937 = vmatpush1.bf16.msra.mxu0 0
        %938 = vmatprep.subr.bf16.mxu0 0
        %939 = vmatpush1.bf16.msra.mxu0 0
        %940 = vmatprep.mubr.bf16.mxu0 0
        %941 = vmatmul.mubr.bf16.gmra.mrb[0].mxu0 %v879
        %v942 = vpop.f32.mrb[0].mxu0
        %v943 = vadd.f32 %v760, %v942
        %v944 = vpop.f32.mrb[0].mxu0
        %v945 = vadd.f32 %v762, %v944
        %v946 = vpop.f32.mrb[0].mxu0
        %v947 = vadd.f32 %v764, %v946
        %v948 = vpop.f32.mrb[0].mxu0
        %v949 = vadd.f32 %v766, %v948
        %950 = vmatprep.mubr.bf16.mxu0 0
        %951 = vmatmul.mubr.bf16.gmra.mrb[0].mxu0 %v882
        %v952 = vpop.f32.mrb[0].mxu0
        %v953 = vadd.f32 %v770, %v952
        %v954 = vpop.f32.mrb[0].mxu0
        %v955 = vadd.f32 %v772, %v954
        %v956 = vpop.f32.mrb[0].mxu0
        %v957 = vadd.f32 %v774, %v956
        %v958 = vpop.f32.mrb[0].mxu0
        %v959 = vadd.f32 %v776, %v958
        %960 = vmatprep.mubr.bf16.mxu0 0
        %961 = vmatmul.mubr.bf16.gmra.mrb[0].mxu0 %v885
        %v962 = vpop.f32.mrb[0].mxu0
        %v963 = vadd.f32 %v780, %v962
        %v964 = vpop.f32.mrb[0].mxu0
        %v965 = vadd.f32 %v782, %v964
        %v966 = vpop.f32.mrb[0].mxu0
        %v967 = vadd.f32 %v784, %v966
        %v968 = vpop.f32.mrb[0].mxu0
        %v969 = vadd.f32 %v786, %v968
        %970 = vmatprep.mubr.bf16.mxu0 0
        %971 = vmatmul.mubr.bf16.gmra.mrb[0].mxu0 %v888
        %v972 = vpop.f32.mrb[0].mxu0
        %v973 = vadd.f32 %v790, %v972
        %v974 = vpop.f32.mrb[0].mxu0
        %v975 = vadd.f32 %v792, %v974
        %v976 = vpop.f32.mrb[0].mxu0
        %v977 = vadd.f32 %v794, %v976
        %v978 = vpop.f32.mrb[0].mxu0
        %v979 = vadd.f32 %v796, %v978
        %980 = vmatprep.mubr.bf16.mxu0 0
        %981 = vmatmul.mubr.bf16.gmra.mrb[0].mxu0 %v891
        %v982 = vpop.f32.mrb[0].mxu0
        %v983 = vadd.f32 %v800, %v982
        %v984 = vpop.f32.mrb[0].mxu0
        %v985 = vadd.f32 %v802, %v984
        %v986 = vpop.f32.mrb[0].mxu0
        %v987 = vadd.f32 %v804, %v986
        %v988 = vpop.f32.mrb[0].mxu0
        %v989 = vadd.f32 %v806, %v988
        %990 = vmatprep.mubr.bf16.mxu0 0
        %991 = vmatmul.mubr.bf16.gmra.mrb[0].mxu0 %v894
        %v992 = vpop.f32.mrb[0].mxu0
        %v993 = vadd.f32 %v810, %v992
        %v994 = vpop.f32.mrb[0].mxu0
        %v995 = vadd.f32 %v812, %v994
        %v996 = vpop.f32.mrb[0].mxu0
        %v997 = vadd.f32 %v814, %v996
        %v998 = vpop.f32.mrb[0].mxu0
        %v999 = vadd.f32 %v816, %v998
        %1000 = vmatprep.mubr.bf16.mxu0 0
        %1001 = vmatmul.mubr.bf16.gmra.mrb[0].mxu0 %v897
        %v1002 = vpop.f32.mrb[0].mxu0
        %v1003 = vadd.f32 %v820, %v1002
        %v1004 = vpop.f32.mrb[0].mxu0
        %v1005 = vadd.f32 %v822, %v1004
        %v1006 = vpop.f32.mrb[0].mxu0
        %v1007 = vadd.f32 %v824, %v1006
        %v1008 = vpop.f32.mrb[0].mxu0
        %v1009 = vadd.f32 %v826, %v1008
        %1010 = vmatprep.mubr.bf16.mxu0 0
        %1011 = vmatmul.mubr.bf16.gmra.mrb[0].mxu0 %v900
        %v1012 = vpop.f32.mrb[0].mxu0
        %v1013 = vadd.f32 %v830, %v1012
        %v1014 = vpop.f32.mrb[0].mxu0
        %v1015 = vadd.f32 %v832, %v1014
        %v1016 = vpop.f32.mrb[0].mxu0
        %v1017 = vadd.f32 %v834, %v1016
        %v1018 = vpop.f32.mrb[0].mxu0
        %v1019 = vadd.f32 %v836, %v1018
        %1020 = vdwg.mxu0
        %v1021 = vpack.c.bf16 %v589, %v589
        %v1022 = vpack.c.bf16 %v590, %v590
        %s1023 = scalar_lea.vmem %s2, 128
        %v1024 = vld [vmem:[%s1023] sm:$0xf]
        %v1025 = vld [vmem:[%s1023 + $0x4] sm:$0xf]
        %v1026 = vld [vmem:[%s1023 + $0x8] sm:$0xf]
        %v1027 = vld [vmem:[%s1023 + $0xc] sm:$0xf]
        %v1028 = vld [vmem:[%s1023 + $0x10] sm:$0xf]
        %v1029 = vld [vmem:[%s1023 + $0x14] sm:$0xf]
        %v1030 = vld [vmem:[%s1023 + $0x18] sm:$0xf]
        %v1031 = vld [vmem:[%s1023 + $0x1c] sm:$0xf]
        %v1032 = vld [vmem:[%s1023 + $0x20] sm:$0xf]
        %v1033 = vld [vmem:[%s1023 + $0x24] sm:$0xf]
        %v1034 = vld [vmem:[%s1023 + $0x28] sm:$0xf]
        %v1035 = vld [vmem:[%s1023 + $0x2c] sm:$0xf]
        %v1036 = vld [vmem:[%s1023 + $0x30] sm:$0xf]
        %v1037 = vld [vmem:[%s1023 + $0x34] sm:$0xf]
        %v1038 = vld [vmem:[%s1023 + $0x38] sm:$0xf]
        %v1039 = vld [vmem:[%s1023 + $0x3c] sm:$0xf]
        %v1056 = vunpack.c.l.b16 %v1024
        %v1057 = vunpack.c.l.b16 %v1025
        %v1058 = vunpack.c.l.b16 %v1026
        %v1059 = vunpack.c.l.b16 %v1027
        %v1060 = vunpack.c.l.b16 %v1028
        %v1061 = vunpack.c.l.b16 %v1029
        %v1062 = vunpack.c.l.b16 %v1030
        %v1063 = vunpack.c.l.b16 %v1031
        %v1064 = vunpack.c.l.b16 %v1032
        %v1065 = vunpack.c.l.b16 %v1033
        %v1066 = vunpack.c.l.b16 %v1034
        %v1067 = vunpack.c.l.b16 %v1035
        %v1068 = vunpack.c.l.b16 %v1036
        %v1069 = vunpack.c.l.b16 %v1037
        %v1070 = vunpack.c.l.b16 %v1038
        %v1071 = vunpack.c.l.b16 %v1039
        %v1072 = vpack.c.b16 %v1057, %v1056
        %v1073 = vpack.c.b16 %v1059, %v1058
        %v1074 = vpack.c.b16 %v1061, %v1060
        %v1075 = vpack.c.b16 %v1063, %v1062
        %v1076 = vpack.c.b16 %v1065, %v1064
        %v1077 = vpack.c.b16 %v1067, %v1066
        %v1078 = vpack.c.b16 %v1069, %v1068
        %v1079 = vpack.c.b16 %v1071, %v1070
        %v1081 = vsel %vm693, %v1072, 0
        %v1084 = vsel %vm693, %v1073, 0
        %v1087 = vsel %vm693, %v1074, 0
        %v1090 = vsel %vm693, %v1075, 0
        %v1093 = vsel %vm693, %v1076, 0
        %v1096 = vsel %vm693, %v1077, 0
        %v1099 = vsel %vm693, %v1078, 0
        %v1102 = vsel %vm693, %v1079, 0
        %v1105 = vsel %vm718, %v1021, 0
        %v1108 = vsel %vm718, %v1022, 0
        %1110 = vmatprep.subr.bf16.mxu0 %v1108
        %1111 = vmatpush1.bf16.msra.mxu0 %v1105
        %1112 = vmatprep.subr.bf16.mxu0 0
        %1113 = vmatpush1.bf16.msra.mxu0 0
        %1114 = vmatprep.subr.bf16.mxu0 0
        %1115 = vmatpush1.bf16.msra.mxu0 0
        %1116 = vmatprep.subr.bf16.mxu0 0
        %1117 = vmatpush1.bf16.msra.mxu0 0
        %1118 = vmatprep.subr.bf16.mxu0 0
        %1119 = vmatpush1.bf16.msra.mxu0 0
        %1120 = vmatprep.subr.bf16.mxu0 0
        %1121 = vmatpush1.bf16.msra.mxu0 0
        %1122 = vmatprep.subr.bf16.mxu0 0
        %1123 = vmatpush1.bf16.msra.mxu0 0
        %1124 = vmatprep.subr.bf16.mxu0 0
        %1125 = vmatpush1.bf16.msra.mxu0 0
        %1126 = vmatprep.subr.bf16.mxu0 0
        %1127 = vmatpush1.bf16.msra.mxu0 0
        %1128 = vmatprep.subr.bf16.mxu0 0
        %1129 = vmatpush1.bf16.msra.mxu0 0
        %1130 = vmatprep.subr.bf16.mxu0 0
        %1131 = vmatpush1.bf16.msra.mxu0 0
        %1132 = vmatprep.subr.bf16.mxu0 0
        %1133 = vmatpush1.bf16.msra.mxu0 0
        %1134 = vmatprep.subr.bf16.mxu0 0
        %1135 = vmatpush1.bf16.msra.mxu0 0
        %1136 = vmatprep.subr.bf16.mxu0 0
        %1137 = vmatpush1.bf16.msra.mxu0 0
        %1138 = vmatprep.subr.bf16.mxu0 0
        %1139 = vmatpush1.bf16.msra.mxu0 0
        %1140 = vmatprep.subr.bf16.mxu0 0
        %1141 = vmatpush1.bf16.msra.mxu0 0
        %1142 = vmatprep.mubr.bf16.mxu0 0
        %1143 = vmatmul.mubr.bf16.gmra.mrb[0].mxu0 %v1081
        %v1144 = vpop.f32.mrb[0].mxu0
        %v1145 = vadd.f32 0.0, %v1144
        %v1146 = vpop.f32.mrb[0].mxu0
        %v1147 = vadd.f32 0.0, %v1146
        %v1148 = vpop.f32.mrb[0].mxu0
        %v1149 = vadd.f32 0.0, %v1148
        %v1150 = vpop.f32.mrb[0].mxu0
        %v1151 = vadd.f32 0.0, %v1150
        %1152 = vmatprep.mubr.bf16.mxu0 0
        %1153 = vmatmul.mubr.bf16.gmra.mrb[0].mxu0 %v1084
        %v1154 = vpop.f32.mrb[0].mxu0
        %v1155 = vadd.f32 0.0, %v1154
        %v1156 = vpop.f32.mrb[0].mxu0
        %v1157 = vadd.f32 0.0, %v1156
        %v1158 = vpop.f32.mrb[0].mxu0
        %v1159 = vadd.f32 0.0, %v1158
        %v1160 = vpop.f32.mrb[0].mxu0
        %v1161 = vadd.f32 0.0, %v1160
        %1162 = vmatprep.mubr.bf16.mxu0 0
        %1163 = vmatmul.mubr.bf16.gmra.mrb[0].mxu0 %v1087
        %v1164 = vpop.f32.mrb[0].mxu0
        %v1165 = vadd.f32 0.0, %v1164
        %v1166 = vpop.f32.mrb[0].mxu0
        %v1167 = vadd.f32 0.0, %v1166
        %v1168 = vpop.f32.mrb[0].mxu0
        %v1169 = vadd.f32 0.0, %v1168
        %v1170 = vpop.f32.mrb[0].mxu0
        %v1171 = vadd.f32 0.0, %v1170
        %1172 = vmatprep.mubr.bf16.mxu0 0
        %1173 = vmatmul.mubr.bf16.gmra.mrb[0].mxu0 %v1090
        %v1174 = vpop.f32.mrb[0].mxu0
        %v1175 = vadd.f32 0.0, %v1174
        %v1176 = vpop.f32.mrb[0].mxu0
        %v1177 = vadd.f32 0.0, %v1176
        %v1178 = vpop.f32.mrb[0].mxu0
        %v1179 = vadd.f32 0.0, %v1178
        %v1180 = vpop.f32.mrb[0].mxu0
        %v1181 = vadd.f32 0.0, %v1180
        %1182 = vmatprep.mubr.bf16.mxu0 0
        %1183 = vmatmul.mubr.bf16.gmra.mrb[0].mxu0 %v1093
        %v1184 = vpop.f32.mrb[0].mxu0
        %v1185 = vadd.f32 0.0, %v1184
        %v1186 = vpop.f32.mrb[0].mxu0
        %v1187 = vadd.f32 0.0, %v1186
        %v1188 = vpop.f32.mrb[0].mxu0
        %v1189 = vadd.f32 0.0, %v1188
        %v1190 = vpop.f32.mrb[0].mxu0
        %v1191 = vadd.f32 0.0, %v1190
        %1192 = vmatprep.mubr.bf16.mxu0 0
        %1193 = vmatmul.mubr.bf16.gmra.mrb[0].mxu0 %v1096
        %v1194 = vpop.f32.mrb[0].mxu0
        %v1195 = vadd.f32 0.0, %v1194
        %v1196 = vpop.f32.mrb[0].mxu0
        %v1197 = vadd.f32 0.0, %v1196
        %v1198 = vpop.f32.mrb[0].mxu0
        %v1199 = vadd.f32 0.0, %v1198
        %v1200 = vpop.f32.mrb[0].mxu0
        %v1201 = vadd.f32 0.0, %v1200
        %1202 = vmatprep.mubr.bf16.mxu0 0
        %1203 = vmatmul.mubr.bf16.gmra.mrb[0].mxu0 %v1099
        %v1204 = vpop.f32.mrb[0].mxu0
        %v1205 = vadd.f32 0.0, %v1204
        %v1206 = vpop.f32.mrb[0].mxu0
        %v1207 = vadd.f32 0.0, %v1206
        %v1208 = vpop.f32.mrb[0].mxu0
        %v1209 = vadd.f32 0.0, %v1208
        %v1210 = vpop.f32.mrb[0].mxu0
        %v1211 = vadd.f32 0.0, %v1210
        %1212 = vmatprep.mubr.bf16.mxu0 0
        %1213 = vmatmul.mubr.bf16.gmra.mrb[0].mxu0 %v1102
        %v1214 = vpop.f32.mrb[0].mxu0
        %v1215 = vadd.f32 0.0, %v1214
        %v1216 = vpop.f32.mrb[0].mxu0
        %v1217 = vadd.f32 0.0, %v1216
        %v1218 = vpop.f32.mrb[0].mxu0
        %v1219 = vadd.f32 0.0, %v1218
        %v1220 = vpop.f32.mrb[0].mxu0
        %v1221 = vadd.f32 0.0, %v1220
        %1222 = vdwg.mxu0
        %v1223 = vadd.f32 %v943, %v1145
        %v1224 = vadd.f32 %v945, %v1147
        %v1225 = vadd.f32 %v947, %v1149
        %v1226 = vadd.f32 %v949, %v1151
        %v1227 = vadd.f32 %v953, %v1155
        %v1228 = vadd.f32 %v955, %v1157
        %v1229 = vadd.f32 %v957, %v1159
        %v1230 = vadd.f32 %v959, %v1161
        %v1231 = vadd.f32 %v963, %v1165
        %v1232 = vadd.f32 %v965, %v1167
        %v1233 = vadd.f32 %v967, %v1169
        %v1234 = vadd.f32 %v969, %v1171
        %v1235 = vadd.f32 %v973, %v1175
        %v1236 = vadd.f32 %v975, %v1177
        %v1237 = vadd.f32 %v977, %v1179
        %v1238 = vadd.f32 %v979, %v1181
        %v1239 = vadd.f32 %v983, %v1185
        %v1240 = vadd.f32 %v985, %v1187
        %v1241 = vadd.f32 %v987, %v1189
        %v1242 = vadd.f32 %v989, %v1191
        %v1243 = vadd.f32 %v993, %v1195
        %v1244 = vadd.f32 %v995, %v1197
        %v1245 = vadd.f32 %v997, %v1199
        %v1246 = vadd.f32 %v999, %v1201
        %v1247 = vadd.f32 %v1003, %v1205
        %v1248 = vadd.f32 %v1005, %v1207
        %v1249 = vadd.f32 %v1007, %v1209
        %v1250 = vadd.f32 %v1009, %v1211
        %v1251 = vadd.f32 %v1013, %v1215
        %v1252 = vadd.f32 %v1015, %v1217
        %v1253 = vadd.f32 %v1017, %v1219
        %v1254 = vadd.f32 %v1019, %v1221
        %1255 = vrot.lane.b32.xlu0 %v589, 127
        %v1256 = vpop.permute.xlu0 %1255
        %1257 = vrot.lane.b32.xlu0 %v590, 127
        %v1258 = vpop.permute.xlu0 %1257
        %vm1259 = vcmp.lt.s32.totalorder %v596, 127
        %v1260 = vsel %vm1259, %v1256, %v1258
        %v1261 = vsel %vm1259, %v1258, %v1256
        %vm1262 = vcmp.lt.s32.totalorder %v596, 255
        %vm1263 = vcmp.lt.s32.totalorder %v600, 255
        %v1264 = vsel %vm1262, %v1260, 0.0
        %v1265 = vsel %vm1263, %v1261, 0.0
        %v1266 = vpack.c.bf16 %v1264, %v1264
        %v1267 = vpack.c.bf16 %v1265, %v1265
        %s1268 = scalar_lea.vmem %s2, 192
        %v1269 = vld [vmem:[%s1268] sm:$0xf]
        %v1270 = vld [vmem:[%s1268 + $0x4] sm:$0xf]
        %v1271 = vld [vmem:[%s1268 + $0x8] sm:$0xf]
        %v1272 = vld [vmem:[%s1268 + $0xc] sm:$0xf]
        %v1273 = vld [vmem:[%s1268 + $0x10] sm:$0xf]
        %v1274 = vld [vmem:[%s1268 + $0x14] sm:$0xf]
        %v1275 = vld [vmem:[%s1268 + $0x18] sm:$0xf]
        %v1276 = vld [vmem:[%s1268 + $0x1c] sm:$0xf]
        %v1277 = vld [vmem:[%s1268 + $0x20] sm:$0xf]
        %v1278 = vld [vmem:[%s1268 + $0x24] sm:$0xf]
        %v1279 = vld [vmem:[%s1268 + $0x28] sm:$0xf]
        %v1280 = vld [vmem:[%s1268 + $0x2c] sm:$0xf]
        %v1281 = vld [vmem:[%s1268 + $0x30] sm:$0xf]
        %v1282 = vld [vmem:[%s1268 + $0x34] sm:$0xf]
        %v1283 = vld [vmem:[%s1268 + $0x38] sm:$0xf]
        %v1284 = vld [vmem:[%s1268 + $0x3c] sm:$0xf]
        %v1301 = vunpack.c.l.b16 %v1269
        %v1302 = vunpack.c.l.b16 %v1270
        %v1303 = vunpack.c.l.b16 %v1271
        %v1304 = vunpack.c.l.b16 %v1272
        %v1305 = vunpack.c.l.b16 %v1273
        %v1306 = vunpack.c.l.b16 %v1274
        %v1307 = vunpack.c.l.b16 %v1275
        %v1308 = vunpack.c.l.b16 %v1276
        %v1309 = vunpack.c.l.b16 %v1277
        %v1310 = vunpack.c.l.b16 %v1278
        %v1311 = vunpack.c.l.b16 %v1279
        %v1312 = vunpack.c.l.b16 %v1280
        %v1313 = vunpack.c.l.b16 %v1281
        %v1314 = vunpack.c.l.b16 %v1282
        %v1315 = vunpack.c.l.b16 %v1283
        %v1316 = vunpack.c.l.b16 %v1284
        %v1317 = vpack.c.b16 %v1302, %v1301
        %v1318 = vpack.c.b16 %v1304, %v1303
        %v1319 = vpack.c.b16 %v1306, %v1305
        %v1320 = vpack.c.b16 %v1308, %v1307
        %v1321 = vpack.c.b16 %v1310, %v1309
        %v1322 = vpack.c.b16 %v1312, %v1311
        %v1323 = vpack.c.b16 %v1314, %v1313
        %v1324 = vpack.c.b16 %v1316, %v1315
        %v1326 = vsel %vm693, %v1317, 0
        %v1329 = vsel %vm693, %v1318, 0
        %v1332 = vsel %vm693, %v1319, 0
        %v1335 = vsel %vm693, %v1320, 0
        %v1338 = vsel %vm693, %v1321, 0
        %v1341 = vsel %vm693, %v1322, 0
        %v1344 = vsel %vm693, %v1323, 0
        %v1347 = vsel %vm693, %v1324, 0
        %v1350 = vsel %vm718, %v1266, 0
        %v1353 = vsel %vm718, %v1267, 0
        %1355 = vmatprep.subr.bf16.mxu0 %v1353
        %1356 = vmatpush1.bf16.msra.mxu0 %v1350
        %1357 = vmatprep.subr.bf16.mxu0 0
        %1358 = vmatpush1.bf16.msra.mxu0 0
        %1359 = vmatprep.subr.bf16.mxu0 0
        %1360 = vmatpush1.bf16.msra.mxu0 0
        %1361 = vmatprep.subr.bf16.mxu0 0
        %1362 = vmatpush1.bf16.msra.mxu0 0
        %1363 = vmatprep.subr.bf16.mxu0 0
        %1364 = vmatpush1.bf16.msra.mxu0 0
        %1365 = vmatprep.subr.bf16.mxu0 0
        %1366 = vmatpush1.bf16.msra.mxu0 0
        %1367 = vmatprep.subr.bf16.mxu0 0
        %1368 = vmatpush1.bf16.msra.mxu0 0
        %1369 = vmatprep.subr.bf16.mxu0 0
        %1370 = vmatpush1.bf16.msra.mxu0 0
        %1371 = vmatprep.subr.bf16.mxu0 0
        %1372 = vmatpush1.bf16.msra.mxu0 0
        %1373 = vmatprep.subr.bf16.mxu0 0
        %1374 = vmatpush1.bf16.msra.mxu0 0
        %1375 = vmatprep.subr.bf16.mxu0 0
        %1376 = vmatpush1.bf16.msra.mxu0 0
        %1377 = vmatprep.subr.bf16.mxu0 0
        %1378 = vmatpush1.bf16.msra.mxu0 0
        %1379 = vmatprep.subr.bf16.mxu0 0
        %1380 = vmatpush1.bf16.msra.mxu0 0
        %1381 = vmatprep.subr.bf16.mxu0 0
        %1382 = vmatpush1.bf16.msra.mxu0 0
        %1383 = vmatprep.subr.bf16.mxu0 0
        %1384 = vmatpush1.bf16.msra.mxu0 0
        %1385 = vmatprep.subr.bf16.mxu0 0
        %1386 = vmatpush1.bf16.msra.mxu0 0
        %1387 = vmatprep.mubr.bf16.mxu0 0
        %1388 = vmatmul.mubr.bf16.gmra.mrb[0].mxu0 %v1326
        %v1389 = vpop.f32.mrb[0].mxu0
        %v1390 = vadd.f32 0.0, %v1389
        %v1391 = vpop.f32.mrb[0].mxu0
        %v1392 = vadd.f32 0.0, %v1391
        %v1393 = vpop.f32.mrb[0].mxu0
        %v1394 = vadd.f32 0.0, %v1393
        %v1395 = vpop.f32.mrb[0].mxu0
        %v1396 = vadd.f32 0.0, %v1395
        %1397 = vmatprep.mubr.bf16.mxu0 0
        %1398 = vmatmul.mubr.bf16.gmra.mrb[0].mxu0 %v1329
        %v1399 = vpop.f32.mrb[0].mxu0
        %v1400 = vadd.f32 0.0, %v1399
        %v1401 = vpop.f32.mrb[0].mxu0
        %v1402 = vadd.f32 0.0, %v1401
        %v1403 = vpop.f32.mrb[0].mxu0
        %v1404 = vadd.f32 0.0, %v1403
        %v1405 = vpop.f32.mrb[0].mxu0
        %v1406 = vadd.f32 0.0, %v1405
        %1407 = vmatprep.mubr.bf16.mxu0 0
        %1408 = vmatmul.mubr.bf16.gmra.mrb[0].mxu0 %v1332
        %v1409 = vpop.f32.mrb[0].mxu0
        %v1410 = vadd.f32 0.0, %v1409
        %v1411 = vpop.f32.mrb[0].mxu0
        %v1412 = vadd.f32 0.0, %v1411
        %v1413 = vpop.f32.mrb[0].mxu0
        %v1414 = vadd.f32 0.0, %v1413
        %v1415 = vpop.f32.mrb[0].mxu0
        %v1416 = vadd.f32 0.0, %v1415
        %1417 = vmatprep.mubr.bf16.mxu0 0
        %1418 = vmatmul.mubr.bf16.gmra.mrb[0].mxu0 %v1335
        %v1419 = vpop.f32.mrb[0].mxu0
        %v1420 = vadd.f32 0.0, %v1419
        %v1421 = vpop.f32.mrb[0].mxu0
        %v1422 = vadd.f32 0.0, %v1421
        %v1423 = vpop.f32.mrb[0].mxu0
        %v1424 = vadd.f32 0.0, %v1423
        %v1425 = vpop.f32.mrb[0].mxu0
        %v1426 = vadd.f32 0.0, %v1425
        %1427 = vmatprep.mubr.bf16.mxu0 0
        %1428 = vmatmul.mubr.bf16.gmra.mrb[0].mxu0 %v1338
        %v1429 = vpop.f32.mrb[0].mxu0
        %v1430 = vadd.f32 0.0, %v1429
        %v1431 = vpop.f32.mrb[0].mxu0
        %v1432 = vadd.f32 0.0, %v1431
        %v1433 = vpop.f32.mrb[0].mxu0
        %v1434 = vadd.f32 0.0, %v1433
        %v1435 = vpop.f32.mrb[0].mxu0
        %v1436 = vadd.f32 0.0, %v1435
        %1437 = vmatprep.mubr.bf16.mxu0 0
        %1438 = vmatmul.mubr.bf16.gmra.mrb[0].mxu0 %v1341
        %v1439 = vpop.f32.mrb[0].mxu0
        %v1440 = vadd.f32 0.0, %v1439
        %v1441 = vpop.f32.mrb[0].mxu0
        %v1442 = vadd.f32 0.0, %v1441
        %v1443 = vpop.f32.mrb[0].mxu0
        %v1444 = vadd.f32 0.0, %v1443
        %v1445 = vpop.f32.mrb[0].mxu0
        %v1446 = vadd.f32 0.0, %v1445
        %1447 = vmatprep.mubr.bf16.mxu0 0
        %1448 = vmatmul.mubr.bf16.gmra.mrb[0].mxu0 %v1344
        %v1449 = vpop.f32.mrb[0].mxu0
        %v1450 = vadd.f32 0.0, %v1449
        %v1451 = vpop.f32.mrb[0].mxu0
        %v1452 = vadd.f32 0.0, %v1451
        %v1453 = vpop.f32.mrb[0].mxu0
        %v1454 = vadd.f32 0.0, %v1453
        %v1455 = vpop.f32.mrb[0].mxu0
        %v1456 = vadd.f32 0.0, %v1455
        %1457 = vmatprep.mubr.bf16.mxu0 0
        %1458 = vmatmul.mubr.bf16.gmra.mrb[0].mxu0 %v1347
        %v1459 = vpop.f32.mrb[0].mxu0
        %v1460 = vadd.f32 0.0, %v1459
        %v1461 = vpop.f32.mrb[0].mxu0
        %v1462 = vadd.f32 0.0, %v1461
        %v1463 = vpop.f32.mrb[0].mxu0
        %v1464 = vadd.f32 0.0, %v1463
        %v1465 = vpop.f32.mrb[0].mxu0
        %v1466 = vadd.f32 0.0, %v1465
        %1467 = vdwg.mxu0
        %v1468 = vadd.f32 %v1223, %v1390
        %v1469 = vadd.f32 %v1224, %v1392
        %v1470 = vadd.f32 %v1225, %v1394
        %v1471 = vadd.f32 %v1226, %v1396
        %v1472 = vadd.f32 %v1227, %v1400
        %v1473 = vadd.f32 %v1228, %v1402
        %v1474 = vadd.f32 %v1229, %v1404
        %v1475 = vadd.f32 %v1230, %v1406
        %v1476 = vadd.f32 %v1231, %v1410
        %v1477 = vadd.f32 %v1232, %v1412
        %v1478 = vadd.f32 %v1233, %v1414
        %v1479 = vadd.f32 %v1234, %v1416
        %v1480 = vadd.f32 %v1235, %v1420
        %v1481 = vadd.f32 %v1236, %v1422
        %v1482 = vadd.f32 %v1237, %v1424
        %v1483 = vadd.f32 %v1238, %v1426
        %v1484 = vadd.f32 %v1239, %v1430
        %v1485 = vadd.f32 %v1240, %v1432
        %v1486 = vadd.f32 %v1241, %v1434
        %v1487 = vadd.f32 %v1242, %v1436
        %v1488 = vadd.f32 %v1243, %v1440
        %v1489 = vadd.f32 %v1244, %v1442
        %v1490 = vadd.f32 %v1245, %v1444
        %v1491 = vadd.f32 %v1246, %v1446
        %v1492 = vadd.f32 %v1247, %v1450
        %v1493 = vadd.f32 %v1248, %v1452
        %v1494 = vadd.f32 %v1249, %v1454
        %v1495 = vadd.f32 %v1250, %v1456
        %v1496 = vadd.f32 %v1251, %v1460
        %v1497 = vadd.f32 %v1252, %v1462
        %v1498 = vadd.f32 %v1253, %v1464
        %v1499 = vadd.f32 %v1254, %v1466
        %1500 = vrot.lane.b32.xlu0 %v589, 126
        %v1501 = vpop.permute.xlu0 %1500
        %1502 = vrot.lane.b32.xlu0 %v590, 126
        %v1503 = vpop.permute.xlu0 %1502
        %vm1504 = vcmp.lt.s32.totalorder %v596, 126
        %v1505 = vsel %vm1504, %v1501, %v1503
        %v1506 = vsel %vm1504, %v1503, %v1501
        %vm1507 = vcmp.lt.s32.totalorder %v596, 254
        %vm1508 = vcmp.lt.s32.totalorder %v600, 254
        %v1509 = vsel %vm1507, %v1505, 0.0
        %v1510 = vsel %vm1508, %v1506, 0.0
        %v1511 = vpack.c.bf16 %v1509, %v1509
        %v1512 = vpack.c.bf16 %v1510, %v1510
        %s1513 = scalar_lea.vmem %s2, 256
        %v1514 = vld [vmem:[%s1513] sm:$0xf]
        %v1515 = vld [vmem:[%s1513 + $0x4] sm:$0xf]
        %v1516 = vld [vmem:[%s1513 + $0x8] sm:$0xf]
        %v1517 = vld [vmem:[%s1513 + $0xc] sm:$0xf]
        %v1518 = vld [vmem:[%s1513 + $0x10] sm:$0xf]
        %v1519 = vld [vmem:[%s1513 + $0x14] sm:$0xf]
        %v1520 = vld [vmem:[%s1513 + $0x18] sm:$0xf]
        %v1521 = vld [vmem:[%s1513 + $0x1c] sm:$0xf]
        %v1522 = vld [vmem:[%s1513 + $0x20] sm:$0xf]
        %v1523 = vld [vmem:[%s1513 + $0x24] sm:$0xf]
        %v1524 = vld [vmem:[%s1513 + $0x28] sm:$0xf]
        %v1525 = vld [vmem:[%s1513 + $0x2c] sm:$0xf]
        %v1526 = vld [vmem:[%s1513 + $0x30] sm:$0xf]
        %v1527 = vld [vmem:[%s1513 + $0x34] sm:$0xf]
        %v1528 = vld [vmem:[%s1513 + $0x38] sm:$0xf]
        %v1529 = vld [vmem:[%s1513 + $0x3c] sm:$0xf]
        %v1546 = vunpack.c.l.b16 %v1514
        %v1547 = vunpack.c.l.b16 %v1515
        %v1548 = vunpack.c.l.b16 %v1516
        %v1549 = vunpack.c.l.b16 %v1517
        %v1550 = vunpack.c.l.b16 %v1518
        %v1551 = vunpack.c.l.b16 %v1519
        %v1552 = vunpack.c.l.b16 %v1520
        %v1553 = vunpack.c.l.b16 %v1521
        %v1554 = vunpack.c.l.b16 %v1522
        %v1555 = vunpack.c.l.b16 %v1523
        %v1556 = vunpack.c.l.b16 %v1524
        %v1557 = vunpack.c.l.b16 %v1525
        %v1558 = vunpack.c.l.b16 %v1526
        %v1559 = vunpack.c.l.b16 %v1527
        %v1560 = vunpack.c.l.b16 %v1528
        %v1561 = vunpack.c.l.b16 %v1529
        %v1562 = vpack.c.b16 %v1547, %v1546
        %v1563 = vpack.c.b16 %v1549, %v1548
        %v1564 = vpack.c.b16 %v1551, %v1550
        %v1565 = vpack.c.b16 %v1553, %v1552
        %v1566 = vpack.c.b16 %v1555, %v1554
        %v1567 = vpack.c.b16 %v1557, %v1556
        %v1568 = vpack.c.b16 %v1559, %v1558
        %v1569 = vpack.c.b16 %v1561, %v1560
        %v1571 = vsel %vm693, %v1562, 0
        %v1574 = vsel %vm693, %v1563, 0
        %v1577 = vsel %vm693, %v1564, 0
        %v1580 = vsel %vm693, %v1565, 0
        %v1583 = vsel %vm693, %v1566, 0
        %v1586 = vsel %vm693, %v1567, 0
        %v1589 = vsel %vm693, %v1568, 0
        %v1592 = vsel %vm693, %v1569, 0
        %v1595 = vsel %vm718, %v1511, 0
        %v1598 = vsel %vm718, %v1512, 0
        %1600 = vmatprep.subr.bf16.mxu0 %v1598
        %1601 = vmatpush1.bf16.msra.mxu0 %v1595
        %1602 = vmatprep.subr.bf16.mxu0 0
        %1603 = vmatpush1.bf16.msra.mxu0 0
        %1604 = vmatprep.subr.bf16.mxu0 0
        %1605 = vmatpush1.bf16.msra.mxu0 0
        %1606 = vmatprep.subr.bf16.mxu0 0
        %1607 = vmatpush1.bf16.msra.mxu0 0
        %1608 = vmatprep.subr.bf16.mxu0 0
        %1609 = vmatpush1.bf16.msra.mxu0 0
        %1610 = vmatprep.subr.bf16.mxu0 0
        %1611 = vmatpush1.bf16.msra.mxu0 0
        %1612 = vmatprep.subr.bf16.mxu0 0
        %1613 = vmatpush1.bf16.msra.mxu0 0
        %1614 = vmatprep.subr.bf16.mxu0 0
        %1615 = vmatpush1.bf16.msra.mxu0 0
        %1616 = vmatprep.subr.bf16.mxu0 0
        %1617 = vmatpush1.bf16.msra.mxu0 0
        %1618 = vmatprep.subr.bf16.mxu0 0
        %1619 = vmatpush1.bf16.msra.mxu0 0
        %1620 = vmatprep.subr.bf16.mxu0 0
        %1621 = vmatpush1.bf16.msra.mxu0 0
        %1622 = vmatprep.subr.bf16.mxu0 0
        %1623 = vmatpush1.bf16.msra.mxu0 0
        %1624 = vmatprep.subr.bf16.mxu0 0
        %1625 = vmatpush1.bf16.msra.mxu0 0
        %1626 = vmatprep.subr.bf16.mxu0 0
        %1627 = vmatpush1.bf16.msra.mxu0 0
        %1628 = vmatprep.subr.bf16.mxu0 0
        %1629 = vmatpush1.bf16.msra.mxu0 0
        %1630 = vmatprep.subr.bf16.mxu0 0
        %1631 = vmatpush1.bf16.msra.mxu0 0
        %1632 = vmatprep.mubr.bf16.mxu0 0
        %1633 = vmatmul.mubr.bf16.gmra.mrb[0].mxu0 %v1571
        %v1634 = vpop.f32.mrb[0].mxu0
        %v1635 = vadd.f32 0.0, %v1634
        %v1636 = vpop.f32.mrb[0].mxu0
        %v1637 = vadd.f32 0.0, %v1636
        %v1638 = vpop.f32.mrb[0].mxu0
        %v1639 = vadd.f32 0.0, %v1638
        %v1640 = vpop.f32.mrb[0].mxu0
        %v1641 = vadd.f32 0.0, %v1640
        %1642 = vmatprep.mubr.bf16.mxu0 0
        %1643 = vmatmul.mubr.bf16.gmra.mrb[0].mxu0 %v1574
        %v1644 = vpop.f32.mrb[0].mxu0
        %v1645 = vadd.f32 0.0, %v1644
        %v1646 = vpop.f32.mrb[0].mxu0
        %v1647 = vadd.f32 0.0, %v1646
        %v1648 = vpop.f32.mrb[0].mxu0
        %v1649 = vadd.f32 0.0, %v1648
        %v1650 = vpop.f32.mrb[0].mxu0
        %v1651 = vadd.f32 0.0, %v1650
        %1652 = vmatprep.mubr.bf16.mxu0 0
        %1653 = vmatmul.mubr.bf16.gmra.mrb[0].mxu0 %v1577
        %v1654 = vpop.f32.mrb[0].mxu0
        %v1655 = vadd.f32 0.0, %v1654
        %v1656 = vpop.f32.mrb[0].mxu0
        %v1657 = vadd.f32 0.0, %v1656
        %v1658 = vpop.f32.mrb[0].mxu0
        %v1659 = vadd.f32 0.0, %v1658
        %v1660 = vpop.f32.mrb[0].mxu0
        %v1661 = vadd.f32 0.0, %v1660
        %1662 = vmatprep.mubr.bf16.mxu0 0
        %1663 = vmatmul.mubr.bf16.gmra.mrb[0].mxu0 %v1580
        %v1664 = vpop.f32.mrb[0].mxu0
        %v1665 = vadd.f32 0.0, %v1664
        %v1666 = vpop.f32.mrb[0].mxu0
        %v1667 = vadd.f32 0.0, %v1666
        %v1668 = vpop.f32.mrb[0].mxu0
        %v1669 = vadd.f32 0.0, %v1668
        %v1670 = vpop.f32.mrb[0].mxu0
        %v1671 = vadd.f32 0.0, %v1670
        %1672 = vmatprep.mubr.bf16.mxu0 0
        %1673 = vmatmul.mubr.bf16.gmra.mrb[0].mxu0 %v1583
        %v1674 = vpop.f32.mrb[0].mxu0
        %v1675 = vadd.f32 0.0, %v1674
        %v1676 = vpop.f32.mrb[0].mxu0
        %v1677 = vadd.f32 0.0, %v1676
        %v1678 = vpop.f32.mrb[0].mxu0
        %v1679 = vadd.f32 0.0, %v1678
        %v1680 = vpop.f32.mrb[0].mxu0
        %v1681 = vadd.f32 0.0, %v1680
        %1682 = vmatprep.mubr.bf16.mxu0 0
        %1683 = vmatmul.mubr.bf16.gmra.mrb[0].mxu0 %v1586
        %v1684 = vpop.f32.mrb[0].mxu0
        %v1685 = vadd.f32 0.0, %v1684
        %v1686 = vpop.f32.mrb[0].mxu0
        %v1687 = vadd.f32 0.0, %v1686
        %v1688 = vpop.f32.mrb[0].mxu0
        %v1689 = vadd.f32 0.0, %v1688
        %v1690 = vpop.f32.mrb[0].mxu0
        %v1691 = vadd.f32 0.0, %v1690
        %1692 = vmatprep.mubr.bf16.mxu0 0
        %1693 = vmatmul.mubr.bf16.gmra.mrb[0].mxu0 %v1589
        %v1694 = vpop.f32.mrb[0].mxu0
        %v1695 = vadd.f32 0.0, %v1694
        %v1696 = vpop.f32.mrb[0].mxu0
        %v1697 = vadd.f32 0.0, %v1696
        %v1698 = vpop.f32.mrb[0].mxu0
        %v1699 = vadd.f32 0.0, %v1698
        %v1700 = vpop.f32.mrb[0].mxu0
        %v1701 = vadd.f32 0.0, %v1700
        %1702 = vmatprep.mubr.bf16.mxu0 0
        %1703 = vmatmul.mubr.bf16.gmra.mrb[0].mxu0 %v1592
        %v1704 = vpop.f32.mrb[0].mxu0
        %v1705 = vadd.f32 0.0, %v1704
        %v1706 = vpop.f32.mrb[0].mxu0
        %v1707 = vadd.f32 0.0, %v1706
        %v1708 = vpop.f32.mrb[0].mxu0
        %v1709 = vadd.f32 0.0, %v1708
        %v1710 = vpop.f32.mrb[0].mxu0
        %v1711 = vadd.f32 0.0, %v1710
        %1712 = vdwg.mxu0
        %v1713 = vadd.f32 %v1468, %v1635
        %v1714 = vadd.f32 %v1469, %v1637
        %v1715 = vadd.f32 %v1470, %v1639
        %v1716 = vadd.f32 %v1471, %v1641
        %v1717 = vadd.f32 %v1472, %v1645
        %v1718 = vadd.f32 %v1473, %v1647
        %v1719 = vadd.f32 %v1474, %v1649
        %v1720 = vadd.f32 %v1475, %v1651
        %v1721 = vadd.f32 %v1476, %v1655
        %v1722 = vadd.f32 %v1477, %v1657
        %v1723 = vadd.f32 %v1478, %v1659
        %v1724 = vadd.f32 %v1479, %v1661
        %v1725 = vadd.f32 %v1480, %v1665
        %v1726 = vadd.f32 %v1481, %v1667
        %v1727 = vadd.f32 %v1482, %v1669
        %v1728 = vadd.f32 %v1483, %v1671
        %v1729 = vadd.f32 %v1484, %v1675
        %v1730 = vadd.f32 %v1485, %v1677
        %v1731 = vadd.f32 %v1486, %v1679
        %v1732 = vadd.f32 %v1487, %v1681
        %v1733 = vadd.f32 %v1488, %v1685
        %v1734 = vadd.f32 %v1489, %v1687
        %v1735 = vadd.f32 %v1490, %v1689
        %v1736 = vadd.f32 %v1491, %v1691
        %v1737 = vadd.f32 %v1492, %v1695
        %v1738 = vadd.f32 %v1493, %v1697
        %v1739 = vadd.f32 %v1494, %v1699
        %v1740 = vadd.f32 %v1495, %v1701
        %v1741 = vadd.f32 %v1496, %v1705
        %v1742 = vadd.f32 %v1497, %v1707
        %v1743 = vadd.f32 %v1498, %v1709
        %v1744 = vadd.f32 %v1499, %v1711
        %v1745 = vld [vmem:[%s3] sm:$0xff]
        %v1746 = vld [vmem:[%s3 + $0x8] sm:$0xff]
        %v1747 = vld [vmem:[%s3 + $0x10] sm:$0xff]
        %v1748 = vld [vmem:[%s3 + $0x18] sm:$0xff]
        %v1749 = vld [vmem:[%s3 + $0x20] sm:$0xff]
        %v1750 = vld [vmem:[%s3 + $0x28] sm:$0xff]
        %v1751 = vld [vmem:[%s3 + $0x30] sm:$0xff]
        %v1752 = vld [vmem:[%s3 + $0x38] sm:$0xff]
        %v1753 = vld [vmem:[%s3 + $0x40] sm:$0xff]
        %v1754 = vld [vmem:[%s3 + $0x48] sm:$0xff]
        %v1755 = vld [vmem:[%s3 + $0x50] sm:$0xff]
        %v1756 = vld [vmem:[%s3 + $0x58] sm:$0xff]
        %v1757 = vld [vmem:[%s3 + $0x60] sm:$0xff]
        %v1758 = vld [vmem:[%s3 + $0x68] sm:$0xff]
        %v1759 = vld [vmem:[%s3 + $0x70] sm:$0xff]
        %v1760 = vld [vmem:[%s3 + $0x78] sm:$0xff]
        %1762 = vset.pattern.permute.xlu0 0
        %1763 = vperm.xlu0 %1762, %v1745
        %v1764 = vpop.permute.xlu0 %1763
        %1767 = vset.pattern.permute.xlu0 0
        %1768 = vperm.xlu0 %1767, %v1746
        %v1769 = vpop.permute.xlu0 %1768
        %1772 = vset.pattern.permute.xlu0 0
        %1773 = vperm.xlu0 %1772, %v1747
        %v1774 = vpop.permute.xlu0 %1773
        %1777 = vset.pattern.permute.xlu0 0
        %1778 = vperm.xlu0 %1777, %v1748
        %v1779 = vpop.permute.xlu0 %1778
        %1782 = vset.pattern.permute.xlu0 0
        %1783 = vperm.xlu0 %1782, %v1749
        %v1784 = vpop.permute.xlu0 %1783
        %1787 = vset.pattern.permute.xlu0 0
        %1788 = vperm.xlu0 %1787, %v1750
        %v1789 = vpop.permute.xlu0 %1788
        %1792 = vset.pattern.permute.xlu0 0
        %1793 = vperm.xlu0 %1792, %v1751
        %v1794 = vpop.permute.xlu0 %1793
        %1797 = vset.pattern.permute.xlu0 0
        %1798 = vperm.xlu0 %1797, %v1752
        %v1799 = vpop.permute.xlu0 %1798
        %1802 = vset.pattern.permute.xlu0 0
        %1803 = vperm.xlu0 %1802, %v1753
        %v1804 = vpop.permute.xlu0 %1803
        %1807 = vset.pattern.permute.xlu0 0
        %1808 = vperm.xlu0 %1807, %v1754
        %v1809 = vpop.permute.xlu0 %1808
        %1812 = vset.pattern.permute.xlu0 0
        %1813 = vperm.xlu0 %1812, %v1755
        %v1814 = vpop.permute.xlu0 %1813
        %1817 = vset.pattern.permute.xlu0 0
        %1818 = vperm.xlu0 %1817, %v1756
        %v1819 = vpop.permute.xlu0 %1818
        %1822 = vset.pattern.permute.xlu0 0
        %1823 = vperm.xlu0 %1822, %v1757
        %v1824 = vpop.permute.xlu0 %1823
        %1827 = vset.pattern.permute.xlu0 0
        %1828 = vperm.xlu0 %1827, %v1758
        %v1829 = vpop.permute.xlu0 %1828
        %1832 = vset.pattern.permute.xlu0 0
        %1833 = vperm.xlu0 %1832, %v1759
        %v1834 = vpop.permute.xlu0 %1833
        %1837 = vset.pattern.permute.xlu0 0
        %1838 = vperm.xlu0 %1837, %v1760
        %v1839 = vpop.permute.xlu0 %1838
        %v1841 = vadd.f32 %v1713, %v1764
        %v1842 = vadd.f32 %v1714, %v1764
        %v1843 = vadd.f32 %v1715, %v1769
        %v1844 = vadd.f32 %v1716, %v1769
        %v1845 = vadd.f32 %v1717, %v1774
        %v1846 = vadd.f32 %v1718, %v1774
        %v1847 = vadd.f32 %v1719, %v1779
        %v1848 = vadd.f32 %v1720, %v1779
        %v1849 = vadd.f32 %v1721, %v1784
        %v1850 = vadd.f32 %v1722, %v1784
        %v1851 = vadd.f32 %v1723, %v1789
        %v1852 = vadd.f32 %v1724, %v1789
        %v1853 = vadd.f32 %v1725, %v1794
        %v1854 = vadd.f32 %v1726, %v1794
        %v1855 = vadd.f32 %v1727, %v1799
        %v1856 = vadd.f32 %v1728, %v1799
        %v1857 = vadd.f32 %v1729, %v1804
        %v1858 = vadd.f32 %v1730, %v1804
        %v1859 = vadd.f32 %v1731, %v1809
        %v1860 = vadd.f32 %v1732, %v1809
        %v1861 = vadd.f32 %v1733, %v1814
        %v1862 = vadd.f32 %v1734, %v1814
        %v1863 = vadd.f32 %v1735, %v1819
        %v1864 = vadd.f32 %v1736, %v1819
        %v1865 = vadd.f32 %v1737, %v1824
        %v1866 = vadd.f32 %v1738, %v1824
        %v1867 = vadd.f32 %v1739, %v1829
        %v1868 = vadd.f32 %v1740, %v1829
        %v1869 = vadd.f32 %v1741, %v1834
        %v1870 = vadd.f32 %v1742, %v1834
        %v1871 = vadd.f32 %v1743, %v1839
        %v1872 = vadd.f32 %v1744, %v1839
        %s1873 = sld [smem:[#allocation2]]
        %vm1874 = vcmp.gt.f32.partialorder %v1841, 0.0
        %vm1875 = vcmp.gt.f32.partialorder %v1842, 0.0
        %vm1876 = vcmp.gt.f32.partialorder %v1843, 0.0
        %vm1877 = vcmp.gt.f32.partialorder %v1844, 0.0
        %vm1878 = vcmp.gt.f32.partialorder %v1845, 0.0
        %vm1879 = vcmp.gt.f32.partialorder %v1846, 0.0
        %vm1880 = vcmp.gt.f32.partialorder %v1847, 0.0
        %vm1881 = vcmp.gt.f32.partialorder %v1848, 0.0
        %vm1882 = vcmp.gt.f32.partialorder %v1849, 0.0
        %vm1883 = vcmp.gt.f32.partialorder %v1850, 0.0
        %vm1884 = vcmp.gt.f32.partialorder %v1851, 0.0
        %vm1885 = vcmp.gt.f32.partialorder %v1852, 0.0
        %vm1886 = vcmp.gt.f32.partialorder %v1853, 0.0
        %vm1887 = vcmp.gt.f32.partialorder %v1854, 0.0
        %vm1888 = vcmp.gt.f32.partialorder %v1855, 0.0
        %vm1889 = vcmp.gt.f32.partialorder %v1856, 0.0
        %vm1890 = vcmp.gt.f32.partialorder %v1857, 0.0
        %vm1891 = vcmp.gt.f32.partialorder %v1858, 0.0
        %vm1892 = vcmp.gt.f32.partialorder %v1859, 0.0
        %vm1893 = vcmp.gt.f32.partialorder %v1860, 0.0
        %vm1894 = vcmp.gt.f32.partialorder %v1861, 0.0
        %vm1895 = vcmp.gt.f32.partialorder %v1862, 0.0
        %vm1896 = vcmp.gt.f32.partialorder %v1863, 0.0
        %vm1897 = vcmp.gt.f32.partialorder %v1864, 0.0
        %vm1898 = vcmp.gt.f32.partialorder %v1865, 0.0
        %vm1899 = vcmp.gt.f32.partialorder %v1866, 0.0
        %vm1900 = vcmp.gt.f32.partialorder %v1867, 0.0
        %vm1901 = vcmp.gt.f32.partialorder %v1868, 0.0
        %vm1902 = vcmp.gt.f32.partialorder %v1869, 0.0
        %vm1903 = vcmp.gt.f32.partialorder %v1870, 0.0
        %vm1904 = vcmp.gt.f32.partialorder %v1871, 0.0
        %vm1905 = vcmp.gt.f32.partialorder %v1872, 0.0
        %v1906 = vstv %s1873
        %v1907 = vmul.f32 %v1906, %v1841
        %v1908 = vmul.f32 %v1906, %v1842
        %v1909 = vmul.f32 %v1906, %v1843
        %v1910 = vmul.f32 %v1906, %v1844
        %v1911 = vmul.f32 %v1906, %v1845
        %v1912 = vmul.f32 %v1906, %v1846
        %v1913 = vmul.f32 %v1906, %v1847
        %v1914 = vmul.f32 %v1906, %v1848
        %v1915 = vmul.f32 %v1906, %v1849
        %v1916 = vmul.f32 %v1906, %v1850
        %v1917 = vmul.f32 %v1906, %v1851
        %v1918 = vmul.f32 %v1906, %v1852
        %v1919 = vmul.f32 %v1906, %v1853
        %v1920 = vmul.f32 %v1906, %v1854
        %v1921 = vmul.f32 %v1906, %v1855
        %v1922 = vmul.f32 %v1906, %v1856
        %v1923 = vmul.f32 %v1906, %v1857
        %v1924 = vmul.f32 %v1906, %v1858
        %v1925 = vmul.f32 %v1906, %v1859
        %v1926 = vmul.f32 %v1906, %v1860
        %v1927 = vmul.f32 %v1906, %v1861
        %v1928 = vmul.f32 %v1906, %v1862
        %v1929 = vmul.f32 %v1906, %v1863
        %v1930 = vmul.f32 %v1906, %v1864
        %v1931 = vmul.f32 %v1906, %v1865
        %v1932 = vmul.f32 %v1906, %v1866
        %v1933 = vmul.f32 %v1906, %v1867
        %v1934 = vmul.f32 %v1906, %v1868
        %v1935 = vmul.f32 %v1906, %v1869
        %v1936 = vmul.f32 %v1906, %v1870
        %v1937 = vmul.f32 %v1906, %v1871
        %v1938 = vmul.f32 %v1906, %v1872
        %v1939 = vsel %vm1874, %v1841, %v1907
        %v1940 = vsel %vm1875, %v1842, %v1908
        %v1941 = vsel %vm1876, %v1843, %v1909
        %v1942 = vsel %vm1877, %v1844, %v1910
        %v1943 = vsel %vm1878, %v1845, %v1911
        %v1944 = vsel %vm1879, %v1846, %v1912
        %v1945 = vsel %vm1880, %v1847, %v1913
        %v1946 = vsel %vm1881, %v1848, %v1914
        %v1947 = vsel %vm1882, %v1849, %v1915
        %v1948 = vsel %vm1883, %v1850, %v1916
        %v1949 = vsel %vm1884, %v1851, %v1917
        %v1950 = vsel %vm1885, %v1852, %v1918
        %v1951 = vsel %vm1886, %v1853, %v1919
        %v1952 = vsel %vm1887, %v1854, %v1920
        %v1953 = vsel %vm1888, %v1855, %v1921
        %v1954 = vsel %vm1889, %v1856, %v1922
        %v1955 = vsel %vm1890, %v1857, %v1923
        %v1956 = vsel %vm1891, %v1858, %v1924
        %v1957 = vsel %vm1892, %v1859, %v1925
        %v1958 = vsel %vm1893, %v1860, %v1926
        %v1959 = vsel %vm1894, %v1861, %v1927
        %v1960 = vsel %vm1895, %v1862, %v1928
        %v1961 = vsel %vm1896, %v1863, %v1929
        %v1962 = vsel %vm1897, %v1864, %v1930
        %v1963 = vsel %vm1898, %v1865, %v1931
        %v1964 = vsel %vm1899, %v1866, %v1932
        %v1965 = vsel %vm1900, %v1867, %v1933
        %v1966 = vsel %vm1901, %v1868, %v1934
        %v1967 = vsel %vm1902, %v1869, %v1935
        %v1968 = vsel %vm1903, %v1870, %v1936
        %v1969 = vsel %vm1904, %v1871, %v1937
        %v1970 = vsel %vm1905, %v1872, %v1938
        %1971 = vrot.lane.b32.xlu0 %v1939, 2
        %v1972 = vpop.permute.xlu0 %1971
        %1973 = vrot.lane.b32.xlu0 %v1941, 2
        %v1974 = vpop.permute.xlu0 %1973
        %1975 = vrot.lane.b32.xlu0 %v1943, 2
        %v1976 = vpop.permute.xlu0 %1975
        %1977 = vrot.lane.b32.xlu0 %v1945, 2
        %v1978 = vpop.permute.xlu0 %1977
        %1979 = vrot.lane.b32.xlu0 %v1947, 2
        %v1980 = vpop.permute.xlu0 %1979
        %1981 = vrot.lane.b32.xlu0 %v1949, 2
        %v1982 = vpop.permute.xlu0 %1981
        %1983 = vrot.lane.b32.xlu0 %v1951, 2
        %v1984 = vpop.permute.xlu0 %1983
        %1985 = vrot.lane.b32.xlu0 %v1953, 2
        %v1986 = vpop.permute.xlu0 %1985
        %1987 = vrot.lane.b32.xlu0 %v1955, 2
        %v1988 = vpop.permute.xlu0 %1987
        %1989 = vrot.lane.b32.xlu0 %v1957, 2
        %v1990 = vpop.permute.xlu0 %1989
        %1991 = vrot.lane.b32.xlu0 %v1959, 2
        %v1992 = vpop.permute.xlu0 %1991
        %1993 = vrot.lane.b32.xlu0 %v1961, 2
        %v1994 = vpop.permute.xlu0 %1993
        %1995 = vrot.lane.b32.xlu0 %v1963, 2
        %v1996 = vpop.permute.xlu0 %1995
        %1997 = vrot.lane.b32.xlu0 %v1965, 2
        %v1998 = vpop.permute.xlu0 %1997
        %1999 = vrot.lane.b32.xlu0 %v1967, 2
        %v2000 = vpop.permute.xlu0 %1999
        %2001 = vrot.lane.b32.xlu0 %v1969, 2
        %v2002 = vpop.permute.xlu0 %2001
        %2003 = vrot.lane.b32.xlu0 %v1940, 2
        %v2004 = vpop.permute.xlu0 %2003
        %2005 = vrot.lane.b32.xlu0 %v1942, 2
        %v2006 = vpop.permute.xlu0 %2005
        %2007 = vrot.lane.b32.xlu0 %v1944, 2
        %v2008 = vpop.permute.xlu0 %2007
        %2009 = vrot.lane.b32.xlu0 %v1946, 2
        %v2010 = vpop.permute.xlu0 %2009
        %2011 = vrot.lane.b32.xlu0 %v1948, 2
        %v2012 = vpop.permute.xlu0 %2011
        %2013 = vrot.lane.b32.xlu0 %v1950, 2
        %v2014 = vpop.permute.xlu0 %2013
        %2015 = vrot.lane.b32.xlu0 %v1952, 2
        %v2016 = vpop.permute.xlu0 %2015
        %2017 = vrot.lane.b32.xlu0 %v1954, 2
        %v2018 = vpop.permute.xlu0 %2017
        %2019 = vrot.lane.b32.xlu0 %v1956, 2
        %v2020 = vpop.permute.xlu0 %2019
        %2021 = vrot.lane.b32.xlu0 %v1958, 2
        %v2022 = vpop.permute.xlu0 %2021
        %2023 = vrot.lane.b32.xlu0 %v1960, 2
        %v2024 = vpop.permute.xlu0 %2023
        %2025 = vrot.lane.b32.xlu0 %v1962, 2
        %v2026 = vpop.permute.xlu0 %2025
        %2027 = vrot.lane.b32.xlu0 %v1964, 2
        %v2028 = vpop.permute.xlu0 %2027
        %2029 = vrot.lane.b32.xlu0 %v1966, 2
        %v2030 = vpop.permute.xlu0 %2029
        %2031 = vrot.lane.b32.xlu0 %v1968, 2
        %v2032 = vpop.permute.xlu0 %2031
        %2033 = vrot.lane.b32.xlu0 %v1970, 2
        %v2034 = vpop.permute.xlu0 %2033
        %v2035 = vsel %vm597, %v1972, %v2004
        %v2036 = vsel %vm597, %v1974, %v2006
        %v2037 = vsel %vm597, %v1976, %v2008
        %v2038 = vsel %vm597, %v1978, %v2010
        %v2039 = vsel %vm597, %v1980, %v2012
        %v2040 = vsel %vm597, %v1982, %v2014
        %v2041 = vsel %vm597, %v1984, %v2016
        %v2042 = vsel %vm597, %v1986, %v2018
        %v2043 = vsel %vm597, %v1988, %v2020
        %v2044 = vsel %vm597, %v1990, %v2022
        %v2045 = vsel %vm597, %v1992, %v2024
        %v2046 = vsel %vm597, %v1994, %v2026
        %v2047 = vsel %vm597, %v1996, %v2028
        %v2048 = vsel %vm597, %v1998, %v2030
        %v2049 = vsel %vm597, %v2000, %v2032
        %v2050 = vsel %vm597, %v2002, %v2034
        %v2051 = vsel %vm597, %v2004, %v1972
        %v2052 = vsel %vm597, %v2006, %v1974
        %v2053 = vsel %vm597, %v2008, %v1976
        %v2054 = vsel %vm597, %v2010, %v1978
        %v2055 = vsel %vm597, %v2012, %v1980
        %v2056 = vsel %vm597, %v2014, %v1982
        %v2057 = vsel %vm597, %v2016, %v1984
        %v2058 = vsel %vm597, %v2018, %v1986
        %v2059 = vsel %vm597, %v2020, %v1988
        %v2060 = vsel %vm597, %v2022, %v1990
        %v2061 = vsel %vm597, %v2024, %v1992
        %v2062 = vsel %vm597, %v2026, %v1994
        %v2063 = vsel %vm597, %v2028, %v1996
        %v2064 = vsel %vm597, %v2030, %v1998
        %v2065 = vsel %vm597, %v2032, %v2000
        %v2066 = vsel %vm597, %v2034, %v2002
        %v2067 = vsel %vm601, %v2051, 0.0
        %v2068 = vsel %vm602, %v2035, 0.0
        %v2069 = vsel %vm601, %v2052, 0.0
        %v2070 = vsel %vm602, %v2036, 0.0
        %v2071 = vsel %vm601, %v2053, 0.0
        %v2072 = vsel %vm602, %v2037, 0.0
        %v2073 = vsel %vm601, %v2054, 0.0
        %v2074 = vsel %vm602, %v2038, 0.0
        %v2075 = vsel %vm601, %v2055, 0.0
        %v2076 = vsel %vm602, %v2039, 0.0
        %v2077 = vsel %vm601, %v2056, 0.0
        %v2078 = vsel %vm602, %v2040, 0.0
        %v2079 = vsel %vm601, %v2057, 0.0
        %v2080 = vsel %vm602, %v2041, 0.0
        %v2081 = vsel %vm601, %v2058, 0.0
        %v2082 = vsel %vm602, %v2042, 0.0
        %v2083 = vsel %vm601, %v2059, 0.0
        %v2084 = vsel %vm602, %v2043, 0.0
        %v2085 = vsel %vm601, %v2060, 0.0
        %v2086 = vsel %vm602, %v2044, 0.0
        %v2087 = vsel %vm601, %v2061, 0.0
        %v2088 = vsel %vm602, %v2045, 0.0
        %v2089 = vsel %vm601, %v2062, 0.0
        %v2090 = vsel %vm602, %v2046, 0.0
        %v2091 = vsel %vm601, %v2063, 0.0
        %v2092 = vsel %vm602, %v2047, 0.0
        %v2093 = vsel %vm601, %v2064, 0.0
        %v2094 = vsel %vm602, %v2048, 0.0
        %v2095 = vsel %vm601, %v2065, 0.0
        %v2096 = vsel %vm602, %v2049, 0.0
        %v2097 = vsel %vm601, %v2066, 0.0
        %v2098 = vsel %vm602, %v2050, 0.0
        %v2099 = vpack.c.bf16 %v2069, %v2067
        %v2100 = vpack.c.bf16 %v2070, %v2068
        %v2101 = vpack.c.bf16 %v2073, %v2071
        %v2102 = vpack.c.bf16 %v2074, %v2072
        %v2103 = vpack.c.bf16 %v2077, %v2075
        %v2104 = vpack.c.bf16 %v2078, %v2076
        %v2105 = vpack.c.bf16 %v2081, %v2079
        %v2106 = vpack.c.bf16 %v2082, %v2080
        %v2107 = vpack.c.bf16 %v2085, %v2083
        %v2108 = vpack.c.bf16 %v2086, %v2084
        %v2109 = vpack.c.bf16 %v2089, %v2087
        %v2110 = vpack.c.bf16 %v2090, %v2088
        %v2111 = vpack.c.bf16 %v2093, %v2091
        %v2112 = vpack.c.bf16 %v2094, %v2092
        %v2113 = vpack.c.bf16 %v2097, %v2095
        %v2114 = vpack.c.bf16 %v2098, %v2096
        %v2115 = vld [vmem:[%s4] sm:$0xf]
        %v2116 = vld [vmem:[%s4 + $0x4] sm:$0xf]
        %v2117 = vld [vmem:[%s4 + $0x8] sm:$0xf]
        %v2118 = vld [vmem:[%s4 + $0xc] sm:$0xf]
        %v2119 = vld [vmem:[%s4 + $0x10] sm:$0xf]
        %v2120 = vld [vmem:[%s4 + $0x14] sm:$0xf]
        %v2121 = vld [vmem:[%s4 + $0x18] sm:$0xf]
        %v2122 = vld [vmem:[%s4 + $0x1c] sm:$0xf]
        %2123 = vrot.lane.b32.xlu0 %v1939, 1
        %v2124 = vpop.permute.xlu0 %2123
        %2125 = vrot.lane.b32.xlu0 %v1941, 1
        %v2126 = vpop.permute.xlu0 %2125
        %2127 = vrot.lane.b32.xlu0 %v1943, 1
        %v2128 = vpop.permute.xlu0 %2127
        %2129 = vrot.lane.b32.xlu0 %v1945, 1
        %v2130 = vpop.permute.xlu0 %2129
        %2131 = vrot.lane.b32.xlu0 %v1947, 1
        %v2132 = vpop.permute.xlu0 %2131
        %2133 = vrot.lane.b32.xlu0 %v1949, 1
        %v2134 = vpop.permute.xlu0 %2133
        %2135 = vrot.lane.b32.xlu0 %v1951, 1
        %v2136 = vpop.permute.xlu0 %2135
        %2137 = vrot.lane.b32.xlu0 %v1953, 1
        %v2138 = vpop.permute.xlu0 %2137
        %2139 = vrot.lane.b32.xlu0 %v1955, 1
        %v2140 = vpop.permute.xlu0 %2139
        %2141 = vrot.lane.b32.xlu0 %v1957, 1
        %v2142 = vpop.permute.xlu0 %2141
        %2143 = vrot.lane.b32.xlu0 %v1959, 1
        %v2144 = vpop.permute.xlu0 %2143
        %2145 = vrot.lane.b32.xlu0 %v1961, 1
        %v2146 = vpop.permute.xlu0 %2145
        %2147 = vrot.lane.b32.xlu0 %v1963, 1
        %v2148 = vpop.permute.xlu0 %2147
        %2149 = vrot.lane.b32.xlu0 %v1965, 1
        %v2150 = vpop.permute.xlu0 %2149
        %2151 = vrot.lane.b32.xlu0 %v1967, 1
        %v2152 = vpop.permute.xlu0 %2151
        %2153 = vrot.lane.b32.xlu0 %v1969, 1
        %v2154 = vpop.permute.xlu0 %2153
        %2155 = vrot.lane.b32.xlu0 %v1940, 1
        %v2156 = vpop.permute.xlu0 %2155
        %2157 = vrot.lane.b32.xlu0 %v1942, 1
        %v2158 = vpop.permute.xlu0 %2157
        %2159 = vrot.lane.b32.xlu0 %v1944, 1
        %v2160 = vpop.permute.xlu0 %2159
        %2161 = vrot.lane.b32.xlu0 %v1946, 1
        %v2162 = vpop.permute.xlu0 %2161
        %2163 = vrot.lane.b32.xlu0 %v1948, 1
        %v2164 = vpop.permute.xlu0 %2163
        %2165 = vrot.lane.b32.xlu0 %v1950, 1
        %v2166 = vpop.permute.xlu0 %2165
        %2167 = vrot.lane.b32.xlu0 %v1952, 1
        %v2168 = vpop.permute.xlu0 %2167
        %2169 = vrot.lane.b32.xlu0 %v1954, 1
        %v2170 = vpop.permute.xlu0 %2169
        %2171 = vrot.lane.b32.xlu0 %v1956, 1
        %v2172 = vpop.permute.xlu0 %2171
        %2173 = vrot.lane.b32.xlu0 %v1958, 1
        %v2174 = vpop.permute.xlu0 %2173
        %2175 = vrot.lane.b32.xlu0 %v1960, 1
        %v2176 = vpop.permute.xlu0 %2175
        %2177 = vrot.lane.b32.xlu0 %v1962, 1
        %v2178 = vpop.permute.xlu0 %2177
        %2179 = vrot.lane.b32.xlu0 %v1964, 1
        %v2180 = vpop.permute.xlu0 %2179
        %2181 = vrot.lane.b32.xlu0 %v1966, 1
        %v2182 = vpop.permute.xlu0 %2181
        %2183 = vrot.lane.b32.xlu0 %v1968, 1
        %v2184 = vpop.permute.xlu0 %2183
        %2185 = vrot.lane.b32.xlu0 %v1970, 1
        %v2186 = vpop.permute.xlu0 %2185
        %v2187 = vsel %vm627, %v2124, %v2156
        %v2188 = vsel %vm627, %v2126, %v2158
        %v2189 = vsel %vm627, %v2128, %v2160
        %v2190 = vsel %vm627, %v2130, %v2162
        %v2191 = vsel %vm627, %v2132, %v2164
        %v2192 = vsel %vm627, %v2134, %v2166
        %v2193 = vsel %vm627, %v2136, %v2168
        %v2194 = vsel %vm627, %v2138, %v2170
        %v2195 = vsel %vm627, %v2140, %v2172
        %v2196 = vsel %vm627, %v2142, %v2174
        %v2197 = vsel %vm627, %v2144, %v2176
        %v2198 = vsel %vm627, %v2146, %v2178
        %v2199 = vsel %vm627, %v2148, %v2180
        %v2200 = vsel %vm627, %v2150, %v2182
        %v2201 = vsel %vm627, %v2152, %v2184
        %v2202 = vsel %vm627, %v2154, %v2186
        %v2203 = vsel %vm627, %v2156, %v2124
        %v2204 = vsel %vm627, %v2158, %v2126
        %v2205 = vsel %vm627, %v2160, %v2128
        %v2206 = vsel %vm627, %v2162, %v2130
        %v2207 = vsel %vm627, %v2164, %v2132
        %v2208 = vsel %vm627, %v2166, %v2134
        %v2209 = vsel %vm627, %v2168, %v2136
        %v2210 = vsel %vm627, %v2170, %v2138
        %v2211 = vsel %vm627, %v2172, %v2140
        %v2212 = vsel %vm627, %v2174, %v2142
        %v2213 = vsel %vm627, %v2176, %v2144
        %v2214 = vsel %vm627, %v2178, %v2146
        %v2215 = vsel %vm627, %v2180, %v2148
        %v2216 = vsel %vm627, %v2182, %v2150
        %v2217 = vsel %vm627, %v2184, %v2152
        %v2218 = vsel %vm627, %v2186, %v2154
        %v2219 = vsel %vm630, %v2203, 0.0
        %v2220 = vsel %vm631, %v2187, 0.0
        %v2221 = vsel %vm630, %v2204, 0.0
        %v2222 = vsel %vm631, %v2188, 0.0
        %v2223 = vsel %vm630, %v2205, 0.0
        %v2224 = vsel %vm631, %v2189, 0.0
        %v2225 = vsel %vm630, %v2206, 0.0
        %v2226 = vsel %vm631, %v2190, 0.0
        %v2227 = vsel %vm630, %v2207, 0.0
        %v2228 = vsel %vm631, %v2191, 0.0
        %v2229 = vsel %vm630, %v2208, 0.0
        %v2230 = vsel %vm631, %v2192, 0.0
        %v2231 = vsel %vm630, %v2209, 0.0
        %v2232 = vsel %vm631, %v2193, 0.0
        %v2233 = vsel %vm630, %v2210, 0.0
        %v2234 = vsel %vm631, %v2194, 0.0
        %v2235 = vsel %vm630, %v2211, 0.0
        %v2236 = vsel %vm631, %v2195, 0.0
        %v2237 = vsel %vm630, %v2212, 0.0
        %v2238 = vsel %vm631, %v2196, 0.0
        %v2239 = vsel %vm630, %v2213, 0.0
        %v2240 = vsel %vm631, %v2197, 0.0
        %v2241 = vsel %vm630, %v2214, 0.0
        %v2242 = vsel %vm631, %v2198, 0.0
        %v2243 = vsel %vm630, %v2215, 0.0
        %v2244 = vsel %vm631, %v2199, 0.0
        %v2245 = vsel %vm630, %v2216, 0.0
        %v2246 = vsel %vm631, %v2200, 0.0
        %v2247 = vsel %vm630, %v2217, 0.0
        %v2248 = vsel %vm631, %v2201, 0.0
        %v2249 = vsel %vm630, %v2218, 0.0
        %v2250 = vsel %vm631, %v2202, 0.0
        %v2251 = vpack.c.bf16 %v2221, %v2219
        %v2252 = vpack.c.bf16 %v2222, %v2220
        %v2253 = vpack.c.bf16 %v2225, %v2223
        %v2254 = vpack.c.bf16 %v2226, %v2224
        %v2255 = vpack.c.bf16 %v2229, %v2227
        %v2256 = vpack.c.bf16 %v2230, %v2228
        %v2257 = vpack.c.bf16 %v2233, %v2231
        %v2258 = vpack.c.bf16 %v2234, %v2232
        %v2259 = vpack.c.bf16 %v2237, %v2235
        %v2260 = vpack.c.bf16 %v2238, %v2236
        %v2261 = vpack.c.bf16 %v2241, %v2239
        %v2262 = vpack.c.bf16 %v2242, %v2240
        %v2263 = vpack.c.bf16 %v2245, %v2243
        %v2264 = vpack.c.bf16 %v2246, %v2244
        %v2265 = vpack.c.bf16 %v2249, %v2247
        %v2266 = vpack.c.bf16 %v2250, %v2248
        %s2267 = scalar_lea.vmem %s4, 32
        %v2268 = vld [vmem:[%s2267] sm:$0xf]
        %v2269 = vld [vmem:[%s2267 + $0x4] sm:$0xf]
        %v2270 = vld [vmem:[%s2267 + $0x8] sm:$0xf]
        %v2271 = vld [vmem:[%s2267 + $0xc] sm:$0xf]
        %v2272 = vld [vmem:[%s2267 + $0x10] sm:$0xf]
        %v2273 = vld [vmem:[%s2267 + $0x14] sm:$0xf]
        %v2274 = vld [vmem:[%s2267 + $0x18] sm:$0xf]
        %v2275 = vld [vmem:[%s2267 + $0x1c] sm:$0xf]
        %v2284 = vunpack.c.l.b16 %v2268
        %v2285 = vunpack.c.l.b16 %v2269
        %v2286 = vunpack.c.l.b16 %v2270
        %v2287 = vunpack.c.l.b16 %v2271
        %v2288 = vunpack.c.l.b16 %v2272
        %v2289 = vunpack.c.l.b16 %v2273
        %v2290 = vunpack.c.l.b16 %v2274
        %v2291 = vunpack.c.l.b16 %v2275
        %v2292 = vpack.c.b16 %v2285, %v2284
        %v2293 = vpack.c.b16 %v2287, %v2286
        %v2294 = vpack.c.b16 %v2289, %v2288
        %v2295 = vpack.c.b16 %v2291, %v2290
        %2300 = vmatprep.subr.bf16.mxu0 %v2252
        %2301 = vmatpush1.bf16.msra.mxu0 %v2251
        %2302 = vmatprep.subr.bf16.mxu0 %v2254
        %2303 = vmatpush1.bf16.msra.mxu0 %v2253
        %2304 = vmatprep.subr.bf16.mxu0 %v2256
        %2305 = vmatpush1.bf16.msra.mxu0 %v2255
        %2306 = vmatprep.subr.bf16.mxu0 %v2258
        %2307 = vmatpush1.bf16.msra.mxu0 %v2257
        %2308 = vmatprep.subr.bf16.mxu0 %v2260
        %2309 = vmatpush1.bf16.msra.mxu0 %v2259
        %2310 = vmatprep.subr.bf16.mxu0 %v2262
        %2311 = vmatpush1.bf16.msra.mxu0 %v2261
        %2312 = vmatprep.subr.bf16.mxu0 %v2264
        %2313 = vmatpush1.bf16.msra.mxu0 %v2263
        %2314 = vmatprep.subr.bf16.mxu0 %v2266
        %2315 = vmatpush1.bf16.msra.mxu0 %v2265
        %2316 = vmatprep.subr.bf16.mxu0 0
        %2317 = vmatpush1.bf16.msra.mxu0 0
        %2318 = vmatprep.subr.bf16.mxu0 0
        %2319 = vmatpush1.bf16.msra.mxu0 0
        %2320 = vmatprep.subr.bf16.mxu0 0
        %2321 = vmatpush1.bf16.msra.mxu0 0
        %2322 = vmatprep.subr.bf16.mxu0 0
        %2323 = vmatpush1.bf16.msra.mxu0 0
        %2324 = vmatprep.subr.bf16.mxu0 0
        %2325 = vmatpush1.bf16.msra.mxu0 0
        %2326 = vmatprep.subr.bf16.mxu0 0
        %2327 = vmatpush1.bf16.msra.mxu0 0
        %2328 = vmatprep.subr.bf16.mxu0 0
        %2329 = vmatpush1.bf16.msra.mxu0 0
        %2330 = vmatprep.subr.bf16.mxu0 0
        %2331 = vmatpush1.bf16.msra.mxu0 0
        %2332 = vmatprep.mubr.bf16.mxu0 0
        %2333 = vmatmul.mubr.bf16.gmra.mrb[0].mxu0 %v2292
        %v2334 = vpop.f32.mrb[0].mxu0
        %v2335 = vadd.f32 0.0, %v2334
        %v2336 = vpop.f32.mrb[0].mxu0
        %v2337 = vadd.f32 0.0, %v2336
        %v2338 = vpop.f32.mrb[0].mxu0
        %v2339 = vadd.f32 0.0, %v2338
        %v2340 = vpop.f32.mrb[0].mxu0
        %v2341 = vadd.f32 0.0, %v2340
        %2342 = vmatprep.mubr.bf16.mxu0 0
        %2343 = vmatmul.mubr.bf16.gmra.mrb[0].mxu0 %v2293
        %v2344 = vpop.f32.mrb[0].mxu0
        %v2345 = vadd.f32 0.0, %v2344
        %v2346 = vpop.f32.mrb[0].mxu0
        %v2347 = vadd.f32 0.0, %v2346
        %v2348 = vpop.f32.mrb[0].mxu0
        %v2349 = vadd.f32 0.0, %v2348
        %v2350 = vpop.f32.mrb[0].mxu0
        %v2351 = vadd.f32 0.0, %v2350
        %2352 = vmatprep.mubr.bf16.mxu0 0
        %2353 = vmatmul.mubr.bf16.gmra.mrb[0].mxu0 %v2294
        %v2354 = vpop.f32.mrb[0].mxu0
        %v2355 = vadd.f32 0.0, %v2354
        %v2356 = vpop.f32.mrb[0].mxu0
        %v2357 = vadd.f32 0.0, %v2356
        %v2358 = vpop.f32.mrb[0].mxu0
        %v2359 = vadd.f32 0.0, %v2358
        %v2360 = vpop.f32.mrb[0].mxu0
        %v2361 = vadd.f32 0.0, %v2360
        %2362 = vmatprep.mubr.bf16.mxu0 0
        %2363 = vmatmul.mubr.bf16.gmra.mrb[0].mxu0 %v2295
        %v2364 = vpop.f32.mrb[0].mxu0
        %v2365 = vadd.f32 0.0, %v2364
        %v2366 = vpop.f32.mrb[0].mxu0
        %v2367 = vadd.f32 0.0, %v2366
        %v2368 = vpop.f32.mrb[0].mxu0
        %v2369 = vadd.f32 0.0, %v2368
        %v2370 = vpop.f32.mrb[0].mxu0
        %v2371 = vadd.f32 0.0, %v2370
        %2372 = vdwg.mxu0
        %v2381 = vunpack.c.l.b16 %v2115
        %v2382 = vunpack.c.l.b16 %v2116
        %v2383 = vunpack.c.l.b16 %v2117
        %v2384 = vunpack.c.l.b16 %v2118
        %v2385 = vunpack.c.l.b16 %v2119
        %v2386 = vunpack.c.l.b16 %v2120
        %v2387 = vunpack.c.l.b16 %v2121
        %v2388 = vunpack.c.l.b16 %v2122
        %v2389 = vpack.c.b16 %v2382, %v2381
        %v2390 = vpack.c.b16 %v2384, %v2383
        %v2391 = vpack.c.b16 %v2386, %v2385
        %v2392 = vpack.c.b16 %v2388, %v2387
        %2397 = vmatprep.subr.bf16.mxu0 %v2100
        %2398 = vmatpush1.bf16.msra.mxu0 %v2099
        %2399 = vmatprep.subr.bf16.mxu0 %v2102
        %2400 = vmatpush1.bf16.msra.mxu0 %v2101
        %2401 = vmatprep.subr.bf16.mxu0 %v2104
        %2402 = vmatpush1.bf16.msra.mxu0 %v2103
        %2403 = vmatprep.subr.bf16.mxu0 %v2106
        %2404 = vmatpush1.bf16.msra.mxu0 %v2105
        %2405 = vmatprep.subr.bf16.mxu0 %v2108
        %2406 = vmatpush1.bf16.msra.mxu0 %v2107
        %2407 = vmatprep.subr.bf16.mxu0 %v2110
        %2408 = vmatpush1.bf16.msra.mxu0 %v2109
        %2409 = vmatprep.subr.bf16.mxu0 %v2112
        %2410 = vmatpush1.bf16.msra.mxu0 %v2111
        %2411 = vmatprep.subr.bf16.mxu0 %v2114
        %2412 = vmatpush1.bf16.msra.mxu0 %v2113
        %2413 = vmatprep.subr.bf16.mxu0 0
        %2414 = vmatpush1.bf16.msra.mxu0 0
        %2415 = vmatprep.subr.bf16.mxu0 0
        %2416 = vmatpush1.bf16.msra.mxu0 0
        %2417 = vmatprep.subr.bf16.mxu0 0
        %2418 = vmatpush1.bf16.msra.mxu0 0
        %2419 = vmatprep.subr.bf16.mxu0 0
        %2420 = vmatpush1.bf16.msra.mxu0 0
        %2421 = vmatprep.subr.bf16.mxu0 0
        %2422 = vmatpush1.bf16.msra.mxu0 0
        %2423 = vmatprep.subr.bf16.mxu0 0
        %2424 = vmatpush1.bf16.msra.mxu0 0
        %2425 = vmatprep.subr.bf16.mxu0 0
        %2426 = vmatpush1.bf16.msra.mxu0 0
        %2427 = vmatprep.subr.bf16.mxu0 0
        %2428 = vmatpush1.bf16.msra.mxu0 0
        %2429 = vmatprep.mubr.bf16.mxu0 0
        %2430 = vmatmul.mubr.bf16.gmra.mrb[0].mxu0 %v2389
        %v2431 = vpop.f32.mrb[0].mxu0
        %v2432 = vadd.f32 %v2335, %v2431
        %v2433 = vpop.f32.mrb[0].mxu0
        %v2434 = vadd.f32 %v2337, %v2433
        %v2435 = vpop.f32.mrb[0].mxu0
        %v2436 = vadd.f32 %v2339, %v2435
        %v2437 = vpop.f32.mrb[0].mxu0
        %v2438 = vadd.f32 %v2341, %v2437
        %2439 = vmatprep.mubr.bf16.mxu0 0
        %2440 = vmatmul.mubr.bf16.gmra.mrb[0].mxu0 %v2390
        %v2441 = vpop.f32.mrb[0].mxu0
        %v2442 = vadd.f32 %v2345, %v2441
        %v2443 = vpop.f32.mrb[0].mxu0
        %v2444 = vadd.f32 %v2347, %v2443
        %v2445 = vpop.f32.mrb[0].mxu0
        %v2446 = vadd.f32 %v2349, %v2445
        %v2447 = vpop.f32.mrb[0].mxu0
        %v2448 = vadd.f32 %v2351, %v2447
        %2449 = vmatprep.mubr.bf16.mxu0 0
        %2450 = vmatmul.mubr.bf16.gmra.mrb[0].mxu0 %v2391
        %v2451 = vpop.f32.mrb[0].mxu0
        %v2452 = vadd.f32 %v2355, %v2451
        %v2453 = vpop.f32.mrb[0].mxu0
        %v2454 = vadd.f32 %v2357, %v2453
        %v2455 = vpop.f32.mrb[0].mxu0
        %v2456 = vadd.f32 %v2359, %v2455
        %v2457 = vpop.f32.mrb[0].mxu0
        %v2458 = vadd.f32 %v2361, %v2457
        %2459 = vmatprep.mubr.bf16.mxu0 0
        %2460 = vmatmul.mubr.bf16.gmra.mrb[0].mxu0 %v2392
        %v2461 = vpop.f32.mrb[0].mxu0
        %v2462 = vadd.f32 %v2365, %v2461
        %v2463 = vpop.f32.mrb[0].mxu0
        %v2464 = vadd.f32 %v2367, %v2463
        %v2465 = vpop.f32.mrb[0].mxu0
        %v2466 = vadd.f32 %v2369, %v2465
        %v2467 = vpop.f32.mrb[0].mxu0
        %v2468 = vadd.f32 %v2371, %v2467
        %2469 = vdwg.mxu0
        %v2470 = vpack.c.bf16 %v1941, %v1939
        %v2471 = vpack.c.bf16 %v1942, %v1940
        %v2472 = vpack.c.bf16 %v1945, %v1943
        %v2473 = vpack.c.bf16 %v1946, %v1944
        %v2474 = vpack.c.bf16 %v1949, %v1947
        %v2475 = vpack.c.bf16 %v1950, %v1948
        %v2476 = vpack.c.bf16 %v1953, %v1951
        %v2477 = vpack.c.bf16 %v1954, %v1952
        %v2478 = vpack.c.bf16 %v1957, %v1955
        %v2479 = vpack.c.bf16 %v1958, %v1956
        %v2480 = vpack.c.bf16 %v1961, %v1959
        %v2481 = vpack.c.bf16 %v1962, %v1960
        %v2482 = vpack.c.bf16 %v1965, %v1963
        %v2483 = vpack.c.bf16 %v1966, %v1964
        %v2484 = vpack.c.bf16 %v1969, %v1967
        %v2485 = vpack.c.bf16 %v1970, %v1968
        %s2486 = scalar_lea.vmem %s4, 64
        %v2487 = vld [vmem:[%s2486] sm:$0xf]
        %v2488 = vld [vmem:[%s2486 + $0x4] sm:$0xf]
        %v2489 = vld [vmem:[%s2486 + $0x8] sm:$0xf]
        %v2490 = vld [vmem:[%s2486 + $0xc] sm:$0xf]
        %v2491 = vld [vmem:[%s2486 + $0x10] sm:$0xf]
        %v2492 = vld [vmem:[%s2486 + $0x14] sm:$0xf]
        %v2493 = vld [vmem:[%s2486 + $0x18] sm:$0xf]
        %v2494 = vld [vmem:[%s2486 + $0x1c] sm:$0xf]
        %v2503 = vunpack.c.l.b16 %v2487
        %v2504 = vunpack.c.l.b16 %v2488
        %v2505 = vunpack.c.l.b16 %v2489
        %v2506 = vunpack.c.l.b16 %v2490
        %v2507 = vunpack.c.l.b16 %v2491
        %v2508 = vunpack.c.l.b16 %v2492
        %v2509 = vunpack.c.l.b16 %v2493
        %v2510 = vunpack.c.l.b16 %v2494
        %v2511 = vpack.c.b16 %v2504, %v2503
        %v2512 = vpack.c.b16 %v2506, %v2505
        %v2513 = vpack.c.b16 %v2508, %v2507
        %v2514 = vpack.c.b16 %v2510, %v2509
        %2519 = vmatprep.subr.bf16.mxu0 %v2471
        %2520 = vmatpush1.bf16.msra.mxu0 %v2470
        %2521 = vmatprep.subr.bf16.mxu0 %v2473
        %2522 = vmatpush1.bf16.msra.mxu0 %v2472
        %2523 = vmatprep.subr.bf16.mxu0 %v2475
        %2524 = vmatpush1.bf16.msra.mxu0 %v2474
        %2525 = vmatprep.subr.bf16.mxu0 %v2477
        %2526 = vmatpush1.bf16.msra.mxu0 %v2476
        %2527 = vmatprep.subr.bf16.mxu0 %v2479
        %2528 = vmatpush1.bf16.msra.mxu0 %v2478
        %2529 = vmatprep.subr.bf16.mxu0 %v2481
        %2530 = vmatpush1.bf16.msra.mxu0 %v2480
        %2531 = vmatprep.subr.bf16.mxu0 %v2483
        %2532 = vmatpush1.bf16.msra.mxu0 %v2482
        %2533 = vmatprep.subr.bf16.mxu0 %v2485
        %2534 = vmatpush1.bf16.msra.mxu0 %v2484
        %2535 = vmatprep.subr.bf16.mxu0 0
        %2536 = vmatpush1.bf16.msra.mxu0 0
        %2537 = vmatprep.subr.bf16.mxu0 0
        %2538 = vmatpush1.bf16.msra.mxu0 0
        %2539 = vmatprep.subr.bf16.mxu0 0
        %2540 = vmatpush1.bf16.msra.mxu0 0
        %2541 = vmatprep.subr.bf16.mxu0 0
        %2542 = vmatpush1.bf16.msra.mxu0 0
        %2543 = vmatprep.subr.bf16.mxu0 0
        %2544 = vmatpush1.bf16.msra.mxu0 0
        %2545 = vmatprep.subr.bf16.mxu0 0
        %2546 = vmatpush1.bf16.msra.mxu0 0
        %2547 = vmatprep.subr.bf16.mxu0 0
        %2548 = vmatpush1.bf16.msra.mxu0 0
        %2549 = vmatprep.subr.bf16.mxu0 0
        %2550 = vmatpush1.bf16.msra.mxu0 0
        %2551 = vmatprep.mubr.bf16.mxu0 0
        %2552 = vmatmul.mubr.bf16.gmra.mrb[0].mxu0 %v2511
        %v2553 = vpop.f32.mrb[0].mxu0
        %v2554 = vadd.f32 0.0, %v2553
        %v2555 = vpop.f32.mrb[0].mxu0
        %v2556 = vadd.f32 0.0, %v2555
        %v2557 = vpop.f32.mrb[0].mxu0
        %v2558 = vadd.f32 0.0, %v2557
        %v2559 = vpop.f32.mrb[0].mxu0
        %v2560 = vadd.f32 0.0, %v2559
        %2561 = vmatprep.mubr.bf16.mxu0 0
        %2562 = vmatmul.mubr.bf16.gmra.mrb[0].mxu0 %v2512
        %v2563 = vpop.f32.mrb[0].mxu0
        %v2564 = vadd.f32 0.0, %v2563
        %v2565 = vpop.f32.mrb[0].mxu0
        %v2566 = vadd.f32 0.0, %v2565
        %v2567 = vpop.f32.mrb[0].mxu0
        %v2568 = vadd.f32 0.0, %v2567
        %v2569 = vpop.f32.mrb[0].mxu0
        %v2570 = vadd.f32 0.0, %v2569
        %2571 = vmatprep.mubr.bf16.mxu0 0
        %2572 = vmatmul.mubr.bf16.gmra.mrb[0].mxu0 %v2513
        %v2573 = vpop.f32.mrb[0].mxu0
        %v2574 = vadd.f32 0.0, %v2573
        %v2575 = vpop.f32.mrb[0].mxu0
        %v2576 = vadd.f32 0.0, %v2575
        %v2577 = vpop.f32.mrb[0].mxu0
        %v2578 = vadd.f32 0.0, %v2577
        %v2579 = vpop.f32.mrb[0].mxu0
        %v2580 = vadd.f32 0.0, %v2579
        %2581 = vmatprep.mubr.bf16.mxu0 0
        %2582 = vmatmul.mubr.bf16.gmra.mrb[0].mxu0 %v2514
        %v2583 = vpop.f32.mrb[0].mxu0
        %v2584 = vadd.f32 0.0, %v2583
        %v2585 = vpop.f32.mrb[0].mxu0
        %v2586 = vadd.f32 0.0, %v2585
        %v2587 = vpop.f32.mrb[0].mxu0
        %v2588 = vadd.f32 0.0, %v2587
        %v2589 = vpop.f32.mrb[0].mxu0
        %v2590 = vadd.f32 0.0, %v2589
        %2591 = vdwg.mxu0
        %v2592 = vadd.f32 %v2432, %v2554
        %v2593 = vadd.f32 %v2434, %v2556
        %v2594 = vadd.f32 %v2436, %v2558
        %v2595 = vadd.f32 %v2438, %v2560
        %v2596 = vadd.f32 %v2442, %v2564
        %v2597 = vadd.f32 %v2444, %v2566
        %v2598 = vadd.f32 %v2446, %v2568
        %v2599 = vadd.f32 %v2448, %v2570
        %v2600 = vadd.f32 %v2452, %v2574
        %v2601 = vadd.f32 %v2454, %v2576
        %v2602 = vadd.f32 %v2456, %v2578
        %v2603 = vadd.f32 %v2458, %v2580
        %v2604 = vadd.f32 %v2462, %v2584
        %v2605 = vadd.f32 %v2464, %v2586
        %v2606 = vadd.f32 %v2466, %v2588
        %v2607 = vadd.f32 %v2468, %v2590
        %2608 = vrot.lane.b32.xlu0 %v1939, 127
        %v2609 = vpop.permute.xlu0 %2608
        %2610 = vrot.lane.b32.xlu0 %v1941, 127
        %v2611 = vpop.permute.xlu0 %2610
        %2612 = vrot.lane.b32.xlu0 %v1943, 127
        %v2613 = vpop.permute.xlu0 %2612
        %2614 = vrot.lane.b32.xlu0 %v1945, 127
        %v2615 = vpop.permute.xlu0 %2614
        %2616 = vrot.lane.b32.xlu0 %v1947, 127
        %v2617 = vpop.permute.xlu0 %2616
        %2618 = vrot.lane.b32.xlu0 %v1949, 127
        %v2619 = vpop.permute.xlu0 %2618
        %2620 = vrot.lane.b32.xlu0 %v1951, 127
        %v2621 = vpop.permute.xlu0 %2620
        %2622 = vrot.lane.b32.xlu0 %v1953, 127
        %v2623 = vpop.permute.xlu0 %2622
        %2624 = vrot.lane.b32.xlu0 %v1955, 127
        %v2625 = vpop.permute.xlu0 %2624
        %2626 = vrot.lane.b32.xlu0 %v1957, 127
        %v2627 = vpop.permute.xlu0 %2626
        %2628 = vrot.lane.b32.xlu0 %v1959, 127
        %v2629 = vpop.permute.xlu0 %2628
        %2630 = vrot.lane.b32.xlu0 %v1961, 127
        %v2631 = vpop.permute.xlu0 %2630
        %2632 = vrot.lane.b32.xlu0 %v1963, 127
        %v2633 = vpop.permute.xlu0 %2632
        %2634 = vrot.lane.b32.xlu0 %v1965, 127
        %v2635 = vpop.permute.xlu0 %2634
        %2636 = vrot.lane.b32.xlu0 %v1967, 127
        %v2637 = vpop.permute.xlu0 %2636
        %2638 = vrot.lane.b32.xlu0 %v1969, 127
        %v2639 = vpop.permute.xlu0 %2638
        %2640 = vrot.lane.b32.xlu0 %v1940, 127
        %v2641 = vpop.permute.xlu0 %2640
        %2642 = vrot.lane.b32.xlu0 %v1942, 127
        %v2643 = vpop.permute.xlu0 %2642
        %2644 = vrot.lane.b32.xlu0 %v1944, 127
        %v2645 = vpop.permute.xlu0 %2644
        %2646 = vrot.lane.b32.xlu0 %v1946, 127
        %v2647 = vpop.permute.xlu0 %2646
        %2648 = vrot.lane.b32.xlu0 %v1948, 127
        %v2649 = vpop.permute.xlu0 %2648
        %2650 = vrot.lane.b32.xlu0 %v1950, 127
        %v2651 = vpop.permute.xlu0 %2650
        %2652 = vrot.lane.b32.xlu0 %v1952, 127
        %v2653 = vpop.permute.xlu0 %2652
        %2654 = vrot.lane.b32.xlu0 %v1954, 127
        %v2655 = vpop.permute.xlu0 %2654
        %2656 = vrot.lane.b32.xlu0 %v1956, 127
        %v2657 = vpop.permute.xlu0 %2656
        %2658 = vrot.lane.b32.xlu0 %v1958, 127
        %v2659 = vpop.permute.xlu0 %2658
        %2660 = vrot.lane.b32.xlu0 %v1960, 127
        %v2661 = vpop.permute.xlu0 %2660
        %2662 = vrot.lane.b32.xlu0 %v1962, 127
        %v2663 = vpop.permute.xlu0 %2662
        %2664 = vrot.lane.b32.xlu0 %v1964, 127
        %v2665 = vpop.permute.xlu0 %2664
        %2666 = vrot.lane.b32.xlu0 %v1966, 127
        %v2667 = vpop.permute.xlu0 %2666
        %2668 = vrot.lane.b32.xlu0 %v1968, 127
        %v2669 = vpop.permute.xlu0 %2668
        %2670 = vrot.lane.b32.xlu0 %v1970, 127
        %v2671 = vpop.permute.xlu0 %2670
        %v2672 = vsel %vm1259, %v2609, %v2641
        %v2673 = vsel %vm1259, %v2611, %v2643
        %v2674 = vsel %vm1259, %v2613, %v2645
        %v2675 = vsel %vm1259, %v2615, %v2647
        %v2676 = vsel %vm1259, %v2617, %v2649
        %v2677 = vsel %vm1259, %v2619, %v2651
        %v2678 = vsel %vm1259, %v2621, %v2653
        %v2679 = vsel %vm1259, %v2623, %v2655
        %v2680 = vsel %vm1259, %v2625, %v2657
        %v2681 = vsel %vm1259, %v2627, %v2659
        %v2682 = vsel %vm1259, %v2629, %v2661
        %v2683 = vsel %vm1259, %v2631, %v2663
        %v2684 = vsel %vm1259, %v2633, %v2665
        %v2685 = vsel %vm1259, %v2635, %v2667
        %v2686 = vsel %vm1259, %v2637, %v2669
        %v2687 = vsel %vm1259, %v2639, %v2671
        %v2688 = vsel %vm1259, %v2641, %v2609
        %v2689 = vsel %vm1259, %v2643, %v2611
        %v2690 = vsel %vm1259, %v2645, %v2613
        %v2691 = vsel %vm1259, %v2647, %v2615
        %v2692 = vsel %vm1259, %v2649, %v2617
        %v2693 = vsel %vm1259, %v2651, %v2619
        %v2694 = vsel %vm1259, %v2653, %v2621
        %v2695 = vsel %vm1259, %v2655, %v2623
        %v2696 = vsel %vm1259, %v2657, %v2625
        %v2697 = vsel %vm1259, %v2659, %v2627
        %v2698 = vsel %vm1259, %v2661, %v2629
        %v2699 = vsel %vm1259, %v2663, %v2631
        %v2700 = vsel %vm1259, %v2665, %v2633
        %v2701 = vsel %vm1259, %v2667, %v2635
        %v2702 = vsel %vm1259, %v2669, %v2637
        %v2703 = vsel %vm1259, %v2671, %v2639
        %v2704 = vsel %vm1262, %v2672, 0.0
        %v2705 = vsel %vm1263, %v2688, 0.0
        %v2706 = vsel %vm1262, %v2673, 0.0
        %v2707 = vsel %vm1263, %v2689, 0.0
        %v2708 = vsel %vm1262, %v2674, 0.0
        %v2709 = vsel %vm1263, %v2690, 0.0
        %v2710 = vsel %vm1262, %v2675, 0.0
        %v2711 = vsel %vm1263, %v2691, 0.0
        %v2712 = vsel %vm1262, %v2676, 0.0
        %v2713 = vsel %vm1263, %v2692, 0.0
        %v2714 = vsel %vm1262, %v2677, 0.0
        %v2715 = vsel %vm1263, %v2693, 0.0
        %v2716 = vsel %vm1262, %v2678, 0.0
        %v2717 = vsel %vm1263, %v2694, 0.0
        %v2718 = vsel %vm1262, %v2679, 0.0
        %v2719 = vsel %vm1263, %v2695, 0.0
        %v2720 = vsel %vm1262, %v2680, 0.0
        %v2721 = vsel %vm1263, %v2696, 0.0
        %v2722 = vsel %vm1262, %v2681, 0.0
        %v2723 = vsel %vm1263, %v2697, 0.0
        %v2724 = vsel %vm1262, %v2682, 0.0
        %v2725 = vsel %vm1263, %v2698, 0.0
        %v2726 = vsel %vm1262, %v2683, 0.0
        %v2727 = vsel %vm1263, %v2699, 0.0
        %v2728 = vsel %vm1262, %v2684, 0.0
        %v2729 = vsel %vm1263, %v2700, 0.0
        %v2730 = vsel %vm1262, %v2685, 0.0
        %v2731 = vsel %vm1263, %v2701, 0.0
        %v2732 = vsel %vm1262, %v2686, 0.0
        %v2733 = vsel %vm1263, %v2702, 0.0
        %v2734 = vsel %vm1262, %v2687, 0.0
        %v2735 = vsel %vm1263, %v2703, 0.0
        %v2736 = vpack.c.bf16 %v2706, %v2704
        %v2737 = vpack.c.bf16 %v2707, %v2705
        %v2738 = vpack.c.bf16 %v2710, %v2708
        %v2739 = vpack.c.bf16 %v2711, %v2709
        %v2740 = vpack.c.bf16 %v2714, %v2712
        %v2741 = vpack.c.bf16 %v2715, %v2713
        %v2742 = vpack.c.bf16 %v2718, %v2716
        %v2743 = vpack.c.bf16 %v2719, %v2717
        %v2744 = vpack.c.bf16 %v2722, %v2720
        %v2745 = vpack.c.bf16 %v2723, %v2721
        %v2746 = vpack.c.bf16 %v2726, %v2724
        %v2747 = vpack.c.bf16 %v2727, %v2725
        %v2748 = vpack.c.bf16 %v2730, %v2728
        %v2749 = vpack.c.bf16 %v2731, %v2729
        %v2750 = vpack.c.bf16 %v2734, %v2732
        %v2751 = vpack.c.bf16 %v2735, %v2733
        %s2752 = scalar_lea.vmem %s4, 96
        %v2753 = vld [vmem:[%s2752] sm:$0xf]
        %v2754 = vld [vmem:[%s2752 + $0x4] sm:$0xf]
        %v2755 = vld [vmem:[%s2752 + $0x8] sm:$0xf]
        %v2756 = vld [vmem:[%s2752 + $0xc] sm:$0xf]
        %v2757 = vld [vmem:[%s2752 + $0x10] sm:$0xf]
        %v2758 = vld [vmem:[%s2752 + $0x14] sm:$0xf]
        %v2759 = vld [vmem:[%s2752 + $0x18] sm:$0xf]
        %v2760 = vld [vmem:[%s2752 + $0x1c] sm:$0xf]
        %v2769 = vunpack.c.l.b16 %v2753
        %v2770 = vunpack.c.l.b16 %v2754
        %v2771 = vunpack.c.l.b16 %v2755
        %v2772 = vunpack.c.l.b16 %v2756
        %v2773 = vunpack.c.l.b16 %v2757
        %v2774 = vunpack.c.l.b16 %v2758
        %v2775 = vunpack.c.l.b16 %v2759
        %v2776 = vunpack.c.l.b16 %v2760
        %v2777 = vpack.c.b16 %v2770, %v2769
        %v2778 = vpack.c.b16 %v2772, %v2771
        %v2779 = vpack.c.b16 %v2774, %v2773
        %v2780 = vpack.c.b16 %v2776, %v2775
        %2785 = vmatprep.subr.bf16.mxu0 %v2737
        %2786 = vmatpush1.bf16.msra.mxu0 %v2736
        %2787 = vmatprep.subr.bf16.mxu0 %v2739
        %2788 = vmatpush1.bf16.msra.mxu0 %v2738
        %2789 = vmatprep.subr.bf16.mxu0 %v2741
        %2790 = vmatpush1.bf16.msra.mxu0 %v2740
        %2791 = vmatprep.subr.bf16.mxu0 %v2743
        %2792 = vmatpush1.bf16.msra.mxu0 %v2742
        %2793 = vmatprep.subr.bf16.mxu0 %v2745
        %2794 = vmatpush1.bf16.msra.mxu0 %v2744
        %2795 = vmatprep.subr.bf16.mxu0 %v2747
        %2796 = vmatpush1.bf16.msra.mxu0 %v2746
        %2797 = vmatprep.subr.bf16.mxu0 %v2749
        %2798 = vmatpush1.bf16.msra.mxu0 %v2748
        %2799 = vmatprep.subr.bf16.mxu0 %v2751
        %2800 = vmatpush1.bf16.msra.mxu0 %v2750
        %2801 = vmatprep.subr.bf16.mxu0 0
        %2802 = vmatpush1.bf16.msra.mxu0 0
        %2803 = vmatprep.subr.bf16.mxu0 0
        %2804 = vmatpush1.bf16.msra.mxu0 0
        %2805 = vmatprep.subr.bf16.mxu0 0
        %2806 = vmatpush1.bf16.msra.mxu0 0
        %2807 = vmatprep.subr.bf16.mxu0 0
        %2808 = vmatpush1.bf16.msra.mxu0 0
        %2809 = vmatprep.subr.bf16.mxu0 0
        %2810 = vmatpush1.bf16.msra.mxu0 0
        %2811 = vmatprep.subr.bf16.mxu0 0
        %2812 = vmatpush1.bf16.msra.mxu0 0
        %2813 = vmatprep.subr.bf16.mxu0 0
        %2814 = vmatpush1.bf16.msra.mxu0 0
        %2815 = vmatprep.subr.bf16.mxu0 0
        %2816 = vmatpush1.bf16.msra.mxu0 0
        %2817 = vmatprep.mubr.bf16.mxu0 0
        %2818 = vmatmul.mubr.bf16.gmra.mrb[0].mxu0 %v2777
        %v2819 = vpop.f32.mrb[0].mxu0
        %v2820 = vadd.f32 0.0, %v2819
        %v2821 = vpop.f32.mrb[0].mxu0
        %v2822 = vadd.f32 0.0, %v2821
        %v2823 = vpop.f32.mrb[0].mxu0
        %v2824 = vadd.f32 0.0, %v2823
        %v2825 = vpop.f32.mrb[0].mxu0
        %v2826 = vadd.f32 0.0, %v2825
        %2827 = vmatprep.mubr.bf16.mxu0 0
        %2828 = vmatmul.mubr.bf16.gmra.mrb[0].mxu0 %v2778
        %v2829 = vpop.f32.mrb[0].mxu0
        %v2830 = vadd.f32 0.0, %v2829
        %v2831 = vpop.f32.mrb[0].mxu0
        %v2832 = vadd.f32 0.0, %v2831
        %v2833 = vpop.f32.mrb[0].mxu0
        %v2834 = vadd.f32 0.0, %v2833
        %v2835 = vpop.f32.mrb[0].mxu0
        %v2836 = vadd.f32 0.0, %v2835
        %2837 = vmatprep.mubr.bf16.mxu0 0
        %2838 = vmatmul.mubr.bf16.gmra.mrb[0].mxu0 %v2779
        %v2839 = vpop.f32.mrb[0].mxu0
        %v2840 = vadd.f32 0.0, %v2839
        %v2841 = vpop.f32.mrb[0].mxu0
        %v2842 = vadd.f32 0.0, %v2841
        %v2843 = vpop.f32.mrb[0].mxu0
        %v2844 = vadd.f32 0.0, %v2843
        %v2845 = vpop.f32.mrb[0].mxu0
        %v2846 = vadd.f32 0.0, %v2845
        %2847 = vmatprep.mubr.bf16.mxu0 0
        %2848 = vmatmul.mubr.bf16.gmra.mrb[0].mxu0 %v2780
        %v2849 = vpop.f32.mrb[0].mxu0
        %v2850 = vadd.f32 0.0, %v2849
        %v2851 = vpop.f32.mrb[0].mxu0
        %v2852 = vadd.f32 0.0, %v2851
        %v2853 = vpop.f32.mrb[0].mxu0
        %v2854 = vadd.f32 0.0, %v2853
        %v2855 = vpop.f32.mrb[0].mxu0
        %v2856 = vadd.f32 0.0, %v2855
        %2857 = vdwg.mxu0
        %v2858 = vadd.f32 %v2592, %v2820
        %v2859 = vadd.f32 %v2593, %v2822
        %v2860 = vadd.f32 %v2594, %v2824
        %v2861 = vadd.f32 %v2595, %v2826
        %v2862 = vadd.f32 %v2596, %v2830
        %v2863 = vadd.f32 %v2597, %v2832
        %v2864 = vadd.f32 %v2598, %v2834
        %v2865 = vadd.f32 %v2599, %v2836
        %v2866 = vadd.f32 %v2600, %v2840
        %v2867 = vadd.f32 %v2601, %v2842
        %v2868 = vadd.f32 %v2602, %v2844
        %v2869 = vadd.f32 %v2603, %v2846
        %v2870 = vadd.f32 %v2604, %v2850
        %v2871 = vadd.f32 %v2605, %v2852
        %v2872 = vadd.f32 %v2606, %v2854
        %v2873 = vadd.f32 %v2607, %v2856
        %2874 = vrot.lane.b32.xlu0 %v1939, 126
        %v2875 = vpop.permute.xlu0 %2874
        %2876 = vrot.lane.b32.xlu0 %v1941, 126
        %v2877 = vpop.permute.xlu0 %2876
        %2878 = vrot.lane.b32.xlu0 %v1943, 126
        %v2879 = vpop.permute.xlu0 %2878
        %2880 = vrot.lane.b32.xlu0 %v1945, 126
        %v2881 = vpop.permute.xlu0 %2880
        %2882 = vrot.lane.b32.xlu0 %v1947, 126
        %v2883 = vpop.permute.xlu0 %2882
        %2884 = vrot.lane.b32.xlu0 %v1949, 126
        %v2885 = vpop.permute.xlu0 %2884
        %2886 = vrot.lane.b32.xlu0 %v1951, 126
        %v2887 = vpop.permute.xlu0 %2886
        %2888 = vrot.lane.b32.xlu0 %v1953, 126
        %v2889 = vpop.permute.xlu0 %2888
        %2890 = vrot.lane.b32.xlu0 %v1955, 126
        %v2891 = vpop.permute.xlu0 %2890
        %2892 = vrot.lane.b32.xlu0 %v1957, 126
        %v2893 = vpop.permute.xlu0 %2892
        %2894 = vrot.lane.b32.xlu0 %v1959, 126
        %v2895 = vpop.permute.xlu0 %2894
        %2896 = vrot.lane.b32.xlu0 %v1961, 126
        %v2897 = vpop.permute.xlu0 %2896
        %2898 = vrot.lane.b32.xlu0 %v1963, 126
        %v2899 = vpop.permute.xlu0 %2898
        %2900 = vrot.lane.b32.xlu0 %v1965, 126
        %v2901 = vpop.permute.xlu0 %2900
        %2902 = vrot.lane.b32.xlu0 %v1967, 126
        %v2903 = vpop.permute.xlu0 %2902
        %2904 = vrot.lane.b32.xlu0 %v1969, 126
        %v2905 = vpop.permute.xlu0 %2904
        %2906 = vrot.lane.b32.xlu0 %v1940, 126
        %v2907 = vpop.permute.xlu0 %2906
        %2908 = vrot.lane.b32.xlu0 %v1942, 126
        %v2909 = vpop.permute.xlu0 %2908
        %2910 = vrot.lane.b32.xlu0 %v1944, 126
        %v2911 = vpop.permute.xlu0 %2910
        %2912 = vrot.lane.b32.xlu0 %v1946, 126
        %v2913 = vpop.permute.xlu0 %2912
        %2914 = vrot.lane.b32.xlu0 %v1948, 126
        %v2915 = vpop.permute.xlu0 %2914
        %2916 = vrot.lane.b32.xlu0 %v1950, 126
        %v2917 = vpop.permute.xlu0 %2916
        %2918 = vrot.lane.b32.xlu0 %v1952, 126
        %v2919 = vpop.permute.xlu0 %2918
        %2920 = vrot.lane.b32.xlu0 %v1954, 126
        %v2921 = vpop.permute.xlu0 %2920
        %2922 = vrot.lane.b32.xlu0 %v1956, 126
        %v2923 = vpop.permute.xlu0 %2922
        %2924 = vrot.lane.b32.xlu0 %v1958, 126
        %v2925 = vpop.permute.xlu0 %2924
        %2926 = vrot.lane.b32.xlu0 %v1960, 126
        %v2927 = vpop.permute.xlu0 %2926
        %2928 = vrot.lane.b32.xlu0 %v1962, 126
        %v2929 = vpop.permute.xlu0 %2928
        %2930 = vrot.lane.b32.xlu0 %v1964, 126
        %v2931 = vpop.permute.xlu0 %2930
        %2932 = vrot.lane.b32.xlu0 %v1966, 126
        %v2933 = vpop.permute.xlu0 %2932
        %2934 = vrot.lane.b32.xlu0 %v1968, 126
        %v2935 = vpop.permute.xlu0 %2934
        %2936 = vrot.lane.b32.xlu0 %v1970, 126
        %v2937 = vpop.permute.xlu0 %2936
        %v2938 = vsel %vm1504, %v2875, %v2907
        %v2939 = vsel %vm1504, %v2877, %v2909
        %v2940 = vsel %vm1504, %v2879, %v2911
        %v2941 = vsel %vm1504, %v2881, %v2913
        %v2942 = vsel %vm1504, %v2883, %v2915
        %v2943 = vsel %vm1504, %v2885, %v2917
        %v2944 = vsel %vm1504, %v2887, %v2919
        %v2945 = vsel %vm1504, %v2889, %v2921
        %v2946 = vsel %vm1504, %v2891, %v2923
        %v2947 = vsel %vm1504, %v2893, %v2925
        %v2948 = vsel %vm1504, %v2895, %v2927
        %v2949 = vsel %vm1504, %v2897, %v2929
        %v2950 = vsel %vm1504, %v2899, %v2931
        %v2951 = vsel %vm1504, %v2901, %v2933
        %v2952 = vsel %vm1504, %v2903, %v2935
        %v2953 = vsel %vm1504, %v2905, %v2937
        %v2954 = vsel %vm1504, %v2907, %v2875
        %v2955 = vsel %vm1504, %v2909, %v2877
        %v2956 = vsel %vm1504, %v2911, %v2879
        %v2957 = vsel %vm1504, %v2913, %v2881
        %v2958 = vsel %vm1504, %v2915, %v2883
        %v2959 = vsel %vm1504, %v2917, %v2885
        %v2960 = vsel %vm1504, %v2919, %v2887
        %v2961 = vsel %vm1504, %v2921, %v2889
        %v2962 = vsel %vm1504, %v2923, %v2891
        %v2963 = vsel %vm1504, %v2925, %v2893
        %v2964 = vsel %vm1504, %v2927, %v2895
        %v2965 = vsel %vm1504, %v2929, %v2897
        %v2966 = vsel %vm1504, %v2931, %v2899
        %v2967 = vsel %vm1504, %v2933, %v2901
        %v2968 = vsel %vm1504, %v2935, %v2903
        %v2969 = vsel %vm1504, %v2937, %v2905
        %v2970 = vsel %vm1507, %v2938, 0.0
        %v2971 = vsel %vm1508, %v2954, 0.0
        %v2972 = vsel %vm1507, %v2939, 0.0
        %v2973 = vsel %vm1508, %v2955, 0.0
        %v2974 = vsel %vm1507, %v2940, 0.0
        %v2975 = vsel %vm1508, %v2956, 0.0
        %v2976 = vsel %vm1507, %v2941, 0.0
        %v2977 = vsel %vm1508, %v2957, 0.0
        %v2978 = vsel %vm1507, %v2942, 0.0
        %v2979 = vsel %vm1508, %v2958, 0.0
        %v2980 = vsel %vm1507, %v2943, 0.0
        %v2981 = vsel %vm1508, %v2959, 0.0
        %v2982 = vsel %vm1507, %v2944, 0.0
        %v2983 = vsel %vm1508, %v2960, 0.0
        %v2984 = vsel %vm1507, %v2945, 0.0
        %v2985 = vsel %vm1508, %v2961, 0.0
        %v2986 = vsel %vm1507, %v2946, 0.0
        %v2987 = vsel %vm1508, %v2962, 0.0
        %v2988 = vsel %vm1507, %v2947, 0.0
        %v2989 = vsel %vm1508, %v2963, 0.0
        %v2990 = vsel %vm1507, %v2948, 0.0
        %v2991 = vsel %vm1508, %v2964, 0.0
        %v2992 = vsel %vm1507, %v2949, 0.0
        %v2993 = vsel %vm1508, %v2965, 0.0
        %v2994 = vsel %vm1507, %v2950, 0.0
        %v2995 = vsel %vm1508, %v2966, 0.0
        %v2996 = vsel %vm1507, %v2951, 0.0
        %v2997 = vsel %vm1508, %v2967, 0.0
        %v2998 = vsel %vm1507, %v2952, 0.0
        %v2999 = vsel %vm1508, %v2968, 0.0
        %v3000 = vsel %vm1507, %v2953, 0.0
        %v3001 = vsel %vm1508, %v2969, 0.0
        %v3002 = vpack.c.bf16 %v2972, %v2970
        %v3003 = vpack.c.bf16 %v2973, %v2971
        %v3004 = vpack.c.bf16 %v2976, %v2974
        %v3005 = vpack.c.bf16 %v2977, %v2975
        %v3006 = vpack.c.bf16 %v2980, %v2978
        %v3007 = vpack.c.bf16 %v2981, %v2979
        %v3008 = vpack.c.bf16 %v2984, %v2982
        %v3009 = vpack.c.bf16 %v2985, %v2983
        %v3010 = vpack.c.bf16 %v2988, %v2986
        %v3011 = vpack.c.bf16 %v2989, %v2987
        %v3012 = vpack.c.bf16 %v2992, %v2990
        %v3013 = vpack.c.bf16 %v2993, %v2991
        %v3014 = vpack.c.bf16 %v2996, %v2994
        %v3015 = vpack.c.bf16 %v2997, %v2995
        %v3016 = vpack.c.bf16 %v3000, %v2998
        %v3017 = vpack.c.bf16 %v3001, %v2999
        %s3018 = scalar_lea.vmem %s4, 128
        %v3019 = vld [vmem:[%s3018] sm:$0xf]
        %v3020 = vld [vmem:[%s3018 + $0x4] sm:$0xf]
        %v3021 = vld [vmem:[%s3018 + $0x8] sm:$0xf]
        %v3022 = vld [vmem:[%s3018 + $0xc] sm:$0xf]
        %v3023 = vld [vmem:[%s3018 + $0x10] sm:$0xf]
        %v3024 = vld [vmem:[%s3018 + $0x14] sm:$0xf]
        %v3025 = vld [vmem:[%s3018 + $0x18] sm:$0xf]
        %v3026 = vld [vmem:[%s3018 + $0x1c] sm:$0xf]
        %v3035 = vunpack.c.l.b16 %v3019
        %v3036 = vunpack.c.l.b16 %v3020
        %v3037 = vunpack.c.l.b16 %v3021
        %v3038 = vunpack.c.l.b16 %v3022
        %v3039 = vunpack.c.l.b16 %v3023
        %v3040 = vunpack.c.l.b16 %v3024
        %v3041 = vunpack.c.l.b16 %v3025
        %v3042 = vunpack.c.l.b16 %v3026
        %v3043 = vpack.c.b16 %v3036, %v3035
        %v3044 = vpack.c.b16 %v3038, %v3037
        %v3045 = vpack.c.b16 %v3040, %v3039
        %v3046 = vpack.c.b16 %v3042, %v3041
        %3051 = vmatprep.subr.bf16.mxu0 %v3003
        %3052 = vmatpush1.bf16.msra.mxu0 %v3002
        %3053 = vmatprep.subr.bf16.mxu0 %v3005
        %3054 = vmatpush1.bf16.msra.mxu0 %v3004
        %3055 = vmatprep.subr.bf16.mxu0 %v3007
        %3056 = vmatpush1.bf16.msra.mxu0 %v3006
        %3057 = vmatprep.subr.bf16.mxu0 %v3009
        %3058 = vmatpush1.bf16.msra.mxu0 %v3008
        %3059 = vmatprep.subr.bf16.mxu0 %v3011
        %3060 = vmatpush1.bf16.msra.mxu0 %v3010
        %3061 = vmatprep.subr.bf16.mxu0 %v3013
        %3062 = vmatpush1.bf16.msra.mxu0 %v3012
        %3063 = vmatprep.subr.bf16.mxu0 %v3015
        %3064 = vmatpush1.bf16.msra.mxu0 %v3014
        %3065 = vmatprep.subr.bf16.mxu0 %v3017
        %3066 = vmatpush1.bf16.msra.mxu0 %v3016
        %3067 = vmatprep.subr.bf16.mxu0 0
        %3068 = vmatpush1.bf16.msra.mxu0 0
        %3069 = vmatprep.subr.bf16.mxu0 0
        %3070 = vmatpush1.bf16.msra.mxu0 0
        %3071 = vmatprep.subr.bf16.mxu0 0
        %3072 = vmatpush1.bf16.msra.mxu0 0
        %3073 = vmatprep.subr.bf16.mxu0 0
        %3074 = vmatpush1.bf16.msra.mxu0 0
        %3075 = vmatprep.subr.bf16.mxu0 0
        %3076 = vmatpush1.bf16.msra.mxu0 0
        %3077 = vmatprep.subr.bf16.mxu0 0
        %3078 = vmatpush1.bf16.msra.mxu0 0
        %3079 = vmatprep.subr.bf16.mxu0 0
        %3080 = vmatpush1.bf16.msra.mxu0 0
        %3081 = vmatprep.subr.bf16.mxu0 0
        %3082 = vmatpush1.bf16.msra.mxu0 0
        %3083 = vmatprep.mubr.bf16.mxu0 0
        %3084 = vmatmul.mubr.bf16.gmra.mrb[0].mxu0 %v3043
        %v3085 = vpop.f32.mrb[0].mxu0
        %v3086 = vadd.f32 0.0, %v3085
        %v3087 = vpop.f32.mrb[0].mxu0
        %v3088 = vadd.f32 0.0, %v3087
        %v3089 = vpop.f32.mrb[0].mxu0
        %v3090 = vadd.f32 0.0, %v3089
        %v3091 = vpop.f32.mrb[0].mxu0
        %v3092 = vadd.f32 0.0, %v3091
        %3093 = vmatprep.mubr.bf16.mxu0 0
        %3094 = vmatmul.mubr.bf16.gmra.mrb[0].mxu0 %v3044
        %v3095 = vpop.f32.mrb[0].mxu0
        %v3096 = vadd.f32 0.0, %v3095
        %v3097 = vpop.f32.mrb[0].mxu0
        %v3098 = vadd.f32 0.0, %v3097
        %v3099 = vpop.f32.mrb[0].mxu0
        %v3100 = vadd.f32 0.0, %v3099
        %v3101 = vpop.f32.mrb[0].mxu0
        %v3102 = vadd.f32 0.0, %v3101
        %3103 = vmatprep.mubr.bf16.mxu0 0
        %3104 = vmatmul.mubr.bf16.gmra.mrb[0].mxu0 %v3045
        %v3105 = vpop.f32.mrb[0].mxu0
        %v3106 = vadd.f32 0.0, %v3105
        %v3107 = vpop.f32.mrb[0].mxu0
        %v3108 = vadd.f32 0.0, %v3107
        %v3109 = vpop.f32.mrb[0].mxu0
        %v3110 = vadd.f32 0.0, %v3109
        %v3111 = vpop.f32.mrb[0].mxu0
        %v3112 = vadd.f32 0.0, %v3111
        %3113 = vmatprep.mubr.bf16.mxu0 0
        %3114 = vmatmul.mubr.bf16.gmra.mrb[0].mxu0 %v3046
        %v3115 = vpop.f32.mrb[0].mxu0
        %v3116 = vadd.f32 0.0, %v3115
        %v3117 = vpop.f32.mrb[0].mxu0
        %v3118 = vadd.f32 0.0, %v3117
        %v3119 = vpop.f32.mrb[0].mxu0
        %v3120 = vadd.f32 0.0, %v3119
        %v3121 = vpop.f32.mrb[0].mxu0
        %v3122 = vadd.f32 0.0, %v3121
        %3123 = vdwg.mxu0
        %v3124 = vadd.f32 %v2858, %v3086
        %v3125 = vadd.f32 %v2859, %v3088
        %v3126 = vadd.f32 %v2860, %v3090
        %v3127 = vadd.f32 %v2861, %v3092
        %v3128 = vadd.f32 %v2862, %v3096
        %v3129 = vadd.f32 %v2863, %v3098
        %v3130 = vadd.f32 %v2864, %v3100
        %v3131 = vadd.f32 %v2865, %v3102
        %v3132 = vadd.f32 %v2866, %v3106
        %v3133 = vadd.f32 %v2867, %v3108
        %v3134 = vadd.f32 %v2868, %v3110
        %v3135 = vadd.f32 %v2869, %v3112
        %v3136 = vadd.f32 %v2870, %v3116
        %v3137 = vadd.f32 %v2871, %v3118
        %v3138 = vadd.f32 %v2872, %v3120
        %v3139 = vadd.f32 %v2873, %v3122
        %v3140 = vld [vmem:[%s5] sm:$0xff]
        %v3141 = vld [vmem:[%s5 + $0x8] sm:$0xff]
        %v3142 = vld [vmem:[%s5 + $0x10] sm:$0xff]
        %v3143 = vld [vmem:[%s5 + $0x18] sm:$0xff]
        %v3144 = vld [vmem:[%s5 + $0x20] sm:$0xff]
        %v3145 = vld [vmem:[%s5 + $0x28] sm:$0xff]
        %v3146 = vld [vmem:[%s5 + $0x30] sm:$0xff]
        %v3147 = vld [vmem:[%s5 + $0x38] sm:$0xff]
        %3149 = vset.pattern.permute.xlu0 0
        %3150 = vperm.xlu0 %3149, %v3140
        %v3151 = vpop.permute.xlu0 %3150
        %3154 = vset.pattern.permute.xlu0 0
        %3155 = vperm.xlu0 %3154, %v3141
        %v3156 = vpop.permute.xlu0 %3155
        %3159 = vset.pattern.permute.xlu0 0
        %3160 = vperm.xlu0 %3159, %v3142
        %v3161 = vpop.permute.xlu0 %3160
        %3164 = vset.pattern.permute.xlu0 0
        %3165 = vperm.xlu0 %3164, %v3143
        %v3166 = vpop.permute.xlu0 %3165
        %3169 = vset.pattern.permute.xlu0 0
        %3170 = vperm.xlu0 %3169, %v3144
        %v3171 = vpop.permute.xlu0 %3170
        %3174 = vset.pattern.permute.xlu0 0
        %3175 = vperm.xlu0 %3174, %v3145
        %v3176 = vpop.permute.xlu0 %3175
        %3179 = vset.pattern.permute.xlu0 0
        %3180 = vperm.xlu0 %3179, %v3146
        %v3181 = vpop.permute.xlu0 %3180
        %3184 = vset.pattern.permute.xlu0 0
        %3185 = vperm.xlu0 %3184, %v3147
        %v3186 = vpop.permute.xlu0 %3185
        %v3188 = vadd.f32 %v3124, %v3151
        %v3189 = vadd.f32 %v3125, %v3151
        %v3190 = vadd.f32 %v3126, %v3156
        %v3191 = vadd.f32 %v3127, %v3156
        %v3192 = vadd.f32 %v3128, %v3161
        %v3193 = vadd.f32 %v3129, %v3161
        %v3194 = vadd.f32 %v3130, %v3166
        %v3195 = vadd.f32 %v3131, %v3166
        %v3196 = vadd.f32 %v3132, %v3171
        %v3197 = vadd.f32 %v3133, %v3171
        %v3198 = vadd.f32 %v3134, %v3176
        %v3199 = vadd.f32 %v3135, %v3176
        %v3200 = vadd.f32 %v3136, %v3181
        %v3201 = vadd.f32 %v3137, %v3181
        %v3202 = vadd.f32 %v3138, %v3186
        %v3203 = vadd.f32 %v3139, %v3186
        %s3204 = sld [smem:[#allocation2 + $0x1]]
        %vm3205 = vcmp.gt.f32.partialorder %v3188, 0.0
        %vm3206 = vcmp.gt.f32.partialorder %v3189, 0.0
        %vm3207 = vcmp.gt.f32.partialorder %v3190, 0.0
        %vm3208 = vcmp.gt.f32.partialorder %v3191, 0.0
        %vm3209 = vcmp.gt.f32.partialorder %v3192, 0.0
        %vm3210 = vcmp.gt.f32.partialorder %v3193, 0.0
        %vm3211 = vcmp.gt.f32.partialorder %v3194, 0.0
        %vm3212 = vcmp.gt.f32.partialorder %v3195, 0.0
        %vm3213 = vcmp.gt.f32.partialorder %v3196, 0.0
        %vm3214 = vcmp.gt.f32.partialorder %v3197, 0.0
        %vm3215 = vcmp.gt.f32.partialorder %v3198, 0.0
        %vm3216 = vcmp.gt.f32.partialorder %v3199, 0.0
        %vm3217 = vcmp.gt.f32.partialorder %v3200, 0.0
        %vm3218 = vcmp.gt.f32.partialorder %v3201, 0.0
        %vm3219 = vcmp.gt.f32.partialorder %v3202, 0.0
        %vm3220 = vcmp.gt.f32.partialorder %v3203, 0.0
        %v3221 = vstv %s3204
        %v3222 = vmul.f32 %v3221, %v3188
        %v3223 = vmul.f32 %v3221, %v3189
        %v3224 = vmul.f32 %v3221, %v3190
        %v3225 = vmul.f32 %v3221, %v3191
        %v3226 = vmul.f32 %v3221, %v3192
        %v3227 = vmul.f32 %v3221, %v3193
        %v3228 = vmul.f32 %v3221, %v3194
        %v3229 = vmul.f32 %v3221, %v3195
        %v3230 = vmul.f32 %v3221, %v3196
        %v3231 = vmul.f32 %v3221, %v3197
        %v3232 = vmul.f32 %v3221, %v3198
        %v3233 = vmul.f32 %v3221, %v3199
        %v3234 = vmul.f32 %v3221, %v3200
        %v3235 = vmul.f32 %v3221, %v3201
        %v3236 = vmul.f32 %v3221, %v3202
        %v3237 = vmul.f32 %v3221, %v3203
        %v3238 = vsel %vm3205, %v3188, %v3222
        %v3239 = vsel %vm3206, %v3189, %v3223
        %v3240 = vsel %vm3207, %v3190, %v3224
        %v3241 = vsel %vm3208, %v3191, %v3225
        %v3242 = vsel %vm3209, %v3192, %v3226
        %v3243 = vsel %vm3210, %v3193, %v3227
        %v3244 = vsel %vm3211, %v3194, %v3228
        %v3245 = vsel %vm3212, %v3195, %v3229
        %v3246 = vsel %vm3213, %v3196, %v3230
        %v3247 = vsel %vm3214, %v3197, %v3231
        %v3248 = vsel %vm3215, %v3198, %v3232
        %v3249 = vsel %vm3216, %v3199, %v3233
        %v3250 = vsel %vm3217, %v3200, %v3234
        %v3251 = vsel %vm3218, %v3201, %v3235
        %v3252 = vsel %vm3219, %v3202, %v3236
        %v3253 = vsel %vm3220, %v3203, %v3237
        %3254 = vrot.lane.b32.xlu0 %v3238, 2
        %v3255 = vpop.permute.xlu0 %3254
        %3256 = vrot.lane.b32.xlu0 %v3240, 2
        %v3257 = vpop.permute.xlu0 %3256
        %3258 = vrot.lane.b32.xlu0 %v3242, 2
        %v3259 = vpop.permute.xlu0 %3258
        %3260 = vrot.lane.b32.xlu0 %v3244, 2
        %v3261 = vpop.permute.xlu0 %3260
        %3262 = vrot.lane.b32.xlu0 %v3246, 2
        %v3263 = vpop.permute.xlu0 %3262
        %3264 = vrot.lane.b32.xlu0 %v3248, 2
        %v3265 = vpop.permute.xlu0 %3264
        %3266 = vrot.lane.b32.xlu0 %v3250, 2
        %v3267 = vpop.permute.xlu0 %3266
        %3268 = vrot.lane.b32.xlu0 %v3252, 2
        %v3269 = vpop.permute.xlu0 %3268
        %3270 = vrot.lane.b32.xlu0 %v3239, 2
        %v3271 = vpop.permute.xlu0 %3270
        %3272 = vrot.lane.b32.xlu0 %v3241, 2
        %v3273 = vpop.permute.xlu0 %3272
        %3274 = vrot.lane.b32.xlu0 %v3243, 2
        %v3275 = vpop.permute.xlu0 %3274
        %3276 = vrot.lane.b32.xlu0 %v3245, 2
        %v3277 = vpop.permute.xlu0 %3276
        %3278 = vrot.lane.b32.xlu0 %v3247, 2
        %v3279 = vpop.permute.xlu0 %3278
        %3280 = vrot.lane.b32.xlu0 %v3249, 2
        %v3281 = vpop.permute.xlu0 %3280
        %3282 = vrot.lane.b32.xlu0 %v3251, 2
        %v3283 = vpop.permute.xlu0 %3282
        %3284 = vrot.lane.b32.xlu0 %v3253, 2
        %v3285 = vpop.permute.xlu0 %3284
        %v3286 = vsel %vm597, %v3255, %v3271
        %v3287 = vsel %vm597, %v3257, %v3273
        %v3288 = vsel %vm597, %v3259, %v3275
        %v3289 = vsel %vm597, %v3261, %v3277
        %v3290 = vsel %vm597, %v3263, %v3279
        %v3291 = vsel %vm597, %v3265, %v3281
        %v3292 = vsel %vm597, %v3267, %v3283
        %v3293 = vsel %vm597, %v3269, %v3285
        %v3294 = vsel %vm597, %v3271, %v3255
        %v3295 = vsel %vm597, %v3273, %v3257
        %v3296 = vsel %vm597, %v3275, %v3259
        %v3297 = vsel %vm597, %v3277, %v3261
        %v3298 = vsel %vm597, %v3279, %v3263
        %v3299 = vsel %vm597, %v3281, %v3265
        %v3300 = vsel %vm597, %v3283, %v3267
        %v3301 = vsel %vm597, %v3285, %v3269
        %v3302 = vsel %vm601, %v3294, 0.0
        %v3303 = vsel %vm602, %v3286, 0.0
        %v3304 = vsel %vm601, %v3295, 0.0
        %v3305 = vsel %vm602, %v3287, 0.0
        %v3306 = vsel %vm601, %v3296, 0.0
        %v3307 = vsel %vm602, %v3288, 0.0
        %v3308 = vsel %vm601, %v3297, 0.0
        %v3309 = vsel %vm602, %v3289, 0.0
        %v3310 = vsel %vm601, %v3298, 0.0
        %v3311 = vsel %vm602, %v3290, 0.0
        %v3312 = vsel %vm601, %v3299, 0.0
        %v3313 = vsel %vm602, %v3291, 0.0
        %v3314 = vsel %vm601, %v3300, 0.0
        %v3315 = vsel %vm602, %v3292, 0.0
        %v3316 = vsel %vm601, %v3301, 0.0
        %v3317 = vsel %vm602, %v3293, 0.0
        %v3318 = vpack.c.bf16 %v3304, %v3302
        %v3319 = vpack.c.bf16 %v3305, %v3303
        %v3320 = vpack.c.bf16 %v3308, %v3306
        %v3321 = vpack.c.bf16 %v3309, %v3307
        %v3322 = vpack.c.bf16 %v3312, %v3310
        %v3323 = vpack.c.bf16 %v3313, %v3311
        %v3324 = vpack.c.bf16 %v3316, %v3314
        %v3325 = vpack.c.bf16 %v3317, %v3315
        %v3326 = vld [vmem:[%s6] sm:$0xf]
        %v3327 = vld [vmem:[%s6 + $0x4] sm:$0xf]
        %v3328 = vld [vmem:[%s6 + $0x8] sm:$0xf]
        %v3329 = vld [vmem:[%s6 + $0xc] sm:$0xf]
        %3330 = vrot.lane.b32.xlu0 %v3238, 1
        %v3331 = vpop.permute.xlu0 %3330
        %3332 = vrot.lane.b32.xlu0 %v3240, 1
        %v3333 = vpop.permute.xlu0 %3332
        %3334 = vrot.lane.b32.xlu0 %v3242, 1
        %v3335 = vpop.permute.xlu0 %3334
        %3336 = vrot.lane.b32.xlu0 %v3244, 1
        %v3337 = vpop.permute.xlu0 %3336
        %3338 = vrot.lane.b32.xlu0 %v3246, 1
        %v3339 = vpop.permute.xlu0 %3338
        %3340 = vrot.lane.b32.xlu0 %v3248, 1
        %v3341 = vpop.permute.xlu0 %3340
        %3342 = vrot.lane.b32.xlu0 %v3250, 1
        %v3343 = vpop.permute.xlu0 %3342
        %3344 = vrot.lane.b32.xlu0 %v3252, 1
        %v3345 = vpop.permute.xlu0 %3344
        %3346 = vrot.lane.b32.xlu0 %v3239, 1
        %v3347 = vpop.permute.xlu0 %3346
        %3348 = vrot.lane.b32.xlu0 %v3241, 1
        %v3349 = vpop.permute.xlu0 %3348
        %3350 = vrot.lane.b32.xlu0 %v3243, 1
        %v3351 = vpop.permute.xlu0 %3350
        %3352 = vrot.lane.b32.xlu0 %v3245, 1
        %v3353 = vpop.permute.xlu0 %3352
        %3354 = vrot.lane.b32.xlu0 %v3247, 1
        %v3355 = vpop.permute.xlu0 %3354
        %3356 = vrot.lane.b32.xlu0 %v3249, 1
        %v3357 = vpop.permute.xlu0 %3356
        %3358 = vrot.lane.b32.xlu0 %v3251, 1
        %v3359 = vpop.permute.xlu0 %3358
        %3360 = vrot.lane.b32.xlu0 %v3253, 1
        %v3361 = vpop.permute.xlu0 %3360
        %v3362 = vsel %vm627, %v3331, %v3347
        %v3363 = vsel %vm627, %v3333, %v3349
        %v3364 = vsel %vm627, %v3335, %v3351
        %v3365 = vsel %vm627, %v3337, %v3353
        %v3366 = vsel %vm627, %v3339, %v3355
        %v3367 = vsel %vm627, %v3341, %v3357
        %v3368 = vsel %vm627, %v3343, %v3359
        %v3369 = vsel %vm627, %v3345, %v3361
        %v3370 = vsel %vm627, %v3347, %v3331
        %v3371 = vsel %vm627, %v3349, %v3333
        %v3372 = vsel %vm627, %v3351, %v3335
        %v3373 = vsel %vm627, %v3353, %v3337
        %v3374 = vsel %vm627, %v3355, %v3339
        %v3375 = vsel %vm627, %v3357, %v3341
        %v3376 = vsel %vm627, %v3359, %v3343
        %v3377 = vsel %vm627, %v3361, %v3345
        %v3378 = vsel %vm630, %v3370, 0.0
        %v3379 = vsel %vm631, %v3362, 0.0
        %v3380 = vsel %vm630, %v3371, 0.0
        %v3381 = vsel %vm631, %v3363, 0.0
        %v3382 = vsel %vm630, %v3372, 0.0
        %v3383 = vsel %vm631, %v3364, 0.0
        %v3384 = vsel %vm630, %v3373, 0.0
        %v3385 = vsel %vm631, %v3365, 0.0
        %v3386 = vsel %vm630, %v3374, 0.0
        %v3387 = vsel %vm631, %v3366, 0.0
        %v3388 = vsel %vm630, %v3375, 0.0
        %v3389 = vsel %vm631, %v3367, 0.0
        %v3390 = vsel %vm630, %v3376, 0.0
        %v3391 = vsel %vm631, %v3368, 0.0
        %v3392 = vsel %vm630, %v3377, 0.0
        %v3393 = vsel %vm631, %v3369, 0.0
        %v3394 = vpack.c.bf16 %v3380, %v3378
        %v3395 = vpack.c.bf16 %v3381, %v3379
        %v3396 = vpack.c.bf16 %v3384, %v3382
        %v3397 = vpack.c.bf16 %v3385, %v3383
        %v3398 = vpack.c.bf16 %v3388, %v3386
        %v3399 = vpack.c.bf16 %v3389, %v3387
        %v3400 = vpack.c.bf16 %v3392, %v3390
        %v3401 = vpack.c.bf16 %v3393, %v3391
        %s3402 = scalar_lea.vmem %s6, 16
        %v3403 = vld [vmem:[%s3402] sm:$0xf]
        %v3404 = vld [vmem:[%s3402 + $0x4] sm:$0xf]
        %v3405 = vld [vmem:[%s3402 + $0x8] sm:$0xf]
        %v3406 = vld [vmem:[%s3402 + $0xc] sm:$0xf]
        %v3411 = vunpack.c.l.b16 %v3403
        %v3412 = vunpack.c.l.b16 %v3404
        %v3413 = vunpack.c.l.b16 %v3405
        %v3414 = vunpack.c.l.b16 %v3406
        %v3415 = vpack.c.b16 %v3412, %v3411
        %v3416 = vpack.c.b16 %v3414, %v3413
        %vm3417 = vcmask 523264
        %v3419 = vsel %vm3417, %v3415, 0
        %v3422 = vsel %vm3417, %v3416, 0
        %3424 = vmatprep.subr.bf16.mxu0 %v3395
        %3425 = vmatpush1.bf16.msra.mxu0 %v3394
        %3426 = vmatprep.subr.bf16.mxu0 %v3397
        %3427 = vmatpush1.bf16.msra.mxu0 %v3396
        %3428 = vmatprep.subr.bf16.mxu0 %v3399
        %3429 = vmatpush1.bf16.msra.mxu0 %v3398
        %3430 = vmatprep.subr.bf16.mxu0 %v3401
        %3431 = vmatpush1.bf16.msra.mxu0 %v3400
        %3432 = vmatprep.subr.bf16.mxu0 0
        %3433 = vmatpush1.bf16.msra.mxu0 0
        %3434 = vmatprep.subr.bf16.mxu0 0
        %3435 = vmatpush1.bf16.msra.mxu0 0
        %3436 = vmatprep.subr.bf16.mxu0 0
        %3437 = vmatpush1.bf16.msra.mxu0 0
        %3438 = vmatprep.subr.bf16.mxu0 0
        %3439 = vmatpush1.bf16.msra.mxu0 0
        %3440 = vmatprep.subr.bf16.mxu0 0
        %3441 = vmatpush1.bf16.msra.mxu0 0
        %3442 = vmatprep.subr.bf16.mxu0 0
        %3443 = vmatpush1.bf16.msra.mxu0 0
        %3444 = vmatprep.subr.bf16.mxu0 0
        %3445 = vmatpush1.bf16.msra.mxu0 0
        %3446 = vmatprep.subr.bf16.mxu0 0
        %3447 = vmatpush1.bf16.msra.mxu0 0
        %3448 = vmatprep.subr.bf16.mxu0 0
        %3449 = vmatpush1.bf16.msra.mxu0 0
        %3450 = vmatprep.subr.bf16.mxu0 0
        %3451 = vmatpush1.bf16.msra.mxu0 0
        %3452 = vmatprep.subr.bf16.mxu0 0
        %3453 = vmatpush1.bf16.msra.mxu0 0
        %3454 = vmatprep.subr.bf16.mxu0 0
        %3455 = vmatpush1.bf16.msra.mxu0 0
        %3456 = vmatprep.mubr.bf16.mxu0 0
        %3457 = vmatmul.mubr.bf16.gmra.mrb[0].mxu0 %v3419
        %v3458 = vpop.f32.mrb[0].mxu0
        %v3459 = vadd.f32 0.0, %v3458
        %v3460 = vpop.f32.mrb[0].mxu0
        %v3461 = vadd.f32 0.0, %v3460
        %v3462 = vpop.f32.mrb[0].mxu0
        %v3463 = vadd.f32 0.0, %v3462
        %v3464 = vpop.f32.mrb[0].mxu0
        %v3465 = vadd.f32 0.0, %v3464
        %3466 = vmatprep.mubr.bf16.mxu0 0
        %3467 = vmatmul.mubr.bf16.gmra.mrb[0].mxu0 %v3422
        %v3468 = vpop.f32.mrb[0].mxu0
        %v3469 = vadd.f32 0.0, %v3468
        %v3470 = vpop.f32.mrb[0].mxu0
        %v3471 = vadd.f32 0.0, %v3470
        %v3472 = vpop.f32.mrb[0].mxu0
        %v3473 = vadd.f32 0.0, %v3472
        %v3474 = vpop.f32.mrb[0].mxu0
        %v3475 = vadd.f32 0.0, %v3474
        %3476 = vdwg.mxu0
        %v3481 = vunpack.c.l.b16 %v3326
        %v3482 = vunpack.c.l.b16 %v3327
        %v3483 = vunpack.c.l.b16 %v3328
        %v3484 = vunpack.c.l.b16 %v3329
        %v3485 = vpack.c.b16 %v3482, %v3481
        %v3486 = vpack.c.b16 %v3484, %v3483
        %v3488 = vsel %vm3417, %v3485, 0
        %v3491 = vsel %vm3417, %v3486, 0
        %3493 = vmatprep.subr.bf16.mxu0 %v3319
        %3494 = vmatpush1.bf16.msra.mxu0 %v3318
        %3495 = vmatprep.subr.bf16.mxu0 %v3321
        %3496 = vmatpush1.bf16.msra.mxu0 %v3320
        %3497 = vmatprep.subr.bf16.mxu0 %v3323
        %3498 = vmatpush1.bf16.msra.mxu0 %v3322
        %3499 = vmatprep.subr.bf16.mxu0 %v3325
        %3500 = vmatpush1.bf16.msra.mxu0 %v3324
        %3501 = vmatprep.subr.bf16.mxu0 0
        %3502 = vmatpush1.bf16.msra.mxu0 0
        %3503 = vmatprep.subr.bf16.mxu0 0
        %3504 = vmatpush1.bf16.msra.mxu0 0
        %3505 = vmatprep.subr.bf16.mxu0 0
        %3506 = vmatpush1.bf16.msra.mxu0 0
        %3507 = vmatprep.subr.bf16.mxu0 0
        %3508 = vmatpush1.bf16.msra.mxu0 0
        %3509 = vmatprep.subr.bf16.mxu0 0
        %3510 = vmatpush1.bf16.msra.mxu0 0
        %3511 = vmatprep.subr.bf16.mxu0 0
        %3512 = vmatpush1.bf16.msra.mxu0 0
        %3513 = vmatprep.subr.bf16.mxu0 0
        %3514 = vmatpush1.bf16.msra.mxu0 0
        %3515 = vmatprep.subr.bf16.mxu0 0
        %3516 = vmatpush1.bf16.msra.mxu0 0
        %3517 = vmatprep.subr.bf16.mxu0 0
        %3518 = vmatpush1.bf16.msra.mxu0 0
        %3519 = vmatprep.subr.bf16.mxu0 0
        %3520 = vmatpush1.bf16.msra.mxu0 0
        %3521 = vmatprep.subr.bf16.mxu0 0
        %3522 = vmatpush1.bf16.msra.mxu0 0
        %3523 = vmatprep.subr.bf16.mxu0 0
        %3524 = vmatpush1.bf16.msra.mxu0 0
        %3525 = vmatprep.mubr.bf16.mxu0 0
        %3526 = vmatmul.mubr.bf16.gmra.mrb[0].mxu0 %v3488
        %v3527 = vpop.f32.mrb[0].mxu0
        %v3528 = vadd.f32 %v3459, %v3527
        %v3529 = vpop.f32.mrb[0].mxu0
        %v3530 = vadd.f32 %v3461, %v3529
        %v3531 = vpop.f32.mrb[0].mxu0
        %v3532 = vadd.f32 %v3463, %v3531
        %v3533 = vpop.f32.mrb[0].mxu0
        %v3534 = vadd.f32 %v3465, %v3533
        %3535 = vmatprep.mubr.bf16.mxu0 0
        %3536 = vmatmul.mubr.bf16.gmra.mrb[0].mxu0 %v3491
        %v3537 = vpop.f32.mrb[0].mxu0
        %v3538 = vadd.f32 %v3469, %v3537
        %v3539 = vpop.f32.mrb[0].mxu0
        %v3540 = vadd.f32 %v3471, %v3539
        %v3541 = vpop.f32.mrb[0].mxu0
        %v3542 = vadd.f32 %v3473, %v3541
        %v3543 = vpop.f32.mrb[0].mxu0
        %v3544 = vadd.f32 %v3475, %v3543
        %3545 = vdwg.mxu0
        %v3546 = vpack.c.bf16 %v3240, %v3238
        %v3547 = vpack.c.bf16 %v3241, %v3239
        %v3548 = vpack.c.bf16 %v3244, %v3242
        %v3549 = vpack.c.bf16 %v3245, %v3243
        %v3550 = vpack.c.bf16 %v3248, %v3246
        %v3551 = vpack.c.bf16 %v3249, %v3247
        %v3552 = vpack.c.bf16 %v3252, %v3250
        %v3553 = vpack.c.bf16 %v3253, %v3251
        %s3554 = scalar_lea.vmem %s6, 32
        %v3555 = vld [vmem:[%s3554] sm:$0xf]
        %v3556 = vld [vmem:[%s3554 + $0x4] sm:$0xf]
        %v3557 = vld [vmem:[%s3554 + $0x8] sm:$0xf]
        %v3558 = vld [vmem:[%s3554 + $0xc] sm:$0xf]
        %v3563 = vunpack.c.l.b16 %v3555
        %v3564 = vunpack.c.l.b16 %v3556
        %v3565 = vunpack.c.l.b16 %v3557
        %v3566 = vunpack.c.l.b16 %v3558
        %v3567 = vpack.c.b16 %v3564, %v3563
        %v3568 = vpack.c.b16 %v3566, %v3565
        %v3570 = vsel %vm3417, %v3567, 0
        %v3573 = vsel %vm3417, %v3568, 0
        %3575 = vmatprep.subr.bf16.mxu0 %v3547
        %3576 = vmatpush1.bf16.msra.mxu0 %v3546
        %3577 = vmatprep.subr.bf16.mxu0 %v3549
        %3578 = vmatpush1.bf16.msra.mxu0 %v3548
        %3579 = vmatprep.subr.bf16.mxu0 %v3551
        %3580 = vmatpush1.bf16.msra.mxu0 %v3550
        %3581 = vmatprep.subr.bf16.mxu0 %v3553
        %3582 = vmatpush1.bf16.msra.mxu0 %v3552
        %3583 = vmatprep.subr.bf16.mxu0 0
        %3584 = vmatpush1.bf16.msra.mxu0 0
        %3585 = vmatprep.subr.bf16.mxu0 0
        %3586 = vmatpush1.bf16.msra.mxu0 0
        %3587 = vmatprep.subr.bf16.mxu0 0
        %3588 = vmatpush1.bf16.msra.mxu0 0
        %3589 = vmatprep.subr.bf16.mxu0 0
        %3590 = vmatpush1.bf16.msra.mxu0 0
        %3591 = vmatprep.subr.bf16.mxu0 0
        %3592 = vmatpush1.bf16.msra.mxu0 0
        %3593 = vmatprep.subr.bf16.mxu0 0
        %3594 = vmatpush1.bf16.msra.mxu0 0
        %3595 = vmatprep.subr.bf16.mxu0 0
        %3596 = vmatpush1.bf16.msra.mxu0 0
        %3597 = vmatprep.subr.bf16.mxu0 0
        %3598 = vmatpush1.bf16.msra.mxu0 0
        %3599 = vmatprep.subr.bf16.mxu0 0
        %3600 = vmatpush1.bf16.msra.mxu0 0
        %3601 = vmatprep.subr.bf16.mxu0 0
        %3602 = vmatpush1.bf16.msra.mxu0 0
        %3603 = vmatprep.subr.bf16.mxu0 0
        %3604 = vmatpush1.bf16.msra.mxu0 0
        %3605 = vmatprep.subr.bf16.mxu0 0
        %3606 = vmatpush1.bf16.msra.mxu0 0
        %3607 = vmatprep.mubr.bf16.mxu0 0
        %3608 = vmatmul.mubr.bf16.gmra.mrb[0].mxu0 %v3570
        %v3609 = vpop.f32.mrb[0].mxu0
        %v3610 = vadd.f32 0.0, %v3609
        %v3611 = vpop.f32.mrb[0].mxu0
        %v3612 = vadd.f32 0.0, %v3611
        %v3613 = vpop.f32.mrb[0].mxu0
        %v3614 = vadd.f32 0.0, %v3613
        %v3615 = vpop.f32.mrb[0].mxu0
        %v3616 = vadd.f32 0.0, %v3615
        %3617 = vmatprep.mubr.bf16.mxu0 0
        %3618 = vmatmul.mubr.bf16.gmra.mrb[0].mxu0 %v3573
        %v3619 = vpop.f32.mrb[0].mxu0
        %v3620 = vadd.f32 0.0, %v3619
        %v3621 = vpop.f32.mrb[0].mxu0
        %v3622 = vadd.f32 0.0, %v3621
        %v3623 = vpop.f32.mrb[0].mxu0
        %v3624 = vadd.f32 0.0, %v3623
        %v3625 = vpop.f32.mrb[0].mxu0
        %v3626 = vadd.f32 0.0, %v3625
        %3627 = vdwg.mxu0
        %v3628 = vadd.f32 %v3528, %v3610
        %v3629 = vadd.f32 %v3530, %v3612
        %v3630 = vadd.f32 %v3532, %v3614
        %v3631 = vadd.f32 %v3534, %v3616
        %v3632 = vadd.f32 %v3538, %v3620
        %v3633 = vadd.f32 %v3540, %v3622
        %v3634 = vadd.f32 %v3542, %v3624
        %v3635 = vadd.f32 %v3544, %v3626
        %3636 = vrot.lane.b32.xlu0 %v3238, 127
        %v3637 = vpop.permute.xlu0 %3636
        %3638 = vrot.lane.b32.xlu0 %v3240, 127
        %v3639 = vpop.permute.xlu0 %3638
        %3640 = vrot.lane.b32.xlu0 %v3242, 127
        %v3641 = vpop.permute.xlu0 %3640
        %3642 = vrot.lane.b32.xlu0 %v3244, 127
        %v3643 = vpop.permute.xlu0 %3642
        %3644 = vrot.lane.b32.xlu0 %v3246, 127
        %v3645 = vpop.permute.xlu0 %3644
        %3646 = vrot.lane.b32.xlu0 %v3248, 127
        %v3647 = vpop.permute.xlu0 %3646
        %3648 = vrot.lane.b32.xlu0 %v3250, 127
        %v3649 = vpop.permute.xlu0 %3648
        %3650 = vrot.lane.b32.xlu0 %v3252, 127
        %v3651 = vpop.permute.xlu0 %3650
        %3652 = vrot.lane.b32.xlu0 %v3239, 127
        %v3653 = vpop.permute.xlu0 %3652
        %3654 = vrot.lane.b32.xlu0 %v3241, 127
        %v3655 = vpop.permute.xlu0 %3654
        %3656 = vrot.lane.b32.xlu0 %v3243, 127
        %v3657 = vpop.permute.xlu0 %3656
        %3658 = vrot.lane.b32.xlu0 %v3245, 127
        %v3659 = vpop.permute.xlu0 %3658
        %3660 = vrot.lane.b32.xlu0 %v3247, 127
        %v3661 = vpop.permute.xlu0 %3660
        %3662 = vrot.lane.b32.xlu0 %v3249, 127
        %v3663 = vpop.permute.xlu0 %3662
        %3664 = vrot.lane.b32.xlu0 %v3251, 127
        %v3665 = vpop.permute.xlu0 %3664
        %3666 = vrot.lane.b32.xlu0 %v3253, 127
        %v3667 = vpop.permute.xlu0 %3666
        %v3668 = vsel %vm1259, %v3637, %v3653
        %v3669 = vsel %vm1259, %v3639, %v3655
        %v3670 = vsel %vm1259, %v3641, %v3657
        %v3671 = vsel %vm1259, %v3643, %v3659
        %v3672 = vsel %vm1259, %v3645, %v3661
        %v3673 = vsel %vm1259, %v3647, %v3663
        %v3674 = vsel %vm1259, %v3649, %v3665
        %v3675 = vsel %vm1259, %v3651, %v3667
        %v3676 = vsel %vm1259, %v3653, %v3637
        %v3677 = vsel %vm1259, %v3655, %v3639
        %v3678 = vsel %vm1259, %v3657, %v3641
        %v3679 = vsel %vm1259, %v3659, %v3643
        %v3680 = vsel %vm1259, %v3661, %v3645
        %v3681 = vsel %vm1259, %v3663, %v3647
        %v3682 = vsel %vm1259, %v3665, %v3649
        %v3683 = vsel %vm1259, %v3667, %v3651
        %v3684 = vsel %vm1262, %v3668, 0.0
        %v3685 = vsel %vm1263, %v3676, 0.0
        %v3686 = vsel %vm1262, %v3669, 0.0
        %v3687 = vsel %vm1263, %v3677, 0.0
        %v3688 = vsel %vm1262, %v3670, 0.0
        %v3689 = vsel %vm1263, %v3678, 0.0
        %v3690 = vsel %vm1262, %v3671, 0.0
        %v3691 = vsel %vm1263, %v3679, 0.0
        %v3692 = vsel %vm1262, %v3672, 0.0
        %v3693 = vsel %vm1263, %v3680, 0.0
        %v3694 = vsel %vm1262, %v3673, 0.0
        %v3695 = vsel %vm1263, %v3681, 0.0
        %v3696 = vsel %vm1262, %v3674, 0.0
        %v3697 = vsel %vm1263, %v3682, 0.0
        %v3698 = vsel %vm1262, %v3675, 0.0
        %v3699 = vsel %vm1263, %v3683, 0.0
        %v3700 = vpack.c.bf16 %v3686, %v3684
        %v3701 = vpack.c.bf16 %v3687, %v3685
        %v3702 = vpack.c.bf16 %v3690, %v3688
        %v3703 = vpack.c.bf16 %v3691, %v3689
        %v3704 = vpack.c.bf16 %v3694, %v3692
        %v3705 = vpack.c.bf16 %v3695, %v3693
        %v3706 = vpack.c.bf16 %v3698, %v3696
        %v3707 = vpack.c.bf16 %v3699, %v3697
        %s3708 = scalar_lea.vmem %s6, 48
        %v3709 = vld [vmem:[%s3708] sm:$0xf]
        %v3710 = vld [vmem:[%s3708 + $0x4] sm:$0xf]
        %v3711 = vld [vmem:[%s3708 + $0x8] sm:$0xf]
        %v3712 = vld [vmem:[%s3708 + $0xc] sm:$0xf]
        %v3717 = vunpack.c.l.b16 %v3709
        %v3718 = vunpack.c.l.b16 %v3710
        %v3719 = vunpack.c.l.b16 %v3711
        %v3720 = vunpack.c.l.b16 %v3712
        %v3721 = vpack.c.b16 %v3718, %v3717
        %v3722 = vpack.c.b16 %v3720, %v3719
        %v3724 = vsel %vm3417, %v3721, 0
        %v3727 = vsel %vm3417, %v3722, 0
        %3729 = vmatprep.subr.bf16.mxu0 %v3701
        %3730 = vmatpush1.bf16.msra.mxu0 %v3700
        %3731 = vmatprep.subr.bf16.mxu0 %v3703
        %3732 = vmatpush1.bf16.msra.mxu0 %v3702
        %3733 = vmatprep.subr.bf16.mxu0 %v3705
        %3734 = vmatpush1.bf16.msra.mxu0 %v3704
        %3735 = vmatprep.subr.bf16.mxu0 %v3707
        %3736 = vmatpush1.bf16.msra.mxu0 %v3706
        %3737 = vmatprep.subr.bf16.mxu0 0
        %3738 = vmatpush1.bf16.msra.mxu0 0
        %3739 = vmatprep.subr.bf16.mxu0 0
        %3740 = vmatpush1.bf16.msra.mxu0 0
        %3741 = vmatprep.subr.bf16.mxu0 0
        %3742 = vmatpush1.bf16.msra.mxu0 0
        %3743 = vmatprep.subr.bf16.mxu0 0
        %3744 = vmatpush1.bf16.msra.mxu0 0
        %3745 = vmatprep.subr.bf16.mxu0 0
        %3746 = vmatpush1.bf16.msra.mxu0 0
        %3747 = vmatprep.subr.bf16.mxu0 0
        %3748 = vmatpush1.bf16.msra.mxu0 0
        %3749 = vmatprep.subr.bf16.mxu0 0
        %3750 = vmatpush1.bf16.msra.mxu0 0
        %3751 = vmatprep.subr.bf16.mxu0 0
        %3752 = vmatpush1.bf16.msra.mxu0 0
        %3753 = vmatprep.subr.bf16.mxu0 0
        %3754 = vmatpush1.bf16.msra.mxu0 0
        %3755 = vmatprep.subr.bf16.mxu0 0
        %3756 = vmatpush1.bf16.msra.mxu0 0
        %3757 = vmatprep.subr.bf16.mxu0 0
        %3758 = vmatpush1.bf16.msra.mxu0 0
        %3759 = vmatprep.subr.bf16.mxu0 0
        %3760 = vmatpush1.bf16.msra.mxu0 0
        %3761 = vmatprep.mubr.bf16.mxu0 0
        %3762 = vmatmul.mubr.bf16.gmra.mrb[0].mxu0 %v3724
        %v3763 = vpop.f32.mrb[0].mxu0
        %v3764 = vadd.f32 0.0, %v3763
        %v3765 = vpop.f32.mrb[0].mxu0
        %v3766 = vadd.f32 0.0, %v3765
        %v3767 = vpop.f32.mrb[0].mxu0
        %v3768 = vadd.f32 0.0, %v3767
        %v3769 = vpop.f32.mrb[0].mxu0
        %v3770 = vadd.f32 0.0, %v3769
        %3771 = vmatprep.mubr.bf16.mxu0 0
        %3772 = vmatmul.mubr.bf16.gmra.mrb[0].mxu0 %v3727
        %v3773 = vpop.f32.mrb[0].mxu0
        %v3774 = vadd.f32 0.0, %v3773
        %v3775 = vpop.f32.mrb[0].mxu0
        %v3776 = vadd.f32 0.0, %v3775
        %v3777 = vpop.f32.mrb[0].mxu0
        %v3778 = vadd.f32 0.0, %v3777
        %v3779 = vpop.f32.mrb[0].mxu0
        %v3780 = vadd.f32 0.0, %v3779
        %3781 = vdwg.mxu0
        %v3782 = vadd.f32 %v3628, %v3764
        %v3783 = vadd.f32 %v3629, %v3766
        %v3784 = vadd.f32 %v3630, %v3768
        %v3785 = vadd.f32 %v3631, %v3770
        %v3786 = vadd.f32 %v3632, %v3774
        %v3787 = vadd.f32 %v3633, %v3776
        %v3788 = vadd.f32 %v3634, %v3778
        %v3789 = vadd.f32 %v3635, %v3780
        %3790 = vrot.lane.b32.xlu0 %v3238, 126
        %v3791 = vpop.permute.xlu0 %3790
        %3792 = vrot.lane.b32.xlu0 %v3240, 126
        %v3793 = vpop.permute.xlu0 %3792
        %3794 = vrot.lane.b32.xlu0 %v3242, 126
        %v3795 = vpop.permute.xlu0 %3794
        %3796 = vrot.lane.b32.xlu0 %v3244, 126
        %v3797 = vpop.permute.xlu0 %3796
        %3798 = vrot.lane.b32.xlu0 %v3246, 126
        %v3799 = vpop.permute.xlu0 %3798
        %3800 = vrot.lane.b32.xlu0 %v3248, 126
        %v3801 = vpop.permute.xlu0 %3800
        %3802 = vrot.lane.b32.xlu0 %v3250, 126
        %v3803 = vpop.permute.xlu0 %3802
        %3804 = vrot.lane.b32.xlu0 %v3252, 126
        %v3805 = vpop.permute.xlu0 %3804
        %3806 = vrot.lane.b32.xlu0 %v3239, 126
        %v3807 = vpop.permute.xlu0 %3806
        %3808 = vrot.lane.b32.xlu0 %v3241, 126
        %v3809 = vpop.permute.xlu0 %3808
        %3810 = vrot.lane.b32.xlu0 %v3243, 126
        %v3811 = vpop.permute.xlu0 %3810
        %3812 = vrot.lane.b32.xlu0 %v3245, 126
        %v3813 = vpop.permute.xlu0 %3812
        %3814 = vrot.lane.b32.xlu0 %v3247, 126
        %v3815 = vpop.permute.xlu0 %3814
        %3816 = vrot.lane.b32.xlu0 %v3249, 126
        %v3817 = vpop.permute.xlu0 %3816
        %3818 = vrot.lane.b32.xlu0 %v3251, 126
        %v3819 = vpop.permute.xlu0 %3818
        %3820 = vrot.lane.b32.xlu0 %v3253, 126
        %v3821 = vpop.permute.xlu0 %3820
        %v3822 = vsel %vm1504, %v3791, %v3807
        %v3823 = vsel %vm1504, %v3793, %v3809
        %v3824 = vsel %vm1504, %v3795, %v3811
        %v3825 = vsel %vm1504, %v3797, %v3813
        %v3826 = vsel %vm1504, %v3799, %v3815
        %v3827 = vsel %vm1504, %v3801, %v3817
        %v3828 = vsel %vm1504, %v3803, %v3819
        %v3829 = vsel %vm1504, %v3805, %v3821
        %v3830 = vsel %vm1504, %v3807, %v3791
        %v3831 = vsel %vm1504, %v3809, %v3793
        %v3832 = vsel %vm1504, %v3811, %v3795
        %v3833 = vsel %vm1504, %v3813, %v3797
        %v3834 = vsel %vm1504, %v3815, %v3799
        %v3835 = vsel %vm1504, %v3817, %v3801
        %v3836 = vsel %vm1504, %v3819, %v3803
        %v3837 = vsel %vm1504, %v3821, %v3805
        %v3838 = vsel %vm1507, %v3822, 0.0
        %v3839 = vsel %vm1508, %v3830, 0.0
        %v3840 = vsel %vm1507, %v3823, 0.0
        %v3841 = vsel %vm1508, %v3831, 0.0
        %v3842 = vsel %vm1507, %v3824, 0.0
        %v3843 = vsel %vm1508, %v3832, 0.0
        %v3844 = vsel %vm1507, %v3825, 0.0
        %v3845 = vsel %vm1508, %v3833, 0.0
        %v3846 = vsel %vm1507, %v3826, 0.0
        %v3847 = vsel %vm1508, %v3834, 0.0
        %v3848 = vsel %vm1507, %v3827, 0.0
        %v3849 = vsel %vm1508, %v3835, 0.0
        %v3850 = vsel %vm1507, %v3828, 0.0
        %v3851 = vsel %vm1508, %v3836, 0.0
        %v3852 = vsel %vm1507, %v3829, 0.0
        %v3853 = vsel %vm1508, %v3837, 0.0
        %v3854 = vpack.c.bf16 %v3840, %v3838
        %v3855 = vpack.c.bf16 %v3841, %v3839
        %v3856 = vpack.c.bf16 %v3844, %v3842
        %v3857 = vpack.c.bf16 %v3845, %v3843
        %v3858 = vpack.c.bf16 %v3848, %v3846
        %v3859 = vpack.c.bf16 %v3849, %v3847
        %v3860 = vpack.c.bf16 %v3852, %v3850
        %v3861 = vpack.c.bf16 %v3853, %v3851
        %s3862 = scalar_lea.vmem %s6, 64
        %v3863 = vld [vmem:[%s3862] sm:$0xf]
        %v3864 = vld [vmem:[%s3862 + $0x4] sm:$0xf]
        %v3865 = vld [vmem:[%s3862 + $0x8] sm:$0xf]
        %v3866 = vld [vmem:[%s3862 + $0xc] sm:$0xf]
        %v3871 = vunpack.c.l.b16 %v3863
        %v3872 = vunpack.c.l.b16 %v3864
        %v3873 = vunpack.c.l.b16 %v3865
        %v3874 = vunpack.c.l.b16 %v3866
        %v3875 = vpack.c.b16 %v3872, %v3871
        %v3876 = vpack.c.b16 %v3874, %v3873
        %v3878 = vsel %vm3417, %v3875, 0
        %v3881 = vsel %vm3417, %v3876, 0
        %3883 = vmatprep.subr.bf16.mxu0 %v3855
        %3884 = vmatpush1.bf16.msra.mxu0 %v3854
        %3885 = vmatprep.subr.bf16.mxu0 %v3857
        %3886 = vmatpush1.bf16.msra.mxu0 %v3856
        %3887 = vmatprep.subr.bf16.mxu0 %v3859
        %3888 = vmatpush1.bf16.msra.mxu0 %v3858
        %3889 = vmatprep.subr.bf16.mxu0 %v3861
        %3890 = vmatpush1.bf16.msra.mxu0 %v3860
        %3891 = vmatprep.subr.bf16.mxu0 0
        %3892 = vmatpush1.bf16.msra.mxu0 0
        %3893 = vmatprep.subr.bf16.mxu0 0
        %3894 = vmatpush1.bf16.msra.mxu0 0
        %3895 = vmatprep.subr.bf16.mxu0 0
        %3896 = vmatpush1.bf16.msra.mxu0 0
        %3897 = vmatprep.subr.bf16.mxu0 0
        %3898 = vmatpush1.bf16.msra.mxu0 0
        %3899 = vmatprep.subr.bf16.mxu0 0
        %3900 = vmatpush1.bf16.msra.mxu0 0
        %3901 = vmatprep.subr.bf16.mxu0 0
        %3902 = vmatpush1.bf16.msra.mxu0 0
        %3903 = vmatprep.subr.bf16.mxu0 0
        %3904 = vmatpush1.bf16.msra.mxu0 0
        %3905 = vmatprep.subr.bf16.mxu0 0
        %3906 = vmatpush1.bf16.msra.mxu0 0
        %3907 = vmatprep.subr.bf16.mxu0 0
        %3908 = vmatpush1.bf16.msra.mxu0 0
        %3909 = vmatprep.subr.bf16.mxu0 0
        %3910 = vmatpush1.bf16.msra.mxu0 0
        %3911 = vmatprep.subr.bf16.mxu0 0
        %3912 = vmatpush1.bf16.msra.mxu0 0
        %3913 = vmatprep.subr.bf16.mxu0 0
        %3914 = vmatpush1.bf16.msra.mxu0 0
        %3915 = vmatprep.mubr.bf16.mxu0 0
        %3916 = vmatmul.mubr.bf16.gmra.mrb[0].mxu0 %v3878
        %v3917 = vpop.f32.mrb[0].mxu0
        %v3918 = vadd.f32 0.0, %v3917
        %v3919 = vpop.f32.mrb[0].mxu0
        %v3920 = vadd.f32 0.0, %v3919
        %v3921 = vpop.f32.mrb[0].mxu0
        %v3922 = vadd.f32 0.0, %v3921
        %v3923 = vpop.f32.mrb[0].mxu0
        %v3924 = vadd.f32 0.0, %v3923
        %3925 = vmatprep.mubr.bf16.mxu0 0
        %3926 = vmatmul.mubr.bf16.gmra.mrb[0].mxu0 %v3881
        %v3927 = vpop.f32.mrb[0].mxu0
        %v3928 = vadd.f32 0.0, %v3927
        %v3929 = vpop.f32.mrb[0].mxu0
        %v3930 = vadd.f32 0.0, %v3929
        %v3931 = vpop.f32.mrb[0].mxu0
        %v3932 = vadd.f32 0.0, %v3931
        %v3933 = vpop.f32.mrb[0].mxu0
        %v3934 = vadd.f32 0.0, %v3933
        %3935 = vdwg.mxu0
        %v3936 = vadd.f32 %v3782, %v3918
        %v3937 = vadd.f32 %v3783, %v3920
        %v3938 = vadd.f32 %v3784, %v3922
        %v3939 = vadd.f32 %v3785, %v3924
        %v3940 = vadd.f32 %v3786, %v3928
        %v3941 = vadd.f32 %v3787, %v3930
        %v3942 = vadd.f32 %v3788, %v3932
        %v3943 = vadd.f32 %v3789, %v3934
        %v3944 = vld [vmem:[%s7] sm:$0xff]
        %v3945 = vld [vmem:[%s7 + $0x8] sm:$0xff]
        %v3946 = vld [vmem:[%s7 + $0x10] sm:$0xff]
        %v3947 = vld [vmem:[%s7 + $0x18] sm:$0xff]
        %3949 = vset.pattern.permute.xlu0 0
        %3950 = vperm.xlu0 %3949, %v3944
        %v3951 = vpop.permute.xlu0 %3950
        %3954 = vset.pattern.permute.xlu0 0
        %3955 = vperm.xlu0 %3954, %v3945
        %v3956 = vpop.permute.xlu0 %3955
        %3959 = vset.pattern.permute.xlu0 0
        %3960 = vperm.xlu0 %3959, %v3946
        %v3961 = vpop.permute.xlu0 %3960
        %3964 = vset.pattern.permute.xlu0 0
        %3965 = vperm.xlu0 %3964, %v3947
        %v3966 = vpop.permute.xlu0 %3965
        %v3968 = vadd.f32 %v3936, %v3951
        %v3969 = vadd.f32 %v3937, %v3951
        %v3970 = vadd.f32 %v3938, %v3956
        %v3971 = vadd.f32 %v3939, %v3956
        %v3972 = vadd.f32 %v3940, %v3961
        %v3973 = vadd.f32 %v3941, %v3961
        %v3974 = vadd.f32 %v3942, %v3966
        %v3975 = vadd.f32 %v3943, %v3966
        %s3976 = sld [smem:[#allocation2 + $0x2]]
        %vm3977 = vcmp.gt.f32.partialorder %v3968, 0.0
        %vm3978 = vcmp.gt.f32.partialorder %v3969, 0.0
        %vm3979 = vcmp.gt.f32.partialorder %v3970, 0.0
        %vm3980 = vcmp.gt.f32.partialorder %v3971, 0.0
        %vm3981 = vcmp.gt.f32.partialorder %v3972, 0.0
        %vm3982 = vcmp.gt.f32.partialorder %v3973, 0.0
        %vm3983 = vcmp.gt.f32.partialorder %v3974, 0.0
        %vm3984 = vcmp.gt.f32.partialorder %v3975, 0.0
        %v3985 = vstv %s3976
        %v3986 = vmul.f32 %v3985, %v3968
        %v3987 = vmul.f32 %v3985, %v3969
        %v3988 = vmul.f32 %v3985, %v3970
        %v3989 = vmul.f32 %v3985, %v3971
        %v3990 = vmul.f32 %v3985, %v3972
        %v3991 = vmul.f32 %v3985, %v3973
        %v3992 = vmul.f32 %v3985, %v3974
        %v3993 = vmul.f32 %v3985, %v3975
        %v3994 = vsel %vm3977, %v3968, %v3986
        %v3995 = vsel %vm3978, %v3969, %v3987
        %v3996 = vsel %vm3979, %v3970, %v3988
        %v3997 = vsel %vm3980, %v3971, %v3989
        %v3998 = vsel %vm3981, %v3972, %v3990
        %v3999 = vsel %vm3982, %v3973, %v3991
        %v4000 = vsel %vm3983, %v3974, %v3992
        %v4001 = vsel %vm3984, %v3975, %v3993
        %4002 = vrot.lane.b32.xlu0 %v3994, 2
        %v4003 = vpop.permute.xlu0 %4002
        %4004 = vrot.lane.b32.xlu0 %v3996, 2
        %v4005 = vpop.permute.xlu0 %4004
        %4006 = vrot.lane.b32.xlu0 %v3998, 2
        %v4007 = vpop.permute.xlu0 %4006
        %4008 = vrot.lane.b32.xlu0 %v4000, 2
        %v4009 = vpop.permute.xlu0 %4008
        %4010 = vrot.lane.b32.xlu0 %v3995, 2
        %v4011 = vpop.permute.xlu0 %4010
        %4012 = vrot.lane.b32.xlu0 %v3997, 2
        %v4013 = vpop.permute.xlu0 %4012
        %4014 = vrot.lane.b32.xlu0 %v3999, 2
        %v4015 = vpop.permute.xlu0 %4014
        %4016 = vrot.lane.b32.xlu0 %v4001, 2
        %v4017 = vpop.permute.xlu0 %4016
        %v4018 = vsel %vm597, %v4003, %v4011
        %v4019 = vsel %vm597, %v4005, %v4013
        %v4020 = vsel %vm597, %v4007, %v4015
        %v4021 = vsel %vm597, %v4009, %v4017
        %v4022 = vsel %vm597, %v4011, %v4003
        %v4023 = vsel %vm597, %v4013, %v4005
        %v4024 = vsel %vm597, %v4015, %v4007
        %v4025 = vsel %vm597, %v4017, %v4009
        %v4026 = vsel %vm601, %v4022, 0.0
        %v4027 = vsel %vm602, %v4018, 0.0
        %v4028 = vsel %vm601, %v4023, 0.0
        %v4029 = vsel %vm602, %v4019, 0.0
        %v4030 = vsel %vm601, %v4024, 0.0
        %v4031 = vsel %vm602, %v4020, 0.0
        %v4032 = vsel %vm601, %v4025, 0.0
        %v4033 = vsel %vm602, %v4021, 0.0
        %v4034 = vpack.c.bf16 %v4028, %v4026
        %v4035 = vpack.c.bf16 %v4029, %v4027
        %v4036 = vpack.c.bf16 %v4032, %v4030
        %v4037 = vpack.c.bf16 %v4033, %v4031
        %v4038 = vld [vmem:[%s8] sm:$0xf]
        %v4039 = vld [vmem:[%s8 + $0x4] sm:$0xf]
        %4040 = vrot.lane.b32.xlu0 %v3994, 1
        %v4041 = vpop.permute.xlu0 %4040
        %4042 = vrot.lane.b32.xlu0 %v3996, 1
        %v4043 = vpop.permute.xlu0 %4042
        %4044 = vrot.lane.b32.xlu0 %v3998, 1
        %v4045 = vpop.permute.xlu0 %4044
        %4046 = vrot.lane.b32.xlu0 %v4000, 1
        %v4047 = vpop.permute.xlu0 %4046
        %4048 = vrot.lane.b32.xlu0 %v3995, 1
        %v4049 = vpop.permute.xlu0 %4048
        %4050 = vrot.lane.b32.xlu0 %v3997, 1
        %v4051 = vpop.permute.xlu0 %4050
        %4052 = vrot.lane.b32.xlu0 %v3999, 1
        %v4053 = vpop.permute.xlu0 %4052
        %4054 = vrot.lane.b32.xlu0 %v4001, 1
        %v4055 = vpop.permute.xlu0 %4054
        %v4056 = vsel %vm627, %v4041, %v4049
        %v4057 = vsel %vm627, %v4043, %v4051
        %v4058 = vsel %vm627, %v4045, %v4053
        %v4059 = vsel %vm627, %v4047, %v4055
        %v4060 = vsel %vm627, %v4049, %v4041
        %v4061 = vsel %vm627, %v4051, %v4043
        %v4062 = vsel %vm627, %v4053, %v4045
        %v4063 = vsel %vm627, %v4055, %v4047
        %v4064 = vsel %vm630, %v4060, 0.0
        %v4065 = vsel %vm631, %v4056, 0.0
        %v4066 = vsel %vm630, %v4061, 0.0
        %v4067 = vsel %vm631, %v4057, 0.0
        %v4068 = vsel %vm630, %v4062, 0.0
        %v4069 = vsel %vm631, %v4058, 0.0
        %v4070 = vsel %vm630, %v4063, 0.0
        %v4071 = vsel %vm631, %v4059, 0.0
        %v4072 = vpack.c.bf16 %v4066, %v4064
        %v4073 = vpack.c.bf16 %v4067, %v4065
        %v4074 = vpack.c.bf16 %v4070, %v4068
        %v4075 = vpack.c.bf16 %v4071, %v4069
        %s4076 = scalar_lea.vmem %s8, 8
        %v4077 = vld [vmem:[%s4076] sm:$0xf]
        %v4078 = vld [vmem:[%s4076 + $0x4] sm:$0xf]
        %v4081 = vunpack.c.l.b16 %v4077
        %v4082 = vunpack.c.l.b16 %v4078
        %v4083 = vpack.c.b16 %v4082, %v4081
        %vm4084 = vcmask 261120
        %v4086 = vsel %vm4084, %v4083, 0
        %4088 = vmatprep.subr.bf16.mxu0 %v4073
        %4089 = vmatpush1.bf16.msra.mxu0 %v4072
        %4090 = vmatprep.subr.bf16.mxu0 %v4075
        %4091 = vmatpush1.bf16.msra.mxu0 %v4074
        %4092 = vmatprep.subr.bf16.mxu0 0
        %4093 = vmatpush1.bf16.msra.mxu0 0
        %4094 = vmatprep.subr.bf16.mxu0 0
        %4095 = vmatpush1.bf16.msra.mxu0 0
        %4096 = vmatprep.subr.bf16.mxu0 0
        %4097 = vmatpush1.bf16.msra.mxu0 0
        %4098 = vmatprep.subr.bf16.mxu0 0
        %4099 = vmatpush1.bf16.msra.mxu0 0
        %4100 = vmatprep.subr.bf16.mxu0 0
        %4101 = vmatpush1.bf16.msra.mxu0 0
        %4102 = vmatprep.subr.bf16.mxu0 0
        %4103 = vmatpush1.bf16.msra.mxu0 0
        %4104 = vmatprep.subr.bf16.mxu0 0
        %4105 = vmatpush1.bf16.msra.mxu0 0
        %4106 = vmatprep.subr.bf16.mxu0 0
        %4107 = vmatpush1.bf16.msra.mxu0 0
        %4108 = vmatprep.subr.bf16.mxu0 0
        %4109 = vmatpush1.bf16.msra.mxu0 0
        %4110 = vmatprep.subr.bf16.mxu0 0
        %4111 = vmatpush1.bf16.msra.mxu0 0
        %4112 = vmatprep.subr.bf16.mxu0 0
        %4113 = vmatpush1.bf16.msra.mxu0 0
        %4114 = vmatprep.subr.bf16.mxu0 0
        %4115 = vmatpush1.bf16.msra.mxu0 0
        %4116 = vmatprep.subr.bf16.mxu0 0
        %4117 = vmatpush1.bf16.msra.mxu0 0
        %4118 = vmatprep.subr.bf16.mxu0 0
        %4119 = vmatpush1.bf16.msra.mxu0 0
        %4120 = vmatprep.mubr.bf16.mxu0 0
        %4121 = vmatmul.mubr.bf16.gmra.mrb[0].mxu0 %v4086
        %v4122 = vpop.f32.mrb[0].mxu0
        %v4123 = vadd.f32 0.0, %v4122
        %v4124 = vpop.f32.mrb[0].mxu0
        %v4125 = vadd.f32 0.0, %v4124
        %v4126 = vpop.f32.mrb[0].mxu0
        %v4127 = vadd.f32 0.0, %v4126
        %v4128 = vpop.f32.mrb[0].mxu0
        %v4129 = vadd.f32 0.0, %v4128
        %4130 = vdwg.mxu0
        %v4133 = vunpack.c.l.b16 %v4038
        %v4134 = vunpack.c.l.b16 %v4039
        %v4135 = vpack.c.b16 %v4134, %v4133
        %v4137 = vsel %vm4084, %v4135, 0
        %4139 = vmatprep.subr.bf16.mxu0 %v4035
        %4140 = vmatpush1.bf16.msra.mxu0 %v4034
        %4141 = vmatprep.subr.bf16.mxu0 %v4037
        %4142 = vmatpush1.bf16.msra.mxu0 %v4036
        %4143 = vmatprep.subr.bf16.mxu0 0
        %4144 = vmatpush1.bf16.msra.mxu0 0
        %4145 = vmatprep.subr.bf16.mxu0 0
        %4146 = vmatpush1.bf16.msra.mxu0 0
        %4147 = vmatprep.subr.bf16.mxu0 0
        %4148 = vmatpush1.bf16.msra.mxu0 0
        %4149 = vmatprep.subr.bf16.mxu0 0
        %4150 = vmatpush1.bf16.msra.mxu0 0
        %4151 = vmatprep.subr.bf16.mxu0 0
        %4152 = vmatpush1.bf16.msra.mxu0 0
        %4153 = vmatprep.subr.bf16.mxu0 0
        %4154 = vmatpush1.bf16.msra.mxu0 0
        %4155 = vmatprep.subr.bf16.mxu0 0
        %4156 = vmatpush1.bf16.msra.mxu0 0
        %4157 = vmatprep.subr.bf16.mxu0 0
        %4158 = vmatpush1.bf16.msra.mxu0 0
        %4159 = vmatprep.subr.bf16.mxu0 0
        %4160 = vmatpush1.bf16.msra.mxu0 0
        %4161 = vmatprep.subr.bf16.mxu0 0
        %4162 = vmatpush1.bf16.msra.mxu0 0
        %4163 = vmatprep.subr.bf16.mxu0 0
        %4164 = vmatpush1.bf16.msra.mxu0 0
        %4165 = vmatprep.subr.bf16.mxu0 0
        %4166 = vmatpush1.bf16.msra.mxu0 0
        %4167 = vmatprep.subr.bf16.mxu0 0
        %4168 = vmatpush1.bf16.msra.mxu0 0
        %4169 = vmatprep.subr.bf16.mxu0 0
        %4170 = vmatpush1.bf16.msra.mxu0 0
        %4171 = vmatprep.mubr.bf16.mxu0 0
        %4172 = vmatmul.mubr.bf16.gmra.mrb[0].mxu0 %v4137
        %v4173 = vpop.f32.mrb[0].mxu0
        %v4174 = vadd.f32 %v4123, %v4173
        %v4175 = vpop.f32.mrb[0].mxu0
        %v4176 = vadd.f32 %v4125, %v4175
        %v4177 = vpop.f32.mrb[0].mxu0
        %v4178 = vadd.f32 %v4127, %v4177
        %v4179 = vpop.f32.mrb[0].mxu0
        %v4180 = vadd.f32 %v4129, %v4179
        %4181 = vdwg.mxu0
        %v4182 = vpack.c.bf16 %v3996, %v3994
        %v4183 = vpack.c.bf16 %v3997, %v3995
        %v4184 = vpack.c.bf16 %v4000, %v3998
        %v4185 = vpack.c.bf16 %v4001, %v3999
        %s4186 = scalar_lea.vmem %s8, 16
        %v4187 = vld [vmem:[%s4186] sm:$0xf]
        %v4188 = vld [vmem:[%s4186 + $0x4] sm:$0xf]
        %v4191 = vunpack.c.l.b16 %v4187
        %v4192 = vunpack.c.l.b16 %v4188
        %v4193 = vpack.c.b16 %v4192, %v4191
        %v4195 = vsel %vm4084, %v4193, 0
        %4197 = vmatprep.subr.bf16.mxu0 %v4183
        %4198 = vmatpush1.bf16.msra.mxu0 %v4182
        %4199 = vmatprep.subr.bf16.mxu0 %v4185
        %4200 = vmatpush1.bf16.msra.mxu0 %v4184
        %4201 = vmatprep.subr.bf16.mxu0 0
        %4202 = vmatpush1.bf16.msra.mxu0 0
        %4203 = vmatprep.subr.bf16.mxu0 0
        %4204 = vmatpush1.bf16.msra.mxu0 0
        %4205 = vmatprep.subr.bf16.mxu0 0
        %4206 = vmatpush1.bf16.msra.mxu0 0
        %4207 = vmatprep.subr.bf16.mxu0 0
        %4208 = vmatpush1.bf16.msra.mxu0 0
        %4209 = vmatprep.subr.bf16.mxu0 0
        %4210 = vmatpush1.bf16.msra.mxu0 0
        %4211 = vmatprep.subr.bf16.mxu0 0
        %4212 = vmatpush1.bf16.msra.mxu0 0
        %4213 = vmatprep.subr.bf16.mxu0 0
        %4214 = vmatpush1.bf16.msra.mxu0 0
        %4215 = vmatprep.subr.bf16.mxu0 0
        %4216 = vmatpush1.bf16.msra.mxu0 0
        %4217 = vmatprep.subr.bf16.mxu0 0
        %4218 = vmatpush1.bf16.msra.mxu0 0
        %4219 = vmatprep.subr.bf16.mxu0 0
        %4220 = vmatpush1.bf16.msra.mxu0 0
        %4221 = vmatprep.subr.bf16.mxu0 0
        %4222 = vmatpush1.bf16.msra.mxu0 0
        %4223 = vmatprep.subr.bf16.mxu0 0
        %4224 = vmatpush1.bf16.msra.mxu0 0
        %4225 = vmatprep.subr.bf16.mxu0 0
        %4226 = vmatpush1.bf16.msra.mxu0 0
        %4227 = vmatprep.subr.bf16.mxu0 0
        %4228 = vmatpush1.bf16.msra.mxu0 0
        %4229 = vmatprep.mubr.bf16.mxu0 0
        %4230 = vmatmul.mubr.bf16.gmra.mrb[0].mxu0 %v4195
        %v4231 = vpop.f32.mrb[0].mxu0
        %v4232 = vadd.f32 0.0, %v4231
        %v4233 = vpop.f32.mrb[0].mxu0
        %v4234 = vadd.f32 0.0, %v4233
        %v4235 = vpop.f32.mrb[0].mxu0
        %v4236 = vadd.f32 0.0, %v4235
        %v4237 = vpop.f32.mrb[0].mxu0
        %v4238 = vadd.f32 0.0, %v4237
        %4239 = vdwg.mxu0
        %v4240 = vadd.f32 %v4174, %v4232
        %v4241 = vadd.f32 %v4176, %v4234
        %v4242 = vadd.f32 %v4178, %v4236
        %v4243 = vadd.f32 %v4180, %v4238
        %4244 = vrot.lane.b32.xlu0 %v3994, 127
        %v4245 = vpop.permute.xlu0 %4244
        %4246 = vrot.lane.b32.xlu0 %v3996, 127
        %v4247 = vpop.permute.xlu0 %4246
        %4248 = vrot.lane.b32.xlu0 %v3998, 127
        %v4249 = vpop.permute.xlu0 %4248
        %4250 = vrot.lane.b32.xlu0 %v4000, 127
        %v4251 = vpop.permute.xlu0 %4250
        %4252 = vrot.lane.b32.xlu0 %v3995, 127
        %v4253 = vpop.permute.xlu0 %4252
        %4254 = vrot.lane.b32.xlu0 %v3997, 127
        %v4255 = vpop.permute.xlu0 %4254
        %4256 = vrot.lane.b32.xlu0 %v3999, 127
        %v4257 = vpop.permute.xlu0 %4256
        %4258 = vrot.lane.b32.xlu0 %v4001, 127
        %v4259 = vpop.permute.xlu0 %4258
        %v4260 = vsel %vm1259, %v4245, %v4253
        %v4261 = vsel %vm1259, %v4247, %v4255
        %v4262 = vsel %vm1259, %v4249, %v4257
        %v4263 = vsel %vm1259, %v4251, %v4259
        %v4264 = vsel %vm1259, %v4253, %v4245
        %v4265 = vsel %vm1259, %v4255, %v4247
        %v4266 = vsel %vm1259, %v4257, %v4249
        %v4267 = vsel %vm1259, %v4259, %v4251
        %v4268 = vsel %vm1262, %v4260, 0.0
        %v4269 = vsel %vm1263, %v4264, 0.0
        %v4270 = vsel %vm1262, %v4261, 0.0
        %v4271 = vsel %vm1263, %v4265, 0.0
        %v4272 = vsel %vm1262, %v4262, 0.0
        %v4273 = vsel %vm1263, %v4266, 0.0
        %v4274 = vsel %vm1262, %v4263, 0.0
        %v4275 = vsel %vm1263, %v4267, 0.0
        %v4276 = vpack.c.bf16 %v4270, %v4268
        %v4277 = vpack.c.bf16 %v4271, %v4269
        %v4278 = vpack.c.bf16 %v4274, %v4272
        %v4279 = vpack.c.bf16 %v4275, %v4273
        %s4280 = scalar_lea.vmem %s8, 24
        %v4281 = vld [vmem:[%s4280] sm:$0xf]
        %v4282 = vld [vmem:[%s4280 + $0x4] sm:$0xf]
        %v4285 = vunpack.c.l.b16 %v4281
        %v4286 = vunpack.c.l.b16 %v4282
        %v4287 = vpack.c.b16 %v4286, %v4285
        %v4289 = vsel %vm4084, %v4287, 0
        %4291 = vmatprep.subr.bf16.mxu0 %v4277
        %4292 = vmatpush1.bf16.msra.mxu0 %v4276
        %4293 = vmatprep.subr.bf16.mxu0 %v4279
        %4294 = vmatpush1.bf16.msra.mxu0 %v4278
        %4295 = vmatprep.subr.bf16.mxu0 0
        %4296 = vmatpush1.bf16.msra.mxu0 0
        %4297 = vmatprep.subr.bf16.mxu0 0
        %4298 = vmatpush1.bf16.msra.mxu0 0
        %4299 = vmatprep.subr.bf16.mxu0 0
        %4300 = vmatpush1.bf16.msra.mxu0 0
        %4301 = vmatprep.subr.bf16.mxu0 0
        %4302 = vmatpush1.bf16.msra.mxu0 0
        %4303 = vmatprep.subr.bf16.mxu0 0
        %4304 = vmatpush1.bf16.msra.mxu0 0
        %4305 = vmatprep.subr.bf16.mxu0 0
        %4306 = vmatpush1.bf16.msra.mxu0 0
        %4307 = vmatprep.subr.bf16.mxu0 0
        %4308 = vmatpush1.bf16.msra.mxu0 0
        %4309 = vmatprep.subr.bf16.mxu0 0
        %4310 = vmatpush1.bf16.msra.mxu0 0
        %4311 = vmatprep.subr.bf16.mxu0 0
        %4312 = vmatpush1.bf16.msra.mxu0 0
        %4313 = vmatprep.subr.bf16.mxu0 0
        %4314 = vmatpush1.bf16.msra.mxu0 0
        %4315 = vmatprep.subr.bf16.mxu0 0
        %4316 = vmatpush1.bf16.msra.mxu0 0
        %4317 = vmatprep.subr.bf16.mxu0 0
        %4318 = vmatpush1.bf16.msra.mxu0 0
        %4319 = vmatprep.subr.bf16.mxu0 0
        %4320 = vmatpush1.bf16.msra.mxu0 0
        %4321 = vmatprep.subr.bf16.mxu0 0
        %4322 = vmatpush1.bf16.msra.mxu0 0
        %4323 = vmatprep.mubr.bf16.mxu0 0
        %4324 = vmatmul.mubr.bf16.gmra.mrb[0].mxu0 %v4289
        %v4325 = vpop.f32.mrb[0].mxu0
        %v4326 = vadd.f32 0.0, %v4325
        %v4327 = vpop.f32.mrb[0].mxu0
        %v4328 = vadd.f32 0.0, %v4327
        %v4329 = vpop.f32.mrb[0].mxu0
        %v4330 = vadd.f32 0.0, %v4329
        %v4331 = vpop.f32.mrb[0].mxu0
        %v4332 = vadd.f32 0.0, %v4331
        %4333 = vdwg.mxu0
        %v4334 = vadd.f32 %v4240, %v4326
        %v4335 = vadd.f32 %v4241, %v4328
        %v4336 = vadd.f32 %v4242, %v4330
        %v4337 = vadd.f32 %v4243, %v4332
        %4338 = vrot.lane.b32.xlu0 %v3994, 126
        %v4339 = vpop.permute.xlu0 %4338
        %4340 = vrot.lane.b32.xlu0 %v3996, 126
        %v4341 = vpop.permute.xlu0 %4340
        %4342 = vrot.lane.b32.xlu0 %v3998, 126
        %v4343 = vpop.permute.xlu0 %4342
        %4344 = vrot.lane.b32.xlu0 %v4000, 126
        %v4345 = vpop.permute.xlu0 %4344
        %4346 = vrot.lane.b32.xlu0 %v3995, 126
        %v4347 = vpop.permute.xlu0 %4346
        %4348 = vrot.lane.b32.xlu0 %v3997, 126
        %v4349 = vpop.permute.xlu0 %4348
        %4350 = vrot.lane.b32.xlu0 %v3999, 126
        %v4351 = vpop.permute.xlu0 %4350
        %4352 = vrot.lane.b32.xlu0 %v4001, 126
        %v4353 = vpop.permute.xlu0 %4352
        %v4354 = vsel %vm1504, %v4339, %v4347
        %v4355 = vsel %vm1504, %v4341, %v4349
        %v4356 = vsel %vm1504, %v4343, %v4351
        %v4357 = vsel %vm1504, %v4345, %v4353
        %v4358 = vsel %vm1504, %v4347, %v4339
        %v4359 = vsel %vm1504, %v4349, %v4341
        %v4360 = vsel %vm1504, %v4351, %v4343
        %v4361 = vsel %vm1504, %v4353, %v4345
        %v4362 = vsel %vm1507, %v4354, 0.0
        %v4363 = vsel %vm1508, %v4358, 0.0
        %v4364 = vsel %vm1507, %v4355, 0.0
        %v4365 = vsel %vm1508, %v4359, 0.0
        %v4366 = vsel %vm1507, %v4356, 0.0
        %v4367 = vsel %vm1508, %v4360, 0.0
        %v4368 = vsel %vm1507, %v4357, 0.0
        %v4369 = vsel %vm1508, %v4361, 0.0
        %v4370 = vpack.c.bf16 %v4364, %v4362
        %v4371 = vpack.c.bf16 %v4365, %v4363
        %v4372 = vpack.c.bf16 %v4368, %v4366
        %v4373 = vpack.c.bf16 %v4369, %v4367
        %s4374 = scalar_lea.vmem %s8, 32
        %v4375 = vld [vmem:[%s4374] sm:$0xf]
        %v4376 = vld [vmem:[%s4374 + $0x4] sm:$0xf]
        %v4379 = vunpack.c.l.b16 %v4375
        %v4380 = vunpack.c.l.b16 %v4376
        %v4381 = vpack.c.b16 %v4380, %v4379
        %v4383 = vsel %vm4084, %v4381, 0
        %4385 = vmatprep.subr.bf16.mxu0 %v4371
        %4386 = vmatpush1.bf16.msra.mxu0 %v4370
        %4387 = vmatprep.subr.bf16.mxu0 %v4373
        %4388 = vmatpush1.bf16.msra.mxu0 %v4372
        %4389 = vmatprep.subr.bf16.mxu0 0
        %4390 = vmatpush1.bf16.msra.mxu0 0
        %4391 = vmatprep.subr.bf16.mxu0 0
        %4392 = vmatpush1.bf16.msra.mxu0 0
        %4393 = vmatprep.subr.bf16.mxu0 0
        %4394 = vmatpush1.bf16.msra.mxu0 0
        %4395 = vmatprep.subr.bf16.mxu0 0
        %4396 = vmatpush1.bf16.msra.mxu0 0
        %4397 = vmatprep.subr.bf16.mxu0 0
        %4398 = vmatpush1.bf16.msra.mxu0 0
        %4399 = vmatprep.subr.bf16.mxu0 0
        %4400 = vmatpush1.bf16.msra.mxu0 0
        %4401 = vmatprep.subr.bf16.mxu0 0
        %4402 = vmatpush1.bf16.msra.mxu0 0
        %4403 = vmatprep.subr.bf16.mxu0 0
        %4404 = vmatpush1.bf16.msra.mxu0 0
        %4405 = vmatprep.subr.bf16.mxu0 0
        %4406 = vmatpush1.bf16.msra.mxu0 0
        %4407 = vmatprep.subr.bf16.mxu0 0
        %4408 = vmatpush1.bf16.msra.mxu0 0
        %4409 = vmatprep.subr.bf16.mxu0 0
        %4410 = vmatpush1.bf16.msra.mxu0 0
        %4411 = vmatprep.subr.bf16.mxu0 0
        %4412 = vmatpush1.bf16.msra.mxu0 0
        %4413 = vmatprep.subr.bf16.mxu0 0
        %4414 = vmatpush1.bf16.msra.mxu0 0
        %4415 = vmatprep.subr.bf16.mxu0 0
        %4416 = vmatpush1.bf16.msra.mxu0 0
        %4417 = vmatprep.mubr.bf16.mxu0 0
        %4418 = vmatmul.mubr.bf16.gmra.mrb[0].mxu0 %v4383
        %v4419 = vpop.f32.mrb[0].mxu0
        %v4420 = vadd.f32 0.0, %v4419
        %v4421 = vpop.f32.mrb[0].mxu0
        %v4422 = vadd.f32 0.0, %v4421
        %v4423 = vpop.f32.mrb[0].mxu0
        %v4424 = vadd.f32 0.0, %v4423
        %v4425 = vpop.f32.mrb[0].mxu0
        %v4426 = vadd.f32 0.0, %v4425
        %4427 = vdwg.mxu0
        %v4428 = vadd.f32 %v4334, %v4420
        %v4429 = vadd.f32 %v4335, %v4422
        %v4430 = vadd.f32 %v4336, %v4424
        %v4431 = vadd.f32 %v4337, %v4426
        %v4432 = vld [vmem:[%s9] sm:$0xff]
        %v4433 = vld [vmem:[%s9 + $0x8] sm:$0xff]
        %4435 = vset.pattern.permute.xlu0 0
        %4436 = vperm.xlu0 %4435, %v4432
        %v4437 = vpop.permute.xlu0 %4436
        %4440 = vset.pattern.permute.xlu0 0
        %4441 = vperm.xlu0 %4440, %v4433
        %v4442 = vpop.permute.xlu0 %4441
        %v4444 = vadd.f32 %v4428, %v4437
        %v4445 = vadd.f32 %v4429, %v4437
        %v4446 = vadd.f32 %v4430, %v4442
        %v4447 = vadd.f32 %v4431, %v4442
        %s4448 = sld [smem:[#allocation2 + $0x3]]
        %vm4449 = vcmp.gt.f32.partialorder %v4444, 0.0
        %vm4450 = vcmp.gt.f32.partialorder %v4445, 0.0
        %vm4451 = vcmp.gt.f32.partialorder %v4446, 0.0
        %vm4452 = vcmp.gt.f32.partialorder %v4447, 0.0
        %v4453 = vstv %s4448
        %v4454 = vmul.f32 %v4453, %v4444
        %v4455 = vmul.f32 %v4453, %v4445
        %v4456 = vmul.f32 %v4453, %v4446
        %v4457 = vmul.f32 %v4453, %v4447
        %v4458 = vsel %vm4449, %v4444, %v4454
        %v4459 = vsel %vm4450, %v4445, %v4455
        %v4460 = vsel %vm4451, %v4446, %v4456
        %v4461 = vsel %vm4452, %v4447, %v4457
        %4462 = vrot.lane.b32.xlu0 %v4458, 2
        %v4463 = vpop.permute.xlu0 %4462
        %4464 = vrot.lane.b32.xlu0 %v4460, 2
        %v4465 = vpop.permute.xlu0 %4464
        %4466 = vrot.lane.b32.xlu0 %v4459, 2
        %v4467 = vpop.permute.xlu0 %4466
        %4468 = vrot.lane.b32.xlu0 %v4461, 2
        %v4469 = vpop.permute.xlu0 %4468
        %v4470 = vsel %vm597, %v4463, %v4467
        %v4471 = vsel %vm597, %v4465, %v4469
        %v4472 = vsel %vm597, %v4467, %v4463
        %v4473 = vsel %vm597, %v4469, %v4465
        %v4474 = vsel %vm601, %v4472, 0.0
        %v4475 = vsel %vm602, %v4470, 0.0
        %v4476 = vsel %vm601, %v4473, 0.0
        %v4477 = vsel %vm602, %v4471, 0.0
        %v4478 = vpack.c.bf16 %v4476, %v4474
        %v4479 = vpack.c.bf16 %v4477, %v4475
        %v4480 = vld [vmem:[%s10] sm:$0xf]
        %v4481 = vld [vmem:[%s10 + $0x4] sm:$0xf]
        %v4482 = vld [vmem:[%s10 + $0x8] sm:$0xf]
        %v4483 = vld [vmem:[%s10 + $0xc] sm:$0xf]
        %4484 = vrot.lane.b32.xlu0 %v4458, 1
        %v4485 = vpop.permute.xlu0 %4484
        %4486 = vrot.lane.b32.xlu0 %v4460, 1
        %v4487 = vpop.permute.xlu0 %4486
        %4488 = vrot.lane.b32.xlu0 %v4459, 1
        %v4489 = vpop.permute.xlu0 %4488
        %4490 = vrot.lane.b32.xlu0 %v4461, 1
        %v4491 = vpop.permute.xlu0 %4490
        %v4492 = vsel %vm627, %v4485, %v4489
        %v4493 = vsel %vm627, %v4487, %v4491
        %v4494 = vsel %vm627, %v4489, %v4485
        %v4495 = vsel %vm627, %v4491, %v4487
        %v4496 = vsel %vm630, %v4494, 0.0
        %v4497 = vsel %vm631, %v4492, 0.0
        %v4498 = vsel %vm630, %v4495, 0.0
        %v4499 = vsel %vm631, %v4493, 0.0
        %v4500 = vpack.c.bf16 %v4498, %v4496
        %v4501 = vpack.c.bf16 %v4499, %v4497
        %s4502 = scalar_lea.vmem %s10, 16
        %v4503 = vld [vmem:[%s4502] sm:$0xf]
        %v4504 = vld [vmem:[%s4502 + $0x4] sm:$0xf]
        %v4505 = vld [vmem:[%s4502 + $0x8] sm:$0xf]
        %v4506 = vld [vmem:[%s4502 + $0xc] sm:$0xf]
        %v4511 = vunpack.c.l.b16 %v4503
        %v4512 = vunpack.c.l.b16 %v4504
        %v4513 = vunpack.c.l.b16 %v4505
        %v4514 = vunpack.c.l.b16 %v4506
        %v4515 = vpack.c.b16 %v4512, %v4511
        %v4516 = vpack.c.b16 %v4514, %v4513
        %vm4517 = vcmask 130048
        %v4519 = vsel %vm4517, %v4515, 0
        %v4522 = vsel %vm4517, %v4516, 0
        %4524 = vmatprep.subr.bf16.mxu0 %v4501
        %4525 = vmatpush1.bf16.msra.mxu0 %v4500
        %4526 = vmatprep.subr.bf16.mxu0 0
        %4527 = vmatpush1.bf16.msra.mxu0 0
        %4528 = vmatprep.subr.bf16.mxu0 0
        %4529 = vmatpush1.bf16.msra.mxu0 0
        %4530 = vmatprep.subr.bf16.mxu0 0
        %4531 = vmatpush1.bf16.msra.mxu0 0
        %4532 = vmatprep.subr.bf16.mxu0 0
        %4533 = vmatpush1.bf16.msra.mxu0 0
        %4534 = vmatprep.subr.bf16.mxu0 0
        %4535 = vmatpush1.bf16.msra.mxu0 0
        %4536 = vmatprep.subr.bf16.mxu0 0
        %4537 = vmatpush1.bf16.msra.mxu0 0
        %4538 = vmatprep.subr.bf16.mxu0 0
        %4539 = vmatpush1.bf16.msra.mxu0 0
        %4540 = vmatprep.subr.bf16.mxu0 0
        %4541 = vmatpush1.bf16.msra.mxu0 0
        %4542 = vmatprep.subr.bf16.mxu0 0
        %4543 = vmatpush1.bf16.msra.mxu0 0
        %4544 = vmatprep.subr.bf16.mxu0 0
        %4545 = vmatpush1.bf16.msra.mxu0 0
        %4546 = vmatprep.subr.bf16.mxu0 0
        %4547 = vmatpush1.bf16.msra.mxu0 0
        %4548 = vmatprep.subr.bf16.mxu0 0
        %4549 = vmatpush1.bf16.msra.mxu0 0
        %4550 = vmatprep.subr.bf16.mxu0 0
        %4551 = vmatpush1.bf16.msra.mxu0 0
        %4552 = vmatprep.subr.bf16.mxu0 0
        %4553 = vmatpush1.bf16.msra.mxu0 0
        %4554 = vmatprep.subr.bf16.mxu0 0
        %4555 = vmatpush1.bf16.msra.mxu0 0
        %4556 = vmatprep.mubr.bf16.mxu0 0
        %4557 = vmatmul.mubr.bf16.gmra.mrb[0].mxu0 %v4519
        %v4558 = vpop.f32.mrb[0].mxu0
        %v4559 = vadd.f32 0.0, %v4558
        %v4560 = vpop.f32.mrb[0].mxu0
        %v4561 = vadd.f32 0.0, %v4560
        %v4562 = vpop.f32.mrb[0].mxu0
        %v4563 = vadd.f32 0.0, %v4562
        %v4564 = vpop.f32.mrb[0].mxu0
        %v4565 = vadd.f32 0.0, %v4564
        %4566 = vmatprep.mubr.bf16.mxu0 0
        %4567 = vmatmul.mubr.bf16.gmra.mrb[0].mxu0 %v4522
        %v4568 = vpop.f32.mrb[0].mxu0
        %v4569 = vadd.f32 0.0, %v4568
        %v4570 = vpop.f32.mrb[0].mxu0
        %v4571 = vadd.f32 0.0, %v4570
        %v4572 = vpop.f32.mrb[0].mxu0
        %v4573 = vadd.f32 0.0, %v4572
        %v4574 = vpop.f32.mrb[0].mxu0
        %v4575 = vadd.f32 0.0, %v4574
        %4576 = vdwg.mxu0
        %v4581 = vunpack.c.l.b16 %v4480
        %v4582 = vunpack.c.l.b16 %v4481
        %v4583 = vunpack.c.l.b16 %v4482
        %v4584 = vunpack.c.l.b16 %v4483
        %v4585 = vpack.c.b16 %v4582, %v4581
        %v4586 = vpack.c.b16 %v4584, %v4583
        %v4588 = vsel %vm4517, %v4585, 0
        %v4591 = vsel %vm4517, %v4586, 0
        %4593 = vmatprep.subr.bf16.mxu0 %v4479
        %4594 = vmatpush1.bf16.msra.mxu0 %v4478
        %4595 = vmatprep.subr.bf16.mxu0 0
        %4596 = vmatpush1.bf16.msra.mxu0 0
        %4597 = vmatprep.subr.bf16.mxu0 0
        %4598 = vmatpush1.bf16.msra.mxu0 0
        %4599 = vmatprep.subr.bf16.mxu0 0
        %4600 = vmatpush1.bf16.msra.mxu0 0
        %4601 = vmatprep.subr.bf16.mxu0 0
        %4602 = vmatpush1.bf16.msra.mxu0 0
        %4603 = vmatprep.subr.bf16.mxu0 0
        %4604 = vmatpush1.bf16.msra.mxu0 0
        %4605 = vmatprep.subr.bf16.mxu0 0
        %4606 = vmatpush1.bf16.msra.mxu0 0
        %4607 = vmatprep.subr.bf16.mxu0 0
        %4608 = vmatpush1.bf16.msra.mxu0 0
        %4609 = vmatprep.subr.bf16.mxu0 0
        %4610 = vmatpush1.bf16.msra.mxu0 0
        %4611 = vmatprep.subr.bf16.mxu0 0
        %4612 = vmatpush1.bf16.msra.mxu0 0
        %4613 = vmatprep.subr.bf16.mxu0 0
        %4614 = vmatpush1.bf16.msra.mxu0 0
        %4615 = vmatprep.subr.bf16.mxu0 0
        %4616 = vmatpush1.bf16.msra.mxu0 0
        %4617 = vmatprep.subr.bf16.mxu0 0
        %4618 = vmatpush1.bf16.msra.mxu0 0
        %4619 = vmatprep.subr.bf16.mxu0 0
        %4620 = vmatpush1.bf16.msra.mxu0 0
        %4621 = vmatprep.subr.bf16.mxu0 0
        %4622 = vmatpush1.bf16.msra.mxu0 0
        %4623 = vmatprep.subr.bf16.mxu0 0
        %4624 = vmatpush1.bf16.msra.mxu0 0
        %4625 = vmatprep.mubr.bf16.mxu0 0
        %4626 = vmatmul.mubr.bf16.gmra.mrb[0].mxu0 %v4588
        %v4627 = vpop.f32.mrb[0].mxu0
        %v4628 = vadd.f32 %v4559, %v4627
        %v4629 = vpop.f32.mrb[0].mxu0
        %v4630 = vadd.f32 %v4561, %v4629
        %v4631 = vpop.f32.mrb[0].mxu0
        %v4632 = vadd.f32 %v4563, %v4631
        %v4633 = vpop.f32.mrb[0].mxu0
        %v4634 = vadd.f32 %v4565, %v4633
        %4635 = vmatprep.mubr.bf16.mxu0 0
        %4636 = vmatmul.mubr.bf16.gmra.mrb[0].mxu0 %v4591
        %v4637 = vpop.f32.mrb[0].mxu0
        %v4638 = vadd.f32 %v4569, %v4637
        %v4639 = vpop.f32.mrb[0].mxu0
        %v4640 = vadd.f32 %v4571, %v4639
        %v4641 = vpop.f32.mrb[0].mxu0
        %v4642 = vadd.f32 %v4573, %v4641
        %v4643 = vpop.f32.mrb[0].mxu0
        %v4644 = vadd.f32 %v4575, %v4643
        %4645 = vdwg.mxu0
        %v4646 = vpack.c.bf16 %v4460, %v4458
        %v4647 = vpack.c.bf16 %v4461, %v4459
        %s4648 = scalar_lea.vmem %s10, 32
        %v4649 = vld [vmem:[%s4648] sm:$0xf]
        %v4650 = vld [vmem:[%s4648 + $0x4] sm:$0xf]
        %v4651 = vld [vmem:[%s4648 + $0x8] sm:$0xf]
        %v4652 = vld [vmem:[%s4648 + $0xc] sm:$0xf]
        %v4657 = vunpack.c.l.b16 %v4649
        %v4658 = vunpack.c.l.b16 %v4650
        %v4659 = vunpack.c.l.b16 %v4651
        %v4660 = vunpack.c.l.b16 %v4652
        %v4661 = vpack.c.b16 %v4658, %v4657
        %v4662 = vpack.c.b16 %v4660, %v4659
        %v4664 = vsel %vm4517, %v4661, 0
        %v4667 = vsel %vm4517, %v4662, 0
        %4669 = vmatprep.subr.bf16.mxu0 %v4647
        %4670 = vmatpush1.bf16.msra.mxu0 %v4646
        %4671 = vmatprep.subr.bf16.mxu0 0
        %4672 = vmatpush1.bf16.msra.mxu0 0
        %4673 = vmatprep.subr.bf16.mxu0 0
        %4674 = vmatpush1.bf16.msra.mxu0 0
        %4675 = vmatprep.subr.bf16.mxu0 0
        %4676 = vmatpush1.bf16.msra.mxu0 0
        %4677 = vmatprep.subr.bf16.mxu0 0
        %4678 = vmatpush1.bf16.msra.mxu0 0
        %4679 = vmatprep.subr.bf16.mxu0 0
        %4680 = vmatpush1.bf16.msra.mxu0 0
        %4681 = vmatprep.subr.bf16.mxu0 0
        %4682 = vmatpush1.bf16.msra.mxu0 0
        %4683 = vmatprep.subr.bf16.mxu0 0
        %4684 = vmatpush1.bf16.msra.mxu0 0
        %4685 = vmatprep.subr.bf16.mxu0 0
        %4686 = vmatpush1.bf16.msra.mxu0 0
        %4687 = vmatprep.subr.bf16.mxu0 0
        %4688 = vmatpush1.bf16.msra.mxu0 0
        %4689 = vmatprep.subr.bf16.mxu0 0
        %4690 = vmatpush1.bf16.msra.mxu0 0
        %4691 = vmatprep.subr.bf16.mxu0 0
        %4692 = vmatpush1.bf16.msra.mxu0 0
        %4693 = vmatprep.subr.bf16.mxu0 0
        %4694 = vmatpush1.bf16.msra.mxu0 0
        %4695 = vmatprep.subr.bf16.mxu0 0
        %4696 = vmatpush1.bf16.msra.mxu0 0
        %4697 = vmatprep.subr.bf16.mxu0 0
        %4698 = vmatpush1.bf16.msra.mxu0 0
        %4699 = vmatprep.subr.bf16.mxu0 0
        %4700 = vmatpush1.bf16.msra.mxu0 0
        %4701 = vmatprep.mubr.bf16.mxu0 0
        %4702 = vmatmul.mubr.bf16.gmra.mrb[0].mxu0 %v4664
        %v4703 = vpop.f32.mrb[0].mxu0
        %v4704 = vadd.f32 0.0, %v4703
        %v4705 = vpop.f32.mrb[0].mxu0
        %v4706 = vadd.f32 0.0, %v4705
        %v4707 = vpop.f32.mrb[0].mxu0
        %v4708 = vadd.f32 0.0, %v4707
        %v4709 = vpop.f32.mrb[0].mxu0
        %v4710 = vadd.f32 0.0, %v4709
        %4711 = vmatprep.mubr.bf16.mxu0 0
        %4712 = vmatmul.mubr.bf16.gmra.mrb[0].mxu0 %v4667
        %v4713 = vpop.f32.mrb[0].mxu0
        %v4714 = vadd.f32 0.0, %v4713
        %v4715 = vpop.f32.mrb[0].mxu0
        %v4716 = vadd.f32 0.0, %v4715
        %v4717 = vpop.f32.mrb[0].mxu0
        %v4718 = vadd.f32 0.0, %v4717
        %v4719 = vpop.f32.mrb[0].mxu0
        %v4720 = vadd.f32 0.0, %v4719
        %4721 = vdwg.mxu0
        %v4722 = vadd.f32 %v4628, %v4704
        %v4723 = vadd.f32 %v4630, %v4706
        %v4724 = vadd.f32 %v4632, %v4708
        %v4725 = vadd.f32 %v4634, %v4710
        %v4726 = vadd.f32 %v4638, %v4714
        %v4727 = vadd.f32 %v4640, %v4716
        %v4728 = vadd.f32 %v4642, %v4718
        %v4729 = vadd.f32 %v4644, %v4720
        %4730 = vrot.lane.b32.xlu0 %v4458, 127
        %v4731 = vpop.permute.xlu0 %4730
        %4732 = vrot.lane.b32.xlu0 %v4460, 127
        %v4733 = vpop.permute.xlu0 %4732
        %4734 = vrot.lane.b32.xlu0 %v4459, 127
        %v4735 = vpop.permute.xlu0 %4734
        %4736 = vrot.lane.b32.xlu0 %v4461, 127
        %v4737 = vpop.permute.xlu0 %4736
        %v4738 = vsel %vm1259, %v4731, %v4735
        %v4739 = vsel %vm1259, %v4733, %v4737
        %v4740 = vsel %vm1259, %v4735, %v4731
        %v4741 = vsel %vm1259, %v4737, %v4733
        %v4742 = vsel %vm1262, %v4738, 0.0
        %v4743 = vsel %vm1263, %v4740, 0.0
        %v4744 = vsel %vm1262, %v4739, 0.0
        %v4745 = vsel %vm1263, %v4741, 0.0
        %v4746 = vpack.c.bf16 %v4744, %v4742
        %v4747 = vpack.c.bf16 %v4745, %v4743
        %s4748 = scalar_lea.vmem %s10, 48
        %v4749 = vld [vmem:[%s4748] sm:$0xf]
        %v4750 = vld [vmem:[%s4748 + $0x4] sm:$0xf]
        %v4751 = vld [vmem:[%s4748 + $0x8] sm:$0xf]
        %v4752 = vld [vmem:[%s4748 + $0xc] sm:$0xf]
        %v4757 = vunpack.c.l.b16 %v4749
        %v4758 = vunpack.c.l.b16 %v4750
        %v4759 = vunpack.c.l.b16 %v4751
        %v4760 = vunpack.c.l.b16 %v4752
        %v4761 = vpack.c.b16 %v4758, %v4757
        %v4762 = vpack.c.b16 %v4760, %v4759
        %v4764 = vsel %vm4517, %v4761, 0
        %v4767 = vsel %vm4517, %v4762, 0
        %4769 = vmatprep.subr.bf16.mxu0 %v4747
        %4770 = vmatpush1.bf16.msra.mxu0 %v4746
        %4771 = vmatprep.subr.bf16.mxu0 0
        %4772 = vmatpush1.bf16.msra.mxu0 0
        %4773 = vmatprep.subr.bf16.mxu0 0
        %4774 = vmatpush1.bf16.msra.mxu0 0
        %4775 = vmatprep.subr.bf16.mxu0 0
        %4776 = vmatpush1.bf16.msra.mxu0 0
        %4777 = vmatprep.subr.bf16.mxu0 0
        %4778 = vmatpush1.bf16.msra.mxu0 0
        %4779 = vmatprep.subr.bf16.mxu0 0
        %4780 = vmatpush1.bf16.msra.mxu0 0
        %4781 = vmatprep.subr.bf16.mxu0 0
        %4782 = vmatpush1.bf16.msra.mxu0 0
        %4783 = vmatprep.subr.bf16.mxu0 0
        %4784 = vmatpush1.bf16.msra.mxu0 0
        %4785 = vmatprep.subr.bf16.mxu0 0
        %4786 = vmatpush1.bf16.msra.mxu0 0
        %4787 = vmatprep.subr.bf16.mxu0 0
        %4788 = vmatpush1.bf16.msra.mxu0 0
        %4789 = vmatprep.subr.bf16.mxu0 0
        %4790 = vmatpush1.bf16.msra.mxu0 0
        %4791 = vmatprep.subr.bf16.mxu0 0
        %4792 = vmatpush1.bf16.msra.mxu0 0
        %4793 = vmatprep.subr.bf16.mxu0 0
        %4794 = vmatpush1.bf16.msra.mxu0 0
        %4795 = vmatprep.subr.bf16.mxu0 0
        %4796 = vmatpush1.bf16.msra.mxu0 0
        %4797 = vmatprep.subr.bf16.mxu0 0
        %4798 = vmatpush1.bf16.msra.mxu0 0
        %4799 = vmatprep.subr.bf16.mxu0 0
        %4800 = vmatpush1.bf16.msra.mxu0 0
        %4801 = vmatprep.mubr.bf16.mxu0 0
        %4802 = vmatmul.mubr.bf16.gmra.mrb[0].mxu0 %v4764
        %v4803 = vpop.f32.mrb[0].mxu0
        %v4804 = vadd.f32 0.0, %v4803
        %v4805 = vpop.f32.mrb[0].mxu0
        %v4806 = vadd.f32 0.0, %v4805
        %v4807 = vpop.f32.mrb[0].mxu0
        %v4808 = vadd.f32 0.0, %v4807
        %v4809 = vpop.f32.mrb[0].mxu0
        %v4810 = vadd.f32 0.0, %v4809
        %4811 = vmatprep.mubr.bf16.mxu0 0
        %4812 = vmatmul.mubr.bf16.gmra.mrb[0].mxu0 %v4767
        %v4813 = vpop.f32.mrb[0].mxu0
        %v4814 = vadd.f32 0.0, %v4813
        %v4815 = vpop.f32.mrb[0].mxu0
        %v4816 = vadd.f32 0.0, %v4815
        %v4817 = vpop.f32.mrb[0].mxu0
        %v4818 = vadd.f32 0.0, %v4817
        %v4819 = vpop.f32.mrb[0].mxu0
        %v4820 = vadd.f32 0.0, %v4819
        %4821 = vdwg.mxu0
        %v4822 = vadd.f32 %v4722, %v4804
        %v4823 = vadd.f32 %v4723, %v4806
        %v4824 = vadd.f32 %v4724, %v4808
        %v4825 = vadd.f32 %v4725, %v4810
        %v4826 = vadd.f32 %v4726, %v4814
        %v4827 = vadd.f32 %v4727, %v4816
        %v4828 = vadd.f32 %v4728, %v4818
        %v4829 = vadd.f32 %v4729, %v4820
        %4830 = vrot.lane.b32.xlu0 %v4458, 126
        %v4831 = vpop.permute.xlu0 %4830
        %4832 = vrot.lane.b32.xlu0 %v4460, 126
        %v4833 = vpop.permute.xlu0 %4832
        %4834 = vrot.lane.b32.xlu0 %v4459, 126
        %v4835 = vpop.permute.xlu0 %4834
        %4836 = vrot.lane.b32.xlu0 %v4461, 126
        %v4837 = vpop.permute.xlu0 %4836
        %v4838 = vsel %vm1504, %v4831, %v4835
        %v4839 = vsel %vm1504, %v4833, %v4837
        %v4840 = vsel %vm1504, %v4835, %v4831
        %v4841 = vsel %vm1504, %v4837, %v4833
        %v4842 = vsel %vm1507, %v4838, 0.0
        %v4843 = vsel %vm1508, %v4840, 0.0
        %v4844 = vsel %vm1507, %v4839, 0.0
        %v4845 = vsel %vm1508, %v4841, 0.0
        %v4846 = vpack.c.bf16 %v4844, %v4842
        %v4847 = vpack.c.bf16 %v4845, %v4843
        %s4848 = scalar_lea.vmem %s10, 64
        %v4849 = vld [vmem:[%s4848] sm:$0xf]
        %v4850 = vld [vmem:[%s4848 + $0x4] sm:$0xf]
        %v4851 = vld [vmem:[%s4848 + $0x8] sm:$0xf]
        %v4852 = vld [vmem:[%s4848 + $0xc] sm:$0xf]
        %v4857 = vunpack.c.l.b16 %v4849
        %v4858 = vunpack.c.l.b16 %v4850
        %v4859 = vunpack.c.l.b16 %v4851
        %v4860 = vunpack.c.l.b16 %v4852
        %v4861 = vpack.c.b16 %v4858, %v4857
        %v4862 = vpack.c.b16 %v4860, %v4859
        %v4864 = vsel %vm4517, %v4861, 0
        %v4867 = vsel %vm4517, %v4862, 0
        %4869 = vmatprep.subr.bf16.mxu0 %v4847
        %4870 = vmatpush1.bf16.msra.mxu0 %v4846
        %4871 = vmatprep.subr.bf16.mxu0 0
        %4872 = vmatpush1.bf16.msra.mxu0 0
        %4873 = vmatprep.subr.bf16.mxu0 0
        %4874 = vmatpush1.bf16.msra.mxu0 0
        %4875 = vmatprep.subr.bf16.mxu0 0
        %4876 = vmatpush1.bf16.msra.mxu0 0
        %4877 = vmatprep.subr.bf16.mxu0 0
        %4878 = vmatpush1.bf16.msra.mxu0 0
        %4879 = vmatprep.subr.bf16.mxu0 0
        %4880 = vmatpush1.bf16.msra.mxu0 0
        %4881 = vmatprep.subr.bf16.mxu0 0
        %4882 = vmatpush1.bf16.msra.mxu0 0
        %4883 = vmatprep.subr.bf16.mxu0 0
        %4884 = vmatpush1.bf16.msra.mxu0 0
        %4885 = vmatprep.subr.bf16.mxu0 0
        %4886 = vmatpush1.bf16.msra.mxu0 0
        %4887 = vmatprep.subr.bf16.mxu0 0
        %4888 = vmatpush1.bf16.msra.mxu0 0
        %4889 = vmatprep.subr.bf16.mxu0 0
        %4890 = vmatpush1.bf16.msra.mxu0 0
        %4891 = vmatprep.subr.bf16.mxu0 0
        %4892 = vmatpush1.bf16.msra.mxu0 0
        %4893 = vmatprep.subr.bf16.mxu0 0
        %4894 = vmatpush1.bf16.msra.mxu0 0
        %4895 = vmatprep.subr.bf16.mxu0 0
        %4896 = vmatpush1.bf16.msra.mxu0 0
        %4897 = vmatprep.subr.bf16.mxu0 0
        %4898 = vmatpush1.bf16.msra.mxu0 0
        %4899 = vmatprep.subr.bf16.mxu0 0
        %4900 = vmatpush1.bf16.msra.mxu0 0
        %4901 = vmatprep.mubr.bf16.mxu0 0
        %4902 = vmatmul.mubr.bf16.gmra.mrb[0].mxu0 %v4864
        %v4903 = vpop.f32.mrb[0].mxu0
        %v4904 = vadd.f32 0.0, %v4903
        %v4905 = vpop.f32.mrb[0].mxu0
        %v4906 = vadd.f32 0.0, %v4905
        %v4907 = vpop.f32.mrb[0].mxu0
        %v4908 = vadd.f32 0.0, %v4907
        %v4909 = vpop.f32.mrb[0].mxu0
        %v4910 = vadd.f32 0.0, %v4909
        %4911 = vmatprep.mubr.bf16.mxu0 0
        %4912 = vmatmul.mubr.bf16.gmra.mrb[0].mxu0 %v4867
        %v4913 = vpop.f32.mrb[0].mxu0
        %v4914 = vadd.f32 0.0, %v4913
        %v4915 = vpop.f32.mrb[0].mxu0
        %v4916 = vadd.f32 0.0, %v4915
        %v4917 = vpop.f32.mrb[0].mxu0
        %v4918 = vadd.f32 0.0, %v4917
        %v4919 = vpop.f32.mrb[0].mxu0
        %v4920 = vadd.f32 0.0, %v4919
        %4921 = vdwg.mxu0
        %v4922 = vadd.f32 %v4822, %v4904
        %v4923 = vadd.f32 %v4823, %v4906
        %v4924 = vadd.f32 %v4824, %v4908
        %v4925 = vadd.f32 %v4825, %v4910
        %v4926 = vadd.f32 %v4826, %v4914
        %v4927 = vadd.f32 %v4827, %v4916
        %v4928 = vadd.f32 %v4828, %v4918
        %v4929 = vadd.f32 %v4829, %v4920
        %v4930 = vld [vmem:[%s11] sm:$0xff]
        %v4931 = vld [vmem:[%s11 + $0x8] sm:$0xff]
        %v4932 = vld [vmem:[%s11 + $0x10] sm:$0xff]
        %v4933 = vld [vmem:[%s11 + $0x18] sm:$0xff]
        %4935 = vset.pattern.permute.xlu0 0
        %4936 = vperm.xlu0 %4935, %v4930
        %v4937 = vpop.permute.xlu0 %4936
        %4940 = vset.pattern.permute.xlu0 0
        %4941 = vperm.xlu0 %4940, %v4931
        %v4942 = vpop.permute.xlu0 %4941
        %4945 = vset.pattern.permute.xlu0 0
        %4946 = vperm.xlu0 %4945, %v4932
        %v4947 = vpop.permute.xlu0 %4946
        %4950 = vset.pattern.permute.xlu0 0
        %4951 = vperm.xlu0 %4950, %v4933
        %v4952 = vpop.permute.xlu0 %4951
        %v4954 = vadd.f32 %v4922, %v4937
        %v4955 = vadd.f32 %v4923, %v4937
        %v4956 = vadd.f32 %v4924, %v4942
        %v4957 = vadd.f32 %v4925, %v4942
        %v4958 = vadd.f32 %v4926, %v4947
        %v4959 = vadd.f32 %v4927, %v4947
        %v4960 = vadd.f32 %v4928, %v4952
        %v4961 = vadd.f32 %v4929, %v4952
        %s4962 = sld [smem:[#allocation2 + $0x4]]
        %vm4963 = vcmp.gt.f32.partialorder %v4954, 0.0
        %vm4964 = vcmp.gt.f32.partialorder %v4955, 0.0
        %vm4965 = vcmp.gt.f32.partialorder %v4956, 0.0
        %vm4966 = vcmp.gt.f32.partialorder %v4957, 0.0
        %vm4967 = vcmp.gt.f32.partialorder %v4958, 0.0
        %vm4968 = vcmp.gt.f32.partialorder %v4959, 0.0
        %vm4969 = vcmp.gt.f32.partialorder %v4960, 0.0
        %vm4970 = vcmp.gt.f32.partialorder %v4961, 0.0
        %v4971 = vstv %s4962
        %v4972 = vmul.f32 %v4971, %v4954
        %v4973 = vmul.f32 %v4971, %v4955
        %v4974 = vmul.f32 %v4971, %v4956
        %v4975 = vmul.f32 %v4971, %v4957
        %v4976 = vmul.f32 %v4971, %v4958
        %v4977 = vmul.f32 %v4971, %v4959
        %v4978 = vmul.f32 %v4971, %v4960
        %v4979 = vmul.f32 %v4971, %v4961
        %v4980 = vsel %vm4963, %v4954, %v4972
        %v4981 = vsel %vm4964, %v4955, %v4973
        %v4982 = vsel %vm4965, %v4956, %v4974
        %v4983 = vsel %vm4966, %v4957, %v4975
        %v4984 = vsel %vm4967, %v4958, %v4976
        %v4985 = vsel %vm4968, %v4959, %v4977
        %v4986 = vsel %vm4969, %v4960, %v4978
        %v4987 = vsel %vm4970, %v4961, %v4979
        %4988 = vrot.lane.b32.xlu0 %v4980, 2
        %v4989 = vpop.permute.xlu0 %4988
        %4990 = vrot.lane.b32.xlu0 %v4982, 2
        %v4991 = vpop.permute.xlu0 %4990
        %4992 = vrot.lane.b32.xlu0 %v4984, 2
        %v4993 = vpop.permute.xlu0 %4992
        %4994 = vrot.lane.b32.xlu0 %v4986, 2
        %v4995 = vpop.permute.xlu0 %4994
        %4996 = vrot.lane.b32.xlu0 %v4981, 2
        %v4997 = vpop.permute.xlu0 %4996
        %4998 = vrot.lane.b32.xlu0 %v4983, 2
        %v4999 = vpop.permute.xlu0 %4998
        %5000 = vrot.lane.b32.xlu0 %v4985, 2
        %v5001 = vpop.permute.xlu0 %5000
        %5002 = vrot.lane.b32.xlu0 %v4987, 2
        %v5003 = vpop.permute.xlu0 %5002
        %v5004 = vsel %vm597, %v4989, %v4997
        %v5005 = vsel %vm597, %v4991, %v4999
        %v5006 = vsel %vm597, %v4993, %v5001
        %v5007 = vsel %vm597, %v4995, %v5003
        %v5008 = vsel %vm597, %v4997, %v4989
        %v5009 = vsel %vm597, %v4999, %v4991
        %v5010 = vsel %vm597, %v5001, %v4993
        %v5011 = vsel %vm597, %v5003, %v4995
        %v5012 = vsel %vm601, %v5008, 0.0
        %v5013 = vsel %vm602, %v5004, 0.0
        %v5014 = vsel %vm601, %v5009, 0.0
        %v5015 = vsel %vm602, %v5005, 0.0
        %v5016 = vsel %vm601, %v5010, 0.0
        %v5017 = vsel %vm602, %v5006, 0.0
        %v5018 = vsel %vm601, %v5011, 0.0
        %v5019 = vsel %vm602, %v5007, 0.0
        %v5020 = vpack.c.bf16 %v5014, %v5012
        %v5021 = vpack.c.bf16 %v5015, %v5013
        %v5022 = vpack.c.bf16 %v5018, %v5016
        %v5023 = vpack.c.bf16 %v5019, %v5017
        %v5024 = vld [vmem:[%s12] sm:$0xf]
        %v5025 = vld [vmem:[%s12 + $0x4] sm:$0xf]
        %v5026 = vld [vmem:[%s12 + $0x8] sm:$0xf]
        %v5027 = vld [vmem:[%s12 + $0xc] sm:$0xf]
        %v5028 = vld [vmem:[%s12 + $0x10] sm:$0xf]
        %v5029 = vld [vmem:[%s12 + $0x14] sm:$0xf]
        %v5030 = vld [vmem:[%s12 + $0x18] sm:$0xf]
        %v5031 = vld [vmem:[%s12 + $0x1c] sm:$0xf]
        %5032 = vrot.lane.b32.xlu0 %v4980, 1
        %v5033 = vpop.permute.xlu0 %5032
        %5034 = vrot.lane.b32.xlu0 %v4982, 1
        %v5035 = vpop.permute.xlu0 %5034
        %5036 = vrot.lane.b32.xlu0 %v4984, 1
        %v5037 = vpop.permute.xlu0 %5036
        %5038 = vrot.lane.b32.xlu0 %v4986, 1
        %v5039 = vpop.permute.xlu0 %5038
        %5040 = vrot.lane.b32.xlu0 %v4981, 1
        %v5041 = vpop.permute.xlu0 %5040
        %5042 = vrot.lane.b32.xlu0 %v4983, 1
        %v5043 = vpop.permute.xlu0 %5042
        %5044 = vrot.lane.b32.xlu0 %v4985, 1
        %v5045 = vpop.permute.xlu0 %5044
        %5046 = vrot.lane.b32.xlu0 %v4987, 1
        %v5047 = vpop.permute.xlu0 %5046
        %v5048 = vsel %vm627, %v5033, %v5041
        %v5049 = vsel %vm627, %v5035, %v5043
        %v5050 = vsel %vm627, %v5037, %v5045
        %v5051 = vsel %vm627, %v5039, %v5047
        %v5052 = vsel %vm627, %v5041, %v5033
        %v5053 = vsel %vm627, %v5043, %v5035
        %v5054 = vsel %vm627, %v5045, %v5037
        %v5055 = vsel %vm627, %v5047, %v5039
        %v5056 = vsel %vm630, %v5052, 0.0
        %v5057 = vsel %vm631, %v5048, 0.0
        %v5058 = vsel %vm630, %v5053, 0.0
        %v5059 = vsel %vm631, %v5049, 0.0
        %v5060 = vsel %vm630, %v5054, 0.0
        %v5061 = vsel %vm631, %v5050, 0.0
        %v5062 = vsel %vm630, %v5055, 0.0
        %v5063 = vsel %vm631, %v5051, 0.0
        %v5064 = vpack.c.bf16 %v5058, %v5056
        %v5065 = vpack.c.bf16 %v5059, %v5057
        %v5066 = vpack.c.bf16 %v5062, %v5060
        %v5067 = vpack.c.bf16 %v5063, %v5061
        %s5068 = scalar_lea.vmem %s12, 32
        %v5069 = vld [vmem:[%s5068] sm:$0xf]
        %v5070 = vld [vmem:[%s5068 + $0x4] sm:$0xf]
        %v5071 = vld [vmem:[%s5068 + $0x8] sm:$0xf]
        %v5072 = vld [vmem:[%s5068 + $0xc] sm:$0xf]
        %v5073 = vld [vmem:[%s5068 + $0x10] sm:$0xf]
        %v5074 = vld [vmem:[%s5068 + $0x14] sm:$0xf]
        %v5075 = vld [vmem:[%s5068 + $0x18] sm:$0xf]
        %v5076 = vld [vmem:[%s5068 + $0x1c] sm:$0xf]
        %v5085 = vunpack.c.l.b16 %v5069
        %v5086 = vunpack.c.l.b16 %v5070
        %v5087 = vunpack.c.l.b16 %v5071
        %v5088 = vunpack.c.l.b16 %v5072
        %v5089 = vunpack.c.l.b16 %v5073
        %v5090 = vunpack.c.l.b16 %v5074
        %v5091 = vunpack.c.l.b16 %v5075
        %v5092 = vunpack.c.l.b16 %v5076
        %v5093 = vpack.c.b16 %v5086, %v5085
        %v5094 = vpack.c.b16 %v5088, %v5087
        %v5095 = vpack.c.b16 %v5090, %v5089
        %v5096 = vpack.c.b16 %v5092, %v5091
        %v5098 = vsel %vm4084, %v5093, 0
        %v5101 = vsel %vm4084, %v5094, 0
        %v5104 = vsel %vm4084, %v5095, 0
        %v5107 = vsel %vm4084, %v5096, 0
        %5109 = vmatprep.subr.bf16.mxu0 %v5065
        %5110 = vmatpush1.bf16.msra.mxu0 %v5064
        %5111 = vmatprep.subr.bf16.mxu0 %v5067
        %5112 = vmatpush1.bf16.msra.mxu0 %v5066
        %5113 = vmatprep.subr.bf16.mxu0 0
        %5114 = vmatpush1.bf16.msra.mxu0 0
        %5115 = vmatprep.subr.bf16.mxu0 0
        %5116 = vmatpush1.bf16.msra.mxu0 0
        %5117 = vmatprep.subr.bf16.mxu0 0
        %5118 = vmatpush1.bf16.msra.mxu0 0
        %5119 = vmatprep.subr.bf16.mxu0 0
        %5120 = vmatpush1.bf16.msra.mxu0 0
        %5121 = vmatprep.subr.bf16.mxu0 0
        %5122 = vmatpush1.bf16.msra.mxu0 0
        %5123 = vmatprep.subr.bf16.mxu0 0
        %5124 = vmatpush1.bf16.msra.mxu0 0
        %5125 = vmatprep.subr.bf16.mxu0 0
        %5126 = vmatpush1.bf16.msra.mxu0 0
        %5127 = vmatprep.subr.bf16.mxu0 0
        %5128 = vmatpush1.bf16.msra.mxu0 0
        %5129 = vmatprep.subr.bf16.mxu0 0
        %5130 = vmatpush1.bf16.msra.mxu0 0
        %5131 = vmatprep.subr.bf16.mxu0 0
        %5132 = vmatpush1.bf16.msra.mxu0 0
        %5133 = vmatprep.subr.bf16.mxu0 0
        %5134 = vmatpush1.bf16.msra.mxu0 0
        %5135 = vmatprep.subr.bf16.mxu0 0
        %5136 = vmatpush1.bf16.msra.mxu0 0
        %5137 = vmatprep.subr.bf16.mxu0 0
        %5138 = vmatpush1.bf16.msra.mxu0 0
        %5139 = vmatprep.subr.bf16.mxu0 0
        %5140 = vmatpush1.bf16.msra.mxu0 0
        %5141 = vmatprep.mubr.bf16.mxu0 0
        %5142 = vmatmul.mubr.bf16.gmra.mrb[0].mxu0 %v5098
        %v5143 = vpop.f32.mrb[0].mxu0
        %v5144 = vadd.f32 0.0, %v5143
        %v5145 = vpop.f32.mrb[0].mxu0
        %v5146 = vadd.f32 0.0, %v5145
        %v5147 = vpop.f32.mrb[0].mxu0
        %v5148 = vadd.f32 0.0, %v5147
        %v5149 = vpop.f32.mrb[0].mxu0
        %v5150 = vadd.f32 0.0, %v5149
        %5151 = vmatprep.mubr.bf16.mxu0 0
        %5152 = vmatmul.mubr.bf16.gmra.mrb[0].mxu0 %v5101
        %v5153 = vpop.f32.mrb[0].mxu0
        %v5154 = vadd.f32 0.0, %v5153
        %v5155 = vpop.f32.mrb[0].mxu0
        %v5156 = vadd.f32 0.0, %v5155
        %v5157 = vpop.f32.mrb[0].mxu0
        %v5158 = vadd.f32 0.0, %v5157
        %v5159 = vpop.f32.mrb[0].mxu0
        %v5160 = vadd.f32 0.0, %v5159
        %5161 = vmatprep.mubr.bf16.mxu0 0
        %5162 = vmatmul.mubr.bf16.gmra.mrb[0].mxu0 %v5104
        %v5163 = vpop.f32.mrb[0].mxu0
        %v5164 = vadd.f32 0.0, %v5163
        %v5165 = vpop.f32.mrb[0].mxu0
        %v5166 = vadd.f32 0.0, %v5165
        %v5167 = vpop.f32.mrb[0].mxu0
        %v5168 = vadd.f32 0.0, %v5167
        %v5169 = vpop.f32.mrb[0].mxu0
        %v5170 = vadd.f32 0.0, %v5169
        %5171 = vmatprep.mubr.bf16.mxu0 0
        %5172 = vmatmul.mubr.bf16.gmra.mrb[0].mxu0 %v5107
        %v5173 = vpop.f32.mrb[0].mxu0
        %v5174 = vadd.f32 0.0, %v5173
        %v5175 = vpop.f32.mrb[0].mxu0
        %v5176 = vadd.f32 0.0, %v5175
        %v5177 = vpop.f32.mrb[0].mxu0
        %v5178 = vadd.f32 0.0, %v5177
        %v5179 = vpop.f32.mrb[0].mxu0
        %v5180 = vadd.f32 0.0, %v5179
        %5181 = vdwg.mxu0
        %v5190 = vunpack.c.l.b16 %v5024
        %v5191 = vunpack.c.l.b16 %v5025
        %v5192 = vunpack.c.l.b16 %v5026
        %v5193 = vunpack.c.l.b16 %v5027
        %v5194 = vunpack.c.l.b16 %v5028
        %v5195 = vunpack.c.l.b16 %v5029
        %v5196 = vunpack.c.l.b16 %v5030
        %v5197 = vunpack.c.l.b16 %v5031
        %v5198 = vpack.c.b16 %v5191, %v5190
        %v5199 = vpack.c.b16 %v5193, %v5192
        %v5200 = vpack.c.b16 %v5195, %v5194
        %v5201 = vpack.c.b16 %v5197, %v5196
        %v5203 = vsel %vm4084, %v5198, 0
        %v5206 = vsel %vm4084, %v5199, 0
        %v5209 = vsel %vm4084, %v5200, 0
        %v5212 = vsel %vm4084, %v5201, 0
        %5214 = vmatprep.subr.bf16.mxu0 %v5021
        %5215 = vmatpush1.bf16.msra.mxu0 %v5020
        %5216 = vmatprep.subr.bf16.mxu0 %v5023
        %5217 = vmatpush1.bf16.msra.mxu0 %v5022
        %5218 = vmatprep.subr.bf16.mxu0 0
        %5219 = vmatpush1.bf16.msra.mxu0 0
        %5220 = vmatprep.subr.bf16.mxu0 0
        %5221 = vmatpush1.bf16.msra.mxu0 0
        %5222 = vmatprep.subr.bf16.mxu0 0
        %5223 = vmatpush1.bf16.msra.mxu0 0
        %5224 = vmatprep.subr.bf16.mxu0 0
        %5225 = vmatpush1.bf16.msra.mxu0 0
        %5226 = vmatprep.subr.bf16.mxu0 0
        %5227 = vmatpush1.bf16.msra.mxu0 0
        %5228 = vmatprep.subr.bf16.mxu0 0
        %5229 = vmatpush1.bf16.msra.mxu0 0
        %5230 = vmatprep.subr.bf16.mxu0 0
        %5231 = vmatpush1.bf16.msra.mxu0 0
        %5232 = vmatprep.subr.bf16.mxu0 0
        %5233 = vmatpush1.bf16.msra.mxu0 0
        %5234 = vmatprep.subr.bf16.mxu0 0
        %5235 = vmatpush1.bf16.msra.mxu0 0
        %5236 = vmatprep.subr.bf16.mxu0 0
        %5237 = vmatpush1.bf16.msra.mxu0 0
        %5238 = vmatprep.subr.bf16.mxu0 0
        %5239 = vmatpush1.bf16.msra.mxu0 0
        %5240 = vmatprep.subr.bf16.mxu0 0
        %5241 = vmatpush1.bf16.msra.mxu0 0
        %5242 = vmatprep.subr.bf16.mxu0 0
        %5243 = vmatpush1.bf16.msra.mxu0 0
        %5244 = vmatprep.subr.bf16.mxu0 0
        %5245 = vmatpush1.bf16.msra.mxu0 0
        %5246 = vmatprep.mubr.bf16.mxu0 0
        %5247 = vmatmul.mubr.bf16.gmra.mrb[0].mxu0 %v5203
        %v5248 = vpop.f32.mrb[0].mxu0
        %v5249 = vadd.f32 %v5144, %v5248
        %v5250 = vpop.f32.mrb[0].mxu0
        %v5251 = vadd.f32 %v5146, %v5250
        %v5252 = vpop.f32.mrb[0].mxu0
        %v5253 = vadd.f32 %v5148, %v5252
        %v5254 = vpop.f32.mrb[0].mxu0
        %v5255 = vadd.f32 %v5150, %v5254
        %5256 = vmatprep.mubr.bf16.mxu0 0
        %5257 = vmatmul.mubr.bf16.gmra.mrb[0].mxu0 %v5206
        %v5258 = vpop.f32.mrb[0].mxu0
        %v5259 = vadd.f32 %v5154, %v5258
        %v5260 = vpop.f32.mrb[0].mxu0
        %v5261 = vadd.f32 %v5156, %v5260
        %v5262 = vpop.f32.mrb[0].mxu0
        %v5263 = vadd.f32 %v5158, %v5262
        %v5264 = vpop.f32.mrb[0].mxu0
        %v5265 = vadd.f32 %v5160, %v5264
        %5266 = vmatprep.mubr.bf16.mxu0 0
        %5267 = vmatmul.mubr.bf16.gmra.mrb[0].mxu0 %v5209
        %v5268 = vpop.f32.mrb[0].mxu0
        %v5269 = vadd.f32 %v5164, %v5268
        %v5270 = vpop.f32.mrb[0].mxu0
        %v5271 = vadd.f32 %v5166, %v5270
        %v5272 = vpop.f32.mrb[0].mxu0
        %v5273 = vadd.f32 %v5168, %v5272
        %v5274 = vpop.f32.mrb[0].mxu0
        %v5275 = vadd.f32 %v5170, %v5274
        %5276 = vmatprep.mubr.bf16.mxu0 0
        %5277 = vmatmul.mubr.bf16.gmra.mrb[0].mxu0 %v5212
        %v5278 = vpop.f32.mrb[0].mxu0
        %v5279 = vadd.f32 %v5174, %v5278
        %v5280 = vpop.f32.mrb[0].mxu0
        %v5281 = vadd.f32 %v5176, %v5280
        %v5282 = vpop.f32.mrb[0].mxu0
        %v5283 = vadd.f32 %v5178, %v5282
        %v5284 = vpop.f32.mrb[0].mxu0
        %v5285 = vadd.f32 %v5180, %v5284
        %5286 = vdwg.mxu0
        %v5287 = vpack.c.bf16 %v4982, %v4980
        %v5288 = vpack.c.bf16 %v4983, %v4981
        %v5289 = vpack.c.bf16 %v4986, %v4984
        %v5290 = vpack.c.bf16 %v4987, %v4985
        %s5291 = scalar_lea.vmem %s12, 64
        %v5292 = vld [vmem:[%s5291] sm:$0xf]
        %v5293 = vld [vmem:[%s5291 + $0x4] sm:$0xf]
        %v5294 = vld [vmem:[%s5291 + $0x8] sm:$0xf]
        %v5295 = vld [vmem:[%s5291 + $0xc] sm:$0xf]
        %v5296 = vld [vmem:[%s5291 + $0x10] sm:$0xf]
        %v5297 = vld [vmem:[%s5291 + $0x14] sm:$0xf]
        %v5298 = vld [vmem:[%s5291 + $0x18] sm:$0xf]
        %v5299 = vld [vmem:[%s5291 + $0x1c] sm:$0xf]
        %v5308 = vunpack.c.l.b16 %v5292
        %v5309 = vunpack.c.l.b16 %v5293
        %v5310 = vunpack.c.l.b16 %v5294
        %v5311 = vunpack.c.l.b16 %v5295
        %v5312 = vunpack.c.l.b16 %v5296
        %v5313 = vunpack.c.l.b16 %v5297
        %v5314 = vunpack.c.l.b16 %v5298
        %v5315 = vunpack.c.l.b16 %v5299
        %v5316 = vpack.c.b16 %v5309, %v5308
        %v5317 = vpack.c.b16 %v5311, %v5310
        %v5318 = vpack.c.b16 %v5313, %v5312
        %v5319 = vpack.c.b16 %v5315, %v5314
        %v5321 = vsel %vm4084, %v5316, 0
        %v5324 = vsel %vm4084, %v5317, 0
        %v5327 = vsel %vm4084, %v5318, 0
        %v5330 = vsel %vm4084, %v5319, 0
        %5332 = vmatprep.subr.bf16.mxu0 %v5288
        %5333 = vmatpush1.bf16.msra.mxu0 %v5287
        %5334 = vmatprep.subr.bf16.mxu0 %v5290
        %5335 = vmatpush1.bf16.msra.mxu0 %v5289
        %5336 = vmatprep.subr.bf16.mxu0 0
        %5337 = vmatpush1.bf16.msra.mxu0 0
        %5338 = vmatprep.subr.bf16.mxu0 0
        %5339 = vmatpush1.bf16.msra.mxu0 0
        %5340 = vmatprep.subr.bf16.mxu0 0
        %5341 = vmatpush1.bf16.msra.mxu0 0
        %5342 = vmatprep.subr.bf16.mxu0 0
        %5343 = vmatpush1.bf16.msra.mxu0 0
        %5344 = vmatprep.subr.bf16.mxu0 0
        %5345 = vmatpush1.bf16.msra.mxu0 0
        %5346 = vmatprep.subr.bf16.mxu0 0
        %5347 = vmatpush1.bf16.msra.mxu0 0
        %5348 = vmatprep.subr.bf16.mxu0 0
        %5349 = vmatpush1.bf16.msra.mxu0 0
        %5350 = vmatprep.subr.bf16.mxu0 0
        %5351 = vmatpush1.bf16.msra.mxu0 0
        %5352 = vmatprep.subr.bf16.mxu0 0
        %5353 = vmatpush1.bf16.msra.mxu0 0
        %5354 = vmatprep.subr.bf16.mxu0 0
        %5355 = vmatpush1.bf16.msra.mxu0 0
        %5356 = vmatprep.subr.bf16.mxu0 0
        %5357 = vmatpush1.bf16.msra.mxu0 0
        %5358 = vmatprep.subr.bf16.mxu0 0
        %5359 = vmatpush1.bf16.msra.mxu0 0
        %5360 = vmatprep.subr.bf16.mxu0 0
        %5361 = vmatpush1.bf16.msra.mxu0 0
        %5362 = vmatprep.subr.bf16.mxu0 0
        %5363 = vmatpush1.bf16.msra.mxu0 0
        %5364 = vmatprep.mubr.bf16.mxu0 0
        %5365 = vmatmul.mubr.bf16.gmra.mrb[0].mxu0 %v5321
        %v5366 = vpop.f32.mrb[0].mxu0
        %v5367 = vadd.f32 0.0, %v5366
        %v5368 = vpop.f32.mrb[0].mxu0
        %v5369 = vadd.f32 0.0, %v5368
        %v5370 = vpop.f32.mrb[0].mxu0
        %v5371 = vadd.f32 0.0, %v5370
        %v5372 = vpop.f32.mrb[0].mxu0
        %v5373 = vadd.f32 0.0, %v5372
        %5374 = vmatprep.mubr.bf16.mxu0 0
        %5375 = vmatmul.mubr.bf16.gmra.mrb[0].mxu0 %v5324
        %v5376 = vpop.f32.mrb[0].mxu0
        %v5377 = vadd.f32 0.0, %v5376
        %v5378 = vpop.f32.mrb[0].mxu0
        %v5379 = vadd.f32 0.0, %v5378
        %v5380 = vpop.f32.mrb[0].mxu0
        %v5381 = vadd.f32 0.0, %v5380
        %v5382 = vpop.f32.mrb[0].mxu0
        %v5383 = vadd.f32 0.0, %v5382
        %5384 = vmatprep.mubr.bf16.mxu0 0
        %5385 = vmatmul.mubr.bf16.gmra.mrb[0].mxu0 %v5327
        %v5386 = vpop.f32.mrb[0].mxu0
        %v5387 = vadd.f32 0.0, %v5386
        %v5388 = vpop.f32.mrb[0].mxu0
        %v5389 = vadd.f32 0.0, %v5388
        %v5390 = vpop.f32.mrb[0].mxu0
        %v5391 = vadd.f32 0.0, %v5390
        %v5392 = vpop.f32.mrb[0].mxu0
        %v5393 = vadd.f32 0.0, %v5392
        %5394 = vmatprep.mubr.bf16.mxu0 0
        %5395 = vmatmul.mubr.bf16.gmra.mrb[0].mxu0 %v5330
        %v5396 = vpop.f32.mrb[0].mxu0
        %v5397 = vadd.f32 0.0, %v5396
        %v5398 = vpop.f32.mrb[0].mxu0
        %v5399 = vadd.f32 0.0, %v5398
        %v5400 = vpop.f32.mrb[0].mxu0
        %v5401 = vadd.f32 0.0, %v5400
        %v5402 = vpop.f32.mrb[0].mxu0
        %v5403 = vadd.f32 0.0, %v5402
        %5404 = vdwg.mxu0
        %v5405 = vadd.f32 %v5249, %v5367
        %v5406 = vadd.f32 %v5251, %v5369
        %v5407 = vadd.f32 %v5253, %v5371
        %v5408 = vadd.f32 %v5255, %v5373
        %v5409 = vadd.f32 %v5259, %v5377
        %v5410 = vadd.f32 %v5261, %v5379
        %v5411 = vadd.f32 %v5263, %v5381
        %v5412 = vadd.f32 %v5265, %v5383
        %v5413 = vadd.f32 %v5269, %v5387
        %v5414 = vadd.f32 %v5271, %v5389
        %v5415 = vadd.f32 %v5273, %v5391
        %v5416 = vadd.f32 %v5275, %v5393
        %v5417 = vadd.f32 %v5279, %v5397
        %v5418 = vadd.f32 %v5281, %v5399
        %v5419 = vadd.f32 %v5283, %v5401
        %v5420 = vadd.f32 %v5285, %v5403
        %5421 = vrot.lane.b32.xlu0 %v4980, 127
        %v5422 = vpop.permute.xlu0 %5421
        %5423 = vrot.lane.b32.xlu0 %v4982, 127
        %v5424 = vpop.permute.xlu0 %5423
        %5425 = vrot.lane.b32.xlu0 %v4984, 127
        %v5426 = vpop.permute.xlu0 %5425
        %5427 = vrot.lane.b32.xlu0 %v4986, 127
        %v5428 = vpop.permute.xlu0 %5427
        %5429 = vrot.lane.b32.xlu0 %v4981, 127
        %v5430 = vpop.permute.xlu0 %5429
        %5431 = vrot.lane.b32.xlu0 %v4983, 127
        %v5432 = vpop.permute.xlu0 %5431
        %5433 = vrot.lane.b32.xlu0 %v4985, 127
        %v5434 = vpop.permute.xlu0 %5433
        %5435 = vrot.lane.b32.xlu0 %v4987, 127
        %v5436 = vpop.permute.xlu0 %5435
        %v5437 = vsel %vm1259, %v5422, %v5430
        %v5438 = vsel %vm1259, %v5424, %v5432
        %v5439 = vsel %vm1259, %v5426, %v5434
        %v5440 = vsel %vm1259, %v5428, %v5436
        %v5441 = vsel %vm1259, %v5430, %v5422
        %v5442 = vsel %vm1259, %v5432, %v5424
        %v5443 = vsel %vm1259, %v5434, %v5426
        %v5444 = vsel %vm1259, %v5436, %v5428
        %v5445 = vsel %vm1262, %v5437, 0.0
        %v5446 = vsel %vm1263, %v5441, 0.0
        %v5447 = vsel %vm1262, %v5438, 0.0
        %v5448 = vsel %vm1263, %v5442, 0.0
        %v5449 = vsel %vm1262, %v5439, 0.0
        %v5450 = vsel %vm1263, %v5443, 0.0
        %v5451 = vsel %vm1262, %v5440, 0.0
        %v5452 = vsel %vm1263, %v5444, 0.0
        %v5453 = vpack.c.bf16 %v5447, %v5445
        %v5454 = vpack.c.bf16 %v5448, %v5446
        %v5455 = vpack.c.bf16 %v5451, %v5449
        %v5456 = vpack.c.bf16 %v5452, %v5450
        %s5457 = scalar_lea.vmem %s12, 96
        %v5458 = vld [vmem:[%s5457] sm:$0xf]
        %v5459 = vld [vmem:[%s5457 + $0x4] sm:$0xf]
        %v5460 = vld [vmem:[%s5457 + $0x8] sm:$0xf]
        %v5461 = vld [vmem:[%s5457 + $0xc] sm:$0xf]
        %v5462 = vld [vmem:[%s5457 + $0x10] sm:$0xf]
        %v5463 = vld [vmem:[%s5457 + $0x14] sm:$0xf]
        %v5464 = vld [vmem:[%s5457 + $0x18] sm:$0xf]
        %v5465 = vld [vmem:[%s5457 + $0x1c] sm:$0xf]
        %v5474 = vunpack.c.l.b16 %v5458
        %v5475 = vunpack.c.l.b16 %v5459
        %v5476 = vunpack.c.l.b16 %v5460
        %v5477 = vunpack.c.l.b16 %v5461
        %v5478 = vunpack.c.l.b16 %v5462
        %v5479 = vunpack.c.l.b16 %v5463
        %v5480 = vunpack.c.l.b16 %v5464
        %v5481 = vunpack.c.l.b16 %v5465
        %v5482 = vpack.c.b16 %v5475, %v5474
        %v5483 = vpack.c.b16 %v5477, %v5476
        %v5484 = vpack.c.b16 %v5479, %v5478
        %v5485 = vpack.c.b16 %v5481, %v5480
        %v5487 = vsel %vm4084, %v5482, 0
        %v5490 = vsel %vm4084, %v5483, 0
        %v5493 = vsel %vm4084, %v5484, 0
        %v5496 = vsel %vm4084, %v5485, 0
        %5498 = vmatprep.subr.bf16.mxu0 %v5454
        %5499 = vmatpush1.bf16.msra.mxu0 %v5453
        %5500 = vmatprep.subr.bf16.mxu0 %v5456
        %5501 = vmatpush1.bf16.msra.mxu0 %v5455
        %5502 = vmatprep.subr.bf16.mxu0 0
        %5503 = vmatpush1.bf16.msra.mxu0 0
        %5504 = vmatprep.subr.bf16.mxu0 0
        %5505 = vmatpush1.bf16.msra.mxu0 0
        %5506 = vmatprep.subr.bf16.mxu0 0
        %5507 = vmatpush1.bf16.msra.mxu0 0
        %5508 = vmatprep.subr.bf16.mxu0 0
        %5509 = vmatpush1.bf16.msra.mxu0 0
        %5510 = vmatprep.subr.bf16.mxu0 0
        %5511 = vmatpush1.bf16.msra.mxu0 0
        %5512 = vmatprep.subr.bf16.mxu0 0
        %5513 = vmatpush1.bf16.msra.mxu0 0
        %5514 = vmatprep.subr.bf16.mxu0 0
        %5515 = vmatpush1.bf16.msra.mxu0 0
        %5516 = vmatprep.subr.bf16.mxu0 0
        %5517 = vmatpush1.bf16.msra.mxu0 0
        %5518 = vmatprep.subr.bf16.mxu0 0
        %5519 = vmatpush1.bf16.msra.mxu0 0
        %5520 = vmatprep.subr.bf16.mxu0 0
        %5521 = vmatpush1.bf16.msra.mxu0 0
        %5522 = vmatprep.subr.bf16.mxu0 0
        %5523 = vmatpush1.bf16.msra.mxu0 0
        %5524 = vmatprep.subr.bf16.mxu0 0
        %5525 = vmatpush1.bf16.msra.mxu0 0
        %5526 = vmatprep.subr.bf16.mxu0 0
        %5527 = vmatpush1.bf16.msra.mxu0 0
        %5528 = vmatprep.subr.bf16.mxu0 0
        %5529 = vmatpush1.bf16.msra.mxu0 0
        %5530 = vmatprep.mubr.bf16.mxu0 0
        %5531 = vmatmul.mubr.bf16.gmra.mrb[0].mxu0 %v5487
        %v5532 = vpop.f32.mrb[0].mxu0
        %v5533 = vadd.f32 0.0, %v5532
        %v5534 = vpop.f32.mrb[0].mxu0
        %v5535 = vadd.f32 0.0, %v5534
        %v5536 = vpop.f32.mrb[0].mxu0
        %v5537 = vadd.f32 0.0, %v5536
        %v5538 = vpop.f32.mrb[0].mxu0
        %v5539 = vadd.f32 0.0, %v5538
        %5540 = vmatprep.mubr.bf16.mxu0 0
        %5541 = vmatmul.mubr.bf16.gmra.mrb[0].mxu0 %v5490
        %v5542 = vpop.f32.mrb[0].mxu0
        %v5543 = vadd.f32 0.0, %v5542
        %v5544 = vpop.f32.mrb[0].mxu0
        %v5545 = vadd.f32 0.0, %v5544
        %v5546 = vpop.f32.mrb[0].mxu0
        %v5547 = vadd.f32 0.0, %v5546
        %v5548 = vpop.f32.mrb[0].mxu0
        %v5549 = vadd.f32 0.0, %v5548
        %5550 = vmatprep.mubr.bf16.mxu0 0
        %5551 = vmatmul.mubr.bf16.gmra.mrb[0].mxu0 %v5493
        %v5552 = vpop.f32.mrb[0].mxu0
        %v5553 = vadd.f32 0.0, %v5552
        %v5554 = vpop.f32.mrb[0].mxu0
        %v5555 = vadd.f32 0.0, %v5554
        %v5556 = vpop.f32.mrb[0].mxu0
        %v5557 = vadd.f32 0.0, %v5556
        %v5558 = vpop.f32.mrb[0].mxu0
        %v5559 = vadd.f32 0.0, %v5558
        %5560 = vmatprep.mubr.bf16.mxu0 0
        %5561 = vmatmul.mubr.bf16.gmra.mrb[0].mxu0 %v5496
        %v5562 = vpop.f32.mrb[0].mxu0
        %v5563 = vadd.f32 0.0, %v5562
        %v5564 = vpop.f32.mrb[0].mxu0
        %v5565 = vadd.f32 0.0, %v5564
        %v5566 = vpop.f32.mrb[0].mxu0
        %v5567 = vadd.f32 0.0, %v5566
        %v5568 = vpop.f32.mrb[0].mxu0
        %v5569 = vadd.f32 0.0, %v5568
        %5570 = vdwg.mxu0
        %v5571 = vadd.f32 %v5405, %v5533
        %v5572 = vadd.f32 %v5406, %v5535
        %v5573 = vadd.f32 %v5407, %v5537
        %v5574 = vadd.f32 %v5408, %v5539
        %v5575 = vadd.f32 %v5409, %v5543
        %v5576 = vadd.f32 %v5410, %v5545
        %v5577 = vadd.f32 %v5411, %v5547
        %v5578 = vadd.f32 %v5412, %v5549
        %v5579 = vadd.f32 %v5413, %v5553
        %v5580 = vadd.f32 %v5414, %v5555
        %v5581 = vadd.f32 %v5415, %v5557
        %v5582 = vadd.f32 %v5416, %v5559
        %v5583 = vadd.f32 %v5417, %v5563
        %v5584 = vadd.f32 %v5418, %v5565
        %v5585 = vadd.f32 %v5419, %v5567
        %v5586 = vadd.f32 %v5420, %v5569
        %5587 = vrot.lane.b32.xlu0 %v4980, 126
        %v5588 = vpop.permute.xlu0 %5587
        %5589 = vrot.lane.b32.xlu0 %v4982, 126
        %v5590 = vpop.permute.xlu0 %5589
        %5591 = vrot.lane.b32.xlu0 %v4984, 126
        %v5592 = vpop.permute.xlu0 %5591
        %5593 = vrot.lane.b32.xlu0 %v4986, 126
        %v5594 = vpop.permute.xlu0 %5593
        %5595 = vrot.lane.b32.xlu0 %v4981, 126
        %v5596 = vpop.permute.xlu0 %5595
        %5597 = vrot.lane.b32.xlu0 %v4983, 126
        %v5598 = vpop.permute.xlu0 %5597
        %5599 = vrot.lane.b32.xlu0 %v4985, 126
        %v5600 = vpop.permute.xlu0 %5599
        %5601 = vrot.lane.b32.xlu0 %v4987, 126
        %v5602 = vpop.permute.xlu0 %5601
        %v5603 = vsel %vm1504, %v5588, %v5596
        %v5604 = vsel %vm1504, %v5590, %v5598
        %v5605 = vsel %vm1504, %v5592, %v5600
        %v5606 = vsel %vm1504, %v5594, %v5602
        %v5607 = vsel %vm1504, %v5596, %v5588
        %v5608 = vsel %vm1504, %v5598, %v5590
        %v5609 = vsel %vm1504, %v5600, %v5592
        %v5610 = vsel %vm1504, %v5602, %v5594
        %v5611 = vsel %vm1507, %v5603, 0.0
        %v5612 = vsel %vm1508, %v5607, 0.0
        %v5613 = vsel %vm1507, %v5604, 0.0
        %v5614 = vsel %vm1508, %v5608, 0.0
        %v5615 = vsel %vm1507, %v5605, 0.0
        %v5616 = vsel %vm1508, %v5609, 0.0
        %v5617 = vsel %vm1507, %v5606, 0.0
        %v5618 = vsel %vm1508, %v5610, 0.0
        %v5619 = vpack.c.bf16 %v5613, %v5611
        %v5620 = vpack.c.bf16 %v5614, %v5612
        %v5621 = vpack.c.bf16 %v5617, %v5615
        %v5622 = vpack.c.bf16 %v5618, %v5616
        %s5623 = scalar_lea.vmem %s12, 128
        %v5624 = vld [vmem:[%s5623] sm:$0xf]
        %v5625 = vld [vmem:[%s5623 + $0x4] sm:$0xf]
        %v5626 = vld [vmem:[%s5623 + $0x8] sm:$0xf]
        %v5627 = vld [vmem:[%s5623 + $0xc] sm:$0xf]
        %v5628 = vld [vmem:[%s5623 + $0x10] sm:$0xf]
        %v5629 = vld [vmem:[%s5623 + $0x14] sm:$0xf]
        %v5630 = vld [vmem:[%s5623 + $0x18] sm:$0xf]
        %v5631 = vld [vmem:[%s5623 + $0x1c] sm:$0xf]
        %v5640 = vunpack.c.l.b16 %v5624
        %v5641 = vunpack.c.l.b16 %v5625
        %v5642 = vunpack.c.l.b16 %v5626
        %v5643 = vunpack.c.l.b16 %v5627
        %v5644 = vunpack.c.l.b16 %v5628
        %v5645 = vunpack.c.l.b16 %v5629
        %v5646 = vunpack.c.l.b16 %v5630
        %v5647 = vunpack.c.l.b16 %v5631
        %v5648 = vpack.c.b16 %v5641, %v5640
        %v5649 = vpack.c.b16 %v5643, %v5642
        %v5650 = vpack.c.b16 %v5645, %v5644
        %v5651 = vpack.c.b16 %v5647, %v5646
        %v5653 = vsel %vm4084, %v5648, 0
        %v5656 = vsel %vm4084, %v5649, 0
        %v5659 = vsel %vm4084, %v5650, 0
        %v5662 = vsel %vm4084, %v5651, 0
        %5664 = vmatprep.subr.bf16.mxu0 %v5620
        %5665 = vmatpush1.bf16.msra.mxu0 %v5619
        %5666 = vmatprep.subr.bf16.mxu0 %v5622
        %5667 = vmatpush1.bf16.msra.mxu0 %v5621
        %5668 = vmatprep.subr.bf16.mxu0 0
        %5669 = vmatpush1.bf16.msra.mxu0 0
        %5670 = vmatprep.subr.bf16.mxu0 0
        %5671 = vmatpush1.bf16.msra.mxu0 0
        %5672 = vmatprep.subr.bf16.mxu0 0
        %5673 = vmatpush1.bf16.msra.mxu0 0
        %5674 = vmatprep.subr.bf16.mxu0 0
        %5675 = vmatpush1.bf16.msra.mxu0 0
        %5676 = vmatprep.subr.bf16.mxu0 0
        %5677 = vmatpush1.bf16.msra.mxu0 0
        %5678 = vmatprep.subr.bf16.mxu0 0
        %5679 = vmatpush1.bf16.msra.mxu0 0
        %5680 = vmatprep.subr.bf16.mxu0 0
        %5681 = vmatpush1.bf16.msra.mxu0 0
        %5682 = vmatprep.subr.bf16.mxu0 0
        %5683 = vmatpush1.bf16.msra.mxu0 0
        %5684 = vmatprep.subr.bf16.mxu0 0
        %5685 = vmatpush1.bf16.msra.mxu0 0
        %5686 = vmatprep.subr.bf16.mxu0 0
        %5687 = vmatpush1.bf16.msra.mxu0 0
        %5688 = vmatprep.subr.bf16.mxu0 0
        %5689 = vmatpush1.bf16.msra.mxu0 0
        %5690 = vmatprep.subr.bf16.mxu0 0
        %5691 = vmatpush1.bf16.msra.mxu0 0
        %5692 = vmatprep.subr.bf16.mxu0 0
        %5693 = vmatpush1.bf16.msra.mxu0 0
        %5694 = vmatprep.subr.bf16.mxu0 0
        %5695 = vmatpush1.bf16.msra.mxu0 0
        %5696 = vmatprep.mubr.bf16.mxu0 0
        %5697 = vmatmul.mubr.bf16.gmra.mrb[0].mxu0 %v5653
        %v5698 = vpop.f32.mrb[0].mxu0
        %v5699 = vadd.f32 0.0, %v5698
        %v5700 = vpop.f32.mrb[0].mxu0
        %v5701 = vadd.f32 0.0, %v5700
        %v5702 = vpop.f32.mrb[0].mxu0
        %v5703 = vadd.f32 0.0, %v5702
        %v5704 = vpop.f32.mrb[0].mxu0
        %v5705 = vadd.f32 0.0, %v5704
        %5706 = vmatprep.mubr.bf16.mxu0 0
        %5707 = vmatmul.mubr.bf16.gmra.mrb[0].mxu0 %v5656
        %v5708 = vpop.f32.mrb[0].mxu0
        %v5709 = vadd.f32 0.0, %v5708
        %v5710 = vpop.f32.mrb[0].mxu0
        %v5711 = vadd.f32 0.0, %v5710
        %v5712 = vpop.f32.mrb[0].mxu0
        %v5713 = vadd.f32 0.0, %v5712
        %v5714 = vpop.f32.mrb[0].mxu0
        %v5715 = vadd.f32 0.0, %v5714
        %5716 = vmatprep.mubr.bf16.mxu0 0
        %5717 = vmatmul.mubr.bf16.gmra.mrb[0].mxu0 %v5659
        %v5718 = vpop.f32.mrb[0].mxu0
        %v5719 = vadd.f32 0.0, %v5718
        %v5720 = vpop.f32.mrb[0].mxu0
        %v5721 = vadd.f32 0.0, %v5720
        %v5722 = vpop.f32.mrb[0].mxu0
        %v5723 = vadd.f32 0.0, %v5722
        %v5724 = vpop.f32.mrb[0].mxu0
        %v5725 = vadd.f32 0.0, %v5724
        %5726 = vmatprep.mubr.bf16.mxu0 0
        %5727 = vmatmul.mubr.bf16.gmra.mrb[0].mxu0 %v5662
        %v5728 = vpop.f32.mrb[0].mxu0
        %v5729 = vadd.f32 0.0, %v5728
        %v5730 = vpop.f32.mrb[0].mxu0
        %v5731 = vadd.f32 0.0, %v5730
        %v5732 = vpop.f32.mrb[0].mxu0
        %v5733 = vadd.f32 0.0, %v5732
        %v5734 = vpop.f32.mrb[0].mxu0
        %v5735 = vadd.f32 0.0, %v5734
        %5736 = vdwg.mxu0
        %v5737 = vadd.f32 %v5571, %v5699
        %v5738 = vadd.f32 %v5572, %v5701
        %v5739 = vadd.f32 %v5573, %v5703
        %v5740 = vadd.f32 %v5574, %v5705
        %v5741 = vadd.f32 %v5575, %v5709
        %v5742 = vadd.f32 %v5576, %v5711
        %v5743 = vadd.f32 %v5577, %v5713
        %v5744 = vadd.f32 %v5578, %v5715
        %v5745 = vadd.f32 %v5579, %v5719
        %v5746 = vadd.f32 %v5580, %v5721
        %v5747 = vadd.f32 %v5581, %v5723
        %v5748 = vadd.f32 %v5582, %v5725
        %v5749 = vadd.f32 %v5583, %v5729
        %v5750 = vadd.f32 %v5584, %v5731
        %v5751 = vadd.f32 %v5585, %v5733
        %v5752 = vadd.f32 %v5586, %v5735
        %v5753 = vld [vmem:[%s13] sm:$0xff]
        %v5754 = vld [vmem:[%s13 + $0x8] sm:$0xff]
        %v5755 = vld [vmem:[%s13 + $0x10] sm:$0xff]
        %v5756 = vld [vmem:[%s13 + $0x18] sm:$0xff]
        %v5757 = vld [vmem:[%s13 + $0x20] sm:$0xff]
        %v5758 = vld [vmem:[%s13 + $0x28] sm:$0xff]
        %v5759 = vld [vmem:[%s13 + $0x30] sm:$0xff]
        %v5760 = vld [vmem:[%s13 + $0x38] sm:$0xff]
        %5762 = vset.pattern.permute.xlu0 0
        %5763 = vperm.xlu0 %5762, %v5753
        %v5764 = vpop.permute.xlu0 %5763
        %5767 = vset.pattern.permute.xlu0 0
        %5768 = vperm.xlu0 %5767, %v5754
        %v5769 = vpop.permute.xlu0 %5768
        %5772 = vset.pattern.permute.xlu0 0
        %5773 = vperm.xlu0 %5772, %v5755
        %v5774 = vpop.permute.xlu0 %5773
        %5777 = vset.pattern.permute.xlu0 0
        %5778 = vperm.xlu0 %5777, %v5756
        %v5779 = vpop.permute.xlu0 %5778
        %5782 = vset.pattern.permute.xlu0 0
        %5783 = vperm.xlu0 %5782, %v5757
        %v5784 = vpop.permute.xlu0 %5783
        %5787 = vset.pattern.permute.xlu0 0
        %5788 = vperm.xlu0 %5787, %v5758
        %v5789 = vpop.permute.xlu0 %5788
        %5792 = vset.pattern.permute.xlu0 0
        %5793 = vperm.xlu0 %5792, %v5759
        %v5794 = vpop.permute.xlu0 %5793
        %5797 = vset.pattern.permute.xlu0 0
        %5798 = vperm.xlu0 %5797, %v5760
        %v5799 = vpop.permute.xlu0 %5798
        %v5801 = vadd.f32 %v5737, %v5764
        %v5802 = vadd.f32 %v5738, %v5764
        %v5803 = vadd.f32 %v5739, %v5769
        %v5804 = vadd.f32 %v5740, %v5769
        %v5805 = vadd.f32 %v5741, %v5774
        %v5806 = vadd.f32 %v5742, %v5774
        %v5807 = vadd.f32 %v5743, %v5779
        %v5808 = vadd.f32 %v5744, %v5779
        %v5809 = vadd.f32 %v5745, %v5784
        %v5810 = vadd.f32 %v5746, %v5784
        %v5811 = vadd.f32 %v5747, %v5789
        %v5812 = vadd.f32 %v5748, %v5789
        %v5813 = vadd.f32 %v5749, %v5794
        %v5814 = vadd.f32 %v5750, %v5794
        %v5815 = vadd.f32 %v5751, %v5799
        %v5816 = vadd.f32 %v5752, %v5799
        %s5817 = sld [smem:[#allocation2 + $0x5]]
        %vm5818 = vcmp.gt.f32.partialorder %v5801, 0.0
        %vm5819 = vcmp.gt.f32.partialorder %v5802, 0.0
        %vm5820 = vcmp.gt.f32.partialorder %v5803, 0.0
        %vm5821 = vcmp.gt.f32.partialorder %v5804, 0.0
        %vm5822 = vcmp.gt.f32.partialorder %v5805, 0.0
        %vm5823 = vcmp.gt.f32.partialorder %v5806, 0.0
        %vm5824 = vcmp.gt.f32.partialorder %v5807, 0.0
        %vm5825 = vcmp.gt.f32.partialorder %v5808, 0.0
        %vm5826 = vcmp.gt.f32.partialorder %v5809, 0.0
        %vm5827 = vcmp.gt.f32.partialorder %v5810, 0.0
        %vm5828 = vcmp.gt.f32.partialorder %v5811, 0.0
        %vm5829 = vcmp.gt.f32.partialorder %v5812, 0.0
        %vm5830 = vcmp.gt.f32.partialorder %v5813, 0.0
        %vm5831 = vcmp.gt.f32.partialorder %v5814, 0.0
        %vm5832 = vcmp.gt.f32.partialorder %v5815, 0.0
        %vm5833 = vcmp.gt.f32.partialorder %v5816, 0.0
        %v5834 = vstv %s5817
        %v5835 = vmul.f32 %v5834, %v5801
        %v5836 = vmul.f32 %v5834, %v5802
        %v5837 = vmul.f32 %v5834, %v5803
        %v5838 = vmul.f32 %v5834, %v5804
        %v5839 = vmul.f32 %v5834, %v5805
        %v5840 = vmul.f32 %v5834, %v5806
        %v5841 = vmul.f32 %v5834, %v5807
        %v5842 = vmul.f32 %v5834, %v5808
        %v5843 = vmul.f32 %v5834, %v5809
        %v5844 = vmul.f32 %v5834, %v5810
        %v5845 = vmul.f32 %v5834, %v5811
        %v5846 = vmul.f32 %v5834, %v5812
        %v5847 = vmul.f32 %v5834, %v5813
        %v5848 = vmul.f32 %v5834, %v5814
        %v5849 = vmul.f32 %v5834, %v5815
        %v5850 = vmul.f32 %v5834, %v5816
        %v5851 = vsel %vm5818, %v5801, %v5835
        %v5852 = vsel %vm5819, %v5802, %v5836
        %v5853 = vsel %vm5820, %v5803, %v5837
        %v5854 = vsel %vm5821, %v5804, %v5838
        %v5855 = vsel %vm5822, %v5805, %v5839
        %v5856 = vsel %vm5823, %v5806, %v5840
        %v5857 = vsel %vm5824, %v5807, %v5841
        %v5858 = vsel %vm5825, %v5808, %v5842
        %v5859 = vsel %vm5826, %v5809, %v5843
        %v5860 = vsel %vm5827, %v5810, %v5844
        %v5861 = vsel %vm5828, %v5811, %v5845
        %v5862 = vsel %vm5829, %v5812, %v5846
        %v5863 = vsel %vm5830, %v5813, %v5847
        %v5864 = vsel %vm5831, %v5814, %v5848
        %v5865 = vsel %vm5832, %v5815, %v5849
        %v5866 = vsel %vm5833, %v5816, %v5850
        %5867 = vrot.lane.b32.xlu0 %v5851, 2
        %v5868 = vpop.permute.xlu0 %5867
        %5869 = vrot.lane.b32.xlu0 %v5853, 2
        %v5870 = vpop.permute.xlu0 %5869
        %5871 = vrot.lane.b32.xlu0 %v5855, 2
        %v5872 = vpop.permute.xlu0 %5871
        %5873 = vrot.lane.b32.xlu0 %v5857, 2
        %v5874 = vpop.permute.xlu0 %5873
        %5875 = vrot.lane.b32.xlu0 %v5859, 2
        %v5876 = vpop.permute.xlu0 %5875
        %5877 = vrot.lane.b32.xlu0 %v5861, 2
        %v5878 = vpop.permute.xlu0 %5877
        %5879 = vrot.lane.b32.xlu0 %v5863, 2
        %v5880 = vpop.permute.xlu0 %5879
        %5881 = vrot.lane.b32.xlu0 %v5865, 2
        %v5882 = vpop.permute.xlu0 %5881
        %5883 = vrot.lane.b32.xlu0 %v5852, 2
        %v5884 = vpop.permute.xlu0 %5883
        %5885 = vrot.lane.b32.xlu0 %v5854, 2
        %v5886 = vpop.permute.xlu0 %5885
        %5887 = vrot.lane.b32.xlu0 %v5856, 2
        %v5888 = vpop.permute.xlu0 %5887
        %5889 = vrot.lane.b32.xlu0 %v5858, 2
        %v5890 = vpop.permute.xlu0 %5889
        %5891 = vrot.lane.b32.xlu0 %v5860, 2
        %v5892 = vpop.permute.xlu0 %5891
        %5893 = vrot.lane.b32.xlu0 %v5862, 2
        %v5894 = vpop.permute.xlu0 %5893
        %5895 = vrot.lane.b32.xlu0 %v5864, 2
        %v5896 = vpop.permute.xlu0 %5895
        %5897 = vrot.lane.b32.xlu0 %v5866, 2
        %v5898 = vpop.permute.xlu0 %5897
        %v5899 = vsel %vm597, %v5868, %v5884
        %v5900 = vsel %vm597, %v5870, %v5886
        %v5901 = vsel %vm597, %v5872, %v5888
        %v5902 = vsel %vm597, %v5874, %v5890
        %v5903 = vsel %vm597, %v5876, %v5892
        %v5904 = vsel %vm597, %v5878, %v5894
        %v5905 = vsel %vm597, %v5880, %v5896
        %v5906 = vsel %vm597, %v5882, %v5898
        %v5907 = vsel %vm597, %v5884, %v5868
        %v5908 = vsel %vm597, %v5886, %v5870
        %v5909 = vsel %vm597, %v5888, %v5872
        %v5910 = vsel %vm597, %v5890, %v5874
        %v5911 = vsel %vm597, %v5892, %v5876
        %v5912 = vsel %vm597, %v5894, %v5878
        %v5913 = vsel %vm597, %v5896, %v5880
        %v5914 = vsel %vm597, %v5898, %v5882
        %v5915 = vsel %vm601, %v5907, 0.0
        %v5916 = vsel %vm602, %v5899, 0.0
        %v5917 = vsel %vm601, %v5908, 0.0
        %v5918 = vsel %vm602, %v5900, 0.0
        %v5919 = vsel %vm601, %v5909, 0.0
        %v5920 = vsel %vm602, %v5901, 0.0
        %v5921 = vsel %vm601, %v5910, 0.0
        %v5922 = vsel %vm602, %v5902, 0.0
        %v5923 = vsel %vm601, %v5911, 0.0
        %v5924 = vsel %vm602, %v5903, 0.0
        %v5925 = vsel %vm601, %v5912, 0.0
        %v5926 = vsel %vm602, %v5904, 0.0
        %v5927 = vsel %vm601, %v5913, 0.0
        %v5928 = vsel %vm602, %v5905, 0.0
        %v5929 = vsel %vm601, %v5914, 0.0
        %v5930 = vsel %vm602, %v5906, 0.0
        %v5931 = vpack.c.bf16 %v5917, %v5915
        %v5932 = vpack.c.bf16 %v5918, %v5916
        %v5933 = vpack.c.bf16 %v5921, %v5919
        %v5934 = vpack.c.bf16 %v5922, %v5920
        %v5935 = vpack.c.bf16 %v5925, %v5923
        %v5936 = vpack.c.bf16 %v5926, %v5924
        %v5937 = vpack.c.bf16 %v5929, %v5927
        %v5938 = vpack.c.bf16 %v5930, %v5928
        %v5939 = vld [vmem:[%s14] sm:$0xf]
        %v5940 = vld [vmem:[%s14 + $0x4] sm:$0xf]
        %v5941 = vld [vmem:[%s14 + $0x8] sm:$0xf]
        %v5942 = vld [vmem:[%s14 + $0xc] sm:$0xf]
        %v5943 = vld [vmem:[%s14 + $0x10] sm:$0xf]
        %v5944 = vld [vmem:[%s14 + $0x14] sm:$0xf]
        %v5945 = vld [vmem:[%s14 + $0x18] sm:$0xf]
        %v5946 = vld [vmem:[%s14 + $0x1c] sm:$0xf]
        %v5947 = vld [vmem:[%s14 + $0x20] sm:$0xf]
        %v5948 = vld [vmem:[%s14 + $0x24] sm:$0xf]
        %v5949 = vld [vmem:[%s14 + $0x28] sm:$0xf]
        %v5950 = vld [vmem:[%s14 + $0x2c] sm:$0xf]
        %v5951 = vld [vmem:[%s14 + $0x30] sm:$0xf]
        %v5952 = vld [vmem:[%s14 + $0x34] sm:$0xf]
        %v5953 = vld [vmem:[%s14 + $0x38] sm:$0xf]
        %v5954 = vld [vmem:[%s14 + $0x3c] sm:$0xf]
        %5955 = vrot.lane.b32.xlu0 %v5851, 1
        %v5956 = vpop.permute.xlu0 %5955
        %5957 = vrot.lane.b32.xlu0 %v5853, 1
        %v5958 = vpop.permute.xlu0 %5957
        %5959 = vrot.lane.b32.xlu0 %v5855, 1
        %v5960 = vpop.permute.xlu0 %5959
        %5961 = vrot.lane.b32.xlu0 %v5857, 1
        %v5962 = vpop.permute.xlu0 %5961
        %5963 = vrot.lane.b32.xlu0 %v5859, 1
        %v5964 = vpop.permute.xlu0 %5963
        %5965 = vrot.lane.b32.xlu0 %v5861, 1
        %v5966 = vpop.permute.xlu0 %5965
        %5967 = vrot.lane.b32.xlu0 %v5863, 1
        %v5968 = vpop.permute.xlu0 %5967
        %5969 = vrot.lane.b32.xlu0 %v5865, 1
        %v5970 = vpop.permute.xlu0 %5969
        %5971 = vrot.lane.b32.xlu0 %v5852, 1
        %v5972 = vpop.permute.xlu0 %5971
        %5973 = vrot.lane.b32.xlu0 %v5854, 1
        %v5974 = vpop.permute.xlu0 %5973
        %5975 = vrot.lane.b32.xlu0 %v5856, 1
        %v5976 = vpop.permute.xlu0 %5975
        %5977 = vrot.lane.b32.xlu0 %v5858, 1
        %v5978 = vpop.permute.xlu0 %5977
        %5979 = vrot.lane.b32.xlu0 %v5860, 1
        %v5980 = vpop.permute.xlu0 %5979
        %5981 = vrot.lane.b32.xlu0 %v5862, 1
        %v5982 = vpop.permute.xlu0 %5981
        %5983 = vrot.lane.b32.xlu0 %v5864, 1
        %v5984 = vpop.permute.xlu0 %5983
        %5985 = vrot.lane.b32.xlu0 %v5866, 1
        %v5986 = vpop.permute.xlu0 %5985
        %v5987 = vsel %vm627, %v5956, %v5972
        %v5988 = vsel %vm627, %v5958, %v5974
        %v5989 = vsel %vm627, %v5960, %v5976
        %v5990 = vsel %vm627, %v5962, %v5978
        %v5991 = vsel %vm627, %v5964, %v5980
        %v5992 = vsel %vm627, %v5966, %v5982
        %v5993 = vsel %vm627, %v5968, %v5984
        %v5994 = vsel %vm627, %v5970, %v5986
        %v5995 = vsel %vm627, %v5972, %v5956
        %v5996 = vsel %vm627, %v5974, %v5958
        %v5997 = vsel %vm627, %v5976, %v5960
        %v5998 = vsel %vm627, %v5978, %v5962
        %v5999 = vsel %vm627, %v5980, %v5964
        %v6000 = vsel %vm627, %v5982, %v5966
        %v6001 = vsel %vm627, %v5984, %v5968
        %v6002 = vsel %vm627, %v5986, %v5970
        %v6003 = vsel %vm630, %v5995, 0.0
        %v6004 = vsel %vm631, %v5987, 0.0
        %v6005 = vsel %vm630, %v5996, 0.0
        %v6006 = vsel %vm631, %v5988, 0.0
        %v6007 = vsel %vm630, %v5997, 0.0
        %v6008 = vsel %vm631, %v5989, 0.0
        %v6009 = vsel %vm630, %v5998, 0.0
        %v6010 = vsel %vm631, %v5990, 0.0
        %v6011 = vsel %vm630, %v5999, 0.0
        %v6012 = vsel %vm631, %v5991, 0.0
        %v6013 = vsel %vm630, %v6000, 0.0
        %v6014 = vsel %vm631, %v5992, 0.0
        %v6015 = vsel %vm630, %v6001, 0.0
        %v6016 = vsel %vm631, %v5993, 0.0
        %v6017 = vsel %vm630, %v6002, 0.0
        %v6018 = vsel %vm631, %v5994, 0.0
        %v6019 = vpack.c.bf16 %v6005, %v6003
        %v6020 = vpack.c.bf16 %v6006, %v6004
        %v6021 = vpack.c.bf16 %v6009, %v6007
        %v6022 = vpack.c.bf16 %v6010, %v6008
        %v6023 = vpack.c.bf16 %v6013, %v6011
        %v6024 = vpack.c.bf16 %v6014, %v6012
        %v6025 = vpack.c.bf16 %v6017, %v6015
        %v6026 = vpack.c.bf16 %v6018, %v6016
        %s6027 = scalar_lea.vmem %s14, 64
        %v6028 = vld [vmem:[%s6027] sm:$0xf]
        %v6029 = vld [vmem:[%s6027 + $0x4] sm:$0xf]
        %v6030 = vld [vmem:[%s6027 + $0x8] sm:$0xf]
        %v6031 = vld [vmem:[%s6027 + $0xc] sm:$0xf]
        %v6032 = vld [vmem:[%s6027 + $0x10] sm:$0xf]
        %v6033 = vld [vmem:[%s6027 + $0x14] sm:$0xf]
        %v6034 = vld [vmem:[%s6027 + $0x18] sm:$0xf]
        %v6035 = vld [vmem:[%s6027 + $0x1c] sm:$0xf]
        %v6036 = vld [vmem:[%s6027 + $0x20] sm:$0xf]
        %v6037 = vld [vmem:[%s6027 + $0x24] sm:$0xf]
        %v6038 = vld [vmem:[%s6027 + $0x28] sm:$0xf]
        %v6039 = vld [vmem:[%s6027 + $0x2c] sm:$0xf]
        %v6040 = vld [vmem:[%s6027 + $0x30] sm:$0xf]
        %v6041 = vld [vmem:[%s6027 + $0x34] sm:$0xf]
        %v6042 = vld [vmem:[%s6027 + $0x38] sm:$0xf]
        %v6043 = vld [vmem:[%s6027 + $0x3c] sm:$0xf]
        %v6060 = vunpack.c.l.b16 %v6028
        %v6061 = vunpack.c.l.b16 %v6029
        %v6062 = vunpack.c.l.b16 %v6030
        %v6063 = vunpack.c.l.b16 %v6031
        %v6064 = vunpack.c.l.b16 %v6032
        %v6065 = vunpack.c.l.b16 %v6033
        %v6066 = vunpack.c.l.b16 %v6034
        %v6067 = vunpack.c.l.b16 %v6035
        %v6068 = vunpack.c.l.b16 %v6036
        %v6069 = vunpack.c.l.b16 %v6037
        %v6070 = vunpack.c.l.b16 %v6038
        %v6071 = vunpack.c.l.b16 %v6039
        %v6072 = vunpack.c.l.b16 %v6040
        %v6073 = vunpack.c.l.b16 %v6041
        %v6074 = vunpack.c.l.b16 %v6042
        %v6075 = vunpack.c.l.b16 %v6043
        %v6076 = vpack.c.b16 %v6061, %v6060
        %v6077 = vpack.c.b16 %v6063, %v6062
        %v6078 = vpack.c.b16 %v6065, %v6064
        %v6079 = vpack.c.b16 %v6067, %v6066
        %v6080 = vpack.c.b16 %v6069, %v6068
        %v6081 = vpack.c.b16 %v6071, %v6070
        %v6082 = vpack.c.b16 %v6073, %v6072
        %v6083 = vpack.c.b16 %v6075, %v6074
        %v6085 = vsel %vm3417, %v6076, 0
        %v6088 = vsel %vm3417, %v6077, 0
        %v6091 = vsel %vm3417, %v6078, 0
        %v6094 = vsel %vm3417, %v6079, 0
        %v6097 = vsel %vm3417, %v6080, 0
        %v6100 = vsel %vm3417, %v6081, 0
        %v6103 = vsel %vm3417, %v6082, 0
        %v6106 = vsel %vm3417, %v6083, 0
        %6108 = vmatprep.subr.bf16.mxu0 %v6020
        %6109 = vmatpush1.bf16.msra.mxu0 %v6019
        %6110 = vmatprep.subr.bf16.mxu0 %v6022
        %6111 = vmatpush1.bf16.msra.mxu0 %v6021
        %6112 = vmatprep.subr.bf16.mxu0 %v6024
        %6113 = vmatpush1.bf16.msra.mxu0 %v6023
        %6114 = vmatprep.subr.bf16.mxu0 %v6026
        %6115 = vmatpush1.bf16.msra.mxu0 %v6025
        %6116 = vmatprep.subr.bf16.mxu0 0
        %6117 = vmatpush1.bf16.msra.mxu0 0
        %6118 = vmatprep.subr.bf16.mxu0 0
        %6119 = vmatpush1.bf16.msra.mxu0 0
        %6120 = vmatprep.subr.bf16.mxu0 0
        %6121 = vmatpush1.bf16.msra.mxu0 0
        %6122 = vmatprep.subr.bf16.mxu0 0
        %6123 = vmatpush1.bf16.msra.mxu0 0
        %6124 = vmatprep.subr.bf16.mxu0 0
        %6125 = vmatpush1.bf16.msra.mxu0 0
        %6126 = vmatprep.subr.bf16.mxu0 0
        %6127 = vmatpush1.bf16.msra.mxu0 0
        %6128 = vmatprep.subr.bf16.mxu0 0
        %6129 = vmatpush1.bf16.msra.mxu0 0
        %6130 = vmatprep.subr.bf16.mxu0 0
        %6131 = vmatpush1.bf16.msra.mxu0 0
        %6132 = vmatprep.subr.bf16.mxu0 0
        %6133 = vmatpush1.bf16.msra.mxu0 0
        %6134 = vmatprep.subr.bf16.mxu0 0
        %6135 = vmatpush1.bf16.msra.mxu0 0
        %6136 = vmatprep.subr.bf16.mxu0 0
        %6137 = vmatpush1.bf16.msra.mxu0 0
        %6138 = vmatprep.subr.bf16.mxu0 0
        %6139 = vmatpush1.bf16.msra.mxu0 0
        %6140 = vmatprep.mubr.bf16.mxu0 0
        %6141 = vmatmul.mubr.bf16.gmra.mrb[0].mxu0 %v6085
        %v6142 = vpop.f32.mrb[0].mxu0
        %v6143 = vadd.f32 0.0, %v6142
        %v6144 = vpop.f32.mrb[0].mxu0
        %v6145 = vadd.f32 0.0, %v6144
        %v6146 = vpop.f32.mrb[0].mxu0
        %v6147 = vadd.f32 0.0, %v6146
        %v6148 = vpop.f32.mrb[0].mxu0
        %v6149 = vadd.f32 0.0, %v6148
        %6150 = vmatprep.mubr.bf16.mxu0 0
        %6151 = vmatmul.mubr.bf16.gmra.mrb[0].mxu0 %v6088
        %v6152 = vpop.f32.mrb[0].mxu0
        %v6153 = vadd.f32 0.0, %v6152
        %v6154 = vpop.f32.mrb[0].mxu0
        %v6155 = vadd.f32 0.0, %v6154
        %v6156 = vpop.f32.mrb[0].mxu0
        %v6157 = vadd.f32 0.0, %v6156
        %v6158 = vpop.f32.mrb[0].mxu0
        %v6159 = vadd.f32 0.0, %v6158
        %6160 = vmatprep.mubr.bf16.mxu0 0
        %6161 = vmatmul.mubr.bf16.gmra.mrb[0].mxu0 %v6091
        %v6162 = vpop.f32.mrb[0].mxu0
        %v6163 = vadd.f32 0.0, %v6162
        %v6164 = vpop.f32.mrb[0].mxu0
        %v6165 = vadd.f32 0.0, %v6164
        %v6166 = vpop.f32.mrb[0].mxu0
        %v6167 = vadd.f32 0.0, %v6166
        %v6168 = vpop.f32.mrb[0].mxu0
        %v6169 = vadd.f32 0.0, %v6168
        %6170 = vmatprep.mubr.bf16.mxu0 0
        %6171 = vmatmul.mubr.bf16.gmra.mrb[0].mxu0 %v6094
        %v6172 = vpop.f32.mrb[0].mxu0
        %v6173 = vadd.f32 0.0, %v6172
        %v6174 = vpop.f32.mrb[0].mxu0
        %v6175 = vadd.f32 0.0, %v6174
        %v6176 = vpop.f32.mrb[0].mxu0
        %v6177 = vadd.f32 0.0, %v6176
        %v6178 = vpop.f32.mrb[0].mxu0
        %v6179 = vadd.f32 0.0, %v6178
        %6180 = vmatprep.mubr.bf16.mxu0 0
        %6181 = vmatmul.mubr.bf16.gmra.mrb[0].mxu0 %v6097
        %v6182 = vpop.f32.mrb[0].mxu0
        %v6183 = vadd.f32 0.0, %v6182
        %v6184 = vpop.f32.mrb[0].mxu0
        %v6185 = vadd.f32 0.0, %v6184
        %v6186 = vpop.f32.mrb[0].mxu0
        %v6187 = vadd.f32 0.0, %v6186
        %v6188 = vpop.f32.mrb[0].mxu0
        %v6189 = vadd.f32 0.0, %v6188
        %6190 = vmatprep.mubr.bf16.mxu0 0
        %6191 = vmatmul.mubr.bf16.gmra.mrb[0].mxu0 %v6100
        %v6192 = vpop.f32.mrb[0].mxu0
        %v6193 = vadd.f32 0.0, %v6192
        %v6194 = vpop.f32.mrb[0].mxu0
        %v6195 = vadd.f32 0.0, %v6194
        %v6196 = vpop.f32.mrb[0].mxu0
        %v6197 = vadd.f32 0.0, %v6196
        %v6198 = vpop.f32.mrb[0].mxu0
        %v6199 = vadd.f32 0.0, %v6198
        %6200 = vmatprep.mubr.bf16.mxu0 0
        %6201 = vmatmul.mubr.bf16.gmra.mrb[0].mxu0 %v6103
        %v6202 = vpop.f32.mrb[0].mxu0
        %v6203 = vadd.f32 0.0, %v6202
        %v6204 = vpop.f32.mrb[0].mxu0
        %v6205 = vadd.f32 0.0, %v6204
        %v6206 = vpop.f32.mrb[0].mxu0
        %v6207 = vadd.f32 0.0, %v6206
        %v6208 = vpop.f32.mrb[0].mxu0
        %v6209 = vadd.f32 0.0, %v6208
        %6210 = vmatprep.mubr.bf16.mxu0 0
        %6211 = vmatmul.mubr.bf16.gmra.mrb[0].mxu0 %v6106
        %v6212 = vpop.f32.mrb[0].mxu0
        %v6213 = vadd.f32 0.0, %v6212
        %v6214 = vpop.f32.mrb[0].mxu0
        %v6215 = vadd.f32 0.0, %v6214
        %v6216 = vpop.f32.mrb[0].mxu0
        %v6217 = vadd.f32 0.0, %v6216
        %v6218 = vpop.f32.mrb[0].mxu0
        %v6219 = vadd.f32 0.0, %v6218
        %6220 = vdwg.mxu0
        %v6237 = vunpack.c.l.b16 %v5939
        %v6238 = vunpack.c.l.b16 %v5940
        %v6239 = vunpack.c.l.b16 %v5941
        %v6240 = vunpack.c.l.b16 %v5942
        %v6241 = vunpack.c.l.b16 %v5943
        %v6242 = vunpack.c.l.b16 %v5944
        %v6243 = vunpack.c.l.b16 %v5945
        %v6244 = vunpack.c.l.b16 %v5946
        %v6245 = vunpack.c.l.b16 %v5947
        %v6246 = vunpack.c.l.b16 %v5948
        %v6247 = vunpack.c.l.b16 %v5949
        %v6248 = vunpack.c.l.b16 %v5950
        %v6249 = vunpack.c.l.b16 %v5951
        %v6250 = vunpack.c.l.b16 %v5952
        %v6251 = vunpack.c.l.b16 %v5953
        %v6252 = vunpack.c.l.b16 %v5954
        %v6253 = vpack.c.b16 %v6238, %v6237
        %v6254 = vpack.c.b16 %v6240, %v6239
        %v6255 = vpack.c.b16 %v6242, %v6241
        %v6256 = vpack.c.b16 %v6244, %v6243
        %v6257 = vpack.c.b16 %v6246, %v6245
        %v6258 = vpack.c.b16 %v6248, %v6247
        %v6259 = vpack.c.b16 %v6250, %v6249
        %v6260 = vpack.c.b16 %v6252, %v6251
        %v6262 = vsel %vm3417, %v6253, 0
        %v6265 = vsel %vm3417, %v6254, 0
        %v6268 = vsel %vm3417, %v6255, 0
        %v6271 = vsel %vm3417, %v6256, 0
        %v6274 = vsel %vm3417, %v6257, 0
        %v6277 = vsel %vm3417, %v6258, 0
        %v6280 = vsel %vm3417, %v6259, 0
        %v6283 = vsel %vm3417, %v6260, 0
        %6285 = vmatprep.subr.bf16.mxu0 %v5932
        %6286 = vmatpush1.bf16.msra.mxu0 %v5931
        %6287 = vmatprep.subr.bf16.mxu0 %v5934
        %6288 = vmatpush1.bf16.msra.mxu0 %v5933
        %6289 = vmatprep.subr.bf16.mxu0 %v5936
        %6290 = vmatpush1.bf16.msra.mxu0 %v5935
        %6291 = vmatprep.subr.bf16.mxu0 %v5938
        %6292 = vmatpush1.bf16.msra.mxu0 %v5937
        %6293 = vmatprep.subr.bf16.mxu0 0
        %6294 = vmatpush1.bf16.msra.mxu0 0
        %6295 = vmatprep.subr.bf16.mxu0 0
        %6296 = vmatpush1.bf16.msra.mxu0 0
        %6297 = vmatprep.subr.bf16.mxu0 0
        %6298 = vmatpush1.bf16.msra.mxu0 0
        %6299 = vmatprep.subr.bf16.mxu0 0
        %6300 = vmatpush1.bf16.msra.mxu0 0
        %6301 = vmatprep.subr.bf16.mxu0 0
        %6302 = vmatpush1.bf16.msra.mxu0 0
        %6303 = vmatprep.subr.bf16.mxu0 0
        %6304 = vmatpush1.bf16.msra.mxu0 0
        %6305 = vmatprep.subr.bf16.mxu0 0
        %6306 = vmatpush1.bf16.msra.mxu0 0
        %6307 = vmatprep.subr.bf16.mxu0 0
        %6308 = vmatpush1.bf16.msra.mxu0 0
        %6309 = vmatprep.subr.bf16.mxu0 0
        %6310 = vmatpush1.bf16.msra.mxu0 0
        %6311 = vmatprep.subr.bf16.mxu0 0
        %6312 = vmatpush1.bf16.msra.mxu0 0
        %6313 = vmatprep.subr.bf16.mxu0 0
        %6314 = vmatpush1.bf16.msra.mxu0 0
        %6315 = vmatprep.subr.bf16.mxu0 0
        %6316 = vmatpush1.bf16.msra.mxu0 0
        %6317 = vmatprep.mubr.bf16.mxu0 0
        %6318 = vmatmul.mubr.bf16.gmra.mrb[0].mxu0 %v6262
        %v6319 = vpop.f32.mrb[0].mxu0
        %v6320 = vadd.f32 %v6143, %v6319
        %v6321 = vpop.f32.mrb[0].mxu0
        %v6322 = vadd.f32 %v6145, %v6321
        %v6323 = vpop.f32.mrb[0].mxu0
        %v6324 = vadd.f32 %v6147, %v6323
        %v6325 = vpop.f32.mrb[0].mxu0
        %v6326 = vadd.f32 %v6149, %v6325
        %6327 = vmatprep.mubr.bf16.mxu0 0
        %6328 = vmatmul.mubr.bf16.gmra.mrb[0].mxu0 %v6265
        %v6329 = vpop.f32.mrb[0].mxu0
        %v6330 = vadd.f32 %v6153, %v6329
        %v6331 = vpop.f32.mrb[0].mxu0
        %v6332 = vadd.f32 %v6155, %v6331
        %v6333 = vpop.f32.mrb[0].mxu0
        %v6334 = vadd.f32 %v6157, %v6333
        %v6335 = vpop.f32.mrb[0].mxu0
        %v6336 = vadd.f32 %v6159, %v6335
        %6337 = vmatprep.mubr.bf16.mxu0 0
        %6338 = vmatmul.mubr.bf16.gmra.mrb[0].mxu0 %v6268
        %v6339 = vpop.f32.mrb[0].mxu0
        %v6340 = vadd.f32 %v6163, %v6339
        %v6341 = vpop.f32.mrb[0].mxu0
        %v6342 = vadd.f32 %v6165, %v6341
        %v6343 = vpop.f32.mrb[0].mxu0
        %v6344 = vadd.f32 %v6167, %v6343
        %v6345 = vpop.f32.mrb[0].mxu0
        %v6346 = vadd.f32 %v6169, %v6345
        %6347 = vmatprep.mubr.bf16.mxu0 0
        %6348 = vmatmul.mubr.bf16.gmra.mrb[0].mxu0 %v6271
        %v6349 = vpop.f32.mrb[0].mxu0
        %v6350 = vadd.f32 %v6173, %v6349
        %v6351 = vpop.f32.mrb[0].mxu0
        %v6352 = vadd.f32 %v6175, %v6351
        %v6353 = vpop.f32.mrb[0].mxu0
        %v6354 = vadd.f32 %v6177, %v6353
        %v6355 = vpop.f32.mrb[0].mxu0
        %v6356 = vadd.f32 %v6179, %v6355
        %6357 = vmatprep.mubr.bf16.mxu0 0
        %6358 = vmatmul.mubr.bf16.gmra.mrb[0].mxu0 %v6274
        %v6359 = vpop.f32.mrb[0].mxu0
        %v6360 = vadd.f32 %v6183, %v6359
        %v6361 = vpop.f32.mrb[0].mxu0
        %v6362 = vadd.f32 %v6185, %v6361
        %v6363 = vpop.f32.mrb[0].mxu0
        %v6364 = vadd.f32 %v6187, %v6363
        %v6365 = vpop.f32.mrb[0].mxu0
        %v6366 = vadd.f32 %v6189, %v6365
        %6367 = vmatprep.mubr.bf16.mxu0 0
        %6368 = vmatmul.mubr.bf16.gmra.mrb[0].mxu0 %v6277
        %v6369 = vpop.f32.mrb[0].mxu0
        %v6370 = vadd.f32 %v6193, %v6369
        %v6371 = vpop.f32.mrb[0].mxu0
        %v6372 = vadd.f32 %v6195, %v6371
        %v6373 = vpop.f32.mrb[0].mxu0
        %v6374 = vadd.f32 %v6197, %v6373
        %v6375 = vpop.f32.mrb[0].mxu0
        %v6376 = vadd.f32 %v6199, %v6375
        %6377 = vmatprep.mubr.bf16.mxu0 0
        %6378 = vmatmul.mubr.bf16.gmra.mrb[0].mxu0 %v6280
        %v6379 = vpop.f32.mrb[0].mxu0
        %v6380 = vadd.f32 %v6203, %v6379
        %v6381 = vpop.f32.mrb[0].mxu0
        %v6382 = vadd.f32 %v6205, %v6381
        %v6383 = vpop.f32.mrb[0].mxu0
        %v6384 = vadd.f32 %v6207, %v6383
        %v6385 = vpop.f32.mrb[0].mxu0
        %v6386 = vadd.f32 %v6209, %v6385
        %6387 = vmatprep.mubr.bf16.mxu0 0
        %6388 = vmatmul.mubr.bf16.gmra.mrb[0].mxu0 %v6283
        %v6389 = vpop.f32.mrb[0].mxu0
        %v6390 = vadd.f32 %v6213, %v6389
        %v6391 = vpop.f32.mrb[0].mxu0
        %v6392 = vadd.f32 %v6215, %v6391
        %v6393 = vpop.f32.mrb[0].mxu0
        %v6394 = vadd.f32 %v6217, %v6393
        %v6395 = vpop.f32.mrb[0].mxu0
        %v6396 = vadd.f32 %v6219, %v6395
        %6397 = vdwg.mxu0
        %v6398 = vpack.c.bf16 %v5853, %v5851
        %v6399 = vpack.c.bf16 %v5854, %v5852
        %v6400 = vpack.c.bf16 %v5857, %v5855
        %v6401 = vpack.c.bf16 %v5858, %v5856
        %v6402 = vpack.c.bf16 %v5861, %v5859
        %v6403 = vpack.c.bf16 %v5862, %v5860
        %v6404 = vpack.c.bf16 %v5865, %v5863
        %v6405 = vpack.c.bf16 %v5866, %v5864
        %s6406 = scalar_lea.vmem %s14, 128
        %v6407 = vld [vmem:[%s6406] sm:$0xf]
        %v6408 = vld [vmem:[%s6406 + $0x4] sm:$0xf]
        %v6409 = vld [vmem:[%s6406 + $0x8] sm:$0xf]
        %v6410 = vld [vmem:[%s6406 + $0xc] sm:$0xf]
        %v6411 = vld [vmem:[%s6406 + $0x10] sm:$0xf]
        %v6412 = vld [vmem:[%s6406 + $0x14] sm:$0xf]
        %v6413 = vld [vmem:[%s6406 + $0x18] sm:$0xf]
        %v6414 = vld [vmem:[%s6406 + $0x1c] sm:$0xf]
        %v6415 = vld [vmem:[%s6406 + $0x20] sm:$0xf]
        %v6416 = vld [vmem:[%s6406 + $0x24] sm:$0xf]
        %v6417 = vld [vmem:[%s6406 + $0x28] sm:$0xf]
        %v6418 = vld [vmem:[%s6406 + $0x2c] sm:$0xf]
        %v6419 = vld [vmem:[%s6406 + $0x30] sm:$0xf]
        %v6420 = vld [vmem:[%s6406 + $0x34] sm:$0xf]
        %v6421 = vld [vmem:[%s6406 + $0x38] sm:$0xf]
        %v6422 = vld [vmem:[%s6406 + $0x3c] sm:$0xf]
        %v6439 = vunpack.c.l.b16 %v6407
        %v6440 = vunpack.c.l.b16 %v6408
        %v6441 = vunpack.c.l.b16 %v6409
        %v6442 = vunpack.c.l.b16 %v6410
        %v6443 = vunpack.c.l.b16 %v6411
        %v6444 = vunpack.c.l.b16 %v6412
        %v6445 = vunpack.c.l.b16 %v6413
        %v6446 = vunpack.c.l.b16 %v6414
        %v6447 = vunpack.c.l.b16 %v6415
        %v6448 = vunpack.c.l.b16 %v6416
        %v6449 = vunpack.c.l.b16 %v6417
        %v6450 = vunpack.c.l.b16 %v6418
        %v6451 = vunpack.c.l.b16 %v6419
        %v6452 = vunpack.c.l.b16 %v6420
        %v6453 = vunpack.c.l.b16 %v6421
        %v6454 = vunpack.c.l.b16 %v6422
        %v6455 = vpack.c.b16 %v6440, %v6439
        %v6456 = vpack.c.b16 %v6442, %v6441
        %v6457 = vpack.c.b16 %v6444, %v6443
        %v6458 = vpack.c.b16 %v6446, %v6445
        %v6459 = vpack.c.b16 %v6448, %v6447
        %v6460 = vpack.c.b16 %v6450, %v6449
        %v6461 = vpack.c.b16 %v6452, %v6451
        %v6462 = vpack.c.b16 %v6454, %v6453
        %v6464 = vsel %vm3417, %v6455, 0
        %v6467 = vsel %vm3417, %v6456, 0
        %v6470 = vsel %vm3417, %v6457, 0
        %v6473 = vsel %vm3417, %v6458, 0
        %v6476 = vsel %vm3417, %v6459, 0
        %v6479 = vsel %vm3417, %v6460, 0
        %v6482 = vsel %vm3417, %v6461, 0
        %v6485 = vsel %vm3417, %v6462, 0
        %6487 = vmatprep.subr.bf16.mxu0 %v6399
        %6488 = vmatpush1.bf16.msra.mxu0 %v6398
        %6489 = vmatprep.subr.bf16.mxu0 %v6401
        %6490 = vmatpush1.bf16.msra.mxu0 %v6400
        %6491 = vmatprep.subr.bf16.mxu0 %v6403
        %6492 = vmatpush1.bf16.msra.mxu0 %v6402
        %6493 = vmatprep.subr.bf16.mxu0 %v6405
        %6494 = vmatpush1.bf16.msra.mxu0 %v6404
        %6495 = vmatprep.subr.bf16.mxu0 0
        %6496 = vmatpush1.bf16.msra.mxu0 0
        %6497 = vmatprep.subr.bf16.mxu0 0
        %6498 = vmatpush1.bf16.msra.mxu0 0
        %6499 = vmatprep.subr.bf16.mxu0 0
        %6500 = vmatpush1.bf16.msra.mxu0 0
        %6501 = vmatprep.subr.bf16.mxu0 0
        %6502 = vmatpush1.bf16.msra.mxu0 0
        %6503 = vmatprep.subr.bf16.mxu0 0
        %6504 = vmatpush1.bf16.msra.mxu0 0
        %6505 = vmatprep.subr.bf16.mxu0 0
        %6506 = vmatpush1.bf16.msra.mxu0 0
        %6507 = vmatprep.subr.bf16.mxu0 0
        %6508 = vmatpush1.bf16.msra.mxu0 0
        %6509 = vmatprep.subr.bf16.mxu0 0
        %6510 = vmatpush1.bf16.msra.mxu0 0
        %6511 = vmatprep.subr.bf16.mxu0 0
        %6512 = vmatpush1.bf16.msra.mxu0 0
        %6513 = vmatprep.subr.bf16.mxu0 0
        %6514 = vmatpush1.bf16.msra.mxu0 0
        %6515 = vmatprep.subr.bf16.mxu0 0
        %6516 = vmatpush1.bf16.msra.mxu0 0
        %6517 = vmatprep.subr.bf16.mxu0 0
        %6518 = vmatpush1.bf16.msra.mxu0 0
        %6519 = vmatprep.mubr.bf16.mxu0 0
        %6520 = vmatmul.mubr.bf16.gmra.mrb[0].mxu0 %v6464
        %v6521 = vpop.f32.mrb[0].mxu0
        %v6522 = vadd.f32 0.0, %v6521
        %v6523 = vpop.f32.mrb[0].mxu0
        %v6524 = vadd.f32 0.0, %v6523
        %v6525 = vpop.f32.mrb[0].mxu0
        %v6526 = vadd.f32 0.0, %v6525
        %v6527 = vpop.f32.mrb[0].mxu0
        %v6528 = vadd.f32 0.0, %v6527
        %6529 = vmatprep.mubr.bf16.mxu0 0
        %6530 = vmatmul.mubr.bf16.gmra.mrb[0].mxu0 %v6467
        %v6531 = vpop.f32.mrb[0].mxu0
        %v6532 = vadd.f32 0.0, %v6531
        %v6533 = vpop.f32.mrb[0].mxu0
        %v6534 = vadd.f32 0.0, %v6533
        %v6535 = vpop.f32.mrb[0].mxu0
        %v6536 = vadd.f32 0.0, %v6535
        %v6537 = vpop.f32.mrb[0].mxu0
        %v6538 = vadd.f32 0.0, %v6537
        %6539 = vmatprep.mubr.bf16.mxu0 0
        %6540 = vmatmul.mubr.bf16.gmra.mrb[0].mxu0 %v6470
        %v6541 = vpop.f32.mrb[0].mxu0
        %v6542 = vadd.f32 0.0, %v6541
        %v6543 = vpop.f32.mrb[0].mxu0
        %v6544 = vadd.f32 0.0, %v6543
        %v6545 = vpop.f32.mrb[0].mxu0
        %v6546 = vadd.f32 0.0, %v6545
        %v6547 = vpop.f32.mrb[0].mxu0
        %v6548 = vadd.f32 0.0, %v6547
        %6549 = vmatprep.mubr.bf16.mxu0 0
        %6550 = vmatmul.mubr.bf16.gmra.mrb[0].mxu0 %v6473
        %v6551 = vpop.f32.mrb[0].mxu0
        %v6552 = vadd.f32 0.0, %v6551
        %v6553 = vpop.f32.mrb[0].mxu0
        %v6554 = vadd.f32 0.0, %v6553
        %v6555 = vpop.f32.mrb[0].mxu0
        %v6556 = vadd.f32 0.0, %v6555
        %v6557 = vpop.f32.mrb[0].mxu0
        %v6558 = vadd.f32 0.0, %v6557
        %6559 = vmatprep.mubr.bf16.mxu0 0
        %6560 = vmatmul.mubr.bf16.gmra.mrb[0].mxu0 %v6476
        %v6561 = vpop.f32.mrb[0].mxu0
        %v6562 = vadd.f32 0.0, %v6561
        %v6563 = vpop.f32.mrb[0].mxu0
        %v6564 = vadd.f32 0.0, %v6563
        %v6565 = vpop.f32.mrb[0].mxu0
        %v6566 = vadd.f32 0.0, %v6565
        %v6567 = vpop.f32.mrb[0].mxu0
        %v6568 = vadd.f32 0.0, %v6567
        %6569 = vmatprep.mubr.bf16.mxu0 0
        %6570 = vmatmul.mubr.bf16.gmra.mrb[0].mxu0 %v6479
        %v6571 = vpop.f32.mrb[0].mxu0
        %v6572 = vadd.f32 0.0, %v6571
        %v6573 = vpop.f32.mrb[0].mxu0
        %v6574 = vadd.f32 0.0, %v6573
        %v6575 = vpop.f32.mrb[0].mxu0
        %v6576 = vadd.f32 0.0, %v6575
        %v6577 = vpop.f32.mrb[0].mxu0
        %v6578 = vadd.f32 0.0, %v6577
        %6579 = vmatprep.mubr.bf16.mxu0 0
        %6580 = vmatmul.mubr.bf16.gmra.mrb[0].mxu0 %v6482
        %v6581 = vpop.f32.mrb[0].mxu0
        %v6582 = vadd.f32 0.0, %v6581
        %v6583 = vpop.f32.mrb[0].mxu0
        %v6584 = vadd.f32 0.0, %v6583
        %v6585 = vpop.f32.mrb[0].mxu0
        %v6586 = vadd.f32 0.0, %v6585
        %v6587 = vpop.f32.mrb[0].mxu0
        %v6588 = vadd.f32 0.0, %v6587
        %6589 = vmatprep.mubr.bf16.mxu0 0
        %6590 = vmatmul.mubr.bf16.gmra.mrb[0].mxu0 %v6485
        %v6591 = vpop.f32.mrb[0].mxu0
        %v6592 = vadd.f32 0.0, %v6591
        %v6593 = vpop.f32.mrb[0].mxu0
        %v6594 = vadd.f32 0.0, %v6593
        %v6595 = vpop.f32.mrb[0].mxu0
        %v6596 = vadd.f32 0.0, %v6595
        %v6597 = vpop.f32.mrb[0].mxu0
        %v6598 = vadd.f32 0.0, %v6597
        %6599 = vdwg.mxu0
        %v6600 = vadd.f32 %v6320, %v6522
        %v6601 = vadd.f32 %v6322, %v6524
        %v6602 = vadd.f32 %v6324, %v6526
        %v6603 = vadd.f32 %v6326, %v6528
        %v6604 = vadd.f32 %v6330, %v6532
        %v6605 = vadd.f32 %v6332, %v6534
        %v6606 = vadd.f32 %v6334, %v6536
        %v6607 = vadd.f32 %v6336, %v6538
        %v6608 = vadd.f32 %v6340, %v6542
        %v6609 = vadd.f32 %v6342, %v6544
        %v6610 = vadd.f32 %v6344, %v6546
        %v6611 = vadd.f32 %v6346, %v6548
        %v6612 = vadd.f32 %v6350, %v6552
        %v6613 = vadd.f32 %v6352, %v6554
        %v6614 = vadd.f32 %v6354, %v6556
        %v6615 = vadd.f32 %v6356, %v6558
        %v6616 = vadd.f32 %v6360, %v6562
        %v6617 = vadd.f32 %v6362, %v6564
        %v6618 = vadd.f32 %v6364, %v6566
        %v6619 = vadd.f32 %v6366, %v6568
        %v6620 = vadd.f32 %v6370, %v6572
        %v6621 = vadd.f32 %v6372, %v6574
        %v6622 = vadd.f32 %v6374, %v6576
        %v6623 = vadd.f32 %v6376, %v6578
        %v6624 = vadd.f32 %v6380, %v6582
        %v6625 = vadd.f32 %v6382, %v6584
        %v6626 = vadd.f32 %v6384, %v6586
        %v6627 = vadd.f32 %v6386, %v6588
        %v6628 = vadd.f32 %v6390, %v6592
        %v6629 = vadd.f32 %v6392, %v6594
        %v6630 = vadd.f32 %v6394, %v6596
        %v6631 = vadd.f32 %v6396, %v6598
        %6632 = vrot.lane.b32.xlu0 %v5851, 127
        %v6633 = vpop.permute.xlu0 %6632
        %6634 = vrot.lane.b32.xlu0 %v5853, 127
        %v6635 = vpop.permute.xlu0 %6634
        %6636 = vrot.lane.b32.xlu0 %v5855, 127
        %v6637 = vpop.permute.xlu0 %6636
        %6638 = vrot.lane.b32.xlu0 %v5857, 127
        %v6639 = vpop.permute.xlu0 %6638
        %6640 = vrot.lane.b32.xlu0 %v5859, 127
        %v6641 = vpop.permute.xlu0 %6640
        %6642 = vrot.lane.b32.xlu0 %v5861, 127
        %v6643 = vpop.permute.xlu0 %6642
        %6644 = vrot.lane.b32.xlu0 %v5863, 127
        %v6645 = vpop.permute.xlu0 %6644
        %6646 = vrot.lane.b32.xlu0 %v5865, 127
        %v6647 = vpop.permute.xlu0 %6646
        %6648 = vrot.lane.b32.xlu0 %v5852, 127
        %v6649 = vpop.permute.xlu0 %6648
        %6650 = vrot.lane.b32.xlu0 %v5854, 127
        %v6651 = vpop.permute.xlu0 %6650
        %6652 = vrot.lane.b32.xlu0 %v5856, 127
        %v6653 = vpop.permute.xlu0 %6652
        %6654 = vrot.lane.b32.xlu0 %v5858, 127
        %v6655 = vpop.permute.xlu0 %6654
        %6656 = vrot.lane.b32.xlu0 %v5860, 127
        %v6657 = vpop.permute.xlu0 %6656
        %6658 = vrot.lane.b32.xlu0 %v5862, 127
        %v6659 = vpop.permute.xlu0 %6658
        %6660 = vrot.lane.b32.xlu0 %v5864, 127
        %v6661 = vpop.permute.xlu0 %6660
        %6662 = vrot.lane.b32.xlu0 %v5866, 127
        %v6663 = vpop.permute.xlu0 %6662
        %v6664 = vsel %vm1259, %v6633, %v6649
        %v6665 = vsel %vm1259, %v6635, %v6651
        %v6666 = vsel %vm1259, %v6637, %v6653
        %v6667 = vsel %vm1259, %v6639, %v6655
        %v6668 = vsel %vm1259, %v6641, %v6657
        %v6669 = vsel %vm1259, %v6643, %v6659
        %v6670 = vsel %vm1259, %v6645, %v6661
        %v6671 = vsel %vm1259, %v6647, %v6663
        %v6672 = vsel %vm1259, %v6649, %v6633
        %v6673 = vsel %vm1259, %v6651, %v6635
        %v6674 = vsel %vm1259, %v6653, %v6637
        %v6675 = vsel %vm1259, %v6655, %v6639
        %v6676 = vsel %vm1259, %v6657, %v6641
        %v6677 = vsel %vm1259, %v6659, %v6643
        %v6678 = vsel %vm1259, %v6661, %v6645
        %v6679 = vsel %vm1259, %v6663, %v6647
        %v6680 = vsel %vm1262, %v6664, 0.0
        %v6681 = vsel %vm1263, %v6672, 0.0
        %v6682 = vsel %vm1262, %v6665, 0.0
        %v6683 = vsel %vm1263, %v6673, 0.0
        %v6684 = vsel %vm1262, %v6666, 0.0
        %v6685 = vsel %vm1263, %v6674, 0.0
        %v6686 = vsel %vm1262, %v6667, 0.0
        %v6687 = vsel %vm1263, %v6675, 0.0
        %v6688 = vsel %vm1262, %v6668, 0.0
        %v6689 = vsel %vm1263, %v6676, 0.0
        %v6690 = vsel %vm1262, %v6669, 0.0
        %v6691 = vsel %vm1263, %v6677, 0.0
        %v6692 = vsel %vm1262, %v6670, 0.0
        %v6693 = vsel %vm1263, %v6678, 0.0
        %v6694 = vsel %vm1262, %v6671, 0.0
        %v6695 = vsel %vm1263, %v6679, 0.0
        %v6696 = vpack.c.bf16 %v6682, %v6680
        %v6697 = vpack.c.bf16 %v6683, %v6681
        %v6698 = vpack.c.bf16 %v6686, %v6684
        %v6699 = vpack.c.bf16 %v6687, %v6685
        %v6700 = vpack.c.bf16 %v6690, %v6688
        %v6701 = vpack.c.bf16 %v6691, %v6689
        %v6702 = vpack.c.bf16 %v6694, %v6692
        %v6703 = vpack.c.bf16 %v6695, %v6693
        %s6704 = scalar_lea.vmem %s14, 192
        %v6705 = vld [vmem:[%s6704] sm:$0xf]
        %v6706 = vld [vmem:[%s6704 + $0x4] sm:$0xf]
        %v6707 = vld [vmem:[%s6704 + $0x8] sm:$0xf]
        %v6708 = vld [vmem:[%s6704 + $0xc] sm:$0xf]
        %v6709 = vld [vmem:[%s6704 + $0x10] sm:$0xf]
        %v6710 = vld [vmem:[%s6704 + $0x14] sm:$0xf]
        %v6711 = vld [vmem:[%s6704 + $0x18] sm:$0xf]
        %v6712 = vld [vmem:[%s6704 + $0x1c] sm:$0xf]
        %v6713 = vld [vmem:[%s6704 + $0x20] sm:$0xf]
        %v6714 = vld [vmem:[%s6704 + $0x24] sm:$0xf]
        %v6715 = vld [vmem:[%s6704 + $0x28] sm:$0xf]
        %v6716 = vld [vmem:[%s6704 + $0x2c] sm:$0xf]
        %v6717 = vld [vmem:[%s6704 + $0x30] sm:$0xf]
        %v6718 = vld [vmem:[%s6704 + $0x34] sm:$0xf]
        %v6719 = vld [vmem:[%s6704 + $0x38] sm:$0xf]
        %v6720 = vld [vmem:[%s6704 + $0x3c] sm:$0xf]
        %v6737 = vunpack.c.l.b16 %v6705
        %v6738 = vunpack.c.l.b16 %v6706
        %v6739 = vunpack.c.l.b16 %v6707
        %v6740 = vunpack.c.l.b16 %v6708
        %v6741 = vunpack.c.l.b16 %v6709
        %v6742 = vunpack.c.l.b16 %v6710
        %v6743 = vunpack.c.l.b16 %v6711
        %v6744 = vunpack.c.l.b16 %v6712
        %v6745 = vunpack.c.l.b16 %v6713
        %v6746 = vunpack.c.l.b16 %v6714
        %v6747 = vunpack.c.l.b16 %v6715
        %v6748 = vunpack.c.l.b16 %v6716
        %v6749 = vunpack.c.l.b16 %v6717
        %v6750 = vunpack.c.l.b16 %v6718
        %v6751 = vunpack.c.l.b16 %v6719
        %v6752 = vunpack.c.l.b16 %v6720
        %v6753 = vpack.c.b16 %v6738, %v6737
        %v6754 = vpack.c.b16 %v6740, %v6739
        %v6755 = vpack.c.b16 %v6742, %v6741
        %v6756 = vpack.c.b16 %v6744, %v6743
        %v6757 = vpack.c.b16 %v6746, %v6745
        %v6758 = vpack.c.b16 %v6748, %v6747
        %v6759 = vpack.c.b16 %v6750, %v6749
        %v6760 = vpack.c.b16 %v6752, %v6751
        %v6762 = vsel %vm3417, %v6753, 0
        %v6765 = vsel %vm3417, %v6754, 0
        %v6768 = vsel %vm3417, %v6755, 0
        %v6771 = vsel %vm3417, %v6756, 0
        %v6774 = vsel %vm3417, %v6757, 0
        %v6777 = vsel %vm3417, %v6758, 0
        %v6780 = vsel %vm3417, %v6759, 0
        %v6783 = vsel %vm3417, %v6760, 0
        %6785 = vmatprep.subr.bf16.mxu0 %v6697
        %6786 = vmatpush1.bf16.msra.mxu0 %v6696
        %6787 = vmatprep.subr.bf16.mxu0 %v6699
        %6788 = vmatpush1.bf16.msra.mxu0 %v6698
        %6789 = vmatprep.subr.bf16.mxu0 %v6701
        %6790 = vmatpush1.bf16.msra.mxu0 %v6700
        %6791 = vmatprep.subr.bf16.mxu0 %v6703
        %6792 = vmatpush1.bf16.msra.mxu0 %v6702
        %6793 = vmatprep.subr.bf16.mxu0 0
        %6794 = vmatpush1.bf16.msra.mxu0 0
        %6795 = vmatprep.subr.bf16.mxu0 0
        %6796 = vmatpush1.bf16.msra.mxu0 0
        %6797 = vmatprep.subr.bf16.mxu0 0
        %6798 = vmatpush1.bf16.msra.mxu0 0
        %6799 = vmatprep.subr.bf16.mxu0 0
        %6800 = vmatpush1.bf16.msra.mxu0 0
        %6801 = vmatprep.subr.bf16.mxu0 0
        %6802 = vmatpush1.bf16.msra.mxu0 0
        %6803 = vmatprep.subr.bf16.mxu0 0
        %6804 = vmatpush1.bf16.msra.mxu0 0
        %6805 = vmatprep.subr.bf16.mxu0 0
        %6806 = vmatpush1.bf16.msra.mxu0 0
        %6807 = vmatprep.subr.bf16.mxu0 0
        %6808 = vmatpush1.bf16.msra.mxu0 0
        %6809 = vmatprep.subr.bf16.mxu0 0
        %6810 = vmatpush1.bf16.msra.mxu0 0
        %6811 = vmatprep.subr.bf16.mxu0 0
        %6812 = vmatpush1.bf16.msra.mxu0 0
        %6813 = vmatprep.subr.bf16.mxu0 0
        %6814 = vmatpush1.bf16.msra.mxu0 0
        %6815 = vmatprep.subr.bf16.mxu0 0
        %6816 = vmatpush1.bf16.msra.mxu0 0
        %6817 = vmatprep.mubr.bf16.mxu0 0
        %6818 = vmatmul.mubr.bf16.gmra.mrb[0].mxu0 %v6762
        %v6819 = vpop.f32.mrb[0].mxu0
        %v6820 = vadd.f32 0.0, %v6819
        %v6821 = vpop.f32.mrb[0].mxu0
        %v6822 = vadd.f32 0.0, %v6821
        %v6823 = vpop.f32.mrb[0].mxu0
        %v6824 = vadd.f32 0.0, %v6823
        %v6825 = vpop.f32.mrb[0].mxu0
        %v6826 = vadd.f32 0.0, %v6825
        %6827 = vmatprep.mubr.bf16.mxu0 0
        %6828 = vmatmul.mubr.bf16.gmra.mrb[0].mxu0 %v6765
        %v6829 = vpop.f32.mrb[0].mxu0
        %v6830 = vadd.f32 0.0, %v6829
        %v6831 = vpop.f32.mrb[0].mxu0
        %v6832 = vadd.f32 0.0, %v6831
        %v6833 = vpop.f32.mrb[0].mxu0
        %v6834 = vadd.f32 0.0, %v6833
        %v6835 = vpop.f32.mrb[0].mxu0
        %v6836 = vadd.f32 0.0, %v6835
        %6837 = vmatprep.mubr.bf16.mxu0 0
        %6838 = vmatmul.mubr.bf16.gmra.mrb[0].mxu0 %v6768
        %v6839 = vpop.f32.mrb[0].mxu0
        %v6840 = vadd.f32 0.0, %v6839
        %v6841 = vpop.f32.mrb[0].mxu0
        %v6842 = vadd.f32 0.0, %v6841
        %v6843 = vpop.f32.mrb[0].mxu0
        %v6844 = vadd.f32 0.0, %v6843
        %v6845 = vpop.f32.mrb[0].mxu0
        %v6846 = vadd.f32 0.0, %v6845
        %6847 = vmatprep.mubr.bf16.mxu0 0
        %6848 = vmatmul.mubr.bf16.gmra.mrb[0].mxu0 %v6771
        %v6849 = vpop.f32.mrb[0].mxu0
        %v6850 = vadd.f32 0.0, %v6849
        %v6851 = vpop.f32.mrb[0].mxu0
        %v6852 = vadd.f32 0.0, %v6851
        %v6853 = vpop.f32.mrb[0].mxu0
        %v6854 = vadd.f32 0.0, %v6853
        %v6855 = vpop.f32.mrb[0].mxu0
        %v6856 = vadd.f32 0.0, %v6855
        %6857 = vmatprep.mubr.bf16.mxu0 0
        %6858 = vmatmul.mubr.bf16.gmra.mrb[0].mxu0 %v6774
        %v6859 = vpop.f32.mrb[0].mxu0
        %v6860 = vadd.f32 0.0, %v6859
        %v6861 = vpop.f32.mrb[0].mxu0
        %v6862 = vadd.f32 0.0, %v6861
        %v6863 = vpop.f32.mrb[0].mxu0
        %v6864 = vadd.f32 0.0, %v6863
        %v6865 = vpop.f32.mrb[0].mxu0
        %v6866 = vadd.f32 0.0, %v6865
        %6867 = vmatprep.mubr.bf16.mxu0 0
        %6868 = vmatmul.mubr.bf16.gmra.mrb[0].mxu0 %v6777
        %v6869 = vpop.f32.mrb[0].mxu0
        %v6870 = vadd.f32 0.0, %v6869
        %v6871 = vpop.f32.mrb[0].mxu0
        %v6872 = vadd.f32 0.0, %v6871
        %v6873 = vpop.f32.mrb[0].mxu0
        %v6874 = vadd.f32 0.0, %v6873
        %v6875 = vpop.f32.mrb[0].mxu0
        %v6876 = vadd.f32 0.0, %v6875
        %6877 = vmatprep.mubr.bf16.mxu0 0
        %6878 = vmatmul.mubr.bf16.gmra.mrb[0].mxu0 %v6780
        %v6879 = vpop.f32.mrb[0].mxu0
        %v6880 = vadd.f32 0.0, %v6879
        %v6881 = vpop.f32.mrb[0].mxu0
        %v6882 = vadd.f32 0.0, %v6881
        %v6883 = vpop.f32.mrb[0].mxu0
        %v6884 = vadd.f32 0.0, %v6883
        %v6885 = vpop.f32.mrb[0].mxu0
        %v6886 = vadd.f32 0.0, %v6885
        %6887 = vmatprep.mubr.bf16.mxu0 0
        %6888 = vmatmul.mubr.bf16.gmra.mrb[0].mxu0 %v6783
        %v6889 = vpop.f32.mrb[0].mxu0
        %v6890 = vadd.f32 0.0, %v6889
        %v6891 = vpop.f32.mrb[0].mxu0
        %v6892 = vadd.f32 0.0, %v6891
        %v6893 = vpop.f32.mrb[0].mxu0
        %v6894 = vadd.f32 0.0, %v6893
        %v6895 = vpop.f32.mrb[0].mxu0
        %v6896 = vadd.f32 0.0, %v6895
        %6897 = vdwg.mxu0
        %v6898 = vadd.f32 %v6600, %v6820
        %v6899 = vadd.f32 %v6601, %v6822
        %v6900 = vadd.f32 %v6602, %v6824
        %v6901 = vadd.f32 %v6603, %v6826
        %v6902 = vadd.f32 %v6604, %v6830
        %v6903 = vadd.f32 %v6605, %v6832
        %v6904 = vadd.f32 %v6606, %v6834
        %v6905 = vadd.f32 %v6607, %v6836
        %v6906 = vadd.f32 %v6608, %v6840
        %v6907 = vadd.f32 %v6609, %v6842
        %v6908 = vadd.f32 %v6610, %v6844
        %v6909 = vadd.f32 %v6611, %v6846
        %v6910 = vadd.f32 %v6612, %v6850
        %v6911 = vadd.f32 %v6613, %v6852
        %v6912 = vadd.f32 %v6614, %v6854
        %v6913 = vadd.f32 %v6615, %v6856
        %v6914 = vadd.f32 %v6616, %v6860
        %v6915 = vadd.f32 %v6617, %v6862
        %v6916 = vadd.f32 %v6618, %v6864
        %v6917 = vadd.f32 %v6619, %v6866
        %v6918 = vadd.f32 %v6620, %v6870
        %v6919 = vadd.f32 %v6621, %v6872
        %v6920 = vadd.f32 %v6622, %v6874
        %v6921 = vadd.f32 %v6623, %v6876
        %v6922 = vadd.f32 %v6624, %v6880
        %v6923 = vadd.f32 %v6625, %v6882
        %v6924 = vadd.f32 %v6626, %v6884
        %v6925 = vadd.f32 %v6627, %v6886
        %v6926 = vadd.f32 %v6628, %v6890
        %v6927 = vadd.f32 %v6629, %v6892
        %v6928 = vadd.f32 %v6630, %v6894
        %v6929 = vadd.f32 %v6631, %v6896
        %6930 = vrot.lane.b32.xlu0 %v5851, 126
        %v6931 = vpop.permute.xlu0 %6930
        %6932 = vrot.lane.b32.xlu0 %v5853, 126
        %v6933 = vpop.permute.xlu0 %6932
        %6934 = vrot.lane.b32.xlu0 %v5855, 126
        %v6935 = vpop.permute.xlu0 %6934
        %6936 = vrot.lane.b32.xlu0 %v5857, 126
        %v6937 = vpop.permute.xlu0 %6936
        %6938 = vrot.lane.b32.xlu0 %v5859, 126
        %v6939 = vpop.permute.xlu0 %6938
        %6940 = vrot.lane.b32.xlu0 %v5861, 126
        %v6941 = vpop.permute.xlu0 %6940
        %6942 = vrot.lane.b32.xlu0 %v5863, 126
        %v6943 = vpop.permute.xlu0 %6942
        %6944 = vrot.lane.b32.xlu0 %v5865, 126
        %v6945 = vpop.permute.xlu0 %6944
        %6946 = vrot.lane.b32.xlu0 %v5852, 126
        %v6947 = vpop.permute.xlu0 %6946
        %6948 = vrot.lane.b32.xlu0 %v5854, 126
        %v6949 = vpop.permute.xlu0 %6948
        %6950 = vrot.lane.b32.xlu0 %v5856, 126
        %v6951 = vpop.permute.xlu0 %6950
        %6952 = vrot.lane.b32.xlu0 %v5858, 126
        %v6953 = vpop.permute.xlu0 %6952
        %6954 = vrot.lane.b32.xlu0 %v5860, 126
        %v6955 = vpop.permute.xlu0 %6954
        %6956 = vrot.lane.b32.xlu0 %v5862, 126
        %v6957 = vpop.permute.xlu0 %6956
        %6958 = vrot.lane.b32.xlu0 %v5864, 126
        %v6959 = vpop.permute.xlu0 %6958
        %6960 = vrot.lane.b32.xlu0 %v5866, 126
        %v6961 = vpop.permute.xlu0 %6960
        %v6962 = vsel %vm1504, %v6931, %v6947
        %v6963 = vsel %vm1504, %v6933, %v6949
        %v6964 = vsel %vm1504, %v6935, %v6951
        %v6965 = vsel %vm1504, %v6937, %v6953
        %v6966 = vsel %vm1504, %v6939, %v6955
        %v6967 = vsel %vm1504, %v6941, %v6957
        %v6968 = vsel %vm1504, %v6943, %v6959
        %v6969 = vsel %vm1504, %v6945, %v6961
        %v6970 = vsel %vm1504, %v6947, %v6931
        %v6971 = vsel %vm1504, %v6949, %v6933
        %v6972 = vsel %vm1504, %v6951, %v6935
        %v6973 = vsel %vm1504, %v6953, %v6937
        %v6974 = vsel %vm1504, %v6955, %v6939
        %v6975 = vsel %vm1504, %v6957, %v6941
        %v6976 = vsel %vm1504, %v6959, %v6943
        %v6977 = vsel %vm1504, %v6961, %v6945
        %v6978 = vsel %vm1507, %v6962, 0.0
        %v6979 = vsel %vm1508, %v6970, 0.0
        %v6980 = vsel %vm1507, %v6963, 0.0
        %v6981 = vsel %vm1508, %v6971, 0.0
        %v6982 = vsel %vm1507, %v6964, 0.0
        %v6983 = vsel %vm1508, %v6972, 0.0
        %v6984 = vsel %vm1507, %v6965, 0.0
        %v6985 = vsel %vm1508, %v6973, 0.0
        %v6986 = vsel %vm1507, %v6966, 0.0
        %v6987 = vsel %vm1508, %v6974, 0.0
        %v6988 = vsel %vm1507, %v6967, 0.0
        %v6989 = vsel %vm1508, %v6975, 0.0
        %v6990 = vsel %vm1507, %v6968, 0.0
        %v6991 = vsel %vm1508, %v6976, 0.0
        %v6992 = vsel %vm1507, %v6969, 0.0
        %v6993 = vsel %vm1508, %v6977, 0.0
        %v6994 = vpack.c.bf16 %v6980, %v6978
        %v6995 = vpack.c.bf16 %v6981, %v6979
        %v6996 = vpack.c.bf16 %v6984, %v6982
        %v6997 = vpack.c.bf16 %v6985, %v6983
        %v6998 = vpack.c.bf16 %v6988, %v6986
        %v6999 = vpack.c.bf16 %v6989, %v6987
        %v7000 = vpack.c.bf16 %v6992, %v6990
        %v7001 = vpack.c.bf16 %v6993, %v6991
        %s7002 = scalar_lea.vmem %s14, 256
        %v7003 = vld [vmem:[%s7002] sm:$0xf]
        %v7004 = vld [vmem:[%s7002 + $0x4] sm:$0xf]
        %v7005 = vld [vmem:[%s7002 + $0x8] sm:$0xf]
        %v7006 = vld [vmem:[%s7002 + $0xc] sm:$0xf]
        %v7007 = vld [vmem:[%s7002 + $0x10] sm:$0xf]
        %v7008 = vld [vmem:[%s7002 + $0x14] sm:$0xf]
        %v7009 = vld [vmem:[%s7002 + $0x18] sm:$0xf]
        %v7010 = vld [vmem:[%s7002 + $0x1c] sm:$0xf]
        %v7011 = vld [vmem:[%s7002 + $0x20] sm:$0xf]
        %v7012 = vld [vmem:[%s7002 + $0x24] sm:$0xf]
        %v7013 = vld [vmem:[%s7002 + $0x28] sm:$0xf]
        %v7014 = vld [vmem:[%s7002 + $0x2c] sm:$0xf]
        %v7015 = vld [vmem:[%s7002 + $0x30] sm:$0xf]
        %v7016 = vld [vmem:[%s7002 + $0x34] sm:$0xf]
        %v7017 = vld [vmem:[%s7002 + $0x38] sm:$0xf]
        %v7018 = vld [vmem:[%s7002 + $0x3c] sm:$0xf]
        %v7035 = vunpack.c.l.b16 %v7003
        %v7036 = vunpack.c.l.b16 %v7004
        %v7037 = vunpack.c.l.b16 %v7005
        %v7038 = vunpack.c.l.b16 %v7006
        %v7039 = vunpack.c.l.b16 %v7007
        %v7040 = vunpack.c.l.b16 %v7008
        %v7041 = vunpack.c.l.b16 %v7009
        %v7042 = vunpack.c.l.b16 %v7010
        %v7043 = vunpack.c.l.b16 %v7011
        %v7044 = vunpack.c.l.b16 %v7012
        %v7045 = vunpack.c.l.b16 %v7013
        %v7046 = vunpack.c.l.b16 %v7014
        %v7047 = vunpack.c.l.b16 %v7015
        %v7048 = vunpack.c.l.b16 %v7016
        %v7049 = vunpack.c.l.b16 %v7017
        %v7050 = vunpack.c.l.b16 %v7018
        %v7051 = vpack.c.b16 %v7036, %v7035
        %v7052 = vpack.c.b16 %v7038, %v7037
        %v7053 = vpack.c.b16 %v7040, %v7039
        %v7054 = vpack.c.b16 %v7042, %v7041
        %v7055 = vpack.c.b16 %v7044, %v7043
        %v7056 = vpack.c.b16 %v7046, %v7045
        %v7057 = vpack.c.b16 %v7048, %v7047
        %v7058 = vpack.c.b16 %v7050, %v7049
        %v7060 = vsel %vm3417, %v7051, 0
        %v7063 = vsel %vm3417, %v7052, 0
        %v7066 = vsel %vm3417, %v7053, 0
        %v7069 = vsel %vm3417, %v7054, 0
        %v7072 = vsel %vm3417, %v7055, 0
        %v7075 = vsel %vm3417, %v7056, 0
        %v7078 = vsel %vm3417, %v7057, 0
        %v7081 = vsel %vm3417, %v7058, 0
        %7083 = vmatprep.subr.bf16.mxu0 %v6995
        %7084 = vmatpush1.bf16.msra.mxu0 %v6994
        %7085 = vmatprep.subr.bf16.mxu0 %v6997
        %7086 = vmatpush1.bf16.msra.mxu0 %v6996
        %7087 = vmatprep.subr.bf16.mxu0 %v6999
        %7088 = vmatpush1.bf16.msra.mxu0 %v6998
        %7089 = vmatprep.subr.bf16.mxu0 %v7001
        %7090 = vmatpush1.bf16.msra.mxu0 %v7000
        %7091 = vmatprep.subr.bf16.mxu0 0
        %7092 = vmatpush1.bf16.msra.mxu0 0
        %7093 = vmatprep.subr.bf16.mxu0 0
        %7094 = vmatpush1.bf16.msra.mxu0 0
        %7095 = vmatprep.subr.bf16.mxu0 0
        %7096 = vmatpush1.bf16.msra.mxu0 0
        %7097 = vmatprep.subr.bf16.mxu0 0
        %7098 = vmatpush1.bf16.msra.mxu0 0
        %7099 = vmatprep.subr.bf16.mxu0 0
        %7100 = vmatpush1.bf16.msra.mxu0 0
        %7101 = vmatprep.subr.bf16.mxu0 0
        %7102 = vmatpush1.bf16.msra.mxu0 0
        %7103 = vmatprep.subr.bf16.mxu0 0
        %7104 = vmatpush1.bf16.msra.mxu0 0
        %7105 = vmatprep.subr.bf16.mxu0 0
        %7106 = vmatpush1.bf16.msra.mxu0 0
        %7107 = vmatprep.subr.bf16.mxu0 0
        %7108 = vmatpush1.bf16.msra.mxu0 0
        %7109 = vmatprep.subr.bf16.mxu0 0
        %7110 = vmatpush1.bf16.msra.mxu0 0
        %7111 = vmatprep.subr.bf16.mxu0 0
        %7112 = vmatpush1.bf16.msra.mxu0 0
        %7113 = vmatprep.subr.bf16.mxu0 0
        %7114 = vmatpush1.bf16.msra.mxu0 0
        %7115 = vmatprep.mubr.bf16.mxu0 0
        %7116 = vmatmul.mubr.bf16.gmra.mrb[0].mxu0 %v7060
        %v7117 = vpop.f32.mrb[0].mxu0
        %v7118 = vadd.f32 0.0, %v7117
        %v7119 = vpop.f32.mrb[0].mxu0
        %v7120 = vadd.f32 0.0, %v7119
        %v7121 = vpop.f32.mrb[0].mxu0
        %v7122 = vadd.f32 0.0, %v7121
        %v7123 = vpop.f32.mrb[0].mxu0
        %v7124 = vadd.f32 0.0, %v7123
        %7125 = vmatprep.mubr.bf16.mxu0 0
        %7126 = vmatmul.mubr.bf16.gmra.mrb[0].mxu0 %v7063
        %v7127 = vpop.f32.mrb[0].mxu0
        %v7128 = vadd.f32 0.0, %v7127
        %v7129 = vpop.f32.mrb[0].mxu0
        %v7130 = vadd.f32 0.0, %v7129
        %v7131 = vpop.f32.mrb[0].mxu0
        %v7132 = vadd.f32 0.0, %v7131
        %v7133 = vpop.f32.mrb[0].mxu0
        %v7134 = vadd.f32 0.0, %v7133
        %7135 = vmatprep.mubr.bf16.mxu0 0
        %7136 = vmatmul.mubr.bf16.gmra.mrb[0].mxu0 %v7066
        %v7137 = vpop.f32.mrb[0].mxu0
        %v7138 = vadd.f32 0.0, %v7137
        %v7139 = vpop.f32.mrb[0].mxu0
        %v7140 = vadd.f32 0.0, %v7139
        %v7141 = vpop.f32.mrb[0].mxu0
        %v7142 = vadd.f32 0.0, %v7141
        %v7143 = vpop.f32.mrb[0].mxu0
        %v7144 = vadd.f32 0.0, %v7143
        %7145 = vmatprep.mubr.bf16.mxu0 0
        %7146 = vmatmul.mubr.bf16.gmra.mrb[0].mxu0 %v7069
        %v7147 = vpop.f32.mrb[0].mxu0
        %v7148 = vadd.f32 0.0, %v7147
        %v7149 = vpop.f32.mrb[0].mxu0
        %v7150 = vadd.f32 0.0, %v7149
        %v7151 = vpop.f32.mrb[0].mxu0
        %v7152 = vadd.f32 0.0, %v7151
        %v7153 = vpop.f32.mrb[0].mxu0
        %v7154 = vadd.f32 0.0, %v7153
        %7155 = vmatprep.mubr.bf16.mxu0 0
        %7156 = vmatmul.mubr.bf16.gmra.mrb[0].mxu0 %v7072
        %v7157 = vpop.f32.mrb[0].mxu0
        %v7158 = vadd.f32 0.0, %v7157
        %v7159 = vpop.f32.mrb[0].mxu0
        %v7160 = vadd.f32 0.0, %v7159
        %v7161 = vpop.f32.mrb[0].mxu0
        %v7162 = vadd.f32 0.0, %v7161
        %v7163 = vpop.f32.mrb[0].mxu0
        %v7164 = vadd.f32 0.0, %v7163
        %7165 = vmatprep.mubr.bf16.mxu0 0
        %7166 = vmatmul.mubr.bf16.gmra.mrb[0].mxu0 %v7075
        %v7167 = vpop.f32.mrb[0].mxu0
        %v7168 = vadd.f32 0.0, %v7167
        %v7169 = vpop.f32.mrb[0].mxu0
        %v7170 = vadd.f32 0.0, %v7169
        %v7171 = vpop.f32.mrb[0].mxu0
        %v7172 = vadd.f32 0.0, %v7171
        %v7173 = vpop.f32.mrb[0].mxu0
        %v7174 = vadd.f32 0.0, %v7173
        %7175 = vmatprep.mubr.bf16.mxu0 0
        %7176 = vmatmul.mubr.bf16.gmra.mrb[0].mxu0 %v7078
        %v7177 = vpop.f32.mrb[0].mxu0
        %v7178 = vadd.f32 0.0, %v7177
        %v7179 = vpop.f32.mrb[0].mxu0
        %v7180 = vadd.f32 0.0, %v7179
        %v7181 = vpop.f32.mrb[0].mxu0
        %v7182 = vadd.f32 0.0, %v7181
        %v7183 = vpop.f32.mrb[0].mxu0
        %v7184 = vadd.f32 0.0, %v7183
        %7185 = vmatprep.mubr.bf16.mxu0 0
        %7186 = vmatmul.mubr.bf16.gmra.mrb[0].mxu0 %v7081
        %v7187 = vpop.f32.mrb[0].mxu0
        %v7188 = vadd.f32 0.0, %v7187
        %v7189 = vpop.f32.mrb[0].mxu0
        %v7190 = vadd.f32 0.0, %v7189
        %v7191 = vpop.f32.mrb[0].mxu0
        %v7192 = vadd.f32 0.0, %v7191
        %v7193 = vpop.f32.mrb[0].mxu0
        %v7194 = vadd.f32 0.0, %v7193
        %7195 = vdwg.mxu0
        %v7196 = vadd.f32 %v6898, %v7118
        %v7197 = vadd.f32 %v6899, %v7120
        %v7198 = vadd.f32 %v6900, %v7122
        %v7199 = vadd.f32 %v6901, %v7124
        %v7200 = vadd.f32 %v6902, %v7128
        %v7201 = vadd.f32 %v6903, %v7130
        %v7202 = vadd.f32 %v6904, %v7132
        %v7203 = vadd.f32 %v6905, %v7134
        %v7204 = vadd.f32 %v6906, %v7138
        %v7205 = vadd.f32 %v6907, %v7140
        %v7206 = vadd.f32 %v6908, %v7142
        %v7207 = vadd.f32 %v6909, %v7144
        %v7208 = vadd.f32 %v6910, %v7148
        %v7209 = vadd.f32 %v6911, %v7150
        %v7210 = vadd.f32 %v6912, %v7152
        %v7211 = vadd.f32 %v6913, %v7154
        %v7212 = vadd.f32 %v6914, %v7158
        %v7213 = vadd.f32 %v6915, %v7160
        %v7214 = vadd.f32 %v6916, %v7162
        %v7215 = vadd.f32 %v6917, %v7164
        %v7216 = vadd.f32 %v6918, %v7168
        %v7217 = vadd.f32 %v6919, %v7170
        %v7218 = vadd.f32 %v6920, %v7172
        %v7219 = vadd.f32 %v6921, %v7174
        %v7220 = vadd.f32 %v6922, %v7178
        %v7221 = vadd.f32 %v6923, %v7180
        %v7222 = vadd.f32 %v6924, %v7182
        %v7223 = vadd.f32 %v6925, %v7184
        %v7224 = vadd.f32 %v6926, %v7188
        %v7225 = vadd.f32 %v6927, %v7190
        %v7226 = vadd.f32 %v6928, %v7192
        %v7227 = vadd.f32 %v6929, %v7194
        %v7228 = vld [vmem:[%s15] sm:$0xff]
        %v7229 = vld [vmem:[%s15 + $0x8] sm:$0xff]
        %v7230 = vld [vmem:[%s15 + $0x10] sm:$0xff]
        %v7231 = vld [vmem:[%s15 + $0x18] sm:$0xff]
        %v7232 = vld [vmem:[%s15 + $0x20] sm:$0xff]
        %v7233 = vld [vmem:[%s15 + $0x28] sm:$0xff]
        %v7234 = vld [vmem:[%s15 + $0x30] sm:$0xff]
        %v7235 = vld [vmem:[%s15 + $0x38] sm:$0xff]
        %v7236 = vld [vmem:[%s15 + $0x40] sm:$0xff]
        %v7237 = vld [vmem:[%s15 + $0x48] sm:$0xff]
        %v7238 = vld [vmem:[%s15 + $0x50] sm:$0xff]
        %v7239 = vld [vmem:[%s15 + $0x58] sm:$0xff]
        %v7240 = vld [vmem:[%s15 + $0x60] sm:$0xff]
        %v7241 = vld [vmem:[%s15 + $0x68] sm:$0xff]
        %v7242 = vld [vmem:[%s15 + $0x70] sm:$0xff]
        %v7243 = vld [vmem:[%s15 + $0x78] sm:$0xff]
        %7245 = vset.pattern.permute.xlu0 0
        %7246 = vperm.xlu0 %7245, %v7228
        %v7247 = vpop.permute.xlu0 %7246
        %7250 = vset.pattern.permute.xlu0 0
        %7251 = vperm.xlu0 %7250, %v7229
        %v7252 = vpop.permute.xlu0 %7251
        %7255 = vset.pattern.permute.xlu0 0
        %7256 = vperm.xlu0 %7255, %v7230
        %v7257 = vpop.permute.xlu0 %7256
        %7260 = vset.pattern.permute.xlu0 0
        %7261 = vperm.xlu0 %7260, %v7231
        %v7262 = vpop.permute.xlu0 %7261
        %7265 = vset.pattern.permute.xlu0 0
        %7266 = vperm.xlu0 %7265, %v7232
        %v7267 = vpop.permute.xlu0 %7266
        %7270 = vset.pattern.permute.xlu0 0
        %7271 = vperm.xlu0 %7270, %v7233
        %v7272 = vpop.permute.xlu0 %7271
        %7275 = vset.pattern.permute.xlu0 0
        %7276 = vperm.xlu0 %7275, %v7234
        %v7277 = vpop.permute.xlu0 %7276
        %7280 = vset.pattern.permute.xlu0 0
        %7281 = vperm.xlu0 %7280, %v7235
        %v7282 = vpop.permute.xlu0 %7281
        %7285 = vset.pattern.permute.xlu0 0
        %7286 = vperm.xlu0 %7285, %v7236
        %v7287 = vpop.permute.xlu0 %7286
        %7290 = vset.pattern.permute.xlu0 0
        %7291 = vperm.xlu0 %7290, %v7237
        %v7292 = vpop.permute.xlu0 %7291
        %7295 = vset.pattern.permute.xlu0 0
        %7296 = vperm.xlu0 %7295, %v7238
        %v7297 = vpop.permute.xlu0 %7296
        %7300 = vset.pattern.permute.xlu0 0
        %7301 = vperm.xlu0 %7300, %v7239
        %v7302 = vpop.permute.xlu0 %7301
        %7305 = vset.pattern.permute.xlu0 0
        %7306 = vperm.xlu0 %7305, %v7240
        %v7307 = vpop.permute.xlu0 %7306
        %7310 = vset.pattern.permute.xlu0 0
        %7311 = vperm.xlu0 %7310, %v7241
        %v7312 = vpop.permute.xlu0 %7311
        %7315 = vset.pattern.permute.xlu0 0
        %7316 = vperm.xlu0 %7315, %v7242
        %v7317 = vpop.permute.xlu0 %7316
        %7320 = vset.pattern.permute.xlu0 0
        %7321 = vperm.xlu0 %7320, %v7243
        %v7322 = vpop.permute.xlu0 %7321
        %v7324 = vadd.f32 %v7196, %v7247
        %v7325 = vadd.f32 %v7197, %v7247
        %v7326 = vadd.f32 %v7198, %v7252
        %v7327 = vadd.f32 %v7199, %v7252
        %v7328 = vadd.f32 %v7200, %v7257
        %v7329 = vadd.f32 %v7201, %v7257
        %v7330 = vadd.f32 %v7202, %v7262
        %v7331 = vadd.f32 %v7203, %v7262
        %v7332 = vadd.f32 %v7204, %v7267
        %v7333 = vadd.f32 %v7205, %v7267
        %v7334 = vadd.f32 %v7206, %v7272
        %v7335 = vadd.f32 %v7207, %v7272
        %v7336 = vadd.f32 %v7208, %v7277
        %v7337 = vadd.f32 %v7209, %v7277
        %v7338 = vadd.f32 %v7210, %v7282
        %v7339 = vadd.f32 %v7211, %v7282
        %v7340 = vadd.f32 %v7212, %v7287
        %v7341 = vadd.f32 %v7213, %v7287
        %v7342 = vadd.f32 %v7214, %v7292
        %v7343 = vadd.f32 %v7215, %v7292
        %v7344 = vadd.f32 %v7216, %v7297
        %v7345 = vadd.f32 %v7217, %v7297
        %v7346 = vadd.f32 %v7218, %v7302
        %v7347 = vadd.f32 %v7219, %v7302
        %v7348 = vadd.f32 %v7220, %v7307
        %v7349 = vadd.f32 %v7221, %v7307
        %v7350 = vadd.f32 %v7222, %v7312
        %v7351 = vadd.f32 %v7223, %v7312
        %v7352 = vadd.f32 %v7224, %v7317
        %v7353 = vadd.f32 %v7225, %v7317
        %v7354 = vadd.f32 %v7226, %v7322
        %v7355 = vadd.f32 %v7227, %v7322
        %s7356 = sld [smem:[#allocation2 + $0x6]]
        %vm7357 = vcmp.gt.f32.partialorder %v7324, 0.0
        %vm7358 = vcmp.gt.f32.partialorder %v7325, 0.0
        %vm7359 = vcmp.gt.f32.partialorder %v7326, 0.0
        %vm7360 = vcmp.gt.f32.partialorder %v7327, 0.0
        %vm7361 = vcmp.gt.f32.partialorder %v7328, 0.0
        %vm7362 = vcmp.gt.f32.partialorder %v7329, 0.0
        %vm7363 = vcmp.gt.f32.partialorder %v7330, 0.0
        %vm7364 = vcmp.gt.f32.partialorder %v7331, 0.0
        %vm7365 = vcmp.gt.f32.partialorder %v7332, 0.0
        %vm7366 = vcmp.gt.f32.partialorder %v7333, 0.0
        %vm7367 = vcmp.gt.f32.partialorder %v7334, 0.0
        %vm7368 = vcmp.gt.f32.partialorder %v7335, 0.0
        %vm7369 = vcmp.gt.f32.partialorder %v7336, 0.0
        %vm7370 = vcmp.gt.f32.partialorder %v7337, 0.0
        %vm7371 = vcmp.gt.f32.partialorder %v7338, 0.0
        %vm7372 = vcmp.gt.f32.partialorder %v7339, 0.0
        %vm7373 = vcmp.gt.f32.partialorder %v7340, 0.0
        %vm7374 = vcmp.gt.f32.partialorder %v7341, 0.0
        %vm7375 = vcmp.gt.f32.partialorder %v7342, 0.0
        %vm7376 = vcmp.gt.f32.partialorder %v7343, 0.0
        %vm7377 = vcmp.gt.f32.partialorder %v7344, 0.0
        %vm7378 = vcmp.gt.f32.partialorder %v7345, 0.0
        %vm7379 = vcmp.gt.f32.partialorder %v7346, 0.0
        %vm7380 = vcmp.gt.f32.partialorder %v7347, 0.0
        %vm7381 = vcmp.gt.f32.partialorder %v7348, 0.0
        %vm7382 = vcmp.gt.f32.partialorder %v7349, 0.0
        %vm7383 = vcmp.gt.f32.partialorder %v7350, 0.0
        %vm7384 = vcmp.gt.f32.partialorder %v7351, 0.0
        %vm7385 = vcmp.gt.f32.partialorder %v7352, 0.0
        %vm7386 = vcmp.gt.f32.partialorder %v7353, 0.0
        %vm7387 = vcmp.gt.f32.partialorder %v7354, 0.0
        %vm7388 = vcmp.gt.f32.partialorder %v7355, 0.0
        %v7389 = vstv %s7356
        %v7390 = vmul.f32 %v7389, %v7324
        %v7391 = vmul.f32 %v7389, %v7325
        %v7392 = vmul.f32 %v7389, %v7326
        %v7393 = vmul.f32 %v7389, %v7327
        %v7394 = vmul.f32 %v7389, %v7328
        %v7395 = vmul.f32 %v7389, %v7329
        %v7396 = vmul.f32 %v7389, %v7330
        %v7397 = vmul.f32 %v7389, %v7331
        %v7398 = vmul.f32 %v7389, %v7332
        %v7399 = vmul.f32 %v7389, %v7333
        %v7400 = vmul.f32 %v7389, %v7334
        %v7401 = vmul.f32 %v7389, %v7335
        %v7402 = vmul.f32 %v7389, %v7336
        %v7403 = vmul.f32 %v7389, %v7337
        %v7404 = vmul.f32 %v7389, %v7338
        %v7405 = vmul.f32 %v7389, %v7339
        %v7406 = vmul.f32 %v7389, %v7340
        %v7407 = vmul.f32 %v7389, %v7341
        %v7408 = vmul.f32 %v7389, %v7342
        %v7409 = vmul.f32 %v7389, %v7343
        %v7410 = vmul.f32 %v7389, %v7344
        %v7411 = vmul.f32 %v7389, %v7345
        %v7412 = vmul.f32 %v7389, %v7346
        %v7413 = vmul.f32 %v7389, %v7347
        %v7414 = vmul.f32 %v7389, %v7348
        %v7415 = vmul.f32 %v7389, %v7349
        %v7416 = vmul.f32 %v7389, %v7350
        %v7417 = vmul.f32 %v7389, %v7351
        %v7418 = vmul.f32 %v7389, %v7352
        %v7419 = vmul.f32 %v7389, %v7353
        %v7420 = vmul.f32 %v7389, %v7354
        %v7421 = vmul.f32 %v7389, %v7355
        %v7422 = vsel %vm7357, %v7324, %v7390
        %v7423 = vsel %vm7358, %v7325, %v7391
        %v7424 = vsel %vm7359, %v7326, %v7392
        %v7425 = vsel %vm7360, %v7327, %v7393
        %v7426 = vsel %vm7361, %v7328, %v7394
        %v7427 = vsel %vm7362, %v7329, %v7395
        %v7428 = vsel %vm7363, %v7330, %v7396
        %v7429 = vsel %vm7364, %v7331, %v7397
        %v7430 = vsel %vm7365, %v7332, %v7398
        %v7431 = vsel %vm7366, %v7333, %v7399
        %v7432 = vsel %vm7367, %v7334, %v7400
        %v7433 = vsel %vm7368, %v7335, %v7401
        %v7434 = vsel %vm7369, %v7336, %v7402
        %v7435 = vsel %vm7370, %v7337, %v7403
        %v7436 = vsel %vm7371, %v7338, %v7404
        %v7437 = vsel %vm7372, %v7339, %v7405
        %v7438 = vsel %vm7373, %v7340, %v7406
        %v7439 = vsel %vm7374, %v7341, %v7407
        %v7440 = vsel %vm7375, %v7342, %v7408
        %v7441 = vsel %vm7376, %v7343, %v7409
        %v7442 = vsel %vm7377, %v7344, %v7410
        %v7443 = vsel %vm7378, %v7345, %v7411
        %v7444 = vsel %vm7379, %v7346, %v7412
        %v7445 = vsel %vm7380, %v7347, %v7413
        %v7446 = vsel %vm7381, %v7348, %v7414
        %v7447 = vsel %vm7382, %v7349, %v7415
        %v7448 = vsel %vm7383, %v7350, %v7416
        %v7449 = vsel %vm7384, %v7351, %v7417
        %v7450 = vsel %vm7385, %v7352, %v7418
        %v7451 = vsel %vm7386, %v7353, %v7419
        %v7452 = vsel %vm7387, %v7354, %v7420
        %v7453 = vsel %vm7388, %v7355, %v7421
        %7454 = vrot.lane.b32.xlu0 %v7422, 2
        %v7455 = vpop.permute.xlu0 %7454
        %7456 = vrot.lane.b32.xlu0 %v7424, 2
        %v7457 = vpop.permute.xlu0 %7456
        %7458 = vrot.lane.b32.xlu0 %v7426, 2
        %v7459 = vpop.permute.xlu0 %7458
        %7460 = vrot.lane.b32.xlu0 %v7428, 2
        %v7461 = vpop.permute.xlu0 %7460
        %7462 = vrot.lane.b32.xlu0 %v7430, 2
        %v7463 = vpop.permute.xlu0 %7462
        %7464 = vrot.lane.b32.xlu0 %v7432, 2
        %v7465 = vpop.permute.xlu0 %7464
        %7466 = vrot.lane.b32.xlu0 %v7434, 2
        %v7467 = vpop.permute.xlu0 %7466
        %7468 = vrot.lane.b32.xlu0 %v7436, 2
        %v7469 = vpop.permute.xlu0 %7468
        %7470 = vrot.lane.b32.xlu0 %v7438, 2
        %v7471 = vpop.permute.xlu0 %7470
        %7472 = vrot.lane.b32.xlu0 %v7440, 2
        %v7473 = vpop.permute.xlu0 %7472
        %7474 = vrot.lane.b32.xlu0 %v7442, 2
        %v7475 = vpop.permute.xlu0 %7474
        %7476 = vrot.lane.b32.xlu0 %v7444, 2
        %v7477 = vpop.permute.xlu0 %7476
        %7478 = vrot.lane.b32.xlu0 %v7446, 2
        %v7479 = vpop.permute.xlu0 %7478
        %7480 = vrot.lane.b32.xlu0 %v7448, 2
        %v7481 = vpop.permute.xlu0 %7480
        %7482 = vrot.lane.b32.xlu0 %v7450, 2
        %v7483 = vpop.permute.xlu0 %7482
        %7484 = vrot.lane.b32.xlu0 %v7452, 2
        %v7485 = vpop.permute.xlu0 %7484
        %7486 = vrot.lane.b32.xlu0 %v7423, 2
        %v7487 = vpop.permute.xlu0 %7486
        %7488 = vrot.lane.b32.xlu0 %v7425, 2
        %v7489 = vpop.permute.xlu0 %7488
        %7490 = vrot.lane.b32.xlu0 %v7427, 2
        %v7491 = vpop.permute.xlu0 %7490
        %7492 = vrot.lane.b32.xlu0 %v7429, 2
        %v7493 = vpop.permute.xlu0 %7492
        %7494 = vrot.lane.b32.xlu0 %v7431, 2
        %v7495 = vpop.permute.xlu0 %7494
        %7496 = vrot.lane.b32.xlu0 %v7433, 2
        %v7497 = vpop.permute.xlu0 %7496
        %7498 = vrot.lane.b32.xlu0 %v7435, 2
        %v7499 = vpop.permute.xlu0 %7498
        %7500 = vrot.lane.b32.xlu0 %v7437, 2
        %v7501 = vpop.permute.xlu0 %7500
        %7502 = vrot.lane.b32.xlu0 %v7439, 2
        %v7503 = vpop.permute.xlu0 %7502
        %7504 = vrot.lane.b32.xlu0 %v7441, 2
        %v7505 = vpop.permute.xlu0 %7504
        %7506 = vrot.lane.b32.xlu0 %v7443, 2
        %v7507 = vpop.permute.xlu0 %7506
        %7508 = vrot.lane.b32.xlu0 %v7445, 2
        %v7509 = vpop.permute.xlu0 %7508
        %7510 = vrot.lane.b32.xlu0 %v7447, 2
        %v7511 = vpop.permute.xlu0 %7510
        %7512 = vrot.lane.b32.xlu0 %v7449, 2
        %v7513 = vpop.permute.xlu0 %7512
        %7514 = vrot.lane.b32.xlu0 %v7451, 2
        %v7515 = vpop.permute.xlu0 %7514
        %7516 = vrot.lane.b32.xlu0 %v7453, 2
        %v7517 = vpop.permute.xlu0 %7516
        %v7518 = vsel %vm597, %v7455, %v7487
        %v7519 = vsel %vm597, %v7457, %v7489
        %v7520 = vsel %vm597, %v7459, %v7491
        %v7521 = vsel %vm597, %v7461, %v7493
        %v7522 = vsel %vm597, %v7463, %v7495
        %v7523 = vsel %vm597, %v7465, %v7497
        %v7524 = vsel %vm597, %v7467, %v7499
        %v7525 = vsel %vm597, %v7469, %v7501
        %v7526 = vsel %vm597, %v7471, %v7503
        %v7527 = vsel %vm597, %v7473, %v7505
        %v7528 = vsel %vm597, %v7475, %v7507
        %v7529 = vsel %vm597, %v7477, %v7509
        %v7530 = vsel %vm597, %v7479, %v7511
        %v7531 = vsel %vm597, %v7481, %v7513
        %v7532 = vsel %vm597, %v7483, %v7515
        %v7533 = vsel %vm597, %v7485, %v7517
        %v7534 = vsel %vm597, %v7487, %v7455
        %v7535 = vsel %vm597, %v7489, %v7457
        %v7536 = vsel %vm597, %v7491, %v7459
        %v7537 = vsel %vm597, %v7493, %v7461
        %v7538 = vsel %vm597, %v7495, %v7463
        %v7539 = vsel %vm597, %v7497, %v7465
        %v7540 = vsel %vm597, %v7499, %v7467
        %v7541 = vsel %vm597, %v7501, %v7469
        %v7542 = vsel %vm597, %v7503, %v7471
        %v7543 = vsel %vm597, %v7505, %v7473
        %v7544 = vsel %vm597, %v7507, %v7475
        %v7545 = vsel %vm597, %v7509, %v7477
        %v7546 = vsel %vm597, %v7511, %v7479
        %v7547 = vsel %vm597, %v7513, %v7481
        %v7548 = vsel %vm597, %v7515, %v7483
        %v7549 = vsel %vm597, %v7517, %v7485
        %v7550 = vsel %vm601, %v7534, 0.0
        %v7551 = vsel %vm602, %v7518, 0.0
        %v7552 = vsel %vm601, %v7535, 0.0
        %v7553 = vsel %vm602, %v7519, 0.0
        %v7554 = vsel %vm601, %v7536, 0.0
        %v7555 = vsel %vm602, %v7520, 0.0
        %v7556 = vsel %vm601, %v7537, 0.0
        %v7557 = vsel %vm602, %v7521, 0.0
        %v7558 = vsel %vm601, %v7538, 0.0
        %v7559 = vsel %vm602, %v7522, 0.0
        %v7560 = vsel %vm601, %v7539, 0.0
        %v7561 = vsel %vm602, %v7523, 0.0
        %v7562 = vsel %vm601, %v7540, 0.0
        %v7563 = vsel %vm602, %v7524, 0.0
        %v7564 = vsel %vm601, %v7541, 0.0
        %v7565 = vsel %vm602, %v7525, 0.0
        %v7566 = vsel %vm601, %v7542, 0.0
        %v7567 = vsel %vm602, %v7526, 0.0
        %v7568 = vsel %vm601, %v7543, 0.0
        %v7569 = vsel %vm602, %v7527, 0.0
        %v7570 = vsel %vm601, %v7544, 0.0
        %v7571 = vsel %vm602, %v7528, 0.0
        %v7572 = vsel %vm601, %v7545, 0.0
        %v7573 = vsel %vm602, %v7529, 0.0
        %v7574 = vsel %vm601, %v7546, 0.0
        %v7575 = vsel %vm602, %v7530, 0.0
        %v7576 = vsel %vm601, %v7547, 0.0
        %v7577 = vsel %vm602, %v7531, 0.0
        %v7578 = vsel %vm601, %v7548, 0.0
        %v7579 = vsel %vm602, %v7532, 0.0
        %v7580 = vsel %vm601, %v7549, 0.0
        %v7581 = vsel %vm602, %v7533, 0.0
        %v7582 = vpack.c.bf16 %v7552, %v7550
        %v7583 = vpack.c.bf16 %v7553, %v7551
        %v7584 = vpack.c.bf16 %v7556, %v7554
        %v7585 = vpack.c.bf16 %v7557, %v7555
        %v7586 = vpack.c.bf16 %v7560, %v7558
        %v7587 = vpack.c.bf16 %v7561, %v7559
        %v7588 = vpack.c.bf16 %v7564, %v7562
        %v7589 = vpack.c.bf16 %v7565, %v7563
        %v7590 = vpack.c.bf16 %v7568, %v7566
        %v7591 = vpack.c.bf16 %v7569, %v7567
        %v7592 = vpack.c.bf16 %v7572, %v7570
        %v7593 = vpack.c.bf16 %v7573, %v7571
        %v7594 = vpack.c.bf16 %v7576, %v7574
        %v7595 = vpack.c.bf16 %v7577, %v7575
        %v7596 = vpack.c.bf16 %v7580, %v7578
        %v7597 = vpack.c.bf16 %v7581, %v7579
        %v7598 = vld [vmem:[%s16] sm:$0xf]
        %7599 = vrot.lane.b32.xlu0 %v7422, 1
        %v7600 = vpop.permute.xlu0 %7599
        %7601 = vrot.lane.b32.xlu0 %v7424, 1
        %v7602 = vpop.permute.xlu0 %7601
        %7603 = vrot.lane.b32.xlu0 %v7426, 1
        %v7604 = vpop.permute.xlu0 %7603
        %7605 = vrot.lane.b32.xlu0 %v7428, 1
        %v7606 = vpop.permute.xlu0 %7605
        %7607 = vrot.lane.b32.xlu0 %v7430, 1
        %v7608 = vpop.permute.xlu0 %7607
        %7609 = vrot.lane.b32.xlu0 %v7432, 1
        %v7610 = vpop.permute.xlu0 %7609
        %7611 = vrot.lane.b32.xlu0 %v7434, 1
        %v7612 = vpop.permute.xlu0 %7611
        %7613 = vrot.lane.b32.xlu0 %v7436, 1
        %v7614 = vpop.permute.xlu0 %7613
        %7615 = vrot.lane.b32.xlu0 %v7438, 1
        %v7616 = vpop.permute.xlu0 %7615
        %7617 = vrot.lane.b32.xlu0 %v7440, 1
        %v7618 = vpop.permute.xlu0 %7617
        %7619 = vrot.lane.b32.xlu0 %v7442, 1
        %v7620 = vpop.permute.xlu0 %7619
        %7621 = vrot.lane.b32.xlu0 %v7444, 1
        %v7622 = vpop.permute.xlu0 %7621
        %7623 = vrot.lane.b32.xlu0 %v7446, 1
        %v7624 = vpop.permute.xlu0 %7623
        %7625 = vrot.lane.b32.xlu0 %v7448, 1
        %v7626 = vpop.permute.xlu0 %7625
        %7627 = vrot.lane.b32.xlu0 %v7450, 1
        %v7628 = vpop.permute.xlu0 %7627
        %7629 = vrot.lane.b32.xlu0 %v7452, 1
        %v7630 = vpop.permute.xlu0 %7629
        %7631 = vrot.lane.b32.xlu0 %v7423, 1
        %v7632 = vpop.permute.xlu0 %7631
        %7633 = vrot.lane.b32.xlu0 %v7425, 1
        %v7634 = vpop.permute.xlu0 %7633
        %7635 = vrot.lane.b32.xlu0 %v7427, 1
        %v7636 = vpop.permute.xlu0 %7635
        %7637 = vrot.lane.b32.xlu0 %v7429, 1
        %v7638 = vpop.permute.xlu0 %7637
        %7639 = vrot.lane.b32.xlu0 %v7431, 1
        %v7640 = vpop.permute.xlu0 %7639
        %7641 = vrot.lane.b32.xlu0 %v7433, 1
        %v7642 = vpop.permute.xlu0 %7641
        %7643 = vrot.lane.b32.xlu0 %v7435, 1
        %v7644 = vpop.permute.xlu0 %7643
        %7645 = vrot.lane.b32.xlu0 %v7437, 1
        %v7646 = vpop.permute.xlu0 %7645
        %7647 = vrot.lane.b32.xlu0 %v7439, 1
        %v7648 = vpop.permute.xlu0 %7647
        %7649 = vrot.lane.b32.xlu0 %v7441, 1
        %v7650 = vpop.permute.xlu0 %7649
        %7651 = vrot.lane.b32.xlu0 %v7443, 1
        %v7652 = vpop.permute.xlu0 %7651
        %7653 = vrot.lane.b32.xlu0 %v7445, 1
        %v7654 = vpop.permute.xlu0 %7653
        %7655 = vrot.lane.b32.xlu0 %v7447, 1
        %v7656 = vpop.permute.xlu0 %7655
        %7657 = vrot.lane.b32.xlu0 %v7449, 1
        %v7658 = vpop.permute.xlu0 %7657
        %7659 = vrot.lane.b32.xlu0 %v7451, 1
        %v7660 = vpop.permute.xlu0 %7659
        %7661 = vrot.lane.b32.xlu0 %v7453, 1
        %v7662 = vpop.permute.xlu0 %7661
        %v7663 = vsel %vm627, %v7600, %v7632
        %v7664 = vsel %vm627, %v7602, %v7634
        %v7665 = vsel %vm627, %v7604, %v7636
        %v7666 = vsel %vm627, %v7606, %v7638
        %v7667 = vsel %vm627, %v7608, %v7640
        %v7668 = vsel %vm627, %v7610, %v7642
        %v7669 = vsel %vm627, %v7612, %v7644
        %v7670 = vsel %vm627, %v7614, %v7646
        %v7671 = vsel %vm627, %v7616, %v7648
        %v7672 = vsel %vm627, %v7618, %v7650
        %v7673 = vsel %vm627, %v7620, %v7652
        %v7674 = vsel %vm627, %v7622, %v7654
        %v7675 = vsel %vm627, %v7624, %v7656
        %v7676 = vsel %vm627, %v7626, %v7658
        %v7677 = vsel %vm627, %v7628, %v7660
        %v7678 = vsel %vm627, %v7630, %v7662
        %v7679 = vsel %vm627, %v7632, %v7600
        %v7680 = vsel %vm627, %v7634, %v7602
        %v7681 = vsel %vm627, %v7636, %v7604
        %v7682 = vsel %vm627, %v7638, %v7606
        %v7683 = vsel %vm627, %v7640, %v7608
        %v7684 = vsel %vm627, %v7642, %v7610
        %v7685 = vsel %vm627, %v7644, %v7612
        %v7686 = vsel %vm627, %v7646, %v7614
        %v7687 = vsel %vm627, %v7648, %v7616
        %v7688 = vsel %vm627, %v7650, %v7618
        %v7689 = vsel %vm627, %v7652, %v7620
        %v7690 = vsel %vm627, %v7654, %v7622
        %v7691 = vsel %vm627, %v7656, %v7624
        %v7692 = vsel %vm627, %v7658, %v7626
        %v7693 = vsel %vm627, %v7660, %v7628
        %v7694 = vsel %vm627, %v7662, %v7630
        %v7695 = vsel %vm630, %v7679, 0.0
        %v7696 = vsel %vm631, %v7663, 0.0
        %v7697 = vsel %vm630, %v7680, 0.0
        %v7698 = vsel %vm631, %v7664, 0.0
        %v7699 = vsel %vm630, %v7681, 0.0
        %v7700 = vsel %vm631, %v7665, 0.0
        %v7701 = vsel %vm630, %v7682, 0.0
        %v7702 = vsel %vm631, %v7666, 0.0
        %v7703 = vsel %vm630, %v7683, 0.0
        %v7704 = vsel %vm631, %v7667, 0.0
        %v7705 = vsel %vm630, %v7684, 0.0
        %v7706 = vsel %vm631, %v7668, 0.0
        %v7707 = vsel %vm630, %v7685, 0.0
        %v7708 = vsel %vm631, %v7669, 0.0
        %v7709 = vsel %vm630, %v7686, 0.0
        %v7710 = vsel %vm631, %v7670, 0.0
        %v7711 = vsel %vm630, %v7687, 0.0
        %v7712 = vsel %vm631, %v7671, 0.0
        %v7713 = vsel %vm630, %v7688, 0.0
        %v7714 = vsel %vm631, %v7672, 0.0
        %v7715 = vsel %vm630, %v7689, 0.0
        %v7716 = vsel %vm631, %v7673, 0.0
        %v7717 = vsel %vm630, %v7690, 0.0
        %v7718 = vsel %vm631, %v7674, 0.0
        %v7719 = vsel %vm630, %v7691, 0.0
        %v7720 = vsel %vm631, %v7675, 0.0
        %v7721 = vsel %vm630, %v7692, 0.0
        %v7722 = vsel %vm631, %v7676, 0.0
        %v7723 = vsel %vm630, %v7693, 0.0
        %v7724 = vsel %vm631, %v7677, 0.0
        %v7725 = vsel %vm630, %v7694, 0.0
        %v7726 = vsel %vm631, %v7678, 0.0
        %v7727 = vpack.c.bf16 %v7697, %v7695
        %v7728 = vpack.c.bf16 %v7698, %v7696
        %v7729 = vpack.c.bf16 %v7701, %v7699
        %v7730 = vpack.c.bf16 %v7702, %v7700
        %v7731 = vpack.c.bf16 %v7705, %v7703
        %v7732 = vpack.c.bf16 %v7706, %v7704
        %v7733 = vpack.c.bf16 %v7709, %v7707
        %v7734 = vpack.c.bf16 %v7710, %v7708
        %v7735 = vpack.c.bf16 %v7713, %v7711
        %v7736 = vpack.c.bf16 %v7714, %v7712
        %v7737 = vpack.c.bf16 %v7717, %v7715
        %v7738 = vpack.c.bf16 %v7718, %v7716
        %v7739 = vpack.c.bf16 %v7721, %v7719
        %v7740 = vpack.c.bf16 %v7722, %v7720
        %v7741 = vpack.c.bf16 %v7725, %v7723
        %v7742 = vpack.c.bf16 %v7726, %v7724
        %s7743 = scalar_lea.vmem %s16, 4
        %v7744 = vld [vmem:[%s7743] sm:$0xf]
        %7745 = vmatprep.subr.bf16.mxu0 %v7728
        %7746 = vmatpush1.bf16.msra.mxu0 %v7727
        %7747 = vmatprep.subr.bf16.mxu0 %v7730
        %7748 = vmatpush1.bf16.msra.mxu0 %v7729
        %7749 = vmatprep.subr.bf16.mxu0 %v7732
        %7750 = vmatpush1.bf16.msra.mxu0 %v7731
        %7751 = vmatprep.subr.bf16.mxu0 %v7734
        %7752 = vmatpush1.bf16.msra.mxu0 %v7733
        %7753 = vmatprep.subr.bf16.mxu0 %v7736
        %7754 = vmatpush1.bf16.msra.mxu0 %v7735
        %7755 = vmatprep.subr.bf16.mxu0 %v7738
        %7756 = vmatpush1.bf16.msra.mxu0 %v7737
        %7757 = vmatprep.subr.bf16.mxu0 %v7740
        %7758 = vmatpush1.bf16.msra.mxu0 %v7739
        %7759 = vmatprep.subr.bf16.mxu0 %v7742
        %7760 = vmatpush1.bf16.msra.mxu0 %v7741
        %7761 = vmatprep.subr.bf16.mxu0 0
        %7762 = vmatpush1.bf16.msra.mxu0 0
        %7763 = vmatprep.subr.bf16.mxu0 0
        %7764 = vmatpush1.bf16.msra.mxu0 0
        %7765 = vmatprep.subr.bf16.mxu0 0
        %7766 = vmatpush1.bf16.msra.mxu0 0
        %7767 = vmatprep.subr.bf16.mxu0 0
        %7768 = vmatpush1.bf16.msra.mxu0 0
        %7769 = vmatprep.subr.bf16.mxu0 0
        %7770 = vmatpush1.bf16.msra.mxu0 0
        %7771 = vmatprep.subr.bf16.mxu0 0
        %7772 = vmatpush1.bf16.msra.mxu0 0
        %7773 = vmatprep.subr.bf16.mxu0 0
        %7774 = vmatpush1.bf16.msra.mxu0 0
        %7775 = vmatprep.subr.bf16.mxu0 0
        %7776 = vmatpush1.bf16.msra.mxu0 0
        %7777 = vmatprep.mubr.bf16.mxu0 0
        %7778 = vmatmul.mubr.bf16.gmra.mrb[0].mxu0 %v7744
        %v7779 = vpop.f32.mrb[0].mxu0
        %v7780 = vadd.f32 0.0, %v7779
        %v7781 = vpop.f32.mrb[0].mxu0
        %v7782 = vadd.f32 0.0, %v7781
        %v7783 = vpop.f32.mrb[0].mxu0
        %v7784 = vpop.f32.mrb[0].mxu0
        %7785 = vdwg.mxu0
        %7786 = vmatprep.subr.bf16.mxu0 %v7583
        %7787 = vmatpush1.bf16.msra.mxu0 %v7582
        %7788 = vmatprep.subr.bf16.mxu0 %v7585
        %7789 = vmatpush1.bf16.msra.mxu0 %v7584
        %7790 = vmatprep.subr.bf16.mxu0 %v7587
        %7791 = vmatpush1.bf16.msra.mxu0 %v7586
        %7792 = vmatprep.subr.bf16.mxu0 %v7589
        %7793 = vmatpush1.bf16.msra.mxu0 %v7588
        %7794 = vmatprep.subr.bf16.mxu0 %v7591
        %7795 = vmatpush1.bf16.msra.mxu0 %v7590
        %7796 = vmatprep.subr.bf16.mxu0 %v7593
        %7797 = vmatpush1.bf16.msra.mxu0 %v7592
        %7798 = vmatprep.subr.bf16.mxu0 %v7595
        %7799 = vmatpush1.bf16.msra.mxu0 %v7594
        %7800 = vmatprep.subr.bf16.mxu0 %v7597
        %7801 = vmatpush1.bf16.msra.mxu0 %v7596
        %7802 = vmatprep.subr.bf16.mxu0 0
        %7803 = vmatpush1.bf16.msra.mxu0 0
        %7804 = vmatprep.subr.bf16.mxu0 0
        %7805 = vmatpush1.bf16.msra.mxu0 0
        %7806 = vmatprep.subr.bf16.mxu0 0
        %7807 = vmatpush1.bf16.msra.mxu0 0
        %7808 = vmatprep.subr.bf16.mxu0 0
        %7809 = vmatpush1.bf16.msra.mxu0 0
        %7810 = vmatprep.subr.bf16.mxu0 0
        %7811 = vmatpush1.bf16.msra.mxu0 0
        %7812 = vmatprep.subr.bf16.mxu0 0
        %7813 = vmatpush1.bf16.msra.mxu0 0
        %7814 = vmatprep.subr.bf16.mxu0 0
        %7815 = vmatpush1.bf16.msra.mxu0 0
        %7816 = vmatprep.subr.bf16.mxu0 0
        %7817 = vmatpush1.bf16.msra.mxu0 0
        %7818 = vmatprep.mubr.bf16.mxu0 0
        %7819 = vmatmul.mubr.bf16.gmra.mrb[0].mxu0 %v7598
        %v7820 = vpop.f32.mrb[0].mxu0
        %v7821 = vadd.f32 %v7780, %v7820
        %v7822 = vpop.f32.mrb[0].mxu0
        %v7823 = vadd.f32 %v7782, %v7822
        %v7824 = vpop.f32.mrb[0].mxu0
        %v7825 = vpop.f32.mrb[0].mxu0
        %7826 = vdwg.mxu0
        %v7827 = vpack.c.bf16 %v7424, %v7422
        %v7828 = vpack.c.bf16 %v7425, %v7423
        %v7829 = vpack.c.bf16 %v7428, %v7426
        %v7830 = vpack.c.bf16 %v7429, %v7427
        %v7831 = vpack.c.bf16 %v7432, %v7430
        %v7832 = vpack.c.bf16 %v7433, %v7431
        %v7833 = vpack.c.bf16 %v7436, %v7434
        %v7834 = vpack.c.bf16 %v7437, %v7435
        %v7835 = vpack.c.bf16 %v7440, %v7438
        %v7836 = vpack.c.bf16 %v7441, %v7439
        %v7837 = vpack.c.bf16 %v7444, %v7442
        %v7838 = vpack.c.bf16 %v7445, %v7443
        %v7839 = vpack.c.bf16 %v7448, %v7446
        %v7840 = vpack.c.bf16 %v7449, %v7447
        %v7841 = vpack.c.bf16 %v7452, %v7450
        %v7842 = vpack.c.bf16 %v7453, %v7451
        %s7843 = scalar_lea.vmem %s16, 8
        %v7844 = vld [vmem:[%s7843] sm:$0xf]
        %7845 = vmatprep.subr.bf16.mxu0 %v7828
        %7846 = vmatpush1.bf16.msra.mxu0 %v7827
        %7847 = vmatprep.subr.bf16.mxu0 %v7830
        %7848 = vmatpush1.bf16.msra.mxu0 %v7829
        %7849 = vmatprep.subr.bf16.mxu0 %v7832
        %7850 = vmatpush1.bf16.msra.mxu0 %v7831
        %7851 = vmatprep.subr.bf16.mxu0 %v7834
        %7852 = vmatpush1.bf16.msra.mxu0 %v7833
        %7853 = vmatprep.subr.bf16.mxu0 %v7836
        %7854 = vmatpush1.bf16.msra.mxu0 %v7835
        %7855 = vmatprep.subr.bf16.mxu0 %v7838
        %7856 = vmatpush1.bf16.msra.mxu0 %v7837
        %7857 = vmatprep.subr.bf16.mxu0 %v7840
        %7858 = vmatpush1.bf16.msra.mxu0 %v7839
        %7859 = vmatprep.subr.bf16.mxu0 %v7842
        %7860 = vmatpush1.bf16.msra.mxu0 %v7841
        %7861 = vmatprep.subr.bf16.mxu0 0
        %7862 = vmatpush1.bf16.msra.mxu0 0
        %7863 = vmatprep.subr.bf16.mxu0 0
        %7864 = vmatpush1.bf16.msra.mxu0 0
        %7865 = vmatprep.subr.bf16.mxu0 0
        %7866 = vmatpush1.bf16.msra.mxu0 0
        %7867 = vmatprep.subr.bf16.mxu0 0
        %7868 = vmatpush1.bf16.msra.mxu0 0
        %7869 = vmatprep.subr.bf16.mxu0 0
        %7870 = vmatpush1.bf16.msra.mxu0 0
        %7871 = vmatprep.subr.bf16.mxu0 0
        %7872 = vmatpush1.bf16.msra.mxu0 0
        %7873 = vmatprep.subr.bf16.mxu0 0
        %7874 = vmatpush1.bf16.msra.mxu0 0
        %7875 = vmatprep.subr.bf16.mxu0 0
        %7876 = vmatpush1.bf16.msra.mxu0 0
        %7877 = vmatprep.mubr.bf16.mxu0 0
        %7878 = vmatmul.mubr.bf16.gmra.mrb[0].mxu0 %v7844
        %v7879 = vpop.f32.mrb[0].mxu0
        %v7880 = vadd.f32 0.0, %v7879
        %v7881 = vpop.f32.mrb[0].mxu0
        %v7882 = vadd.f32 0.0, %v7881
        %v7883 = vpop.f32.mrb[0].mxu0
        %v7884 = vpop.f32.mrb[0].mxu0
        %7885 = vdwg.mxu0
        %v7886 = vadd.f32 %v7821, %v7880
        %v7887 = vadd.f32 %v7823, %v7882
        %7888 = vrot.lane.b32.xlu0 %v7422, 127
        %v7889 = vpop.permute.xlu0 %7888
        %7890 = vrot.lane.b32.xlu0 %v7424, 127
        %v7891 = vpop.permute.xlu0 %7890
        %7892 = vrot.lane.b32.xlu0 %v7426, 127
        %v7893 = vpop.permute.xlu0 %7892
        %7894 = vrot.lane.b32.xlu0 %v7428, 127
        %v7895 = vpop.permute.xlu0 %7894
        %7896 = vrot.lane.b32.xlu0 %v7430, 127
        %v7897 = vpop.permute.xlu0 %7896
        %7898 = vrot.lane.b32.xlu0 %v7432, 127
        %v7899 = vpop.permute.xlu0 %7898
        %7900 = vrot.lane.b32.xlu0 %v7434, 127
        %v7901 = vpop.permute.xlu0 %7900
        %7902 = vrot.lane.b32.xlu0 %v7436, 127
        %v7903 = vpop.permute.xlu0 %7902
        %7904 = vrot.lane.b32.xlu0 %v7438, 127
        %v7905 = vpop.permute.xlu0 %7904
        %7906 = vrot.lane.b32.xlu0 %v7440, 127
        %v7907 = vpop.permute.xlu0 %7906
        %7908 = vrot.lane.b32.xlu0 %v7442, 127
        %v7909 = vpop.permute.xlu0 %7908
        %7910 = vrot.lane.b32.xlu0 %v7444, 127
        %v7911 = vpop.permute.xlu0 %7910
        %7912 = vrot.lane.b32.xlu0 %v7446, 127
        %v7913 = vpop.permute.xlu0 %7912
        %7914 = vrot.lane.b32.xlu0 %v7448, 127
        %v7915 = vpop.permute.xlu0 %7914
        %7916 = vrot.lane.b32.xlu0 %v7450, 127
        %v7917 = vpop.permute.xlu0 %7916
        %7918 = vrot.lane.b32.xlu0 %v7452, 127
        %v7919 = vpop.permute.xlu0 %7918
        %7920 = vrot.lane.b32.xlu0 %v7423, 127
        %v7921 = vpop.permute.xlu0 %7920
        %7922 = vrot.lane.b32.xlu0 %v7425, 127
        %v7923 = vpop.permute.xlu0 %7922
        %7924 = vrot.lane.b32.xlu0 %v7427, 127
        %v7925 = vpop.permute.xlu0 %7924
        %7926 = vrot.lane.b32.xlu0 %v7429, 127
        %v7927 = vpop.permute.xlu0 %7926
        %7928 = vrot.lane.b32.xlu0 %v7431, 127
        %v7929 = vpop.permute.xlu0 %7928
        %7930 = vrot.lane.b32.xlu0 %v7433, 127
        %v7931 = vpop.permute.xlu0 %7930
        %7932 = vrot.lane.b32.xlu0 %v7435, 127
        %v7933 = vpop.permute.xlu0 %7932
        %7934 = vrot.lane.b32.xlu0 %v7437, 127
        %v7935 = vpop.permute.xlu0 %7934
        %7936 = vrot.lane.b32.xlu0 %v7439, 127
        %v7937 = vpop.permute.xlu0 %7936
        %7938 = vrot.lane.b32.xlu0 %v7441, 127
        %v7939 = vpop.permute.xlu0 %7938
        %7940 = vrot.lane.b32.xlu0 %v7443, 127
        %v7941 = vpop.permute.xlu0 %7940
        %7942 = vrot.lane.b32.xlu0 %v7445, 127
        %v7943 = vpop.permute.xlu0 %7942
        %7944 = vrot.lane.b32.xlu0 %v7447, 127
        %v7945 = vpop.permute.xlu0 %7944
        %7946 = vrot.lane.b32.xlu0 %v7449, 127
        %v7947 = vpop.permute.xlu0 %7946
        %7948 = vrot.lane.b32.xlu0 %v7451, 127
        %v7949 = vpop.permute.xlu0 %7948
        %7950 = vrot.lane.b32.xlu0 %v7453, 127
        %v7951 = vpop.permute.xlu0 %7950
        %v7952 = vsel %vm1259, %v7889, %v7921
        %v7953 = vsel %vm1259, %v7891, %v7923
        %v7954 = vsel %vm1259, %v7893, %v7925
        %v7955 = vsel %vm1259, %v7895, %v7927
        %v7956 = vsel %vm1259, %v7897, %v7929
        %v7957 = vsel %vm1259, %v7899, %v7931
        %v7958 = vsel %vm1259, %v7901, %v7933
        %v7959 = vsel %vm1259, %v7903, %v7935
        %v7960 = vsel %vm1259, %v7905, %v7937
        %v7961 = vsel %vm1259, %v7907, %v7939
        %v7962 = vsel %vm1259, %v7909, %v7941
        %v7963 = vsel %vm1259, %v7911, %v7943
        %v7964 = vsel %vm1259, %v7913, %v7945
        %v7965 = vsel %vm1259, %v7915, %v7947
        %v7966 = vsel %vm1259, %v7917, %v7949
        %v7967 = vsel %vm1259, %v7919, %v7951
        %v7968 = vsel %vm1259, %v7921, %v7889
        %v7969 = vsel %vm1259, %v7923, %v7891
        %v7970 = vsel %vm1259, %v7925, %v7893
        %v7971 = vsel %vm1259, %v7927, %v7895
        %v7972 = vsel %vm1259, %v7929, %v7897
        %v7973 = vsel %vm1259, %v7931, %v7899
        %v7974 = vsel %vm1259, %v7933, %v7901
        %v7975 = vsel %vm1259, %v7935, %v7903
        %v7976 = vsel %vm1259, %v7937, %v7905
        %v7977 = vsel %vm1259, %v7939, %v7907
        %v7978 = vsel %vm1259, %v7941, %v7909
        %v7979 = vsel %vm1259, %v7943, %v7911
        %v7980 = vsel %vm1259, %v7945, %v7913
        %v7981 = vsel %vm1259, %v7947, %v7915
        %v7982 = vsel %vm1259, %v7949, %v7917
        %v7983 = vsel %vm1259, %v7951, %v7919
        %v7984 = vsel %vm1262, %v7952, 0.0
        %v7985 = vsel %vm1263, %v7968, 0.0
        %v7986 = vsel %vm1262, %v7953, 0.0
        %v7987 = vsel %vm1263, %v7969, 0.0
        %v7988 = vsel %vm1262, %v7954, 0.0
        %v7989 = vsel %vm1263, %v7970, 0.0
        %v7990 = vsel %vm1262, %v7955, 0.0
        %v7991 = vsel %vm1263, %v7971, 0.0
        %v7992 = vsel %vm1262, %v7956, 0.0
        %v7993 = vsel %vm1263, %v7972, 0.0
        %v7994 = vsel %vm1262, %v7957, 0.0
        %v7995 = vsel %vm1263, %v7973, 0.0
        %v7996 = vsel %vm1262, %v7958, 0.0
        %v7997 = vsel %vm1263, %v7974, 0.0
        %v7998 = vsel %vm1262, %v7959, 0.0
        %v7999 = vsel %vm1263, %v7975, 0.0
        %v8000 = vsel %vm1262, %v7960, 0.0
        %v8001 = vsel %vm1263, %v7976, 0.0
        %v8002 = vsel %vm1262, %v7961, 0.0
        %v8003 = vsel %vm1263, %v7977, 0.0
        %v8004 = vsel %vm1262, %v7962, 0.0
        %v8005 = vsel %vm1263, %v7978, 0.0
        %v8006 = vsel %vm1262, %v7963, 0.0
        %v8007 = vsel %vm1263, %v7979, 0.0
        %v8008 = vsel %vm1262, %v7964, 0.0
        %v8009 = vsel %vm1263, %v7980, 0.0
        %v8010 = vsel %vm1262, %v7965, 0.0
        %v8011 = vsel %vm1263, %v7981, 0.0
        %v8012 = vsel %vm1262, %v7966, 0.0
        %v8013 = vsel %vm1263, %v7982, 0.0
        %v8014 = vsel %vm1262, %v7967, 0.0
        %v8015 = vsel %vm1263, %v7983, 0.0
        %v8016 = vpack.c.bf16 %v7986, %v7984
        %v8017 = vpack.c.bf16 %v7987, %v7985
        %v8018 = vpack.c.bf16 %v7990, %v7988
        %v8019 = vpack.c.bf16 %v7991, %v7989
        %v8020 = vpack.c.bf16 %v7994, %v7992
        %v8021 = vpack.c.bf16 %v7995, %v7993
        %v8022 = vpack.c.bf16 %v7998, %v7996
        %v8023 = vpack.c.bf16 %v7999, %v7997
        %v8024 = vpack.c.bf16 %v8002, %v8000
        %v8025 = vpack.c.bf16 %v8003, %v8001
        %v8026 = vpack.c.bf16 %v8006, %v8004
        %v8027 = vpack.c.bf16 %v8007, %v8005
        %v8028 = vpack.c.bf16 %v8010, %v8008
        %v8029 = vpack.c.bf16 %v8011, %v8009
        %v8030 = vpack.c.bf16 %v8014, %v8012
        %v8031 = vpack.c.bf16 %v8015, %v8013
        %s8032 = scalar_lea.vmem %s16, 12
        %v8033 = vld [vmem:[%s8032] sm:$0xf]
        %8034 = vmatprep.subr.bf16.mxu0 %v8017
        %8035 = vmatpush1.bf16.msra.mxu0 %v8016
        %8036 = vmatprep.subr.bf16.mxu0 %v8019
        %8037 = vmatpush1.bf16.msra.mxu0 %v8018
        %8038 = vmatprep.subr.bf16.mxu0 %v8021
        %8039 = vmatpush1.bf16.msra.mxu0 %v8020
        %8040 = vmatprep.subr.bf16.mxu0 %v8023
        %8041 = vmatpush1.bf16.msra.mxu0 %v8022
        %8042 = vmatprep.subr.bf16.mxu0 %v8025
        %8043 = vmatpush1.bf16.msra.mxu0 %v8024
        %8044 = vmatprep.subr.bf16.mxu0 %v8027
        %8045 = vmatpush1.bf16.msra.mxu0 %v8026
        %8046 = vmatprep.subr.bf16.mxu0 %v8029
        %8047 = vmatpush1.bf16.msra.mxu0 %v8028
        %8048 = vmatprep.subr.bf16.mxu0 %v8031
        %8049 = vmatpush1.bf16.msra.mxu0 %v8030
        %8050 = vmatprep.subr.bf16.mxu0 0
        %8051 = vmatpush1.bf16.msra.mxu0 0
        %8052 = vmatprep.subr.bf16.mxu0 0
        %8053 = vmatpush1.bf16.msra.mxu0 0
        %8054 = vmatprep.subr.bf16.mxu0 0
        %8055 = vmatpush1.bf16.msra.mxu0 0
        %8056 = vmatprep.subr.bf16.mxu0 0
        %8057 = vmatpush1.bf16.msra.mxu0 0
        %8058 = vmatprep.subr.bf16.mxu0 0
        %8059 = vmatpush1.bf16.msra.mxu0 0
        %8060 = vmatprep.subr.bf16.mxu0 0
        %8061 = vmatpush1.bf16.msra.mxu0 0
        %8062 = vmatprep.subr.bf16.mxu0 0
        %8063 = vmatpush1.bf16.msra.mxu0 0
        %8064 = vmatprep.subr.bf16.mxu0 0
        %8065 = vmatpush1.bf16.msra.mxu0 0
        %8066 = vmatprep.mubr.bf16.mxu0 0
        %8067 = vmatmul.mubr.bf16.gmra.mrb[0].mxu0 %v8033
        %v8068 = vpop.f32.mrb[0].mxu0
        %v8069 = vadd.f32 0.0, %v8068
        %v8070 = vpop.f32.mrb[0].mxu0
        %v8071 = vadd.f32 0.0, %v8070
        %v8072 = vpop.f32.mrb[0].mxu0
        %v8073 = vpop.f32.mrb[0].mxu0
        %8074 = vdwg.mxu0
        %v8075 = vadd.f32 %v7886, %v8069
        %v8076 = vadd.f32 %v7887, %v8071
        %8077 = vrot.lane.b32.xlu0 %v7422, 126
        %v8078 = vpop.permute.xlu0 %8077
        %8079 = vrot.lane.b32.xlu0 %v7424, 126
        %v8080 = vpop.permute.xlu0 %8079
        %8081 = vrot.lane.b32.xlu0 %v7426, 126
        %v8082 = vpop.permute.xlu0 %8081
        %8083 = vrot.lane.b32.xlu0 %v7428, 126
        %v8084 = vpop.permute.xlu0 %8083
        %8085 = vrot.lane.b32.xlu0 %v7430, 126
        %v8086 = vpop.permute.xlu0 %8085
        %8087 = vrot.lane.b32.xlu0 %v7432, 126
        %v8088 = vpop.permute.xlu0 %8087
        %8089 = vrot.lane.b32.xlu0 %v7434, 126
        %v8090 = vpop.permute.xlu0 %8089
        %8091 = vrot.lane.b32.xlu0 %v7436, 126
        %v8092 = vpop.permute.xlu0 %8091
        %8093 = vrot.lane.b32.xlu0 %v7438, 126
        %v8094 = vpop.permute.xlu0 %8093
        %8095 = vrot.lane.b32.xlu0 %v7440, 126
        %v8096 = vpop.permute.xlu0 %8095
        %8097 = vrot.lane.b32.xlu0 %v7442, 126
        %v8098 = vpop.permute.xlu0 %8097
        %8099 = vrot.lane.b32.xlu0 %v7444, 126
        %v8100 = vpop.permute.xlu0 %8099
        %8101 = vrot.lane.b32.xlu0 %v7446, 126
        %v8102 = vpop.permute.xlu0 %8101
        %8103 = vrot.lane.b32.xlu0 %v7448, 126
        %v8104 = vpop.permute.xlu0 %8103
        %8105 = vrot.lane.b32.xlu0 %v7450, 126
        %v8106 = vpop.permute.xlu0 %8105
        %8107 = vrot.lane.b32.xlu0 %v7452, 126
        %v8108 = vpop.permute.xlu0 %8107
        %8109 = vrot.lane.b32.xlu0 %v7423, 126
        %v8110 = vpop.permute.xlu0 %8109
        %8111 = vrot.lane.b32.xlu0 %v7425, 126
        %v8112 = vpop.permute.xlu0 %8111
        %8113 = vrot.lane.b32.xlu0 %v7427, 126
        %v8114 = vpop.permute.xlu0 %8113
        %8115 = vrot.lane.b32.xlu0 %v7429, 126
        %v8116 = vpop.permute.xlu0 %8115
        %8117 = vrot.lane.b32.xlu0 %v7431, 126
        %v8118 = vpop.permute.xlu0 %8117
        %8119 = vrot.lane.b32.xlu0 %v7433, 126
        %v8120 = vpop.permute.xlu0 %8119
        %8121 = vrot.lane.b32.xlu0 %v7435, 126
        %v8122 = vpop.permute.xlu0 %8121
        %8123 = vrot.lane.b32.xlu0 %v7437, 126
        %v8124 = vpop.permute.xlu0 %8123
        %8125 = vrot.lane.b32.xlu0 %v7439, 126
        %v8126 = vpop.permute.xlu0 %8125
        %8127 = vrot.lane.b32.xlu0 %v7441, 126
        %v8128 = vpop.permute.xlu0 %8127
        %8129 = vrot.lane.b32.xlu0 %v7443, 126
        %v8130 = vpop.permute.xlu0 %8129
        %8131 = vrot.lane.b32.xlu0 %v7445, 126
        %v8132 = vpop.permute.xlu0 %8131
        %8133 = vrot.lane.b32.xlu0 %v7447, 126
        %v8134 = vpop.permute.xlu0 %8133
        %8135 = vrot.lane.b32.xlu0 %v7449, 126
        %v8136 = vpop.permute.xlu0 %8135
        %8137 = vrot.lane.b32.xlu0 %v7451, 126
        %v8138 = vpop.permute.xlu0 %8137
        %8139 = vrot.lane.b32.xlu0 %v7453, 126
        %v8140 = vpop.permute.xlu0 %8139
        %v8141 = vsel %vm1504, %v8078, %v8110
        %v8142 = vsel %vm1504, %v8080, %v8112
        %v8143 = vsel %vm1504, %v8082, %v8114
        %v8144 = vsel %vm1504, %v8084, %v8116
        %v8145 = vsel %vm1504, %v8086, %v8118
        %v8146 = vsel %vm1504, %v8088, %v8120
        %v8147 = vsel %vm1504, %v8090, %v8122
        %v8148 = vsel %vm1504, %v8092, %v8124
        %v8149 = vsel %vm1504, %v8094, %v8126
        %v8150 = vsel %vm1504, %v8096, %v8128
        %v8151 = vsel %vm1504, %v8098, %v8130
        %v8152 = vsel %vm1504, %v8100, %v8132
        %v8153 = vsel %vm1504, %v8102, %v8134
        %v8154 = vsel %vm1504, %v8104, %v8136
        %v8155 = vsel %vm1504, %v8106, %v8138
        %v8156 = vsel %vm1504, %v8108, %v8140
        %v8157 = vsel %vm1504, %v8110, %v8078
        %v8158 = vsel %vm1504, %v8112, %v8080
        %v8159 = vsel %vm1504, %v8114, %v8082
        %v8160 = vsel %vm1504, %v8116, %v8084
        %v8161 = vsel %vm1504, %v8118, %v8086
        %v8162 = vsel %vm1504, %v8120, %v8088
        %v8163 = vsel %vm1504, %v8122, %v8090
        %v8164 = vsel %vm1504, %v8124, %v8092
        %v8165 = vsel %vm1504, %v8126, %v8094
        %v8166 = vsel %vm1504, %v8128, %v8096
        %v8167 = vsel %vm1504, %v8130, %v8098
        %v8168 = vsel %vm1504, %v8132, %v8100
        %v8169 = vsel %vm1504, %v8134, %v8102
        %v8170 = vsel %vm1504, %v8136, %v8104
        %v8171 = vsel %vm1504, %v8138, %v8106
        %v8172 = vsel %vm1504, %v8140, %v8108
        %v8173 = vsel %vm1507, %v8141, 0.0
        %v8174 = vsel %vm1508, %v8157, 0.0
        %v8175 = vsel %vm1507, %v8142, 0.0
        %v8176 = vsel %vm1508, %v8158, 0.0
        %v8177 = vsel %vm1507, %v8143, 0.0
        %v8178 = vsel %vm1508, %v8159, 0.0
        %v8179 = vsel %vm1507, %v8144, 0.0
        %v8180 = vsel %vm1508, %v8160, 0.0
        %v8181 = vsel %vm1507, %v8145, 0.0
        %v8182 = vsel %vm1508, %v8161, 0.0
        %v8183 = vsel %vm1507, %v8146, 0.0
        %v8184 = vsel %vm1508, %v8162, 0.0
        %v8185 = vsel %vm1507, %v8147, 0.0
        %v8186 = vsel %vm1508, %v8163, 0.0
        %v8187 = vsel %vm1507, %v8148, 0.0
        %v8188 = vsel %vm1508, %v8164, 0.0
        %v8189 = vsel %vm1507, %v8149, 0.0
        %v8190 = vsel %vm1508, %v8165, 0.0
        %v8191 = vsel %vm1507, %v8150, 0.0
        %v8192 = vsel %vm1508, %v8166, 0.0
        %v8193 = vsel %vm1507, %v8151, 0.0
        %v8194 = vsel %vm1508, %v8167, 0.0
        %v8195 = vsel %vm1507, %v8152, 0.0
        %v8196 = vsel %vm1508, %v8168, 0.0
        %v8197 = vsel %vm1507, %v8153, 0.0
        %v8198 = vsel %vm1508, %v8169, 0.0
        %v8199 = vsel %vm1507, %v8154, 0.0
        %v8200 = vsel %vm1508, %v8170, 0.0
        %v8201 = vsel %vm1507, %v8155, 0.0
        %v8202 = vsel %vm1508, %v8171, 0.0
        %v8203 = vsel %vm1507, %v8156, 0.0
        %v8204 = vsel %vm1508, %v8172, 0.0
        %v8205 = vpack.c.bf16 %v8175, %v8173
        %v8206 = vpack.c.bf16 %v8176, %v8174
        %v8207 = vpack.c.bf16 %v8179, %v8177
        %v8208 = vpack.c.bf16 %v8180, %v8178
        %v8209 = vpack.c.bf16 %v8183, %v8181
        %v8210 = vpack.c.bf16 %v8184, %v8182
        %v8211 = vpack.c.bf16 %v8187, %v8185
        %v8212 = vpack.c.bf16 %v8188, %v8186
        %v8213 = vpack.c.bf16 %v8191, %v8189
        %v8214 = vpack.c.bf16 %v8192, %v8190
        %v8215 = vpack.c.bf16 %v8195, %v8193
        %v8216 = vpack.c.bf16 %v8196, %v8194
        %v8217 = vpack.c.bf16 %v8199, %v8197
        %v8218 = vpack.c.bf16 %v8200, %v8198
        %v8219 = vpack.c.bf16 %v8203, %v8201
        %v8220 = vpack.c.bf16 %v8204, %v8202
        %s8221 = scalar_lea.vmem %s16, 16
        %v8222 = vld [vmem:[%s8221] sm:$0xf]
        %8223 = vmatprep.subr.bf16.mxu0 %v8206
        %8224 = vmatpush1.bf16.msra.mxu0 %v8205
        %8225 = vmatprep.subr.bf16.mxu0 %v8208
        %8226 = vmatpush1.bf16.msra.mxu0 %v8207
        %8227 = vmatprep.subr.bf16.mxu0 %v8210
        %8228 = vmatpush1.bf16.msra.mxu0 %v8209
        %8229 = vmatprep.subr.bf16.mxu0 %v8212
        %8230 = vmatpush1.bf16.msra.mxu0 %v8211
        %8231 = vmatprep.subr.bf16.mxu0 %v8214
        %8232 = vmatpush1.bf16.msra.mxu0 %v8213
        %8233 = vmatprep.subr.bf16.mxu0 %v8216
        %8234 = vmatpush1.bf16.msra.mxu0 %v8215
        %8235 = vmatprep.subr.bf16.mxu0 %v8218
        %8236 = vmatpush1.bf16.msra.mxu0 %v8217
        %8237 = vmatprep.subr.bf16.mxu0 %v8220
        %8238 = vmatpush1.bf16.msra.mxu0 %v8219
        %8239 = vmatprep.subr.bf16.mxu0 0
        %8240 = vmatpush1.bf16.msra.mxu0 0
        %8241 = vmatprep.subr.bf16.mxu0 0
        %8242 = vmatpush1.bf16.msra.mxu0 0
        %8243 = vmatprep.subr.bf16.mxu0 0
        %8244 = vmatpush1.bf16.msra.mxu0 0
        %8245 = vmatprep.subr.bf16.mxu0 0
        %8246 = vmatpush1.bf16.msra.mxu0 0
        %8247 = vmatprep.subr.bf16.mxu0 0
        %8248 = vmatpush1.bf16.msra.mxu0 0
        %8249 = vmatprep.subr.bf16.mxu0 0
        %8250 = vmatpush1.bf16.msra.mxu0 0
        %8251 = vmatprep.subr.bf16.mxu0 0
        %8252 = vmatpush1.bf16.msra.mxu0 0
        %8253 = vmatprep.subr.bf16.mxu0 0
        %8254 = vmatpush1.bf16.msra.mxu0 0
        %8255 = vmatprep.mubr.bf16.mxu0 0
        %8256 = vmatmul.mubr.bf16.gmra.mrb[0].mxu0 %v8222
        %v8257 = vpop.f32.mrb[0].mxu0
        %v8258 = vadd.f32 0.0, %v8257
        %v8259 = vpop.f32.mrb[0].mxu0
        %v8260 = vadd.f32 0.0, %v8259
        %v8261 = vpop.f32.mrb[0].mxu0
        %v8262 = vpop.f32.mrb[0].mxu0
        %8263 = vdwg.mxu0
        %v8264 = vadd.f32 %v8075, %v8258
        %v8265 = vadd.f32 %v8076, %v8260
        %v8266 = vld [vmem:[%s17] sm:$0xff]
        %8268 = vset.pattern.permute.xlu0 0
        %8269 = vperm.xlu0 %8268, %v8266
        %v8270 = vpop.permute.xlu0 %8269
        %v8272 = vadd.f32 %v8264, %v8270
        %v8273 = vadd.f32 %v8265, %v8270
        %8274 = vst [vmem:[%s582] sm:$0xff] %v8272
        %8275 = vst [vmem:[%s582 + $0x8] sm:$0xff] %v8273
        %s8276 = sand.u32 %s424, 1
        %s8277 = scalar_lea.sflag [#allocation3], %s8276
        %s8278 = sand.u32 %s424, 1
        %s8279 = smul.addr %s8278, 16
        %s8280 = scalar_lea.vmem [#allocation5], %s8279
        // Predicated region
        $region97: #{tpu_custom_call.1} parent=91 // pred_check
          %p8281 = pneg %p434
        $region98: #{tpu_custom_call.1} parent=91 // pred_check_branch
          %8283 = sbr.rel (%p8281) target = $region100
        $region99: #{tpu_custom_call.1} parent=91 // pred_region
          %s8285 = ssub.s32 256, 256
          %8286 = vsyncadd %s8277, %s8285
          %s8287 = smul.addr %s33, 2
          %s8288 = smul.addr %s8287, 128
          %s8289 = scalar_lea.hbm %s18, %s8288
          %s8291 = sshll.u32 %s8280, 4
          %s8292 = int_to_ptr.vmem [resolvable:$true] %s8291
          %8294 = dma.vmem_to_hbm [thread:$0]  %s8292, 256, %s8289, %s8277
        $region100: #{tpu_custom_call.1} parent=91 // pred_fallthru
          _
      $region92: #{tpu_custom_call.1} parent=5 // pred_fallthru
        _
      %p8295 = scmp.le.s32.totalorder 2, %s28
      // Predicated region
      $region101: #{tpu_custom_call.1} parent=5 // pred_check
        %p8296 = pneg %p8295
      $region102: #{tpu_custom_call.1} parent=5 // pred_check_branch
        %8298 = sbr.rel (%p8296) target = $region104
      $region103: #{tpu_custom_call.1} parent=5 // pred_region
        %s8299 = ssub.s32 %s28, 2
        // Predicated region
        $region105: #{tpu_custom_call.1} parent=103 // pred_check
          %p8300 = pneg %p440
        $region106: #{tpu_custom_call.1} parent=103 // pred_check_branch
          %8302 = sbr.rel (%p8300) target = $region108
        $region107: #{tpu_custom_call.1} parent=103 // pred_region
          %s8303 = sand.u32 %s425, 1
          %s8304 = scalar_lea.sflag [#allocation3], %s8303
          %s8305 = sand.u32 %s425, 1
          %s8306 = smul.addr %s8305, 16
          %s8307 = scalar_lea.vmem [#allocation5], %s8306
          %8308 = dma.done %s8304, 256
        $region108: #{tpu_custom_call.1} parent=103 // pred_fallthru
          _
      $region104: #{tpu_custom_call.1} parent=5 // pred_fallthru
        _
    $region6: #{tpu_custom_call.1} parent=1 // loop_footer
      %s32 = sadd.s32 1, %s28
    $region7: #{tpu_custom_call.1} parent=1 // loop_footer_branch
      %27 = sbr.rel target = $region3
    $region8: #{tpu_custom_call.1} parent=1 // loop_exit
      _
    %8309 = vsyncpa [#allocation3], 1
    %s8310 = scalar_lea.sflag [#allocation3], 1
    %8311 = vsyncpa %s8310, 1
    %8312 = vsyncpa [#allocation4], 1
    %s8313 = scalar_lea.sflag [#allocation4], 1
    %8314 = vsyncpa %s8313, 1

</llo_original>
